<compile_context>
chip_gen: v6e
topology: v6e:2x2x1
jax: 0.10.0
libtpu: 0.0.40
codegen_flags: <defaults>
</compile_context>

<pallas_src>
import jax
import jax.numpy as jnp
import numpy as np
from jax.experimental import pallas as pl
from jax.experimental.pallas import tpu as pltpu

# Row-tile cap: 256 (not 512) so M>=512 calls get a >=2-step "parallel" grid
# that can shard across v7x's two TensorCores.  VMEM is never the constraint
# here (largest double-buffered tile << 1 MiB on every generation).
BM_CAP = 256


def _round_up(x, m):
    return ((x + m - 1) // m) * m


def _full_spec(a):
    nd = a.ndim
    return pl.BlockSpec(a.shape, lambda i, nd=nd: (0,) * nd)


# ----------------------------------------------------------------------------
# Backbone stage kernel: relu(relu(patches @ w_pe + b_pe) @ w_mix + b_mix)
# ----------------------------------------------------------------------------
def _stage_kernel(x_ref, w1_ref, b1_ref, w2_ref, b2_ref, o_ref):
    h = jnp.dot(x_ref[...], w1_ref[...],
                preferred_element_type=jnp.float32) + b1_ref[...]
    h = jnp.maximum(h, 0.0).astype(jnp.bfloat16)
    y = jnp.dot(h, w2_ref[...],
                preferred_element_type=jnp.float32) + b2_ref[...]
    o_ref[...] = jnp.maximum(y, 0.0).astype(o_ref.dtype)


def _row_call(kernel, inputs, M, n_out, out_dtype, bm_cap=BM_CAP):
    """Row-tiled pallas_call.

    inputs: list of (kind, array), kind in {"row", "full"}:
      "row"  : [M, K] array tiled as (BM, K) blocks over a 1-D parallel grid.
      "full" : whole array resident every grid step (weights / biases).
    """
    BM = min(_round_up(M, 8), bm_cap)
    Mp = _round_up(M, BM)

    in_specs, args = [], []
    for kind, a in inputs:
        if kind == "row":
            if Mp != M:
                a = jnp.pad(a, ((0, Mp - M), (0, 0)))
            in_specs.append(pl.BlockSpec((BM, a.shape[1]), lambda i: (i, 0)))
        else:  # "full"
            in_specs.append(_full_spec(a))
        args.append(a)

    out = pl.pallas_call(
        kernel,
        out_shape=jax.ShapeDtypeStruct((Mp, n_out), out_dtype),
        grid_spec=pltpu.PrefetchScalarGridSpec(
            num_scalar_prefetch=0,
            grid=(Mp // BM,),
            in_specs=in_specs,
            out_specs=pl.BlockSpec((BM, n_out), lambda i: (i, 0)),
        ),
        compiler_params=pltpu.CompilerParams(
            dimension_semantics=("parallel",)),
    )(*args)
    return out[:M] if Mp != M else out


# ----------------------------------------------------------------------------
# Fused decoder kernel: backbone stage 4 + level-4 harmonize + 3 fuse levels
# (x2 nearest upsample done as a 0/1 matmul) + pred/target/fixation heads.
# grid=(1,): the whole decoder working set is < 1 MiB, so everything lives in
# VMEM/vregs and the only HBM traffic is the (tiny) inputs and 3 outputs.
# ----------------------------------------------------------------------------
def _decoder_kernel(s_ref,
                    fb3p_ref, fb3_ref, fb2_ref, fb1_ref, mask_ref,
                    u43_ref, u32_ref, u21_ref,
                    pe4_w, pe4_b, mix4_w, mix4_b,
                    wta4, bta4, wta3, bta3, wta2, bta2,
                    wt1, bt1,
                    wf43, bf43, wf32, bf32, wf21, bf21,
                    wh, bh,
                    pred_ref, tgt_ref, fix_ref):
    f32 = jnp.float32
    bf16 = jnp.bfloat16
    C = wt1.shape[1]  # decoder channel width

    def mm(a, w):
        return jnp.dot(a.astype(bf16), w.astype(bf16),
                       preferred_element_type=f32)

    def harmonize(fb, wta_r, bta_r, s):
        # packed [C_in, 2C] dot: columns [:C] = trans branch, [C:] = adapt.
        y = jnp.maximum(mm(fb, wta_r[...]) + bta_r[...], 0.0)
        return (1.0 - s) * y[:, :C] + s * y[:, C:]

    # ---- backbone stage 4 (patch-embed + mix), kept entirely in vregs ----
    h = jnp.maximum(mm(fb3p_ref[...], pe4_w[...]) + pe4_b[...], 0.0)
    fb4 = jnp.maximum(mm(h, mix4_w[...]) + mix4_b[...], 0.0)

    s4 = s_ref[0, 0]
    s3 = s_ref[0, 1]
    s2 = s_ref[0, 2]

    # ---- level 4: blend(trans4(fb4), adapt4(fb4)) ----
    d = harmonize(fb4, wta4, bta4, s4)

    # ---- level 3: x2 nearest upsample (0/1 matmul) + harmonize + fuse ----
    d = jnp.maximum(
        mm(mm(u43_ref[...], d) + harmonize(fb3_ref[...], wta3, bta3, s3),
           wf43[...]) + bf43[...], 0.0)

    # ---- level 2 ----
    d = jnp.maximum(
        mm(mm(u32_ref[...], d) + harmonize(fb2_ref[...], wta2, bta2, s2),
           wf32[...]) + bf32[...], 0.0)

    # ---- level 1 (no adapter / harmonizer: trans-only branch) ----
    h1 = jnp.maximum(mm(fb1_ref[...], wt1[...]) + bt1[...], 0.0)
    d = jnp.maximum(mm(mm(u21_ref[...], d) + h1, wf21[...]) + bf21[...], 0.0)

    # ---- heads (one N=3 dot):
    #   col 0: pred     = d @ w_p + b_p
    #   col 1: target   = (d * mask) @ w_t + b_t  == mask*(d @ w_t) + b_t
    #   col 2: fixation = sigmoid(d @ w_f + b_f)
    y = mm(d, wh[...])
    col = jax.lax.broadcasted_iota(jnp.int32, y.shape, 1)
    y = jnp.where(col == 1, y * mask_ref[...], y)
    y = y + bh[...]
    y = jnp.where(col == 2, jax.nn.sigmoid(y), y)
    pred_ref[...] = y[:, 0:1]
    tgt_ref[...] = y[:, 1:2]
    fix_ref[...] = y[:, 2:3]


def _run_decoder(s, fb3p, fb3, fb2, fb1, mask_s4, u43, u32, u21, p):
    M1 = fb1.shape[0]
    args = [fb3p, fb3, fb2, fb1, mask_s4, u43, u32, u21,
            p["pe4_w"], p["pe4_b"], p["mix4_w"], p["mix4_b"],
            p["wta4"], p["bta4"], p["wta3"], p["bta3"], p["wta2"], p["bta2"],
            p["wt1_w"], p["wt1_b"],
            p["wf43_w"], p["wf43_b"], p["wf32_w"], p["wf32_b"],
            p["wf21_w"], p["wf21_b"],
            p["wh"], p["bh"]]
    in_specs = ([pl.BlockSpec(memory_space=pltpu.MemorySpace.SMEM)] +
                [_full_spec(a) for a in args])
    out_shape = tuple(jax.ShapeDtypeStruct((M1, 1), jnp.float32)
                      for _ in range(3))
    out_specs = tuple(pl.BlockSpec((M1, 1), lambda i: (0, 0))
                      for _ in range(3))
    return pl.pallas_call(
        _decoder_kernel,
        out_shape=out_shape,
        grid_spec=pltpu.PrefetchScalarGridSpec(
            num_scalar_prefetch=0,
            grid=(1,),
            in_specs=in_specs,
            out_specs=list(out_specs),
        ),
        compiler_params=pltpu.CompilerParams(
            dimension_semantics=("arbitrary",)),
    )(s, *args)


# ----------------------------------------------------------------------------
# Glue ops (spatial reshapes) — plain JAX, plus trace-time constants
# ----------------------------------------------------------------------------
def extract_patches(x_nhwc, patch):
    """k x k conv with stride == k, expressed as a reshape into [M, k*k*C]."""
    N, H, W, C = x_nhwc.shape
    Ho, Wo = H // patch, W // patch
    x = x_nhwc.reshape(N, Ho, patch, Wo, patch, C)
    x = x.transpose(0, 1, 3, 2, 4, 5).reshape(N * Ho * Wo, patch * patch * C)
    return x, (N, Ho, Wo)


def avgpool(x, f):
    N, H, W, C = x.shape
    return x.reshape(N, H // f, f, W // f, f, C).mean(axis=(2, 4))


def _upsample_matrix(N, Hc, Wc):
    """0/1 matrix U so that (U @ flat_coarse) == x2 nearest-neighbour upsample
    in the flattened [N*H*W, C] layout.  Built with numpy -> compile-time
    constant (no per-forward XLA ops)."""
    Hf, Wf = 2 * Hc, 2 * Wc
    mf = np.arange(N * Hf * Wf)
    n = mf // (Hf * Wf)
    hf = (mf // Wf) % Hf
    wf = mf % Wf
    mc = (n * Hc + hf // 2) * Wc + wf // 2
    u = np.zeros((N * Hf * Wf, N * Hc * Wc), np.float32)
    u[mf, mc] = 1.0
    return jnp.asarray(u, jnp.bfloat16)


# ----------------------------------------------------------------------------
# Parameters (deterministic synthetic init, stored kernel-ready)
# ----------------------------------------------------------------------------
def init_params(key, channel=32, in_ch=3):
    cs = (8, 16, 24, 32)  # scaled-down PVT-v2-b2 stage widths (real 64/128/320/512)
    keys = iter(jax.random.split(key, 32))

    def w(fan_in, fan_out, scale=0.05):
        return (scale * jax.random.normal(next(keys), (fan_in, fan_out),
                                          jnp.float32)).astype(jnp.bfloat16)

    def b(fan_out):
        return jnp.zeros((1, fan_out), jnp.float32)

    p = {}
    # backbone stand-in (patch-embed + mix per stage)
    p["pe1_w"], p["pe1_b"] = w(4 * 4 * in_ch, cs[0]), b(cs[0])
    p["mix1_w"], p["mix1_b"] = w(cs[0], cs[0]), b(cs[0])
    p["pe2_w"], p["pe2_b"] = w(2 * 2 * cs[0], cs[1]), b(cs[1])
    p["mix2_w"], p["mix2_b"] = w(cs[1], cs[1]), b(cs[1])
    p["pe3_w"], p["pe3_b"] = w(2 * 2 * cs[1], cs[2]), b(cs[2])
    p["mix3_w"], p["mix3_b"] = w(cs[2], cs[2]), b(cs[2])
    p["pe4_w"], p["pe4_b"] = w(2 * 2 * cs[2], cs[3]), b(cs[3])
    p["mix4_w"], p["mix4_b"] = w(cs[3], cs[3]), b(cs[3])

    # decoder translation + domain-adapter projections, packed per level as
    # [C_in, 2*channel] = [ trans | adapt ] so each level is ONE MXU dot.
    def packed(c_in):
        wt = 0.05 * jax.random.normal(next(keys), (c_in, channel), jnp.float32)
        wa = 0.05 * jax.random.normal(next(keys), (c_in, channel), jnp.float32)
        return (jnp.concatenate([wt, wa], axis=1).astype(jnp.bfloat16),
                jnp.zeros((1, 2 * channel), jnp.float32))

    p["wta4"], p["bta4"] = packed(cs[3])
    p["wta3"], p["bta3"] = packed(cs[2])
    p["wta2"], p["bta2"] = packed(cs[1])
    p["wt1_w"], p["wt1_b"] = w(cs[0], channel), b(channel)

    # harmonizer fusion-weight logits for levels 4/3/2 (sigmoid(0)=0.5 blend)
    p["fw"] = jnp.zeros((1, 3), jnp.float32)

    # progressive top-down fusion convs
    p["wf43_w"], p["wf43_b"] = w(channel, channel), b(channel)
    p["wf32_w"], p["wf32_b"] = w(channel, channel), b(channel)
    p["wf21_w"], p["wf21_b"] = w(channel, channel), b(channel)

    # heads packed as one [channel, 3] matmul: pred | target | fixation
    p["wh"], p["bh"] = w(channel, 3), b(3)

    # domain classifier: only used by forward_enhanced(), never by forward()
    p["domain_cls_w"], p["domain_cls_b"] = w(cs[3], 2), b(2)
    return p


# ----------------------------------------------------------------------------
# Forward pass (mirrors EnhancedDegreeNet.forward -> (pred, target_pred, fixation))
# ----------------------------------------------------------------------------
def _stage(feat, params, idx, patch):
    xp, (N, Ho, Wo) = extract_patches(feat, patch)
    w1, b1 = params[f"pe{idx}_w"], params[f"pe{idx}_b"]
    w2, b2 = params[f"mix{idx}_w"], params[f"mix{idx}_b"]
    out = _row_call(
        _stage_kernel,
        [("row", xp), ("full", w1), ("full", b1), ("full", w2), ("full", b2)],
        M=xp.shape[0], n_out=w2.shape[1], out_dtype=jnp.bfloat16)
    return out.reshape(N, Ho, Wo, w2.shape[1])


def enhanced_degree_net_forward(params, x_nchw, mask_nchw):
    x = jnp.transpose(x_nchw, (0, 2, 3, 1)).astype(jnp.bfloat16)   # NCHW->NHWC
    mask = jnp.transpose(mask_nchw, (0, 2, 3, 1)).astype(jnp.float32)

    # ---- backbone stages 1..3 (stage 4 is fused into the decoder kernel) ----
    fb1 = _stage(x, params, "1", 4)     # [N, H/4,  W/4,  8 ]
    fb2 = _stage(fb1, params, "2", 2)   # [N, H/8,  W/8,  16]
    fb3 = _stage(fb2, params, "3", 2)   # [N, H/16, W/16, 24]

    N, Hd, Wd, _ = fb1.shape
    fb3p, (_, H4, W4) = extract_patches(fb3, 2)          # stage-4 input patches

    # x2 nearest-upsample matrices (compile-time constants)
    u43 = _upsample_matrix(N, H4, W4)                    # lvl4 grid -> lvl3 grid
    u32 = _upsample_matrix(N, fb3.shape[1], fb3.shape[2])  # lvl3 -> lvl2
    u21 = _upsample_matrix(N, fb2.shape[1], fb2.shape[2])  # lvl2 -> lvl1

    mask_s4 = avgpool(mask, 4).reshape(-1, 1)            # [N*Hd*Wd, 1]
    s = jax.nn.sigmoid(params["fw"])                     # [1,3] blend weights

    pred, tgt, fix = _run_decoder(
        s, fb3p,
        fb3.reshape(-1, fb3.shape[-1]),
        fb2.reshape(-1, fb2.shape[-1]),
        fb1.reshape(-1, fb1.shape[-1]),
        mask_s4, u43, u32, u21, params)

    def finish(y):  # [N*Hd*Wd, 1] -> x4 nearest upsample -> NCHW
        y = y.reshape(N, Hd, Wd, 1)
        y = jnp.repeat(jnp.repeat(y, 4, axis=1), 4, axis=2)
        return jnp.transpose(y, (0, 3, 1, 2))

    return finish(pred), finish(tgt), finish(fix)


# ----------------------------------------------------------------------------
if __name__ == "__main__":
    key = jax.random.PRNGKey(0)
    k_param, k_x, k_m = jax.random.split(key, 3)

    B, H, W = 2, 64, 64
    x = jax.random.normal(k_x, (B, 3, H, W), jnp.float32)
    mask = (jax.random.uniform(k_m, (B, 1, H, W)) > 0.5).astype(jnp.float32)

    params = init_params(k_param, channel=32)

    pred, target_pred, fixation = jax.jit(enhanced_degree_net_forward)(
        params, x, mask)
    jax.block_until_ready((pred, target_pred, fixation))

    assert pred.shape == (B, 1, H, W)
    assert target_pred.shape == (B, 1, H, W)
    assert fixation.shape == (B, 1, H, W)
    assert bool(jnp.all(jnp.isfinite(pred)))
    assert bool(jnp.all((fixation >= 0) & (fixation <= 1)))
    print("KERNEL_OK")
</pallas_src>

<mosaic_0001>
module attributes {stable_mosaic.version = 11 : i64} {
  func.func @_stage_kernel(%arg0: i32, %arg1: memref<256x48xbf16, #tpu.memory_space<vmem>>, %arg2: memref<48x8xbf16, #tpu.memory_space<vmem>>, %arg3: memref<1x8xf32, #tpu.memory_space<vmem>>, %arg4: memref<8x8xbf16, #tpu.memory_space<vmem>>, %arg5: memref<1x8xf32, #tpu.memory_space<vmem>>, %arg6: memref<256x8xbf16, #tpu.memory_space<vmem>>) attributes {dimension_semantics = [#tpu.dimension_semantics<parallel>], iteration_bounds = array<i64: 2>, scalar_prefetch = 0 : i64, scratch_operands = 0 : i64, tpu.core_type = #tpu.core_type<tc>, window_params = [{transform_indices = @transform_0, window_bounds = array<i64: 256, 48>}, {pipeline_mode = #tpu.pipeline_mode<synchronous>, transform_indices = @transform_1, window_bounds = array<i64: 48, 8>}, {pipeline_mode = #tpu.pipeline_mode<synchronous>, transform_indices = @transform_2, window_bounds = array<i64: 1, 8>}, {pipeline_mode = #tpu.pipeline_mode<synchronous>, transform_indices = @transform_3, window_bounds = array<i64: 8, 8>}, {pipeline_mode = #tpu.pipeline_mode<synchronous>, transform_indices = @transform_4, window_bounds = array<i64: 1, 8>}, {transform_indices = @transform_5, window_bounds = array<i64: 256, 8>}]} {
    %c0 = arith.constant 0 : index
    %c0_0 = arith.constant 0 : index
    %0 = vector.load %arg1[%c0, %c0_0] : memref<256x48xbf16, #tpu.memory_space<vmem>>, vector<256x48xbf16>
    %c0_1 = arith.constant 0 : index
    %c0_2 = arith.constant 0 : index
    %1 = vector.load %arg2[%c0_1, %c0_2] : memref<48x8xbf16, #tpu.memory_space<vmem>>, vector<48x8xbf16>
    %cst = arith.constant dense<0.000000e+00> : vector<256x8xf32>
    %2 = tpu.matmul %0, %1, %cst {dimension_numbers = #tpu.dot_dimension_numbers<[1], [0], [0], [1], [0, 0, 1, 1], [], []>} : vector<256x48xbf16>, vector<48x8xbf16>, vector<256x8xf32> -> vector<256x8xf32>
    %c0_3 = arith.constant 0 : index
    %c0_4 = arith.constant 0 : index
    %3 = vector.load %arg3[%c0_3, %c0_4] : memref<1x8xf32, #tpu.memory_space<vmem>>, vector<1x8xf32>
    %4 = vector.broadcast %3 : vector<1x8xf32> to vector<256x8xf32>
    %5 = arith.addf %2, %4 : vector<256x8xf32>
    %cst_5 = arith.constant 0.000000e+00 : f32
    %6 = vector.broadcast %cst_5 : f32 to vector<256x8xf32>
    %7 = arith.maximumf %5, %6 : vector<256x8xf32>
    %8 = arith.truncf %7 : vector<256x8xf32> to vector<256x8xbf16>
    %c0_6 = arith.constant 0 : index
    %c0_7 = arith.constant 0 : index
    %9 = vector.load %arg4[%c0_6, %c0_7] : memref<8x8xbf16, #tpu.memory_space<vmem>>, vector<8x8xbf16>
    %cst_8 = arith.constant dense<0.000000e+00> : vector<256x8xf32>
    %10 = tpu.matmul %8, %9, %cst_8 {dimension_numbers = #tpu.dot_dimension_numbers<[1], [0], [0], [1], [0, 0, 1, 1], [], []>} : vector<256x8xbf16>, vector<8x8xbf16>, vector<256x8xf32> -> vector<256x8xf32>
    %c0_9 = arith.constant 0 : index
    %c0_10 = arith.constant 0 : index
    %11 = vector.load %arg5[%c0_9, %c0_10] : memref<1x8xf32, #tpu.memory_space<vmem>>, vector<1x8xf32>
    %12 = vector.broadcast %11 : vector<1x8xf32> to vector<256x8xf32>
    %13 = arith.addf %10, %12 : vector<256x8xf32>
    %cst_11 = arith.constant 0.000000e+00 : f32
    %14 = vector.broadcast %cst_11 : f32 to vector<256x8xf32>
    %15 = arith.maximumf %13, %14 : vector<256x8xf32>
    %16 = arith.truncf %15 : vector<256x8xf32> to vector<256x8xbf16>
    %c0_12 = arith.constant 0 : index
    %c0_13 = arith.constant 0 : index
    %17 = vector.load %arg6[%c0_12, %c0_13] : memref<256x8xbf16, #tpu.memory_space<vmem>>, vector<256x8xbf16>
    tpu.vector_store %arg6[%c0_12, %c0_13], %16 {strides = array<i32>} : memref<256x8xbf16, #tpu.memory_space<vmem>>, vector<256x8xbf16>,
    return
  }
  func.func @transform_0(%arg0: i32) -> (i32, i32) {
    %c0_i32 = arith.constant 0 : i32
    %c0_i32_0 = arith.constant 0 : i32
    return %arg0, %c0_i32 : i32, i32
  }
  func.func @transform_1(%arg0: i32) -> (i32, i32) {
    %c0_i32 = arith.constant 0 : i32
    %c0_i32_0 = arith.constant 0 : i32
    %c0_i32_1 = arith.constant 0 : i32
    return %c0_i32, %c0_i32_0 : i32, i32
  }
  func.func @transform_2(%arg0: i32) -> (i32, i32) {
    %c0_i32 = arith.constant 0 : i32
    %c0_i32_0 = arith.constant 0 : i32
    %c0_i32_1 = arith.constant 0 : i32
    return %c0_i32, %c0_i32_0 : i32, i32
  }
  func.func @transform_3(%arg0: i32) -> (i32, i32) {
    %c0_i32 = arith.constant 0 : i32
    %c0_i32_0 = arith.constant 0 : i32
    %c0_i32_1 = arith.constant 0 : i32
    return %c0_i32, %c0_i32_0 : i32, i32
  }
  func.func @transform_4(%arg0: i32) -> (i32, i32) {
    %c0_i32 = arith.constant 0 : i32
    %c0_i32_0 = arith.constant 0 : i32
    %c0_i32_1 = arith.constant 0 : i32
    return %c0_i32, %c0_i32_0 : i32, i32
  }
  func.func @transform_5(%arg0: i32) -> (i32, i32) {
    %c0_i32 = arith.constant 0 : i32
    %c0_i32_0 = arith.constant 0 : i32
    return %arg0, %c0_i32 : i32, i32
  }
}

module attributes {stable_mosaic.version = 11 : i64} {
  func.func @_stage_kernel(%arg0: i32, %arg1: memref<128x32xbf16, #tpu.memory_space<vmem>>, %arg2: memref<32x16xbf16, #tpu.memory_space<vmem>>, %arg3: memref<1x16xf32, #tpu.memory_space<vmem>>, %arg4: memref<16x16xbf16, #tpu.memory_space<vmem>>, %arg5: memref<1x16xf32, #tpu.memory_space<vmem>>, %arg6: memref<128x16xbf16, #tpu.memory_space<vmem>>) attributes {dimension_semantics = [#tpu.dimension_semantics<parallel>], iteration_bounds = array<i64: 1>, scalar_prefetch = 0 : i64, scratch_operands = 0 : i64, tpu.core_type = #tpu.core_type<tc>, window_params = [{transform_indices = @transform_0, window_bounds = array<i64: 128, 32>}, {pipeline_mode = #tpu.pipeline_mode<synchronous>, transform_indices = @transform_1, window_bounds = array<i64: 32, 16>}, {pipeline_mode = #tpu.pipeline_mode<synchronous>, transform_indices = @transform_2, window_bounds = array<i64: 1, 16>}, {pipeline_mode = #tpu.pipeline_mode<synchronous>, transform_indices = @transform_3, window_bounds = array<i64: 16, 16>}, {pipeline_mode = #tpu.pipeline_mode<synchronous>, transform_indices = @transform_4, window_bounds = array<i64: 1, 16>}, {transform_indices = @transform_5, window_bounds = array<i64: 128, 16>}]} {
    %c0 = arith.constant 0 : index
    %c0_0 = arith.constant 0 : index
    %0 = vector.load %arg1[%c0, %c0_0] : memref<128x32xbf16, #tpu.memory_space<vmem>>, vector<128x32xbf16>
    %c0_1 = arith.constant 0 : index
    %c0_2 = arith.constant 0 : index
    %1 = vector.load %arg2[%c0_1, %c0_2] : memref<32x16xbf16, #tpu.memory_space<vmem>>, vector<32x16xbf16>
    %cst = arith.constant dense<0.000000e+00> : vector<128x16xf32>
    %2 = tpu.matmul %0, %1, %cst {dimension_numbers = #tpu.dot_dimension_numbers<[1], [0], [0], [1], [0, 0, 1, 1], [], []>} : vector<128x32xbf16>, vector<32x16xbf16>, vector<128x16xf32> -> vector<128x16xf32>
    %c0_3 = arith.constant 0 : index
    %c0_4 = arith.constant 0 : index
    %3 = vector.load %arg3[%c0_3, %c0_4] : memref<1x16xf32, #tpu.memory_space<vmem>>, vector<1x16xf32>
    %4 = vector.broadcast %3 : vector<1x16xf32> to vector<128x16xf32>
    %5 = arith.addf %2, %4 : vector<128x16xf32>
    %cst_5 = arith.constant 0.000000e+00 : f32
    %6 = vector.broadcast %cst_5 : f32 to vector<128x16xf32>
    %7 = arith.maximumf %5, %6 : vector<128x16xf32>
    %8 = arith.truncf %7 : vector<128x16xf32> to vector<128x16xbf16>
    %c0_6 = arith.constant 0 : index
    %c0_7 = arith.constant 0 : index
    %9 = vector.load %arg4[%c0_6, %c0_7] : memref<16x16xbf16, #tpu.memory_space<vmem>>, vector<16x16xbf16>
    %cst_8 = arith.constant dense<0.000000e+00> : vector<128x16xf32>
    %10 = tpu.matmul %8, %9, %cst_8 {dimension_numbers = #tpu.dot_dimension_numbers<[1], [0], [0], [1], [0, 0, 1, 1], [], []>} : vector<128x16xbf16>, vector<16x16xbf16>, vector<128x16xf32> -> vector<128x16xf32>
    %c0_9 = arith.constant 0 : index
    %c0_10 = arith.constant 0 : index
    %11 = vector.load %arg5[%c0_9, %c0_10] : memref<1x16xf32, #tpu.memory_space<vmem>>, vector<1x16xf32>
    %12 = vector.broadcast %11 : vector<1x16xf32> to vector<128x16xf32>
    %13 = arith.addf %10, %12 : vector<128x16xf32>
    %cst_11 = arith.constant 0.000000e+00 : f32
    %14 = vector.broadcast %cst_11 : f32 to vector<128x16xf32>
    %15 = arith.maximumf %13, %14 : vector<128x16xf32>
    %16 = arith.truncf %15 : vector<128x16xf32> to vector<128x16xbf16>
    %c0_12 = arith.constant 0 : index
    %c0_13 = arith.constant 0 : index
    %17 = vector.load %arg6[%c0_12, %c0_13] : memref<128x16xbf16, #tpu.memory_space<vmem>>, vector<128x16xbf16>
    tpu.vector_store %arg6[%c0_12, %c0_13], %16 {strides = array<i32>} : memref<128x16xbf16, #tpu.memory_space<vmem>>, vector<128x16xbf16>,
    return
  }
  func.func @transform_0(%arg0: i32) -> (i32, i32) {
    %c0_i32 = arith.constant 0 : i32
    %c0_i32_0 = arith.constant 0 : i32
    return %arg0, %c0_i32 : i32, i32
  }
  func.func @transform_1(%arg0: i32) -> (i32, i32) {
    %c0_i32 = arith.constant 0 : i32
    %c0_i32_0 = arith.constant 0 : i32
    %c0_i32_1 = arith.constant 0 : i32
    return %c0_i32, %c0_i32_0 : i32, i32
  }
  func.func @transform_2(%arg0: i32) -> (i32, i32) {
    %c0_i32 = arith.constant 0 : i32
    %c0_i32_0 = arith.constant 0 : i32
    %c0_i32_1 = arith.constant 0 : i32
    return %c0_i32, %c0_i32_0 : i32, i32
  }
  func.func @transform_3(%arg0: i32) -> (i32, i32) {
    %c0_i32 = arith.constant 0 : i32
    %c0_i32_0 = arith.constant 0 : i32
    %c0_i32_1 = arith.constant 0 : i32
    return %c0_i32, %c0_i32_0 : i32, i32
  }
  func.func @transform_4(%arg0: i32) -> (i32, i32) {
    %c0_i32 = arith.constant 0 : i32
    %c0_i32_0 = arith.constant 0 : i32
    %c0_i32_1 = arith.constant 0 : i32
    return %c0_i32, %c0_i32_0 : i32, i32
  }
  func.func @transform_5(%arg0: i32) -> (i32, i32) {
    %c0_i32 = arith.constant 0 : i32
    %c0_i32_0 = arith.constant 0 : i32
    return %arg0, %c0_i32 : i32, i32
  }
}

module attributes {stable_mosaic.version = 11 : i64} {
  func.func @_stage_kernel(%arg0: i32, %arg1: memref<32x64xbf16, #tpu.memory_space<vmem>>, %arg2: memref<64x24xbf16, #tpu.memory_space<vmem>>, %arg3: memref<1x24xf32, #tpu.memory_space<vmem>>, %arg4: memref<24x24xbf16, #tpu.memory_space<vmem>>, %arg5: memref<1x24xf32, #tpu.memory_space<vmem>>, %arg6: memref<32x24xbf16, #tpu.memory_space<vmem>>) attributes {dimension_semantics = [#tpu.dimension_semantics<parallel>], iteration_bounds = array<i64: 1>, scalar_prefetch = 0 : i64, scratch_operands = 0 : i64, tpu.core_type = #tpu.core_type<tc>, window_params = [{transform_indices = @transform_0, window_bounds = array<i64: 32, 64>}, {pipeline_mode = #tpu.pipeline_mode<synchronous>, transform_indices = @transform_1, window_bounds = array<i64: 64, 24>}, {pipeline_mode = #tpu.pipeline_mode<synchronous>, transform_indices = @transform_2, window_bounds = array<i64: 1, 24>}, {pipeline_mode = #tpu.pipeline_mode<synchronous>, transform_indices = @transform_3, window_bounds = array<i64: 24, 24>}, {pipeline_mode = #tpu.pipeline_mode<synchronous>, transform_indices = @transform_4, window_bounds = array<i64: 1, 24>}, {transform_indices = @transform_5, window_bounds = array<i64: 32, 24>}]} {
    %c0 = arith.constant 0 : index
    %c0_0 = arith.constant 0 : index
    %0 = vector.load %arg1[%c0, %c0_0] : memref<32x64xbf16, #tpu.memory_space<vmem>>, vector<32x64xbf16>
    %c0_1 = arith.constant 0 : index
    %c0_2 = arith.constant 0 : index
    %1 = vector.load %arg2[%c0_1, %c0_2] : memref<64x24xbf16, #tpu.memory_space<vmem>>, vector<64x24xbf16>
    %cst = arith.constant dense<0.000000e+00> : vector<32x24xf32>
    %2 = tpu.matmul %0, %1, %cst {dimension_numbers = #tpu.dot_dimension_numbers<[1], [0], [0], [1], [0, 0, 1, 1], [], []>} : vector<32x64xbf16>, vector<64x24xbf16>, vector<32x24xf32> -> vector<32x24xf32>
    %c0_3 = arith.constant 0 : index
    %c0_4 = arith.constant 0 : index
    %3 = vector.load %arg3[%c0_3, %c0_4] : memref<1x24xf32, #tpu.memory_space<vmem>>, vector<1x24xf32>
    %4 = vector.broadcast %3 : vector<1x24xf32> to vector<32x24xf32>
    %5 = arith.addf %2, %4 : vector<32x24xf32>
    %cst_5 = arith.constant 0.000000e+00 : f32
    %6 = vector.broadcast %cst_5 : f32 to vector<32x24xf32>
    %7 = arith.maximumf %5, %6 : vector<32x24xf32>
    %8 = arith.truncf %7 : vector<32x24xf32> to vector<32x24xbf16>
    %c0_6 = arith.constant 0 : index
    %c0_7 = arith.constant 0 : index
    %9 = vector.load %arg4[%c0_6, %c0_7] : memref<24x24xbf16, #tpu.memory_space<vmem>>, vector<24x24xbf16>
    %cst_8 = arith.constant dense<0.000000e+00> : vector<32x24xf32>
    %10 = tpu.matmul %8, %9, %cst_8 {dimension_numbers = #tpu.dot_dimension_numbers<[1], [0], [0], [1], [0, 0, 1, 1], [], []>} : vector<32x24xbf16>, vector<24x24xbf16>, vector<32x24xf32> -> vector<32x24xf32>
    %c0_9 = arith.constant 0 : index
    %c0_10 = arith.constant 0 : index
    %11 = vector.load %arg5[%c0_9, %c0_10] : memref<1x24xf32, #tpu.memory_space<vmem>>, vector<1x24xf32>
    %12 = vector.broadcast %11 : vector<1x24xf32> to vector<32x24xf32>
    %13 = arith.addf %10, %12 : vector<32x24xf32>
    %cst_11 = arith.constant 0.000000e+00 : f32
    %14 = vector.broadcast %cst_11 : f32 to vector<32x24xf32>
    %15 = arith.maximumf %13, %14 : vector<32x24xf32>
    %16 = arith.truncf %15 : vector<32x24xf32> to vector<32x24xbf16>
    %c0_12 = arith.constant 0 : index
    %c0_13 = arith.constant 0 : index
    %17 = vector.load %arg6[%c0_12, %c0_13] : memref<32x24xbf16, #tpu.memory_space<vmem>>, vector<32x24xbf16>
    tpu.vector_store %arg6[%c0_12, %c0_13], %16 {strides = array<i32>} : memref<32x24xbf16, #tpu.memory_space<vmem>>, vector<32x24xbf16>,
    return
  }
  func.func @transform_0(%arg0: i32) -> (i32, i32) {
    %c0_i32 = arith.constant 0 : i32
    %c0_i32_0 = arith.constant 0 : i32
    return %arg0, %c0_i32 : i32, i32
  }
  func.func @transform_1(%arg0: i32) -> (i32, i32) {
    %c0_i32 = arith.constant 0 : i32
    %c0_i32_0 = arith.constant 0 : i32
    %c0_i32_1 = arith.constant 0 : i32
    return %c0_i32, %c0_i32_0 : i32, i32
  }
  func.func @transform_2(%arg0: i32) -> (i32, i32) {
    %c0_i32 = arith.constant 0 : i32
    %c0_i32_0 = arith.constant 0 : i32
    %c0_i32_1 = arith.constant 0 : i32
    return %c0_i32, %c0_i32_0 : i32, i32
  }
  func.func @transform_3(%arg0: i32) -> (i32, i32) {
    %c0_i32 = arith.constant 0 : i32
    %c0_i32_0 = arith.constant 0 : i32
    %c0_i32_1 = arith.constant 0 : i32
    return %c0_i32, %c0_i32_0 : i32, i32
  }
  func.func @transform_4(%arg0: i32) -> (i32, i32) {
    %c0_i32 = arith.constant 0 : i32
    %c0_i32_0 = arith.constant 0 : i32
    %c0_i32_1 = arith.constant 0 : i32
    return %c0_i32, %c0_i32_0 : i32, i32
  }
  func.func @transform_5(%arg0: i32) -> (i32, i32) {
    %c0_i32 = arith.constant 0 : i32
    %c0_i32_0 = arith.constant 0 : i32
    return %arg0, %c0_i32 : i32, i32
  }
}

module attributes {stable_mosaic.version = 11 : i64} {
  func.func @_decoder_kernel(%arg0: i32, %arg1: memref<1x3xf32, #tpu.memory_space<smem>>, %arg2: memref<8x96xbf16, #tpu.memory_space<vmem>>, %arg3: memref<32x24xbf16, #tpu.memory_space<vmem>>, %arg4: memref<128x16xbf16, #tpu.memory_space<vmem>>, %arg5: memref<512x8xbf16, #tpu.memory_space<vmem>>, %arg6: memref<512x1xf32, #tpu.memory_space<vmem>>, %arg7: memref<32x8xbf16, #tpu.memory_space<vmem>>, %arg8: memref<128x32xbf16, #tpu.memory_space<vmem>>, %arg9: memref<512x128xbf16, #tpu.memory_space<vmem>>, %arg10: memref<96x32xbf16, #tpu.memory_space<vmem>>, %arg11: memref<1x32xf32, #tpu.memory_space<vmem>>, %arg12: memref<32x32xbf16, #tpu.memory_space<vmem>>, %arg13: memref<1x32xf32, #tpu.memory_space<vmem>>, %arg14: memref<32x64xbf16, #tpu.memory_space<vmem>>, %arg15: memref<1x64xf32, #tpu.memory_space<vmem>>, %arg16: memref<24x64xbf16, #tpu.memory_space<vmem>>, %arg17: memref<1x64xf32, #tpu.memory_space<vmem>>, %arg18: memref<16x64xbf16, #tpu.memory_space<vmem>>, %arg19: memref<1x64xf32, #tpu.memory_space<vmem>>, %arg20: memref<8x32xbf16, #tpu.memory_space<vmem>>, %arg21: memref<1x32xf32, #tpu.memory_space<vmem>>, %arg22: memref<32x32xbf16, #tpu.memory_space<vmem>>, %arg23: memref<1x32xf32, #tpu.memory_space<vmem>>, %arg24: memref<32x32xbf16, #tpu.memory_space<vmem>>, %arg25: memref<1x32xf32, #tpu.memory_space<vmem>>, %arg26: memref<32x32xbf16, #tpu.memory_space<vmem>>, %arg27: memref<1x32xf32, #tpu.memory_space<vmem>>, %arg28: memref<32x3xbf16, #tpu.memory_space<vmem>>, %arg29: memref<1x3xf32, #tpu.memory_space<vmem>>, %arg30: memref<512x1xf32, #tpu.memory_space<vmem>>, %arg31: memref<512x1xf32, #tpu.memory_space<vmem>>, %arg32: memref<512x1xf32, #tpu.memory_space<vmem>>) attributes {dimension_semantics = [#tpu.dimension_semantics<arbitrary>], iteration_bounds = array<i64: 1>, scalar_prefetch = 0 : i64, scratch_operands = 0 : i64, tpu.core_type = #tpu.core_type<tc>, window_params = [{transform_indices = @transform_0, window_bounds = array<i64: 1, 3>}, {pipeline_mode = #tpu.pipeline_mode<synchronous>, transform_indices = @transform_1, window_bounds = array<i64: 8, 96>}, {pipeline_mode = #tpu.pipeline_mode<synchronous>, transform_indices = @transform_2, window_bounds = array<i64: 32, 24>}, {pipeline_mode = #tpu.pipeline_mode<synchronous>, transform_indices = @transform_3, window_bounds = array<i64: 128, 16>}, {pipeline_mode = #tpu.pipeline_mode<synchronous>, transform_indices = @transform_4, window_bounds = array<i64: 512, 8>}, {pipeline_mode = #tpu.pipeline_mode<synchronous>, transform_indices = @transform_5, window_bounds = array<i64: 512, 1>}, {pipeline_mode = #tpu.pipeline_mode<synchronous>, transform_indices = @transform_6, window_bounds = array<i64: 32, 8>}, {pipeline_mode = #tpu.pipeline_mode<synchronous>, transform_indices = @transform_7, window_bounds = array<i64: 128, 32>}, {pipeline_mode = #tpu.pipeline_mode<synchronous>, transform_indices = @transform_8, window_bounds = array<i64: 512, 128>}, {pipeline_mode = #tpu.pipeline_mode<synchronous>, transform_indices = @transform_9, window_bounds = array<i64: 96, 32>}, {pipeline_mode = #tpu.pipeline_mode<synchronous>, transform_indices = @transform_10, window_bounds = array<i64: 1, 32>}, {pipeline_mode = #tpu.pipeline_mode<synchronous>, transform_indices = @transform_11, window_bounds = array<i64: 32, 32>}, {pipeline_mode = #tpu.pipeline_mode<synchronous>, transform_indices = @transform_12, window_bounds = array<i64: 1, 32>}, {pipeline_mode = #tpu.pipeline_mode<synchronous>, transform_indices = @transform_13, window_bounds = array<i64: 32, 64>}, {pipeline_mode = #tpu.pipeline_mode<synchronous>, transform_indices = @transform_14, window_bounds = array<i64: 1, 64>}, {pipeline_mode = #tpu.pipeline_mode<synchronous>, transform_indices = @transform_15, window_bounds = array<i64: 24, 64>}, {pipeline_mode = #tpu.pipeline_mode<synchronous>, transform_indices = @transform_16, window_bounds = array<i64: 1, 64>}, {pipeline_mode = #tpu.pipeline_mode<synchronous>, transform_indices = @transform_17, window_bounds = array<i64: 16, 64>}, {pipeline_mode = #tpu.pipeline_mode<synchronous>, transform_indices = @transform_18, window_bounds = array<i64: 1, 64>}, {pipeline_mode = #tpu.pipeline_mode<synchronous>, transform_indices = @transform_19, window_bounds = array<i64: 8, 32>}, {pipeline_mode = #tpu.pipeline_mode<synchronous>, transform_indices = @transform_20, window_bounds = array<i64: 1, 32>}, {pipeline_mode = #tpu.pipeline_mode<synchronous>, transform_indices = @transform_21, window_bounds = array<i64: 32, 32>}, {pipeline_mode = #tpu.pipeline_mode<synchronous>, transform_indices = @transform_22, window_bounds = array<i64: 1, 32>}, {pipeline_mode = #tpu.pipeline_mode<synchronous>, transform_indices = @transform_23, window_bounds = array<i64: 32, 32>}, {pipeline_mode = #tpu.pipeline_mode<synchronous>, transform_indices = @transform_24, window_bounds = array<i64: 1, 32>}, {pipeline_mode = #tpu.pipeline_mode<synchronous>, transform_indices = @transform_25, window_bounds = array<i64: 32, 32>}, {pipeline_mode = #tpu.pipeline_mode<synchronous>, transform_indices = @transform_26, window_bounds = array<i64: 1, 32>}, {pipeline_mode = #tpu.pipeline_mode<synchronous>, transform_indices = @transform_27, window_bounds = array<i64: 32, 3>}, {pipeline_mode = #tpu.pipeline_mode<synchronous>, transform_indices = @transform_28, window_bounds = array<i64: 1, 3>}, {pipeline_mode = #tpu.pipeline_mode<synchronous>, transform_indices = @transform_29, window_bounds = array<i64: 512, 1>}, {pipeline_mode = #tpu.pipeline_mode<synchronous>, transform_indices = @transform_30, window_bounds = array<i64: 512, 1>}, {pipeline_mode = #tpu.pipeline_mode<synchronous>, transform_indices = @transform_31, window_bounds = array<i64: 512, 1>}]} {
    %c0 = arith.constant 0 : index
    %c0_0 = arith.constant 0 : index
    %0 = vector.load %arg2[%c0, %c0_0] : memref<8x96xbf16, #tpu.memory_space<vmem>>, vector<8x96xbf16>
    %c0_1 = arith.constant 0 : index
    %c0_2 = arith.constant 0 : index
    %1 = vector.load %arg10[%c0_1, %c0_2] : memref<96x32xbf16, #tpu.memory_space<vmem>>, vector<96x32xbf16>
    %cst = arith.constant dense<0.000000e+00> : vector<8x32xf32>
    %2 = tpu.matmul %0, %1, %cst {dimension_numbers = #tpu.dot_dimension_numbers<[1], [0], [0], [1], [0, 0, 1, 1], [], []>} : vector<8x96xbf16>, vector<96x32xbf16>, vector<8x32xf32> -> vector<8x32xf32>
    %c0_3 = arith.constant 0 : index
    %c0_4 = arith.constant 0 : index
    %3 = vector.load %arg11[%c0_3, %c0_4] : memref<1x32xf32, #tpu.memory_space<vmem>>, vector<1x32xf32>
    %4 = vector.broadcast %3 : vector<1x32xf32> to vector<8x32xf32>
    %5 = arith.addf %2, %4 : vector<8x32xf32>
    %cst_5 = arith.constant 0.000000e+00 : f32
    %6 = vector.broadcast %cst_5 : f32 to vector<8x32xf32>
    %7 = arith.maximumf %5, %6 : vector<8x32xf32>
    %c0_6 = arith.constant 0 : index
    %c0_7 = arith.constant 0 : index
    %8 = vector.load %arg12[%c0_6, %c0_7] : memref<32x32xbf16, #tpu.memory_space<vmem>>, vector<32x32xbf16>
    %9 = arith.truncf %7 : vector<8x32xf32> to vector<8x32xbf16>
    %cst_8 = arith.constant dense<0.000000e+00> : vector<8x32xf32>
    %10 = tpu.matmul %9, %8, %cst_8 {dimension_numbers = #tpu.dot_dimension_numbers<[1], [0], [0], [1], [0, 0, 1, 1], [], []>} : vector<8x32xbf16>, vector<32x32xbf16>, vector<8x32xf32> -> vector<8x32xf32>
    %c0_9 = arith.constant 0 : index
    %c0_10 = arith.constant 0 : index
    %11 = vector.load %arg13[%c0_9, %c0_10] : memref<1x32xf32, #tpu.memory_space<vmem>>, vector<1x32xf32>
    %12 = vector.broadcast %11 : vector<1x32xf32> to vector<8x32xf32>
    %13 = arith.addf %10, %12 : vector<8x32xf32>
    %cst_11 = arith.constant 0.000000e+00 : f32
    %14 = vector.broadcast %cst_11 : f32 to vector<8x32xf32>
    %15 = arith.maximumf %13, %14 : vector<8x32xf32>
    %c0_12 = arith.constant 0 : index
    %c0_13 = arith.constant 0 : index
    %16 = memref.load %arg1[%c0_12, %c0_13] : memref<1x3xf32, #tpu.memory_space<smem>>
    %c0_14 = arith.constant 0 : index
    %c1 = arith.constant 1 : index
    %17 = memref.load %arg1[%c0_14, %c1] : memref<1x3xf32, #tpu.memory_space<smem>>
    %c0_15 = arith.constant 0 : index
    %c2 = arith.constant 2 : index
    %18 = memref.load %arg1[%c0_15, %c2] : memref<1x3xf32, #tpu.memory_space<smem>>
    %c0_16 = arith.constant 0 : index
    %c0_17 = arith.constant 0 : index
    %19 = vector.load %arg14[%c0_16, %c0_17] : memref<32x64xbf16, #tpu.memory_space<vmem>>, vector<32x64xbf16>
    %20 = arith.truncf %15 : vector<8x32xf32> to vector<8x32xbf16>
    %cst_18 = arith.constant dense<0.000000e+00> : vector<8x64xf32>
    %21 = tpu.matmul %20, %19, %cst_18 {dimension_numbers = #tpu.dot_dimension_numbers<[1], [0], [0], [1], [0, 0, 1, 1], [], []>} : vector<8x32xbf16>, vector<32x64xbf16>, vector<8x64xf32> -> vector<8x64xf32>
    %c0_19 = arith.constant 0 : index
    %c0_20 = arith.constant 0 : index
    %22 = vector.load %arg15[%c0_19, %c0_20] : memref<1x64xf32, #tpu.memory_space<vmem>>, vector<1x64xf32>
    %23 = vector.broadcast %22 : vector<1x64xf32> to vector<8x64xf32>
    %24 = arith.addf %21, %23 : vector<8x64xf32>
    %cst_21 = arith.constant 0.000000e+00 : f32
    %25 = vector.broadcast %cst_21 : f32 to vector<8x64xf32>
    %26 = arith.maximumf %24, %25 : vector<8x64xf32>
    %cst_22 = arith.constant 1.000000e+00 : f32
    %27 = arith.subf %cst_22, %16 : f32
    %28 = vector.extract_strided_slice %26 {offsets = [0, 0], sizes = [8, 32], strides = [1, 1]} : vector<8x64xf32> to vector<8x32xf32>
    %29 = vector.broadcast %27 : f32 to vector<8x32xf32>
    %30 = arith.mulf %29, %28 : vector<8x32xf32>
    %31 = vector.extract_strided_slice %26 {offsets = [0, 32], sizes = [8, 32], strides = [1, 1]} : vector<8x64xf32> to vector<8x32xf32>
    %32 = vector.broadcast %16 : f32 to vector<8x32xf32>
    %33 = arith.mulf %32, %31 : vector<8x32xf32>
    %34 = arith.addf %30, %33 : vector<8x32xf32>
    %c0_23 = arith.constant 0 : index
    %c0_24 = arith.constant 0 : index
    %35 = vector.load %arg7[%c0_23, %c0_24] : memref<32x8xbf16, #tpu.memory_space<vmem>>, vector<32x8xbf16>
    %36 = arith.truncf %34 : vector<8x32xf32> to vector<8x32xbf16>
    %cst_25 = arith.constant dense<0.000000e+00> : vector<32x32xf32>
    %37 = tpu.matmul %35, %36, %cst_25 {dimension_numbers = #tpu.dot_dimension_numbers<[1], [0], [0], [1], [0, 0, 1, 1], [], []>} : vector<32x8xbf16>, vector<8x32xbf16>, vector<32x32xf32> -> vector<32x32xf32>
    %c0_26 = arith.constant 0 : index
    %c0_27 = arith.constant 0 : index
    %38 = vector.load %arg3[%c0_26, %c0_27] : memref<32x24xbf16, #tpu.memory_space<vmem>>, vector<32x24xbf16>
    %c0_28 = arith.constant 0 : index
    %c0_29 = arith.constant 0 : index
    %39 = vector.load %arg16[%c0_28, %c0_29] : memref<24x64xbf16, #tpu.memory_space<vmem>>, vector<24x64xbf16>
    %cst_30 = arith.constant dense<0.000000e+00> : vector<32x64xf32>
    %40 = tpu.matmul %38, %39, %cst_30 {dimension_numbers = #tpu.dot_dimension_numbers<[1], [0], [0], [1], [0, 0, 1, 1], [], []>} : vector<32x24xbf16>, vector<24x64xbf16>, vector<32x64xf32> -> vector<32x64xf32>
    %c0_31 = arith.constant 0 : index
    %c0_32 = arith.constant 0 : index
    %41 = vector.load %arg17[%c0_31, %c0_32] : memref<1x64xf32, #tpu.memory_space<vmem>>, vector<1x64xf32>
    %42 = vector.broadcast %41 : vector<1x64xf32> to vector<32x64xf32>
    %43 = arith.addf %40, %42 : vector<32x64xf32>
    %cst_33 = arith.constant 0.000000e+00 : f32
    %44 = vector.broadcast %cst_33 : f32 to vector<32x64xf32>
    %45 = arith.maximumf %43, %44 : vector<32x64xf32>
    %cst_34 = arith.constant 1.000000e+00 : f32
    %46 = arith.subf %cst_34, %17 : f32
    %47 = vector.extract_strided_slice %45 {offsets = [0, 0], sizes = [32, 32], strides = [1, 1]} : vector<32x64xf32> to vector<32x32xf32>
    %48 = vector.broadcast %46 : f32 to vector<32x32xf32>
    %49 = arith.mulf %48, %47 : vector<32x32xf32>
    %50 = vector.extract_strided_slice %45 {offsets = [0, 32], sizes = [32, 32], strides = [1, 1]} : vector<32x64xf32> to vector<32x32xf32>
    %51 = vector.broadcast %17 : f32 to vector<32x32xf32>
    %52 = arith.mulf %51, %50 : vector<32x32xf32>
    %53 = arith.addf %49, %52 : vector<32x32xf32>
    %54 = arith.addf %37, %53 : vector<32x32xf32>
    %c0_35 = arith.constant 0 : index
    %c0_36 = arith.constant 0 : index
    %55 = vector.load %arg22[%c0_35, %c0_36] : memref<32x32xbf16, #tpu.memory_space<vmem>>, vector<32x32xbf16>
    %56 = arith.truncf %54 : vector<32x32xf32> to vector<32x32xbf16>
    %cst_37 = arith.constant dense<0.000000e+00> : vector<32x32xf32>
    %57 = tpu.matmul %56, %55, %cst_37 {dimension_numbers = #tpu.dot_dimension_numbers<[1], [0], [0], [1], [0, 0, 1, 1], [], []>} : vector<32x32xbf16>, vector<32x32xbf16>, vector<32x32xf32> -> vector<32x32xf32>
    %c0_38 = arith.constant 0 : index
    %c0_39 = arith.constant 0 : index
    %58 = vector.load %arg23[%c0_38, %c0_39] : memref<1x32xf32, #tpu.memory_space<vmem>>, vector<1x32xf32>
    %59 = vector.broadcast %58 : vector<1x32xf32> to vector<32x32xf32>
    %60 = arith.addf %57, %59 : vector<32x32xf32>
    %cst_40 = arith.constant 0.000000e+00 : f32
    %61 = vector.broadcast %cst_40 : f32 to vector<32x32xf32>
    %62 = arith.maximumf %60, %61 : vector<32x32xf32>
    %c0_41 = arith.constant 0 : index
    %c0_42 = arith.constant 0 : index
    %63 = vector.load %arg8[%c0_41, %c0_42] : memref<128x32xbf16, #tpu.memory_space<vmem>>, vector<128x32xbf16>
    %64 = arith.truncf %62 : vector<32x32xf32> to vector<32x32xbf16>
    %cst_43 = arith.constant dense<0.000000e+00> : vector<128x32xf32>
    %65 = tpu.matmul %63, %64, %cst_43 {dimension_numbers = #tpu.dot_dimension_numbers<[1], [0], [0], [1], [0, 0, 1, 1], [], []>} : vector<128x32xbf16>, vector<32x32xbf16>, vector<128x32xf32> -> vector<128x32xf32>
    %c0_44 = arith.constant 0 : index
    %c0_45 = arith.constant 0 : index
    %66 = vector.load %arg4[%c0_44, %c0_45] : memref<128x16xbf16, #tpu.memory_space<vmem>>, vector<128x16xbf16>
    %c0_46 = arith.constant 0 : index
    %c0_47 = arith.constant 0 : index
    %67 = vector.load %arg18[%c0_46, %c0_47] : memref<16x64xbf16, #tpu.memory_space<vmem>>, vector<16x64xbf16>
    %cst_48 = arith.constant dense<0.000000e+00> : vector<128x64xf32>
    %68 = tpu.matmul %66, %67, %cst_48 {dimension_numbers = #tpu.dot_dimension_numbers<[1], [0], [0], [1], [0, 0, 1, 1], [], []>} : vector<128x16xbf16>, vector<16x64xbf16>, vector<128x64xf32> -> vector<128x64xf32>
    %c0_49 = arith.constant 0 : index
    %c0_50 = arith.constant 0 : index
    %69 = vector.load %arg19[%c0_49, %c0_50] : memref<1x64xf32, #tpu.memory_space<vmem>>, vector<1x64xf32>
    %70 = vector.broadcast %69 : vector<1x64xf32> to vector<128x64xf32>
    %71 = arith.addf %68, %70 : vector<128x64xf32>
    %cst_51 = arith.constant 0.000000e+00 : f32
    %72 = vector.broadcast %cst_51 : f32 to vector<128x64xf32>
    %73 = arith.maximumf %71, %72 : vector<128x64xf32>
    %cst_52 = arith.constant 1.000000e+00 : f32
    %74 = arith.subf %cst_52, %18 : f32
    %75 = vector.extract_strided_slice %73 {offsets = [0, 0], sizes = [128, 32], strides = [1, 1]} : vector<128x64xf32> to vector<128x32xf32>
    %76 = vector.broadcast %74 : f32 to vector<128x32xf32>
    %77 = arith.mulf %76, %75 : vector<128x32xf32>
    %78 = vector.extract_strided_slice %73 {offsets = [0, 32], sizes = [128, 32], strides = [1, 1]} : vector<128x64xf32> to vector<128x32xf32>
    %79 = vector.broadcast %18 : f32 to vector<128x32xf32>
    %80 = arith.mulf %79, %78 : vector<128x32xf32>
    %81 = arith.addf %77, %80 : vector<128x32xf32>
    %82 = arith.addf %65, %81 : vector<128x32xf32>
    %c0_53 = arith.constant 0 : index
    %c0_54 = arith.constant 0 : index
    %83 = vector.load %arg24[%c0_53, %c0_54] : memref<32x32xbf16, #tpu.memory_space<vmem>>, vector<32x32xbf16>
    %84 = arith.truncf %82 : vector<128x32xf32> to vector<128x32xbf16>
    %cst_55 = arith.constant dense<0.000000e+00> : vector<128x32xf32>
    %85 = tpu.matmul %84, %83, %cst_55 {dimension_numbers = #tpu.dot_dimension_numbers<[1], [0], [0], [1], [0, 0, 1, 1], [], []>} : vector<128x32xbf16>, vector<32x32xbf16>, vector<128x32xf32> -> vector<128x32xf32>
    %c0_56 = arith.constant 0 : index
    %c0_57 = arith.constant 0 : index
    %86 = vector.load %arg25[%c0_56, %c0_57] : memref<1x32xf32, #tpu.memory_space<vmem>>, vector<1x32xf32>
    %87 = vector.broadcast %86 : vector<1x32xf32> to vector<128x32xf32>
    %88 = arith.addf %85, %87 : vector<128x32xf32>
    %cst_58 = arith.constant 0.000000e+00 : f32
    %89 = vector.broadcast %cst_58 : f32 to vector<128x32xf32>
    %90 = arith.maximumf %88, %89 : vector<128x32xf32>
    %c0_59 = arith.constant 0 : index
    %c0_60 = arith.constant 0 : index
    %91 = vector.load %arg5[%c0_59, %c0_60] : memref<512x8xbf16, #tpu.memory_space<vmem>>, vector<512x8xbf16>
    %c0_61 = arith.constant 0 : index
    %c0_62 = arith.constant 0 : index
    %92 = vector.load %arg20[%c0_61, %c0_62] : memref<8x32xbf16, #tpu.memory_space<vmem>>, vector<8x32xbf16>
    %cst_63 = arith.constant dense<0.000000e+00> : vector<512x32xf32>
    %93 = tpu.matmul %91, %92, %cst_63 {dimension_numbers = #tpu.dot_dimension_numbers<[1], [0], [0], [1], [0, 0, 1, 1], [], []>} : vector<512x8xbf16>, vector<8x32xbf16>, vector<512x32xf32> -> vector<512x32xf32>
    %c0_64 = arith.constant 0 : index
    %c0_65 = arith.constant 0 : index
    %94 = vector.load %arg21[%c0_64, %c0_65] : memref<1x32xf32, #tpu.memory_space<vmem>>, vector<1x32xf32>
    %95 = vector.broadcast %94 : vector<1x32xf32> to vector<512x32xf32>
    %96 = arith.addf %93, %95 : vector<512x32xf32>
    %cst_66 = arith.constant 0.000000e+00 : f32
    %97 = vector.broadcast %cst_66 : f32 to vector<512x32xf32>
    %98 = arith.maximumf %96, %97 : vector<512x32xf32>
    %c0_67 = arith.constant 0 : index
    %c0_68 = arith.constant 0 : index
    %99 = vector.load %arg9[%c0_67, %c0_68] : memref<512x128xbf16, #tpu.memory_space<vmem>>, vector<512x128xbf16>
    %100 = arith.truncf %90 : vector<128x32xf32> to vector<128x32xbf16>
    %cst_69 = arith.constant dense<0.000000e+00> : vector<512x32xf32>
    %101 = tpu.matmul %99, %100, %cst_69 {dimension_numbers = #tpu.dot_dimension_numbers<[1], [0], [0], [1], [0, 0, 1, 1], [], []>} : vector<512x128xbf16>, vector<128x32xbf16>, vector<512x32xf32> -> vector<512x32xf32>
    %102 = arith.addf %101, %98 : vector<512x32xf32>
    %c0_70 = arith.constant 0 : index
    %c0_71 = arith.constant 0 : index
    %103 = vector.load %arg26[%c0_70, %c0_71] : memref<32x32xbf16, #tpu.memory_space<vmem>>, vector<32x32xbf16>
    %104 = arith.truncf %102 : vector<512x32xf32> to vector<512x32xbf16>
    %cst_72 = arith.constant dense<0.000000e+00> : vector<512x32xf32>
    %105 = tpu.matmul %104, %103, %cst_72 {dimension_numbers = #tpu.dot_dimension_numbers<[1], [0], [0], [1], [0, 0, 1, 1], [], []>} : vector<512x32xbf16>, vector<32x32xbf16>, vector<512x32xf32> -> vector<512x32xf32>
    %c0_73 = arith.constant 0 : index
    %c0_74 = arith.constant 0 : index
    %106 = vector.load %arg27[%c0_73, %c0_74] : memref<1x32xf32, #tpu.memory_space<vmem>>, vector<1x32xf32>
    %107 = vector.broadcast %106 : vector<1x32xf32> to vector<512x32xf32>
    %108 = arith.addf %105, %107 : vector<512x32xf32>
    %cst_75 = arith.constant 0.000000e+00 : f32
    %109 = vector.broadcast %cst_75 : f32 to vector<512x32xf32>
    %110 = arith.maximumf %108, %109 : vector<512x32xf32>
    %c0_76 = arith.constant 0 : index
    %c0_77 = arith.constant 0 : index
    %111 = vector.load %arg28[%c0_76, %c0_77] : memref<32x3xbf16, #tpu.memory_space<vmem>>, vector<32x3xbf16>
    %112 = arith.truncf %110 : vector<512x32xf32> to vector<512x32xbf16>
    %cst_78 = arith.constant dense<0.000000e+00> : vector<512x3xf32>
    %113 = tpu.matmul %112, %111, %cst_78 {dimension_numbers = #tpu.dot_dimension_numbers<[1], [0], [0], [1], [0, 0, 1, 1], [], []>} : vector<512x32xbf16>, vector<32x3xbf16>, vector<512x3xf32> -> vector<512x3xf32>
    %114 = tpu.iota {dimensions = array<i32: 1>} : vector<512x3xi32>
    %c1_i32 = arith.constant 1 : i32
    %115 = vector.broadcast %c1_i32 : i32 to vector<512x3xi32>
    %116 = arith.cmpi eq, %114, %115 : vector<512x3xi32>
    %c0_79 = arith.constant 0 : index
    %c0_80 = arith.constant 0 : index
    %117 = vector.load %arg6[%c0_79, %c0_80] : memref<512x1xf32, #tpu.memory_space<vmem>>, vector<512x1xf32>
    %118 = vector.broadcast %117 : vector<512x1xf32> to vector<512x3xf32>
    %119 = arith.mulf %113, %118 : vector<512x3xf32>
    %120 = arith.select %116, %119, %113 : vector<512x3xi1>, vector<512x3xf32>
    %c0_81 = arith.constant 0 : index
    %c0_82 = arith.constant 0 : index
    %121 = vector.load %arg29[%c0_81, %c0_82] : memref<1x3xf32, #tpu.memory_space<vmem>>, vector<1x3xf32>
    %122 = vector.broadcast %121 : vector<1x3xf32> to vector<512x3xf32>
    %123 = arith.addf %120, %122 : vector<512x3xf32>
    %c2_i32 = arith.constant 2 : i32
    %124 = vector.broadcast %c2_i32 : i32 to vector<512x3xi32>
    %125 = arith.cmpi eq, %114, %124 : vector<512x3xi32>
    %126 = arith.negf %123 : vector<512x3xf32>
    %127 = math.exp %126 : vector<512x3xf32>
    %cst_83 = arith.constant 1.000000e+00 : f32
    %128 = vector.broadcast %cst_83 : f32 to vector<512x3xf32>
    %129 = arith.addf %128, %127 : vector<512x3xf32>
    %130 = arith.divf %128, %129 : vector<512x3xf32>
    %131 = arith.select %125, %130, %123 : vector<512x3xi1>, vector<512x3xf32>
    %132 = vector.extract_strided_slice %131 {offsets = [0, 0], sizes = [512, 1], strides = [1, 1]} : vector<512x3xf32> to vector<512x1xf32>
    %c0_84 = arith.constant 0 : index
    %c0_85 = arith.constant 0 : index
    %133 = vector.load %arg30[%c0_84, %c0_85] : memref<512x1xf32, #tpu.memory_space<vmem>>, vector<512x1xf32>
    tpu.vector_store %arg30[%c0_84, %c0_85], %132 {strides = array<i32>} : memref<512x1xf32, #tpu.memory_space<vmem>>, vector<512x1xf32>,
    %134 = vector.extract_strided_slice %131 {offsets = [0, 1], sizes = [512, 1], strides = [1, 1]} : vector<512x3xf32> to vector<512x1xf32>
    %c0_86 = arith.constant 0 : index
    %c0_87 = arith.constant 0 : index
    %135 = vector.load %arg31[%c0_86, %c0_87] : memref<512x1xf32, #tpu.memory_space<vmem>>, vector<512x1xf32>
    tpu.vector_store %arg31[%c0_86, %c0_87], %134 {strides = array<i32>} : memref<512x1xf32, #tpu.memory_space<vmem>>, vector<512x1xf32>,
    %136 = vector.extract_strided_slice %131 {offsets = [0, 2], sizes = [512, 1], strides = [1, 1]} : vector<512x3xf32> to vector<512x1xf32>
    %c0_88 = arith.constant 0 : index
    %c0_89 = arith.constant 0 : index
    %137 = vector.load %arg32[%c0_88, %c0_89] : memref<512x1xf32, #tpu.memory_space<vmem>>, vector<512x1xf32>
    tpu.vector_store %arg32[%c0_88, %c0_89], %136 {strides = array<i32>} : memref<512x1xf32, #tpu.memory_space<vmem>>, vector<512x1xf32>,
    return
  }
  func.func @transform_0(%arg0: i32) -> (i32, i32) {
    %c0_i32 = arith.constant 0 : i32
    %c0_i32_0 = arith.constant 0 : i32
    %c0_i32_1 = arith.constant 0 : i32
    return %c0_i32, %c0_i32_0 : i32, i32
  }
  func.func @transform_1(%arg0: i32) -> (i32, i32) {
    %c0_i32 = arith.constant 0 : i32
    %c0_i32_0 = arith.constant 0 : i32
    %c0_i32_1 = arith.constant 0 : i32
    return %c0_i32, %c0_i32_0 : i32, i32
  }
  func.func @transform_2(%arg0: i32) -> (i32, i32) {
    %c0_i32 = arith.constant 0 : i32
    %c0_i32_0 = arith.constant 0 : i32
    %c0_i32_1 = arith.constant 0 : i32
    return %c0_i32, %c0_i32_0 : i32, i32
  }
  func.func @transform_3(%arg0: i32) -> (i32, i32) {
    %c0_i32 = arith.constant 0 : i32
    %c0_i32_0 = arith.constant 0 : i32
    %c0_i32_1 = arith.constant 0 : i32
    return %c0_i32, %c0_i32_0 : i32, i32
  }
  func.func @transform_4(%arg0: i32) -> (i32, i32) {
    %c0_i32 = arith.constant 0 : i32
    %c0_i32_0 = arith.constant 0 : i32
    %c0_i32_1 = arith.constant 0 : i32
    return %c0_i32, %c0_i32_0 : i32, i32
  }
  func.func @transform_5(%arg0: i32) -> (i32, i32) {
    %c0_i32 = arith.constant 0 : i32
    %c0_i32_0 = arith.constant 0 : i32
    %c0_i32_1 = arith.constant 0 : i32
    return %c0_i32, %c0_i32_0 : i32, i32
  }
  func.func @transform_6(%arg0: i32) -> (i32, i32) {
    %c0_i32 = arith.constant 0 : i32
    %c0_i32_0 = arith.constant 0 : i32
    %c0_i32_1 = arith.constant 0 : i32
    return %c0_i32, %c0_i32_0 : i32, i32
  }
  func.func @transform_7(%arg0: i32) -> (i32, i32) {
    %c0_i32 = arith.constant 0 : i32
    %c0_i32_0 = arith.constant 0 : i32
    %c0_i32_1 = arith.constant 0 : i32
    return %c0_i32, %c0_i32_0 : i32, i32
  }
  func.func @transform_8(%arg0: i32) -> (i32, i32) {
    %c0_i32 = arith.constant 0 : i32
    %c0_i32_0 = arith.constant 0 : i32
    %c0_i32_1 = arith.constant 0 : i32
    return %c0_i32, %c0_i32_0 : i32, i32
  }
  func.func @transform_9(%arg0: i32) -> (i32, i32) {
    %c0_i32 = arith.constant 0 : i32
    %c0_i32_0 = arith.constant 0 : i32
    %c0_i32_1 = arith.constant 0 : i32
    return %c0_i32, %c0_i32_0 : i32, i32
  }
  func.func @transform_10(%arg0: i32) -> (i32, i32) {
    %c0_i32 = arith.constant 0 : i32
    %c0_i32_0 = arith.constant 0 : i32
    %c0_i32_1 = arith.constant 0 : i32
    return %c0_i32, %c0_i32_0 : i32, i32
  }
  func.func @transform_11(%arg0: i32) -> (i32, i32) {
    %c0_i32 = arith.constant 0 : i32
    %c0_i32_0 = arith.constant 0 : i32
    %c0_i32_1 = arith.constant 0 : i32
    return %c0_i32, %c0_i32_0 : i32, i32
  }
  func.func @transform_12(%arg0: i32) -> (i32, i32) {
    %c0_i32 = arith.constant 0 : i32
    %c0_i32_0 = arith.constant 0 : i32
    %c0_i32_1 = arith.constant 0 : i32
    return %c0_i32, %c0_i32_0 : i32, i32
  }
  func.func @transform_13(%arg0: i32) -> (i32, i32) {
    %c0_i32 = arith.constant 0 : i32
    %c0_i32_0 = arith.constant 0 : i32
    %c0_i32_1 = arith.constant 0 : i32
    return %c0_i32, %c0_i32_0 : i32, i32
  }
  func.func @transform_14(%arg0: i32) -> (i32, i32) {
    %c0_i32 = arith.constant 0 : i32
    %c0_i32_0 = arith.constant 0 : i32
    %c0_i32_1 = arith.constant 0 : i32
    return %c0_i32, %c0_i32_0 : i32, i32
  }
  func.func @transform_15(%arg0: i32) -> (i32, i32) {
    %c0_i32 = arith.constant 0 : i32
    %c0_i32_0 = arith.constant 0 : i32
    %c0_i32_1 = arith.constant 0 : i32
    return %c0_i32, %c0_i32_0 : i32, i32
  }
  func.func @transform_16(%arg0: i32) -> (i32, i32) {
    %c0_i32 = arith.constant 0 : i32
    %c0_i32_0 = arith.constant 0 : i32
    %c0_i32_1 = arith.constant 0 : i32
    return %c0_i32, %c0_i32_0 : i32, i32
  }
  func.func @transform_17(%arg0: i32) -> (i32, i32) {
    %c0_i32 = arith.constant 0 : i32
    %c0_i32_0 = arith.constant 0 : i32
    %c0_i32_1 = arith.constant 0 : i32
    return %c0_i32, %c0_i32_0 : i32, i32
  }
  func.func @transform_18(%arg0: i32) -> (i32, i32) {
    %c0_i32 = arith.constant 0 : i32
    %c0_i32_0 = arith.constant 0 : i32
    %c0_i32_1 = arith.constant 0 : i32
    return %c0_i32, %c0_i32_0 : i32, i32
  }
  func.func @transform_19(%arg0: i32) -> (i32, i32) {
    %c0_i32 = arith.constant 0 : i32
    %c0_i32_0 = arith.constant 0 : i32
    %c0_i32_1 = arith.constant 0 : i32
    return %c0_i32, %c0_i32_0 : i32, i32
  }
  func.func @transform_20(%arg0: i32) -> (i32, i32) {
    %c0_i32 = arith.constant 0 : i32
    %c0_i32_0 = arith.constant 0 : i32
    %c0_i32_1 = arith.constant 0 : i32
    return %c0_i32, %c0_i32_0 : i32, i32
  }
  func.func @transform_21(%arg0: i32) -> (i32, i32) {
    %c0_i32 = arith.constant 0 : i32
    %c0_i32_0 = arith.constant 0 : i32
    %c0_i32_1 = arith.constant 0 : i32
    return %c0_i32, %c0_i32_0 : i32, i32
  }
  func.func @transform_22(%arg0: i32) -> (i32, i32) {
    %c0_i32 = arith.constant 0 : i32
    %c0_i32_0 = arith.constant 0 : i32
    %c0_i32_1 = arith.constant 0 : i32
    return %c0_i32, %c0_i32_0 : i32, i32
  }
  func.func @transform_23(%arg0: i32) -> (i32, i32) {
    %c0_i32 = arith.constant 0 : i32
    %c0_i32_0 = arith.constant 0 : i32
    %c0_i32_1 = arith.constant 0 : i32
    return %c0_i32, %c0_i32_0 : i32, i32
  }
  func.func @transform_24(%arg0: i32) -> (i32, i32) {
    %c0_i32 = arith.constant 0 : i32
    %c0_i32_0 = arith.constant 0 : i32
    %c0_i32_1 = arith.constant 0 : i32
    return %c0_i32, %c0_i32_0 : i32, i32
  }
  func.func @transform_25(%arg0: i32) -> (i32, i32) {
    %c0_i32 = arith.constant 0 : i32
    %c0_i32_0 = arith.constant 0 : i32
    %c0_i32_1 = arith.constant 0 : i32
    return %c0_i32, %c0_i32_0 : i32, i32
  }
  func.func @transform_26(%arg0: i32) -> (i32, i32) {
    %c0_i32 = arith.constant 0 : i32
    %c0_i32_0 = arith.constant 0 : i32
    %c0_i32_1 = arith.constant 0 : i32
    return %c0_i32, %c0_i32_0 : i32, i32
  }
  func.func @transform_27(%arg0: i32) -> (i32, i32) {
    %c0_i32 = arith.constant 0 : i32
    %c0_i32_0 = arith.constant 0 : i32
    %c0_i32_1 = arith.constant 0 : i32
    return %c0_i32, %c0_i32_0 : i32, i32
  }
  func.func @transform_28(%arg0: i32) -> (i32, i32) {
    %c0_i32 = arith.constant 0 : i32
    %c0_i32_0 = arith.constant 0 : i32
    %c0_i32_1 = arith.constant 0 : i32
    return %c0_i32, %c0_i32_0 : i32, i32
  }
  func.func @transform_29(%arg0: i32) -> (i32, i32) {
    %c0_i32 = arith.constant 0 : i32
    %c0_i32_0 = arith.constant 0 : i32
    %c0_i32_1 = arith.constant 0 : i32
    return %c0_i32, %c0_i32_0 : i32, i32
  }
  func.func @transform_30(%arg0: i32) -> (i32, i32) {
    %c0_i32 = arith.constant 0 : i32
    %c0_i32_0 = arith.constant 0 : i32
    %c0_i32_1 = arith.constant 0 : i32
    return %c0_i32, %c0_i32_0 : i32, i32
  }
  func.func @transform_31(%arg0: i32) -> (i32, i32) {
    %c0_i32 = arith.constant 0 : i32
    %c0_i32_0 = arith.constant 0 : i32
    %c0_i32_1 = arith.constant 0 : i32
    return %c0_i32, %c0_i32_0 : i32, i32
  }
}

</mosaic_0001>

<llo_original>
// kernel: enhanced_degree_net_forward.4
$region0: #{enhanced_degree_net_forward.4}
  #allocation0 [shape = 'u32[]', space=smem, size = 0x4, offset = 0x4, fixed_abs, tag = 'smem constant byte address 0x4 - core index']
  #allocation1 [shape = 'u32[144,128]{1,0:T(1,128)}', space=vmem, size = 0x12000, scoped, tag = 'internal scratch']
  %s0 = inlined_call_operand.vmem [shape: bf16[512,48], index: 0, kind: input, shape index: {}]
  %s1 = inlined_call_operand.vmem [shape: bf16[48,8], index: 1, kind: input, shape index: {}]
  %s2 = inlined_call_operand.vmem [shape: f32[1,8], index: 2, kind: input, shape index: {}]
  %s3 = inlined_call_operand.vmem [shape: bf16[8,8], index: 3, kind: input, shape index: {}]
  %s4 = inlined_call_operand.vmem [shape: f32[1,8], index: 4, kind: input, shape index: {}]
  %s5 = inlined_call_operand.vmem [shape: bf16[512,8], index: 5, kind: output, shape index: {}]
  %s6 = sld [smem:[#allocation0]]
  $region53: #{enhanced_degree_net_forward.4} parent=0
    _
  %s8 = ssub.s32 1, %s6
  %s9 = scalar_select 0, %s8, %s6
  loop: start=0, step=1, limit=4
  $region2: #{enhanced_degree_net_forward.4} parent=0 // loop_pre_header
    _
  $region3: #{enhanced_degree_net_forward.4} parent=0 // loop_header
    %s11 = sphi 0, %s15
    %p12 = scmp.ge.s32.totalorder %s11, 4
    %s21 = sphi 0, %s23
    %s24 = sphi 0, %s21
    %s25 = sphi 0, %s24
    %s41 = sphi 0, %s25
    %s45 = sphi 0, %s45
    %s47 = sphi 0, %s45
    %s48 = sphi 0, %s47
    %s62 = sphi 0, %s48
    %s66 = sphi 0, %s66
    %s68 = sphi 0, %s66
    %s69 = sphi 0, %s68
    %s83 = sphi 0, %s69
    %s87 = sphi 0, %s87
    %s89 = sphi 0, %s87
    %s90 = sphi 0, %s89
    %s104 = sphi 0, %s90
    %s108 = sphi 0, %s108
    %s110 = sphi 0, %s108
    %s111 = sphi 0, %s110
    %s125 = sphi 0, %s111
    %s131 = sphi 0, %s133
    %s134 = sphi 0, %s131
    %s135 = sphi 0, %s134
    %s151 = sphi 0, %s135
  $region4: #{enhanced_degree_net_forward.4} parent=0 // loop_header_branch
    %14 = sbr.rel (%p12) target = $region8
  $region5: #{enhanced_degree_net_forward.4} parent=0 // loop_body
    %s16 = ssub.s32 %s11, 1
    %s17 = ssub.s32 %s11, 2
    %s18 = sadd.s32 %s11, 1
    %s19 = ssub.s32 %s11, %s18
    %p20 = scmp.eq.s32.totalorder %s19, 0
    %s22 = sadd.s32 %s21, 1
    %s23 = scalar_select %p20, %s21, %s22
    %p26 = pneg %p20
    %p27 = scmp.eq.s32.totalorder %s11, 1
    %p28 = por %p26, %p27
    %p29 = scmp.ne.s32.totalorder %s21, %s24
    %p30 = scmp.eq.s32.totalorder %s11, 0
    %p31 = por %p29, %p30
    %p32 = scmp.ne.s32.totalorder %s21, %s24
    %p33 = scmp.eq.s32.totalorder %s16, 1
    %p34 = por %p32, %p33
    %p35 = scmp.ne.s32.totalorder %s24, %s25
    %p36 = scmp.eq.s32.totalorder %s16, 0
    %p37 = por %p35, %p36
    %p38 = scmp.ne.s32.totalorder %s24, %s25
    %p39 = scmp.eq.s32.totalorder %s17, 1
    %p40 = por %p38, %p39
    %p42 = scmp.ne.s32.totalorder %s25, %s41
    %p43 = scmp.eq.s32.totalorder %s17, 0
    %p44 = por %p42, %p43
    %s46 = sadd.s32 %s45, 1
    %p49 = scmp.eq.s32.totalorder %s11, 1
    %p50 = scmp.ne.s32.totalorder %s45, %s47
    %p51 = scmp.eq.s32.totalorder %s11, 0
    %p52 = por %p50, %p51
    %p53 = scmp.ne.s32.totalorder %s45, %s47
    %p54 = scmp.eq.s32.totalorder %s16, 1
    %p55 = por %p53, %p54
    %p56 = scmp.ne.s32.totalorder %s47, %s48
    %p57 = scmp.eq.s32.totalorder %s16, 0
    %p58 = por %p56, %p57
    %p59 = scmp.ne.s32.totalorder %s47, %s48
    %p60 = scmp.eq.s32.totalorder %s17, 1
    %p61 = por %p59, %p60
    %p63 = scmp.ne.s32.totalorder %s48, %s62
    %p64 = scmp.eq.s32.totalorder %s17, 0
    %p65 = por %p63, %p64
    %s67 = sadd.s32 %s66, 1
    %p70 = scmp.eq.s32.totalorder %s11, 1
    %p71 = scmp.ne.s32.totalorder %s66, %s68
    %p72 = scmp.eq.s32.totalorder %s11, 0
    %p73 = por %p71, %p72
    %p74 = scmp.ne.s32.totalorder %s66, %s68
    %p75 = scmp.eq.s32.totalorder %s16, 1
    %p76 = por %p74, %p75
    %p77 = scmp.ne.s32.totalorder %s68, %s69
    %p78 = scmp.eq.s32.totalorder %s16, 0
    %p79 = por %p77, %p78
    %p80 = scmp.ne.s32.totalorder %s68, %s69
    %p81 = scmp.eq.s32.totalorder %s17, 1
    %p82 = por %p80, %p81
    %p84 = scmp.ne.s32.totalorder %s69, %s83
    %p85 = scmp.eq.s32.totalorder %s17, 0
    %p86 = por %p84, %p85
    %s88 = sadd.s32 %s87, 1
    %p91 = scmp.eq.s32.totalorder %s11, 1
    %p92 = scmp.ne.s32.totalorder %s87, %s89
    %p93 = scmp.eq.s32.totalorder %s11, 0
    %p94 = por %p92, %p93
    %p95 = scmp.ne.s32.totalorder %s87, %s89
    %p96 = scmp.eq.s32.totalorder %s16, 1
    %p97 = por %p95, %p96
    %p98 = scmp.ne.s32.totalorder %s89, %s90
    %p99 = scmp.eq.s32.totalorder %s16, 0
    %p100 = por %p98, %p99
    %p101 = scmp.ne.s32.totalorder %s89, %s90
    %p102 = scmp.eq.s32.totalorder %s17, 1
    %p103 = por %p101, %p102
    %p105 = scmp.ne.s32.totalorder %s90, %s104
    %p106 = scmp.eq.s32.totalorder %s17, 0
    %p107 = por %p105, %p106
    %s109 = sadd.s32 %s108, 1
    %p112 = scmp.eq.s32.totalorder %s11, 1
    %p113 = scmp.ne.s32.totalorder %s108, %s110
    %p114 = scmp.eq.s32.totalorder %s11, 0
    %p115 = por %p113, %p114
    %p116 = scmp.ne.s32.totalorder %s108, %s110
    %p117 = scmp.eq.s32.totalorder %s16, 1
    %p118 = por %p116, %p117
    %p119 = scmp.ne.s32.totalorder %s110, %s111
    %p120 = scmp.eq.s32.totalorder %s16, 0
    %p121 = por %p119, %p120
    %p122 = scmp.ne.s32.totalorder %s110, %s111
    %p123 = scmp.eq.s32.totalorder %s17, 1
    %p124 = por %p122, %p123
    %p126 = scmp.ne.s32.totalorder %s111, %s125
    %p127 = scmp.eq.s32.totalorder %s17, 0
    %p128 = por %p126, %p127
    %s129 = ssub.s32 %s11, %s18
    %p130 = scmp.eq.s32.totalorder %s129, 0
    %s132 = sadd.s32 %s131, 1
    %s133 = scalar_select %p130, %s131, %s132
    %p136 = pneg %p130
    %p137 = scmp.eq.s32.totalorder %s11, 1
    %p138 = por %p136, %p137
    %p139 = scmp.ne.s32.totalorder %s131, %s134
    %p140 = scmp.eq.s32.totalorder %s11, 0
    %p141 = por %p139, %p140
    %p142 = scmp.ne.s32.totalorder %s131, %s134
    %p143 = scmp.eq.s32.totalorder %s16, 1
    %p144 = por %p142, %p143
    %p145 = scmp.ne.s32.totalorder %s134, %s135
    %p146 = scmp.eq.s32.totalorder %s16, 0
    %p147 = por %p145, %p146
    %p148 = scmp.ne.s32.totalorder %s134, %s135
    %p149 = scmp.eq.s32.totalorder %s17, 1
    %p150 = por %p148, %p149
    %p152 = scmp.ne.s32.totalorder %s135, %s151
    %p153 = scmp.eq.s32.totalorder %s17, 0
    %p154 = por %p152, %p153
    %p155 = scmp.le.s32.totalorder 1, %s11
    %p156 = scmp.lt.s32.totalorder %s11, 3
    %p157 = pnand %p155, %p156
    %p158 = pneg %p157
    // Predicated region
    $region9: #{enhanced_degree_net_forward.4} parent=5 // pred_check
      _
    $region10: #{enhanced_degree_net_forward.4} parent=5 // pred_check_branch
      %160 = sbr.rel (%p157) target = $region12
    $region11: #{enhanced_degree_net_forward.4} parent=5 // pred_region
      %s161 = ssub.s32 %s11, 1
      // Predicated region
      $region13: #{enhanced_degree_net_forward.4} parent=11 // pred_check
        %p162 = pneg %p58
      $region14: #{enhanced_degree_net_forward.4} parent=11 // pred_check_branch
        %164 = sbr.rel (%p162) target = $region16
      $region15: #{enhanced_degree_net_forward.4} parent=11 // pred_region
        _
      $region16: #{enhanced_degree_net_forward.4} parent=11 // pred_fallthru
        _
      // Predicated region
      $region17: #{enhanced_degree_net_forward.4} parent=11 // pred_check
        %p165 = pneg %p79
      $region18: #{enhanced_degree_net_forward.4} parent=11 // pred_check_branch
        %167 = sbr.rel (%p165) target = $region20
      $region19: #{enhanced_degree_net_forward.4} parent=11 // pred_region
        _
      $region20: #{enhanced_degree_net_forward.4} parent=11 // pred_fallthru
        _
      // Predicated region
      $region21: #{enhanced_degree_net_forward.4} parent=11 // pred_check
        %p168 = pneg %p100
      $region22: #{enhanced_degree_net_forward.4} parent=11 // pred_check_branch
        %170 = sbr.rel (%p168) target = $region24
      $region23: #{enhanced_degree_net_forward.4} parent=11 // pred_region
        _
      $region24: #{enhanced_degree_net_forward.4} parent=11 // pred_fallthru
        _
      // Predicated region
      $region25: #{enhanced_degree_net_forward.4} parent=11 // pred_check
        %p171 = pneg %p121
      $region26: #{enhanced_degree_net_forward.4} parent=11 // pred_check_branch
        %173 = sbr.rel (%p171) target = $region28
      $region27: #{enhanced_degree_net_forward.4} parent=11 // pred_region
        _
      $region28: #{enhanced_degree_net_forward.4} parent=11 // pred_fallthru
        _
    $region12: #{enhanced_degree_net_forward.4} parent=5 // pred_fallthru
      _
    %p174 = scmp.lt.s32.totalorder %s11, 2
    // Predicated region
    $region29: #{enhanced_degree_net_forward.4} parent=5 // pred_check
      %p175 = pneg %p174
    $region30: #{enhanced_degree_net_forward.4} parent=5 // pred_check_branch
      %177 = sbr.rel (%p175) target = $region32
    $region31: #{enhanced_degree_net_forward.4} parent=5 // pred_region
      // Predicated region
      $region33: #{enhanced_degree_net_forward.4} parent=31 // pred_check
        %p178 = pneg %p31
      $region34: #{enhanced_degree_net_forward.4} parent=31 // pred_check_branch
        %180 = sbr.rel (%p178) target = $region36
      $region35: #{enhanced_degree_net_forward.4} parent=31 // pred_region
        %s181 = smul.u32 32, %s11
        %p182 = scmp.lt.s32.totalorder %s181, 63
        %s183 = scalar_select %p182, %s181, 63
        %s184 = smul.addr %s183, 4
        %s185 = scalar_lea.vmem %s0, %s184
        %s186 = smul.u32 32, %s11
      $region36: #{enhanced_degree_net_forward.4} parent=31 // pred_fallthru
        _
    $region32: #{enhanced_degree_net_forward.4} parent=5 // pred_fallthru
      _
    %p187 = scmp.le.s32.totalorder 1, %s11
    %p188 = scmp.lt.s32.totalorder %s11, 3
    %p189 = pnand %p187, %p188
    %p190 = pneg %p189
    // Predicated region
    $region37: #{enhanced_degree_net_forward.4} parent=5 // pred_check
      _
    $region38: #{enhanced_degree_net_forward.4} parent=5 // pred_check_branch
      %192 = sbr.rel (%p189) target = $region40
    $region39: #{enhanced_degree_net_forward.4} parent=5 // pred_region
      %s193 = ssub.s32 %s11, 1
      %s194 = smul.u32 32, %s16
      %p195 = scmp.lt.s32.totalorder %s194, 63
      %s196 = scalar_select %p195, %s194, 63
      %s197 = smul.addr %s196, 4
      %s198 = scalar_lea.vmem %s0, %s197
      %p199 = pneg %p37
      %p200 = pneg %p34
      %p201 = pneg %p58
      %p202 = pneg %p55
      %p203 = pneg %p79
      %p204 = pneg %p76
      %p205 = pneg %p100
      %p206 = pneg %p97
      %p207 = pneg %p121
      %p208 = pneg %p118
      %p209 = pneg %p147
      %p210 = pneg %p144
      %s211 = smul.u32 32, %s16
      %p212 = scmp.lt.s32.totalorder %s211, 63
      %s213 = scalar_select %p212, %s211, 63
      %s214 = smul.addr %s213, 4
      %s215 = scalar_lea.vmem %s5, %s214
      %s216 = smul.u32 32, %s16
      %p217 = scmp.lt.s32.totalorder %s216, 63
      %s218 = scalar_select %p217, %s216, 63
      %s219 = smul.addr %s218, 4
      %s220 = scalar_lea.vmem %s0, %s219
      %s221 = smul.u32 32, %s16
      %s222 = smul.u32 32, %s16
      %p223 = scmp.lt.s32.totalorder %s222, 63
      %s224 = scalar_select %p223, %s222, 63
      %s225 = smul.addr %s224, 4
      %s226 = scalar_lea.vmem %s5, %s225
      %s227 = smul.u32 32, %s16
      %v229 = vld [vmem:[%s220] sm:$0xf]
      %v230 = vld [vmem:[%s220 + $0x4] sm:$0xf]
      %v231 = vld [vmem:[%s220 + $0x8] sm:$0xf]
      %v232 = vld [vmem:[%s220 + $0xc] sm:$0xf]
      %v233 = vld [vmem:[%s220 + $0x10] sm:$0xf]
      %v234 = vld [vmem:[%s220 + $0x14] sm:$0xf]
      %v235 = vld [vmem:[%s220 + $0x18] sm:$0xf]
      %v236 = vld [vmem:[%s220 + $0x1c] sm:$0xf]
      %v237 = vld [vmem:[%s220 + $0x20] sm:$0xf]
      %v238 = vld [vmem:[%s220 + $0x24] sm:$0xf]
      %v239 = vld [vmem:[%s220 + $0x28] sm:$0xf]
      %v240 = vld [vmem:[%s220 + $0x2c] sm:$0xf]
      %v241 = vld [vmem:[%s220 + $0x30] sm:$0xf]
      %v242 = vld [vmem:[%s220 + $0x34] sm:$0xf]
      %v243 = vld [vmem:[%s220 + $0x38] sm:$0xf]
      %v244 = vld [vmem:[%s220 + $0x3c] sm:$0xf]
      %v245 = vld [vmem:[%s220 + $0x40] sm:$0xf]
      %v246 = vld [vmem:[%s220 + $0x44] sm:$0xf]
      %v247 = vld [vmem:[%s220 + $0x48] sm:$0xf]
      %v248 = vld [vmem:[%s220 + $0x4c] sm:$0xf]
      %v249 = vld [vmem:[%s220 + $0x50] sm:$0xf]
      %v250 = vld [vmem:[%s220 + $0x54] sm:$0xf]
      %v251 = vld [vmem:[%s220 + $0x58] sm:$0xf]
      %v252 = vld [vmem:[%s220 + $0x5c] sm:$0xf]
      %v253 = vld [vmem:[%s220 + $0x60] sm:$0xf]
      %v254 = vld [vmem:[%s220 + $0x64] sm:$0xf]
      %v255 = vld [vmem:[%s220 + $0x68] sm:$0xf]
      %v256 = vld [vmem:[%s220 + $0x6c] sm:$0xf]
      %v257 = vld [vmem:[%s220 + $0x70] sm:$0xf]
      %v258 = vld [vmem:[%s220 + $0x74] sm:$0xf]
      %v259 = vld [vmem:[%s220 + $0x78] sm:$0xf]
      %v260 = vld [vmem:[%s220 + $0x7c] sm:$0xf]
      %v261 = vld [vmem:[%s1] sm:$0xf]
      %v262 = vld [vmem:[%s1 + $0x4] sm:$0xf]
      %v263 = vld [vmem:[%s1 + $0x8] sm:$0xf]
      %v264 = vld [vmem:[%s1 + $0xc] sm:$0xf]
      %v265 = vld [vmem:[%s1 + $0x10] sm:$0xf]
      %v266 = vld [vmem:[%s1 + $0x14] sm:$0xf]
      %v267 = vld [vmem:[%s2] sm:$0x1]
      %v269 = vlaneseq
      %v270 = vshrl.u32 %v269, 7
      %v271 = vsub.s32 0, %v270
      %v272 = vrot.slane %v267, %v271
      %v306 = vunpack.c.l.b16 %v229
      %v307 = vunpack.c.l.b16 %v230
      %v308 = vunpack.c.l.b16 %v231
      %v309 = vunpack.c.l.b16 %v232
      %v310 = vunpack.c.l.b16 %v233
      %v311 = vunpack.c.l.b16 %v234
      %v312 = vunpack.c.l.b16 %v235
      %v313 = vunpack.c.l.b16 %v236
      %v314 = vunpack.c.l.b16 %v237
      %v315 = vunpack.c.l.b16 %v238
      %v316 = vunpack.c.l.b16 %v239
      %v317 = vunpack.c.l.b16 %v240
      %v318 = vunpack.c.l.b16 %v241
      %v319 = vunpack.c.l.b16 %v242
      %v320 = vunpack.c.l.b16 %v243
      %v321 = vunpack.c.l.b16 %v244
      %v322 = vunpack.c.l.b16 %v245
      %v323 = vunpack.c.l.b16 %v246
      %v324 = vunpack.c.l.b16 %v247
      %v325 = vunpack.c.l.b16 %v248
      %v326 = vunpack.c.l.b16 %v249
      %v327 = vunpack.c.l.b16 %v250
      %v328 = vunpack.c.l.b16 %v251
      %v329 = vunpack.c.l.b16 %v252
      %v330 = vunpack.c.l.b16 %v253
      %v331 = vunpack.c.l.b16 %v254
      %v332 = vunpack.c.l.b16 %v255
      %v333 = vunpack.c.l.b16 %v256
      %v334 = vunpack.c.l.b16 %v257
      %v335 = vunpack.c.l.b16 %v258
      %v336 = vunpack.c.l.b16 %v259
      %v337 = vunpack.c.l.b16 %v260
      %v338 = vpack.c.b16 %v307, %v306
      %v339 = vpack.c.b16 %v309, %v308
      %v340 = vpack.c.b16 %v311, %v310
      %v341 = vpack.c.b16 %v313, %v312
      %v342 = vpack.c.b16 %v315, %v314
      %v343 = vpack.c.b16 %v317, %v316
      %v344 = vpack.c.b16 %v319, %v318
      %v345 = vpack.c.b16 %v321, %v320
      %v346 = vpack.c.b16 %v323, %v322
      %v347 = vpack.c.b16 %v325, %v324
      %v348 = vpack.c.b16 %v327, %v326
      %v349 = vpack.c.b16 %v329, %v328
      %v350 = vpack.c.b16 %v331, %v330
      %v351 = vpack.c.b16 %v333, %v332
      %v352 = vpack.c.b16 %v335, %v334
      %v353 = vpack.c.b16 %v337, %v336
      %v360 = vunpack.c.l.b16 %v261
      %v361 = vunpack.c.l.b16 %v262
      %v362 = vunpack.c.l.b16 %v263
      %v363 = vunpack.c.l.b16 %v264
      %v364 = vunpack.c.l.b16 %v265
      %v365 = vunpack.c.l.b16 %v266
      %v366 = vpack.c.b16 %v361, %v360
      %v367 = vpack.c.b16 %v363, %v362
      %v368 = vpack.c.b16 %v365, %v364
      %vm372 = vcmask 392192
      %v374 = vsel %vm372, %v338, 0
      %v377 = vsel %vm372, %v339, 0
      %v380 = vsel %vm372, %v340, 0
      %v383 = vsel %vm372, %v341, 0
      %v386 = vsel %vm372, %v342, 0
      %v389 = vsel %vm372, %v343, 0
      %v392 = vsel %vm372, %v344, 0
      %v395 = vsel %vm372, %v345, 0
      %v398 = vsel %vm372, %v346, 0
      %v401 = vsel %vm372, %v347, 0
      %v404 = vsel %vm372, %v348, 0
      %v407 = vsel %vm372, %v349, 0
      %v410 = vsel %vm372, %v350, 0
      %v413 = vsel %vm372, %v351, 0
      %v416 = vsel %vm372, %v352, 0
      %v419 = vsel %vm372, %v353, 0
      %421 = vmatprep.subr.bf16.mxu0 0
      %422 = vmatpush1.bf16.msra.mxu0 0
      %423 = vmatprep.subr.bf16.mxu0 0
      %424 = vmatpush1.bf16.msra.mxu0 0
      %425 = vmatprep.subr.bf16.mxu0 0
      %426 = vmatpush1.bf16.msra.mxu0 0
      %427 = vmatprep.subr.bf16.mxu0 0
      %428 = vmatpush1.bf16.msra.mxu0 0
      %429 = vmatprep.subr.bf16.mxu0 0
      %430 = vmatpush1.bf16.msra.mxu0 0
      %431 = vmatprep.subr.bf16.mxu0 0
      %432 = vmatpush1.bf16.msra.mxu0 %v368
      %433 = vmatprep.subr.bf16.mxu0 0
      %434 = vmatpush1.bf16.msra.mxu0 %v367
      %435 = vmatprep.subr.bf16.mxu0 0
      %436 = vmatpush1.bf16.msra.mxu0 %v366
      %437 = vmatprep.subr.bf16.mxu0 0
      %438 = vmatpush2.bf16.msra.mxu0 0
      %439 = vmatprep.subr.bf16.mxu0 0
      %440 = vmatpush2.bf16.msra.mxu0 0
      %441 = vmatprep.subr.bf16.mxu0 0
      %442 = vmatpush2.bf16.msra.mxu0 0
      %443 = vmatprep.subr.bf16.mxu0 0
      %444 = vmatpush2.bf16.msra.mxu0 0
      %445 = vmatprep.subr.bf16.mxu0 0
      %446 = vmatpush2.bf16.msra.mxu0 0
      %447 = vmatprep.subr.bf16.mxu0 0
      %448 = vmatpush2.bf16.msra.mxu0 0
      %449 = vmatprep.subr.bf16.mxu0 0
      %450 = vmatpush2.bf16.msra.mxu0 0
      %451 = vmatprep.subr.bf16.mxu0 0
      %452 = vmatpush2.bf16.msra.mxu0 0
      %453 = vmatprep.mubr.bf16.mxu0 0
      %454 = vmatmul.mubr.bf16.gmra.mxu0 %v374
      %v455 = vpop.f32.mrf.mxu0
      %v456 = vadd.f32 %v272, %v455
      %v457 = vpop.f32.mrf.mxu0
      %v458 = vpop.f32.mrf.mxu0
      %v459 = vadd.f32 %v272, %v458
      %v460 = vpop.f32.mrf.mxu0
      %461 = vmatprep.mubr.bf16.mxu0 0
      %462 = vmatmul.mubr.bf16.gmra.mxu0 %v377
      %v463 = vpop.f32.mrf.mxu0
      %v464 = vadd.f32 %v272, %v463
      %v465 = vpop.f32.mrf.mxu0
      %v466 = vpop.f32.mrf.mxu0
      %v467 = vadd.f32 %v272, %v466
      %v468 = vpop.f32.mrf.mxu0
      %469 = vmatprep.mubr.bf16.mxu0 0
      %470 = vmatmul.mubr.bf16.gmra.mxu0 %v380
      %v471 = vpop.f32.mrf.mxu0
      %v472 = vadd.f32 %v272, %v471
      %v473 = vpop.f32.mrf.mxu0
      %v474 = vpop.f32.mrf.mxu0
      %v475 = vadd.f32 %v272, %v474
      %v476 = vpop.f32.mrf.mxu0
      %477 = vmatprep.mubr.bf16.mxu0 0
      %478 = vmatmul.mubr.bf16.gmra.mxu0 %v383
      %v479 = vpop.f32.mrf.mxu0
      %v480 = vadd.f32 %v272, %v479
      %v481 = vpop.f32.mrf.mxu0
      %v482 = vpop.f32.mrf.mxu0
      %v483 = vadd.f32 %v272, %v482
      %v484 = vpop.f32.mrf.mxu0
      %485 = vmatprep.mubr.bf16.mxu0 0
      %486 = vmatmul.mubr.bf16.gmra.mxu0 %v386
      %v487 = vpop.f32.mrf.mxu0
      %v488 = vadd.f32 %v272, %v487
      %v489 = vpop.f32.mrf.mxu0
      %v490 = vpop.f32.mrf.mxu0
      %v491 = vadd.f32 %v272, %v490
      %v492 = vpop.f32.mrf.mxu0
      %493 = vmatprep.mubr.bf16.mxu0 0
      %494 = vmatmul.mubr.bf16.gmra.mxu0 %v389
      %v495 = vpop.f32.mrf.mxu0
      %v496 = vadd.f32 %v272, %v495
      %v497 = vpop.f32.mrf.mxu0
      %v498 = vpop.f32.mrf.mxu0
      %v499 = vadd.f32 %v272, %v498
      %v500 = vpop.f32.mrf.mxu0
      %501 = vmatprep.mubr.bf16.mxu0 0
      %502 = vmatmul.mubr.bf16.gmra.mxu0 %v392
      %v503 = vpop.f32.mrf.mxu0
      %v504 = vadd.f32 %v272, %v503
      %v505 = vpop.f32.mrf.mxu0
      %v506 = vpop.f32.mrf.mxu0
      %v507 = vadd.f32 %v272, %v506
      %v508 = vpop.f32.mrf.mxu0
      %509 = vmatprep.mubr.bf16.mxu0 0
      %510 = vmatmul.mubr.bf16.gmra.mxu0 %v395
      %v511 = vpop.f32.mrf.mxu0
      %v512 = vadd.f32 %v272, %v511
      %v513 = vpop.f32.mrf.mxu0
      %v514 = vpop.f32.mrf.mxu0
      %v515 = vadd.f32 %v272, %v514
      %v516 = vpop.f32.mrf.mxu0
      %517 = vmatprep.mubr.bf16.mxu0 0
      %518 = vmatmul.mubr.bf16.gmra.mxu0 %v398
      %v519 = vpop.f32.mrf.mxu0
      %v520 = vadd.f32 %v272, %v519
      %v521 = vpop.f32.mrf.mxu0
      %v522 = vpop.f32.mrf.mxu0
      %v523 = vadd.f32 %v272, %v522
      %v524 = vpop.f32.mrf.mxu0
      %525 = vmatprep.mubr.bf16.mxu0 0
      %526 = vmatmul.mubr.bf16.gmra.mxu0 %v401
      %v527 = vpop.f32.mrf.mxu0
      %v528 = vadd.f32 %v272, %v527
      %v529 = vpop.f32.mrf.mxu0
      %v530 = vpop.f32.mrf.mxu0
      %v531 = vadd.f32 %v272, %v530
      %v532 = vpop.f32.mrf.mxu0
      %533 = vmatprep.mubr.bf16.mxu0 0
      %534 = vmatmul.mubr.bf16.gmra.mxu0 %v404
      %v535 = vpop.f32.mrf.mxu0
      %v536 = vadd.f32 %v272, %v535
      %v537 = vpop.f32.mrf.mxu0
      %v538 = vpop.f32.mrf.mxu0
      %v539 = vadd.f32 %v272, %v538
      %v540 = vpop.f32.mrf.mxu0
      %541 = vmatprep.mubr.bf16.mxu0 0
      %542 = vmatmul.mubr.bf16.gmra.mxu0 %v407
      %v543 = vpop.f32.mrf.mxu0
      %v544 = vadd.f32 %v272, %v543
      %v545 = vpop.f32.mrf.mxu0
      %v546 = vpop.f32.mrf.mxu0
      %v547 = vadd.f32 %v272, %v546
      %v548 = vpop.f32.mrf.mxu0
      %549 = vmatprep.mubr.bf16.mxu0 0
      %550 = vmatmul.mubr.bf16.gmra.mxu0 %v410
      %v551 = vpop.f32.mrf.mxu0
      %v552 = vadd.f32 %v272, %v551
      %v553 = vpop.f32.mrf.mxu0
      %v554 = vpop.f32.mrf.mxu0
      %v555 = vadd.f32 %v272, %v554
      %v556 = vpop.f32.mrf.mxu0
      %557 = vmatprep.mubr.bf16.mxu0 0
      %558 = vmatmul.mubr.bf16.gmra.mxu0 %v413
      %v559 = vpop.f32.mrf.mxu0
      %v560 = vadd.f32 %v272, %v559
      %v561 = vpop.f32.mrf.mxu0
      %v562 = vpop.f32.mrf.mxu0
      %v563 = vadd.f32 %v272, %v562
      %v564 = vpop.f32.mrf.mxu0
      %565 = vmatprep.mubr.bf16.mxu0 0
      %566 = vmatmul.mubr.bf16.gmra.mxu0 %v416
      %v567 = vpop.f32.mrf.mxu0
      %v568 = vadd.f32 %v272, %v567
      %v569 = vpop.f32.mrf.mxu0
      %v570 = vpop.f32.mrf.mxu0
      %v571 = vadd.f32 %v272, %v570
      %v572 = vpop.f32.mrf.mxu0
      %573 = vmatprep.mubr.bf16.mxu0 0
      %574 = vmatmul.mubr.bf16.gmra.mxu0 %v419
      %v575 = vpop.f32.mrf.mxu0
      %v576 = vadd.f32 %v272, %v575
      %v577 = vpop.f32.mrf.mxu0
      %v578 = vpop.f32.mrf.mxu0
      %v579 = vadd.f32 %v272, %v578
      %v580 = vpop.f32.mrf.mxu0
      %581 = vdwg.mxu0
      %v582 = vmax.f32 %v456, 0.0
      %v583 = vmax.f32 %v459, 0.0
      %v584 = vmax.f32 %v464, 0.0
      %v585 = vmax.f32 %v467, 0.0
      %v586 = vmax.f32 %v472, 0.0
      %v587 = vmax.f32 %v475, 0.0
      %v588 = vmax.f32 %v480, 0.0
      %v589 = vmax.f32 %v483, 0.0
      %v590 = vmax.f32 %v488, 0.0
      %v591 = vmax.f32 %v491, 0.0
      %v592 = vmax.f32 %v496, 0.0
      %v593 = vmax.f32 %v499, 0.0
      %v594 = vmax.f32 %v504, 0.0
      %v595 = vmax.f32 %v507, 0.0
      %v596 = vmax.f32 %v512, 0.0
      %v597 = vmax.f32 %v515, 0.0
      %v598 = vmax.f32 %v520, 0.0
      %v599 = vmax.f32 %v523, 0.0
      %v600 = vmax.f32 %v528, 0.0
      %v601 = vmax.f32 %v531, 0.0
      %v602 = vmax.f32 %v536, 0.0
      %v603 = vmax.f32 %v539, 0.0
      %v604 = vmax.f32 %v544, 0.0
      %v605 = vmax.f32 %v547, 0.0
      %v606 = vmax.f32 %v552, 0.0
      %v607 = vmax.f32 %v555, 0.0
      %v608 = vmax.f32 %v560, 0.0
      %v609 = vmax.f32 %v563, 0.0
      %v610 = vmax.f32 %v568, 0.0
      %v611 = vmax.f32 %v571, 0.0
      %v612 = vmax.f32 %v576, 0.0
      %v613 = vmax.f32 %v579, 0.0
      %v614 = vpack.c.bf16 %v583, %v582
      %v615 = vpack.c.bf16 %v585, %v584
      %v616 = vpack.c.bf16 %v587, %v586
      %v617 = vpack.c.bf16 %v589, %v588
      %v618 = vpack.c.bf16 %v591, %v590
      %v619 = vpack.c.bf16 %v593, %v592
      %v620 = vpack.c.bf16 %v595, %v594
      %v621 = vpack.c.bf16 %v597, %v596
      %v622 = vpack.c.bf16 %v599, %v598
      %v623 = vpack.c.bf16 %v601, %v600
      %v624 = vpack.c.bf16 %v603, %v602
      %v625 = vpack.c.bf16 %v605, %v604
      %v626 = vpack.c.bf16 %v607, %v606
      %v627 = vpack.c.bf16 %v609, %v608
      %v628 = vpack.c.bf16 %v611, %v610
      %v629 = vpack.c.bf16 %v613, %v612
      %v630 = vld [vmem:[%s3] sm:$0xf]
      %v631 = vld [vmem:[%s4] sm:$0x1]
      %v633 = vlaneseq
      %v634 = vshrl.u32 %v633, 7
      %v635 = vsub.s32 0, %v634
      %v636 = vrot.slane %v631, %v635
      %vm638 = vcmask 64512
      %v640 = vsel %vm638, %v614, 0
      %v643 = vsel %vm638, %v615, 0
      %v646 = vsel %vm638, %v616, 0
      %v649 = vsel %vm638, %v617, 0
      %v652 = vsel %vm638, %v618, 0
      %v655 = vsel %vm638, %v619, 0
      %v658 = vsel %vm638, %v620, 0
      %v661 = vsel %vm638, %v621, 0
      %v664 = vsel %vm638, %v622, 0
      %v667 = vsel %vm638, %v623, 0
      %v670 = vsel %vm638, %v624, 0
      %v673 = vsel %vm638, %v625, 0
      %v676 = vsel %vm638, %v626, 0
      %v679 = vsel %vm638, %v627, 0
      %v682 = vsel %vm638, %v628, 0
      %v685 = vsel %vm638, %v629, 0
      %vm687 = vcmask 1043456
      %v689 = vsel %vm687, %v630, 0
      %691 = vmatprep.subr.bf16.mxu0 0
      %692 = vmatpush1.bf16.msra.mxu0 0
      %693 = vmatprep.subr.bf16.mxu0 0
      %694 = vmatpush1.bf16.msra.mxu0 0
      %695 = vmatprep.subr.bf16.mxu0 0
      %696 = vmatpush1.bf16.msra.mxu0 0
      %697 = vmatprep.subr.bf16.mxu0 0
      %698 = vmatpush1.bf16.msra.mxu0 0
      %699 = vmatprep.subr.bf16.mxu0 0
      %700 = vmatpush1.bf16.msra.mxu0 0
      %701 = vmatprep.subr.bf16.mxu0 0
      %702 = vmatpush1.bf16.msra.mxu0 0
      %703 = vmatprep.subr.bf16.mxu0 0
      %704 = vmatpush1.bf16.msra.mxu0 0
      %705 = vmatprep.subr.bf16.mxu0 0
      %706 = vmatpush1.bf16.msra.mxu0 %v689
      %707 = vmatprep.subr.bf16.mxu0 0
      %708 = vmatpush2.bf16.msra.mxu0 0
      %709 = vmatprep.subr.bf16.mxu0 0
      %710 = vmatpush2.bf16.msra.mxu0 0
      %711 = vmatprep.subr.bf16.mxu0 0
      %712 = vmatpush2.bf16.msra.mxu0 0
      %713 = vmatprep.subr.bf16.mxu0 0
      %714 = vmatpush2.bf16.msra.mxu0 0
      %715 = vmatprep.subr.bf16.mxu0 0
      %716 = vmatpush2.bf16.msra.mxu0 0
      %717 = vmatprep.subr.bf16.mxu0 0
      %718 = vmatpush2.bf16.msra.mxu0 0
      %719 = vmatprep.subr.bf16.mxu0 0
      %720 = vmatpush2.bf16.msra.mxu0 0
      %721 = vmatprep.subr.bf16.mxu0 0
      %722 = vmatpush2.bf16.msra.mxu0 0
      %723 = vmatprep.mubr.bf16.mxu0 0
      %724 = vmatmul.mubr.bf16.gmra.mxu0 %v640
      %v725 = vpop.f32.mrf.mxu0
      %v726 = vadd.f32 %v636, %v725
      %v727 = vpop.f32.mrf.mxu0
      %v728 = vpop.f32.mrf.mxu0
      %v729 = vadd.f32 %v636, %v728
      %v730 = vpop.f32.mrf.mxu0
      %731 = vmatprep.mubr.bf16.mxu0 0
      %732 = vmatmul.mubr.bf16.gmra.mxu0 %v643
      %v733 = vpop.f32.mrf.mxu0
      %v734 = vadd.f32 %v636, %v733
      %v735 = vpop.f32.mrf.mxu0
      %v736 = vpop.f32.mrf.mxu0
      %v737 = vadd.f32 %v636, %v736
      %v738 = vpop.f32.mrf.mxu0
      %739 = vmatprep.mubr.bf16.mxu0 0
      %740 = vmatmul.mubr.bf16.gmra.mxu0 %v646
      %v741 = vpop.f32.mrf.mxu0
      %v742 = vadd.f32 %v636, %v741
      %v743 = vpop.f32.mrf.mxu0
      %v744 = vpop.f32.mrf.mxu0
      %v745 = vadd.f32 %v636, %v744
      %v746 = vpop.f32.mrf.mxu0
      %747 = vmatprep.mubr.bf16.mxu0 0
      %748 = vmatmul.mubr.bf16.gmra.mxu0 %v649
      %v749 = vpop.f32.mrf.mxu0
      %v750 = vadd.f32 %v636, %v749
      %v751 = vpop.f32.mrf.mxu0
      %v752 = vpop.f32.mrf.mxu0
      %v753 = vadd.f32 %v636, %v752
      %v754 = vpop.f32.mrf.mxu0
      %755 = vmatprep.mubr.bf16.mxu0 0
      %756 = vmatmul.mubr.bf16.gmra.mxu0 %v652
      %v757 = vpop.f32.mrf.mxu0
      %v758 = vadd.f32 %v636, %v757
      %v759 = vpop.f32.mrf.mxu0
      %v760 = vpop.f32.mrf.mxu0
      %v761 = vadd.f32 %v636, %v760
      %v762 = vpop.f32.mrf.mxu0
      %763 = vmatprep.mubr.bf16.mxu0 0
      %764 = vmatmul.mubr.bf16.gmra.mxu0 %v655
      %v765 = vpop.f32.mrf.mxu0
      %v766 = vadd.f32 %v636, %v765
      %v767 = vpop.f32.mrf.mxu0
      %v768 = vpop.f32.mrf.mxu0
      %v769 = vadd.f32 %v636, %v768
      %v770 = vpop.f32.mrf.mxu0
      %771 = vmatprep.mubr.bf16.mxu0 0
      %772 = vmatmul.mubr.bf16.gmra.mxu0 %v658
      %v773 = vpop.f32.mrf.mxu0
      %v774 = vadd.f32 %v636, %v773
      %v775 = vpop.f32.mrf.mxu0
      %v776 = vpop.f32.mrf.mxu0
      %v777 = vadd.f32 %v636, %v776
      %v778 = vpop.f32.mrf.mxu0
      %779 = vmatprep.mubr.bf16.mxu0 0
      %780 = vmatmul.mubr.bf16.gmra.mxu0 %v661
      %v781 = vpop.f32.mrf.mxu0
      %v782 = vadd.f32 %v636, %v781
      %v783 = vpop.f32.mrf.mxu0
      %v784 = vpop.f32.mrf.mxu0
      %v785 = vadd.f32 %v636, %v784
      %v786 = vpop.f32.mrf.mxu0
      %787 = vmatprep.mubr.bf16.mxu0 0
      %788 = vmatmul.mubr.bf16.gmra.mxu0 %v664
      %v789 = vpop.f32.mrf.mxu0
      %v790 = vadd.f32 %v636, %v789
      %v791 = vpop.f32.mrf.mxu0
      %v792 = vpop.f32.mrf.mxu0
      %v793 = vadd.f32 %v636, %v792
      %v794 = vpop.f32.mrf.mxu0
      %795 = vmatprep.mubr.bf16.mxu0 0
      %796 = vmatmul.mubr.bf16.gmra.mxu0 %v667
      %v797 = vpop.f32.mrf.mxu0
      %v798 = vadd.f32 %v636, %v797
      %v799 = vpop.f32.mrf.mxu0
      %v800 = vpop.f32.mrf.mxu0
      %v801 = vadd.f32 %v636, %v800
      %v802 = vpop.f32.mrf.mxu0
      %803 = vmatprep.mubr.bf16.mxu0 0
      %804 = vmatmul.mubr.bf16.gmra.mxu0 %v670
      %v805 = vpop.f32.mrf.mxu0
      %v806 = vadd.f32 %v636, %v805
      %v807 = vpop.f32.mrf.mxu0
      %v808 = vpop.f32.mrf.mxu0
      %v809 = vadd.f32 %v636, %v808
      %v810 = vpop.f32.mrf.mxu0
      %811 = vmatprep.mubr.bf16.mxu0 0
      %812 = vmatmul.mubr.bf16.gmra.mxu0 %v673
      %v813 = vpop.f32.mrf.mxu0
      %v814 = vadd.f32 %v636, %v813
      %v815 = vpop.f32.mrf.mxu0
      %v816 = vpop.f32.mrf.mxu0
      %v817 = vadd.f32 %v636, %v816
      %v818 = vpop.f32.mrf.mxu0
      %819 = vmatprep.mubr.bf16.mxu0 0
      %820 = vmatmul.mubr.bf16.gmra.mxu0 %v676
      %v821 = vpop.f32.mrf.mxu0
      %v822 = vadd.f32 %v636, %v821
      %v823 = vpop.f32.mrf.mxu0
      %v824 = vpop.f32.mrf.mxu0
      %v825 = vadd.f32 %v636, %v824
      %v826 = vpop.f32.mrf.mxu0
      %827 = vmatprep.mubr.bf16.mxu0 0
      %828 = vmatmul.mubr.bf16.gmra.mxu0 %v679
      %v829 = vpop.f32.mrf.mxu0
      %v830 = vadd.f32 %v636, %v829
      %v831 = vpop.f32.mrf.mxu0
      %v832 = vpop.f32.mrf.mxu0
      %v833 = vadd.f32 %v636, %v832
      %v834 = vpop.f32.mrf.mxu0
      %835 = vmatprep.mubr.bf16.mxu0 0
      %836 = vmatmul.mubr.bf16.gmra.mxu0 %v682
      %v837 = vpop.f32.mrf.mxu0
      %v838 = vadd.f32 %v636, %v837
      %v839 = vpop.f32.mrf.mxu0
      %v840 = vpop.f32.mrf.mxu0
      %v841 = vadd.f32 %v636, %v840
      %v842 = vpop.f32.mrf.mxu0
      %843 = vmatprep.mubr.bf16.mxu0 0
      %844 = vmatmul.mubr.bf16.gmra.mxu0 %v685
      %v845 = vpop.f32.mrf.mxu0
      %v846 = vadd.f32 %v636, %v845
      %v847 = vpop.f32.mrf.mxu0
      %v848 = vpop.f32.mrf.mxu0
      %v849 = vadd.f32 %v636, %v848
      %v850 = vpop.f32.mrf.mxu0
      %851 = vdwg.mxu0
      %v852 = vmax.f32 %v726, 0.0
      %v853 = vmax.f32 %v729, 0.0
      %v854 = vmax.f32 %v734, 0.0
      %v855 = vmax.f32 %v737, 0.0
      %v856 = vmax.f32 %v742, 0.0
      %v857 = vmax.f32 %v745, 0.0
      %v858 = vmax.f32 %v750, 0.0
      %v859 = vmax.f32 %v753, 0.0
      %v860 = vmax.f32 %v758, 0.0
      %v861 = vmax.f32 %v761, 0.0
      %v862 = vmax.f32 %v766, 0.0
      %v863 = vmax.f32 %v769, 0.0
      %v864 = vmax.f32 %v774, 0.0
      %v865 = vmax.f32 %v777, 0.0
      %v866 = vmax.f32 %v782, 0.0
      %v867 = vmax.f32 %v785, 0.0
      %v868 = vmax.f32 %v790, 0.0
      %v869 = vmax.f32 %v793, 0.0
      %v870 = vmax.f32 %v798, 0.0
      %v871 = vmax.f32 %v801, 0.0
      %v872 = vmax.f32 %v806, 0.0
      %v873 = vmax.f32 %v809, 0.0
      %v874 = vmax.f32 %v814, 0.0
      %v875 = vmax.f32 %v817, 0.0
      %v876 = vmax.f32 %v822, 0.0
      %v877 = vmax.f32 %v825, 0.0
      %v878 = vmax.f32 %v830, 0.0
      %v879 = vmax.f32 %v833, 0.0
      %v880 = vmax.f32 %v838, 0.0
      %v881 = vmax.f32 %v841, 0.0
      %v882 = vmax.f32 %v846, 0.0
      %v883 = vmax.f32 %v849, 0.0
      %v884 = vpack.c.bf16 %v853, %v852
      %v885 = vpack.c.bf16 %v855, %v854
      %v886 = vpack.c.bf16 %v857, %v856
      %v887 = vpack.c.bf16 %v859, %v858
      %v888 = vpack.c.bf16 %v861, %v860
      %v889 = vpack.c.bf16 %v863, %v862
      %v890 = vpack.c.bf16 %v865, %v864
      %v891 = vpack.c.bf16 %v867, %v866
      %v892 = vpack.c.bf16 %v869, %v868
      %v893 = vpack.c.bf16 %v871, %v870
      %v894 = vpack.c.bf16 %v873, %v872
      %v895 = vpack.c.bf16 %v875, %v874
      %v896 = vpack.c.bf16 %v877, %v876
      %v897 = vpack.c.bf16 %v879, %v878
      %v898 = vpack.c.bf16 %v881, %v880
      %v899 = vpack.c.bf16 %v883, %v882
      %v916 = vunpack.c.l.b16 %v884
      %v917 = vunpack.c.h.b16 %v884
      %v918 = vunpack.c.l.b16 %v885
      %v919 = vunpack.c.h.b16 %v885
      %v920 = vunpack.c.l.b16 %v886
      %v921 = vunpack.c.h.b16 %v886
      %v922 = vunpack.c.l.b16 %v887
      %v923 = vunpack.c.h.b16 %v887
      %v924 = vunpack.c.l.b16 %v888
      %v925 = vunpack.c.h.b16 %v888
      %v926 = vunpack.c.l.b16 %v889
      %v927 = vunpack.c.h.b16 %v889
      %v928 = vunpack.c.l.b16 %v890
      %v929 = vunpack.c.h.b16 %v890
      %v930 = vunpack.c.l.b16 %v891
      %v931 = vunpack.c.h.b16 %v891
      %v932 = vunpack.c.l.b16 %v892
      %v933 = vunpack.c.h.b16 %v892
      %v934 = vunpack.c.l.b16 %v893
      %v935 = vunpack.c.h.b16 %v893
      %v936 = vunpack.c.l.b16 %v894
      %v937 = vunpack.c.h.b16 %v894
      %v938 = vunpack.c.l.b16 %v895
      %v939 = vunpack.c.h.b16 %v895
      %v940 = vunpack.c.l.b16 %v896
      %v941 = vunpack.c.h.b16 %v896
      %v942 = vunpack.c.l.b16 %v897
      %v943 = vunpack.c.h.b16 %v897
      %v944 = vunpack.c.l.b16 %v898
      %v945 = vunpack.c.h.b16 %v898
      %v946 = vunpack.c.l.b16 %v899
      %v947 = vunpack.c.h.b16 %v899
      %v948 = vpack.c.b16 %v916, %v916
      %v949 = vpack.c.b16 %v917, %v917
      %v950 = vpack.c.b16 %v918, %v918
      %v951 = vpack.c.b16 %v919, %v919
      %v952 = vpack.c.b16 %v920, %v920
      %v953 = vpack.c.b16 %v921, %v921
      %v954 = vpack.c.b16 %v922, %v922
      %v955 = vpack.c.b16 %v923, %v923
      %v956 = vpack.c.b16 %v924, %v924
      %v957 = vpack.c.b16 %v925, %v925
      %v958 = vpack.c.b16 %v926, %v926
      %v959 = vpack.c.b16 %v927, %v927
      %v960 = vpack.c.b16 %v928, %v928
      %v961 = vpack.c.b16 %v929, %v929
      %v962 = vpack.c.b16 %v930, %v930
      %v963 = vpack.c.b16 %v931, %v931
      %v964 = vpack.c.b16 %v932, %v932
      %v965 = vpack.c.b16 %v933, %v933
      %v966 = vpack.c.b16 %v934, %v934
      %v967 = vpack.c.b16 %v935, %v935
      %v968 = vpack.c.b16 %v936, %v936
      %v969 = vpack.c.b16 %v937, %v937
      %v970 = vpack.c.b16 %v938, %v938
      %v971 = vpack.c.b16 %v939, %v939
      %v972 = vpack.c.b16 %v940, %v940
      %v973 = vpack.c.b16 %v941, %v941
      %v974 = vpack.c.b16 %v942, %v942
      %v975 = vpack.c.b16 %v943, %v943
      %v976 = vpack.c.b16 %v944, %v944
      %v977 = vpack.c.b16 %v945, %v945
      %v978 = vpack.c.b16 %v946, %v946
      %v979 = vpack.c.b16 %v947, %v947
      %vm1012 = vcmask 60416
      %1013 = vst.msk [vmem:[%s226] sm:$0xf] %vm1012, %v948
      %1014 = vst.msk [vmem:[%s226 + $0x4] sm:$0xf] %vm1012, %v949
      %1015 = vst.msk [vmem:[%s226 + $0x8] sm:$0xf] %vm1012, %v950
      %1016 = vst.msk [vmem:[%s226 + $0xc] sm:$0xf] %vm1012, %v951
      %1017 = vst.msk [vmem:[%s226 + $0x10] sm:$0xf] %vm1012, %v952
      %1018 = vst.msk [vmem:[%s226 + $0x14] sm:$0xf] %vm1012, %v953
      %1019 = vst.msk [vmem:[%s226 + $0x18] sm:$0xf] %vm1012, %v954
      %1020 = vst.msk [vmem:[%s226 + $0x1c] sm:$0xf] %vm1012, %v955
      %1021 = vst.msk [vmem:[%s226 + $0x20] sm:$0xf] %vm1012, %v956
      %1022 = vst.msk [vmem:[%s226 + $0x24] sm:$0xf] %vm1012, %v957
      %1023 = vst.msk [vmem:[%s226 + $0x28] sm:$0xf] %vm1012, %v958
      %1024 = vst.msk [vmem:[%s226 + $0x2c] sm:$0xf] %vm1012, %v959
      %1025 = vst.msk [vmem:[%s226 + $0x30] sm:$0xf] %vm1012, %v960
      %1026 = vst.msk [vmem:[%s226 + $0x34] sm:$0xf] %vm1012, %v961
      %1027 = vst.msk [vmem:[%s226 + $0x38] sm:$0xf] %vm1012, %v962
      %1028 = vst.msk [vmem:[%s226 + $0x3c] sm:$0xf] %vm1012, %v963
      %1029 = vst.msk [vmem:[%s226 + $0x40] sm:$0xf] %vm1012, %v964
      %1030 = vst.msk [vmem:[%s226 + $0x44] sm:$0xf] %vm1012, %v965
      %1031 = vst.msk [vmem:[%s226 + $0x48] sm:$0xf] %vm1012, %v966
      %1032 = vst.msk [vmem:[%s226 + $0x4c] sm:$0xf] %vm1012, %v967
      %1033 = vst.msk [vmem:[%s226 + $0x50] sm:$0xf] %vm1012, %v968
      %1034 = vst.msk [vmem:[%s226 + $0x54] sm:$0xf] %vm1012, %v969
      %1035 = vst.msk [vmem:[%s226 + $0x58] sm:$0xf] %vm1012, %v970
      %1036 = vst.msk [vmem:[%s226 + $0x5c] sm:$0xf] %vm1012, %v971
      %1037 = vst.msk [vmem:[%s226 + $0x60] sm:$0xf] %vm1012, %v972
      %1038 = vst.msk [vmem:[%s226 + $0x64] sm:$0xf] %vm1012, %v973
      %1039 = vst.msk [vmem:[%s226 + $0x68] sm:$0xf] %vm1012, %v974
      %1040 = vst.msk [vmem:[%s226 + $0x6c] sm:$0xf] %vm1012, %v975
      %1041 = vst.msk [vmem:[%s226 + $0x70] sm:$0xf] %vm1012, %v976
      %1042 = vst.msk [vmem:[%s226 + $0x74] sm:$0xf] %vm1012, %v977
      %1043 = vst.msk [vmem:[%s226 + $0x78] sm:$0xf] %vm1012, %v978
      %1044 = vst.msk [vmem:[%s226 + $0x7c] sm:$0xf] %vm1012, %v979
      %s1045 = smul.u32 32, %s16
      %p1046 = scmp.lt.s32.totalorder %s1045, 63
      %s1047 = scalar_select %p1046, %s1045, 63
      %s1048 = smul.addr %s1047, 4
      %s1049 = scalar_lea.vmem %s5, %s1048
      // Predicated region
      $region41: #{enhanced_degree_net_forward.4} parent=39 // pred_check
        %p1050 = pneg %p144
      $region42: #{enhanced_degree_net_forward.4} parent=39 // pred_check_branch
        %1052 = sbr.rel (%p1050) target = $region44
      $region43: #{enhanced_degree_net_forward.4} parent=39 // pred_region
        %s1053 = smul.u32 32, %s16
      $region44: #{enhanced_degree_net_forward.4} parent=39 // pred_fallthru
        _
    $region40: #{enhanced_degree_net_forward.4} parent=5 // pred_fallthru
      _
    %p1054 = scmp.le.s32.totalorder 2, %s11
    // Predicated region
    $region45: #{enhanced_degree_net_forward.4} parent=5 // pred_check
      %p1055 = pneg %p1054
    $region46: #{enhanced_degree_net_forward.4} parent=5 // pred_check_branch
      %1057 = sbr.rel (%p1055) target = $region48
    $region47: #{enhanced_degree_net_forward.4} parent=5 // pred_region
      %s1058 = ssub.s32 %s11, 2
      // Predicated region
      $region49: #{enhanced_degree_net_forward.4} parent=47 // pred_check
        %p1059 = pneg %p150
      $region50: #{enhanced_degree_net_forward.4} parent=47 // pred_check_branch
        %1061 = sbr.rel (%p1059) target = $region52
      $region51: #{enhanced_degree_net_forward.4} parent=47 // pred_region
        %s1062 = smul.u32 32, %s17
        %p1063 = scmp.lt.s32.totalorder %s1062, 63
        %s1064 = scalar_select %p1063, %s1062, 63
        %s1065 = smul.addr %s1064, 4
        %s1066 = scalar_lea.vmem %s5, %s1065
      $region52: #{enhanced_degree_net_forward.4} parent=47 // pred_fallthru
        _
    $region48: #{enhanced_degree_net_forward.4} parent=5 // pred_fallthru
      _
  $region6: #{enhanced_degree_net_forward.4} parent=0 // loop_footer
    %s15 = sadd.s32 1, %s11
  $region7: #{enhanced_degree_net_forward.4} parent=0 // loop_footer_branch
    %10 = sbr.rel target = $region3
  $region8: #{enhanced_degree_net_forward.4} parent=0 // loop_exit
    _

// kernel: enhanced_degree_net_forward.5
$region0: #{enhanced_degree_net_forward.5}
  #allocation0 [shape = 'u32[]', space=smem, size = 0x4, offset = 0x4, fixed_abs, tag = 'smem constant byte address 0x4 - core index']
  #allocation1 [shape = 'u32[144,128]{1,0:T(1,128)}', space=vmem, size = 0x12000, scoped, tag = 'internal scratch']
  %s0 = inlined_call_operand.vmem [shape: bf16[128,32], index: 0, kind: input, shape index: {}]
  %s1 = inlined_call_operand.vmem [shape: bf16[32,16], index: 1, kind: input, shape index: {}]
  %s2 = inlined_call_operand.vmem [shape: f32[1,16], index: 2, kind: input, shape index: {}]
  %s3 = inlined_call_operand.vmem [shape: bf16[16,16], index: 3, kind: input, shape index: {}]
  %s4 = inlined_call_operand.vmem [shape: f32[1,16], index: 4, kind: input, shape index: {}]
  %s5 = inlined_call_operand.vmem [shape: bf16[128,16], index: 5, kind: output, shape index: {}]
  %s6 = sld [smem:[#allocation0]]
  $region30: #{enhanced_degree_net_forward.5} parent=0
    _
  %s8 = ssub.s32 1, %s6
  %s9 = scalar_select 0, %s8, %s6
  // Predicated region
  $region2: #{enhanced_degree_net_forward.5} parent=0 // pred_check
    _
  $region3: #{enhanced_degree_net_forward.5} parent=0 // pred_check_branch
    %11 = sbr.rel (0) target = $region5
  $region4: #{enhanced_degree_net_forward.5} parent=0 // pred_region
    _
  $region5: #{enhanced_degree_net_forward.5} parent=0 // pred_fallthru
    _
  // Predicated region
  $region6: #{enhanced_degree_net_forward.5} parent=0 // pred_check
    _
  $region7: #{enhanced_degree_net_forward.5} parent=0 // pred_check_branch
    %13 = sbr.rel (0) target = $region9
  $region8: #{enhanced_degree_net_forward.5} parent=0 // pred_region
    _
  $region9: #{enhanced_degree_net_forward.5} parent=0 // pred_fallthru
    _
  // Predicated region
  $region10: #{enhanced_degree_net_forward.5} parent=0 // pred_check
    _
  $region11: #{enhanced_degree_net_forward.5} parent=0 // pred_check_branch
    %15 = sbr.rel (0) target = $region13
  $region12: #{enhanced_degree_net_forward.5} parent=0 // pred_region
    _
  $region13: #{enhanced_degree_net_forward.5} parent=0 // pred_fallthru
    _
  // Predicated region
  $region14: #{enhanced_degree_net_forward.5} parent=0 // pred_check
    _
  $region15: #{enhanced_degree_net_forward.5} parent=0 // pred_check_branch
    %17 = sbr.rel (0) target = $region17
  $region16: #{enhanced_degree_net_forward.5} parent=0 // pred_region
    _
  $region17: #{enhanced_degree_net_forward.5} parent=0 // pred_fallthru
    _
  // Predicated region
  $region18: #{enhanced_degree_net_forward.5} parent=0 // pred_check
    _
  $region19: #{enhanced_degree_net_forward.5} parent=0 // pred_check_branch
    %19 = sbr.rel (0) target = $region21
  $region20: #{enhanced_degree_net_forward.5} parent=0 // pred_region
    _
  $region21: #{enhanced_degree_net_forward.5} parent=0 // pred_fallthru
    _
  %v21 = vld [vmem:[%s0] sm:$0xf]
  %v22 = vld [vmem:[%s0 + $0x4] sm:$0xf]
  %v23 = vld [vmem:[%s0 + $0x8] sm:$0xf]
  %v24 = vld [vmem:[%s0 + $0xc] sm:$0xf]
  %v25 = vld [vmem:[%s0 + $0x10] sm:$0xf]
  %v26 = vld [vmem:[%s0 + $0x14] sm:$0xf]
  %v27 = vld [vmem:[%s0 + $0x18] sm:$0xf]
  %v28 = vld [vmem:[%s0 + $0x1c] sm:$0xf]
  %v29 = vld [vmem:[%s0 + $0x20] sm:$0xf]
  %v30 = vld [vmem:[%s0 + $0x24] sm:$0xf]
  %v31 = vld [vmem:[%s0 + $0x28] sm:$0xf]
  %v32 = vld [vmem:[%s0 + $0x2c] sm:$0xf]
  %v33 = vld [vmem:[%s0 + $0x30] sm:$0xf]
  %v34 = vld [vmem:[%s0 + $0x34] sm:$0xf]
  %v35 = vld [vmem:[%s0 + $0x38] sm:$0xf]
  %v36 = vld [vmem:[%s0 + $0x3c] sm:$0xf]
  %v37 = vld [vmem:[%s1] sm:$0xf]
  %v38 = vld [vmem:[%s1 + $0x4] sm:$0xf]
  %v39 = vld [vmem:[%s1 + $0x8] sm:$0xf]
  %v40 = vld [vmem:[%s1 + $0xc] sm:$0xf]
  %v41 = vld [vmem:[%s2] sm:$0x1]
  %v43 = vlaneseq
  %v44 = vshrl.u32 %v43, 7
  %v45 = vsub.s32 0, %v44
  %v46 = vrot.slane %v41, %v45
  %v64 = vunpack.c.l.b16 %v21
  %v65 = vunpack.c.l.b16 %v22
  %v66 = vunpack.c.l.b16 %v23
  %v67 = vunpack.c.l.b16 %v24
  %v68 = vunpack.c.l.b16 %v25
  %v69 = vunpack.c.l.b16 %v26
  %v70 = vunpack.c.l.b16 %v27
  %v71 = vunpack.c.l.b16 %v28
  %v72 = vunpack.c.l.b16 %v29
  %v73 = vunpack.c.l.b16 %v30
  %v74 = vunpack.c.l.b16 %v31
  %v75 = vunpack.c.l.b16 %v32
  %v76 = vunpack.c.l.b16 %v33
  %v77 = vunpack.c.l.b16 %v34
  %v78 = vunpack.c.l.b16 %v35
  %v79 = vunpack.c.l.b16 %v36
  %v80 = vpack.c.b16 %v65, %v64
  %v81 = vpack.c.b16 %v67, %v66
  %v82 = vpack.c.b16 %v69, %v68
  %v83 = vpack.c.b16 %v71, %v70
  %v84 = vpack.c.b16 %v73, %v72
  %v85 = vpack.c.b16 %v75, %v74
  %v86 = vpack.c.b16 %v77, %v76
  %v87 = vpack.c.b16 %v79, %v78
  %v92 = vunpack.c.l.b16 %v37
  %v93 = vunpack.c.l.b16 %v38
  %v94 = vunpack.c.l.b16 %v39
  %v95 = vunpack.c.l.b16 %v40
  %v96 = vpack.c.b16 %v93, %v92
  %v97 = vpack.c.b16 %v95, %v94
  %vm100 = vcmask 261120
  %v102 = vsel %vm100, %v80, 0
  %v105 = vsel %vm100, %v81, 0
  %v108 = vsel %vm100, %v82, 0
  %v111 = vsel %vm100, %v83, 0
  %v114 = vsel %vm100, %v84, 0
  %v117 = vsel %vm100, %v85, 0
  %v120 = vsel %vm100, %v86, 0
  %v123 = vsel %vm100, %v87, 0
  %125 = vmatprep.subr.bf16.mxu0 0
  %126 = vmatpush1.bf16.msra.mxu0 0
  %127 = vmatprep.subr.bf16.mxu0 0
  %128 = vmatpush1.bf16.msra.mxu0 0
  %129 = vmatprep.subr.bf16.mxu0 0
  %130 = vmatpush1.bf16.msra.mxu0 0
  %131 = vmatprep.subr.bf16.mxu0 0
  %132 = vmatpush1.bf16.msra.mxu0 0
  %133 = vmatprep.subr.bf16.mxu0 0
  %134 = vmatpush1.bf16.msra.mxu0 0
  %135 = vmatprep.subr.bf16.mxu0 0
  %136 = vmatpush1.bf16.msra.mxu0 0
  %137 = vmatprep.subr.bf16.mxu0 0
  %138 = vmatpush1.bf16.msra.mxu0 %v97
  %139 = vmatprep.subr.bf16.mxu0 0
  %140 = vmatpush1.bf16.msra.mxu0 %v96
  %141 = vmatprep.subr.bf16.mxu0 0
  %142 = vmatpush2.bf16.msra.mxu0 0
  %143 = vmatprep.subr.bf16.mxu0 0
  %144 = vmatpush2.bf16.msra.mxu0 0
  %145 = vmatprep.subr.bf16.mxu0 0
  %146 = vmatpush2.bf16.msra.mxu0 0
  %147 = vmatprep.subr.bf16.mxu0 0
  %148 = vmatpush2.bf16.msra.mxu0 0
  %149 = vmatprep.subr.bf16.mxu0 0
  %150 = vmatpush2.bf16.msra.mxu0 0
  %151 = vmatprep.subr.bf16.mxu0 0
  %152 = vmatpush2.bf16.msra.mxu0 0
  %153 = vmatprep.subr.bf16.mxu0 0
  %154 = vmatpush2.bf16.msra.mxu0 0
  %155 = vmatprep.subr.bf16.mxu0 0
  %156 = vmatpush2.bf16.msra.mxu0 0
  %157 = vmatprep.mubr.bf16.mxu0 0
  %158 = vmatmul.mubr.bf16.gmra.mxu0 %v102
  %v159 = vpop.f32.mrf.mxu0
  %v160 = vadd.f32 %v46, %v159
  %v161 = vpop.f32.mrf.mxu0
  %v162 = vpop.f32.mrf.mxu0
  %v163 = vadd.f32 %v46, %v162
  %v164 = vpop.f32.mrf.mxu0
  %165 = vmatprep.mubr.bf16.mxu0 0
  %166 = vmatmul.mubr.bf16.gmra.mxu0 %v105
  %v167 = vpop.f32.mrf.mxu0
  %v168 = vadd.f32 %v46, %v167
  %v169 = vpop.f32.mrf.mxu0
  %v170 = vpop.f32.mrf.mxu0
  %v171 = vadd.f32 %v46, %v170
  %v172 = vpop.f32.mrf.mxu0
  %173 = vmatprep.mubr.bf16.mxu0 0
  %174 = vmatmul.mubr.bf16.gmra.mxu0 %v108
  %v175 = vpop.f32.mrf.mxu0
  %v176 = vadd.f32 %v46, %v175
  %v177 = vpop.f32.mrf.mxu0
  %v178 = vpop.f32.mrf.mxu0
  %v179 = vadd.f32 %v46, %v178
  %v180 = vpop.f32.mrf.mxu0
  %181 = vmatprep.mubr.bf16.mxu0 0
  %182 = vmatmul.mubr.bf16.gmra.mxu0 %v111
  %v183 = vpop.f32.mrf.mxu0
  %v184 = vadd.f32 %v46, %v183
  %v185 = vpop.f32.mrf.mxu0
  %v186 = vpop.f32.mrf.mxu0
  %v187 = vadd.f32 %v46, %v186
  %v188 = vpop.f32.mrf.mxu0
  %189 = vmatprep.mubr.bf16.mxu0 0
  %190 = vmatmul.mubr.bf16.gmra.mxu0 %v114
  %v191 = vpop.f32.mrf.mxu0
  %v192 = vadd.f32 %v46, %v191
  %v193 = vpop.f32.mrf.mxu0
  %v194 = vpop.f32.mrf.mxu0
  %v195 = vadd.f32 %v46, %v194
  %v196 = vpop.f32.mrf.mxu0
  %197 = vmatprep.mubr.bf16.mxu0 0
  %198 = vmatmul.mubr.bf16.gmra.mxu0 %v117
  %v199 = vpop.f32.mrf.mxu0
  %v200 = vadd.f32 %v46, %v199
  %v201 = vpop.f32.mrf.mxu0
  %v202 = vpop.f32.mrf.mxu0
  %v203 = vadd.f32 %v46, %v202
  %v204 = vpop.f32.mrf.mxu0
  %205 = vmatprep.mubr.bf16.mxu0 0
  %206 = vmatmul.mubr.bf16.gmra.mxu0 %v120
  %v207 = vpop.f32.mrf.mxu0
  %v208 = vadd.f32 %v46, %v207
  %v209 = vpop.f32.mrf.mxu0
  %v210 = vpop.f32.mrf.mxu0
  %v211 = vadd.f32 %v46, %v210
  %v212 = vpop.f32.mrf.mxu0
  %213 = vmatprep.mubr.bf16.mxu0 0
  %214 = vmatmul.mubr.bf16.gmra.mxu0 %v123
  %v215 = vpop.f32.mrf.mxu0
  %v216 = vadd.f32 %v46, %v215
  %v217 = vpop.f32.mrf.mxu0
  %v218 = vpop.f32.mrf.mxu0
  %v219 = vadd.f32 %v46, %v218
  %v220 = vpop.f32.mrf.mxu0
  %221 = vdwg.mxu0
  %v222 = vmax.f32 %v160, 0.0
  %v223 = vmax.f32 %v163, 0.0
  %v224 = vmax.f32 %v168, 0.0
  %v225 = vmax.f32 %v171, 0.0
  %v226 = vmax.f32 %v176, 0.0
  %v227 = vmax.f32 %v179, 0.0
  %v228 = vmax.f32 %v184, 0.0
  %v229 = vmax.f32 %v187, 0.0
  %v230 = vmax.f32 %v192, 0.0
  %v231 = vmax.f32 %v195, 0.0
  %v232 = vmax.f32 %v200, 0.0
  %v233 = vmax.f32 %v203, 0.0
  %v234 = vmax.f32 %v208, 0.0
  %v235 = vmax.f32 %v211, 0.0
  %v236 = vmax.f32 %v216, 0.0
  %v237 = vmax.f32 %v219, 0.0
  %v238 = vpack.c.bf16 %v223, %v222
  %v239 = vpack.c.bf16 %v225, %v224
  %v240 = vpack.c.bf16 %v227, %v226
  %v241 = vpack.c.bf16 %v229, %v228
  %v242 = vpack.c.bf16 %v231, %v230
  %v243 = vpack.c.bf16 %v233, %v232
  %v244 = vpack.c.bf16 %v235, %v234
  %v245 = vpack.c.bf16 %v237, %v236
  %v246 = vld [vmem:[%s3] sm:$0xf]
  %v247 = vld [vmem:[%s3 + $0x4] sm:$0xf]
  %v248 = vld [vmem:[%s4] sm:$0x1]
  %v250 = vlaneseq
  %v251 = vshrl.u32 %v250, 7
  %v252 = vsub.s32 0, %v251
  %v253 = vrot.slane %v248, %v252
  %v257 = vunpack.c.l.b16 %v246
  %v258 = vunpack.c.l.b16 %v247
  %v259 = vpack.c.b16 %v258, %v257
  %vm261 = vcmask 130048
  %v263 = vsel %vm261, %v238, 0
  %v266 = vsel %vm261, %v239, 0
  %v269 = vsel %vm261, %v240, 0
  %v272 = vsel %vm261, %v241, 0
  %v275 = vsel %vm261, %v242, 0
  %v278 = vsel %vm261, %v243, 0
  %v281 = vsel %vm261, %v244, 0
  %v284 = vsel %vm261, %v245, 0
  %286 = vmatprep.subr.bf16.mxu0 0
  %287 = vmatpush1.bf16.msra.mxu0 0
  %288 = vmatprep.subr.bf16.mxu0 0
  %289 = vmatpush1.bf16.msra.mxu0 0
  %290 = vmatprep.subr.bf16.mxu0 0
  %291 = vmatpush1.bf16.msra.mxu0 0
  %292 = vmatprep.subr.bf16.mxu0 0
  %293 = vmatpush1.bf16.msra.mxu0 0
  %294 = vmatprep.subr.bf16.mxu0 0
  %295 = vmatpush1.bf16.msra.mxu0 0
  %296 = vmatprep.subr.bf16.mxu0 0
  %297 = vmatpush1.bf16.msra.mxu0 0
  %298 = vmatprep.subr.bf16.mxu0 0
  %299 = vmatpush1.bf16.msra.mxu0 0
  %300 = vmatprep.subr.bf16.mxu0 0
  %301 = vmatpush1.bf16.msra.mxu0 %v259
  %302 = vmatprep.subr.bf16.mxu0 0
  %303 = vmatpush2.bf16.msra.mxu0 0
  %304 = vmatprep.subr.bf16.mxu0 0
  %305 = vmatpush2.bf16.msra.mxu0 0
  %306 = vmatprep.subr.bf16.mxu0 0
  %307 = vmatpush2.bf16.msra.mxu0 0
  %308 = vmatprep.subr.bf16.mxu0 0
  %309 = vmatpush2.bf16.msra.mxu0 0
  %310 = vmatprep.subr.bf16.mxu0 0
  %311 = vmatpush2.bf16.msra.mxu0 0
  %312 = vmatprep.subr.bf16.mxu0 0
  %313 = vmatpush2.bf16.msra.mxu0 0
  %314 = vmatprep.subr.bf16.mxu0 0
  %315 = vmatpush2.bf16.msra.mxu0 0
  %316 = vmatprep.subr.bf16.mxu0 0
  %317 = vmatpush2.bf16.msra.mxu0 0
  %318 = vmatprep.mubr.bf16.mxu0 0
  %319 = vmatmul.mubr.bf16.gmra.mxu0 %v263
  %v320 = vpop.f32.mrf.mxu0
  %v321 = vadd.f32 %v253, %v320
  %v322 = vpop.f32.mrf.mxu0
  %v323 = vpop.f32.mrf.mxu0
  %v324 = vadd.f32 %v253, %v323
  %v325 = vpop.f32.mrf.mxu0
  %326 = vmatprep.mubr.bf16.mxu0 0
  %327 = vmatmul.mubr.bf16.gmra.mxu0 %v266
  %v328 = vpop.f32.mrf.mxu0
  %v329 = vadd.f32 %v253, %v328
  %v330 = vpop.f32.mrf.mxu0
  %v331 = vpop.f32.mrf.mxu0
  %v332 = vadd.f32 %v253, %v331
  %v333 = vpop.f32.mrf.mxu0
  %334 = vmatprep.mubr.bf16.mxu0 0
  %335 = vmatmul.mubr.bf16.gmra.mxu0 %v269
  %v336 = vpop.f32.mrf.mxu0
  %v337 = vadd.f32 %v253, %v336
  %v338 = vpop.f32.mrf.mxu0
  %v339 = vpop.f32.mrf.mxu0
  %v340 = vadd.f32 %v253, %v339
  %v341 = vpop.f32.mrf.mxu0
  %342 = vmatprep.mubr.bf16.mxu0 0
  %343 = vmatmul.mubr.bf16.gmra.mxu0 %v272
  %v344 = vpop.f32.mrf.mxu0
  %v345 = vadd.f32 %v253, %v344
  %v346 = vpop.f32.mrf.mxu0
  %v347 = vpop.f32.mrf.mxu0
  %v348 = vadd.f32 %v253, %v347
  %v349 = vpop.f32.mrf.mxu0
  %350 = vmatprep.mubr.bf16.mxu0 0
  %351 = vmatmul.mubr.bf16.gmra.mxu0 %v275
  %v352 = vpop.f32.mrf.mxu0
  %v353 = vadd.f32 %v253, %v352
  %v354 = vpop.f32.mrf.mxu0
  %v355 = vpop.f32.mrf.mxu0
  %v356 = vadd.f32 %v253, %v355
  %v357 = vpop.f32.mrf.mxu0
  %358 = vmatprep.mubr.bf16.mxu0 0
  %359 = vmatmul.mubr.bf16.gmra.mxu0 %v278
  %v360 = vpop.f32.mrf.mxu0
  %v361 = vadd.f32 %v253, %v360
  %v362 = vpop.f32.mrf.mxu0
  %v363 = vpop.f32.mrf.mxu0
  %v364 = vadd.f32 %v253, %v363
  %v365 = vpop.f32.mrf.mxu0
  %366 = vmatprep.mubr.bf16.mxu0 0
  %367 = vmatmul.mubr.bf16.gmra.mxu0 %v281
  %v368 = vpop.f32.mrf.mxu0
  %v369 = vadd.f32 %v253, %v368
  %v370 = vpop.f32.mrf.mxu0
  %v371 = vpop.f32.mrf.mxu0
  %v372 = vadd.f32 %v253, %v371
  %v373 = vpop.f32.mrf.mxu0
  %374 = vmatprep.mubr.bf16.mxu0 0
  %375 = vmatmul.mubr.bf16.gmra.mxu0 %v284
  %v376 = vpop.f32.mrf.mxu0
  %v377 = vadd.f32 %v253, %v376
  %v378 = vpop.f32.mrf.mxu0
  %v379 = vpop.f32.mrf.mxu0
  %v380 = vadd.f32 %v253, %v379
  %v381 = vpop.f32.mrf.mxu0
  %382 = vdwg.mxu0
  %v383 = vmax.f32 %v321, 0.0
  %v384 = vmax.f32 %v324, 0.0
  %v385 = vmax.f32 %v329, 0.0
  %v386 = vmax.f32 %v332, 0.0
  %v387 = vmax.f32 %v337, 0.0
  %v388 = vmax.f32 %v340, 0.0
  %v389 = vmax.f32 %v345, 0.0
  %v390 = vmax.f32 %v348, 0.0
  %v391 = vmax.f32 %v353, 0.0
  %v392 = vmax.f32 %v356, 0.0
  %v393 = vmax.f32 %v361, 0.0
  %v394 = vmax.f32 %v364, 0.0
  %v395 = vmax.f32 %v369, 0.0
  %v396 = vmax.f32 %v372, 0.0
  %v397 = vmax.f32 %v377, 0.0
  %v398 = vmax.f32 %v380, 0.0
  %v399 = vpack.c.bf16 %v384, %v383
  %v400 = vpack.c.bf16 %v386, %v385
  %v401 = vpack.c.bf16 %v388, %v387
  %v402 = vpack.c.bf16 %v390, %v389
  %v403 = vpack.c.bf16 %v392, %v391
  %v404 = vpack.c.bf16 %v394, %v393
  %v405 = vpack.c.bf16 %v396, %v395
  %v406 = vpack.c.bf16 %v398, %v397
  %v415 = vunpack.c.l.b16 %v399
  %v416 = vunpack.c.h.b16 %v399
  %v417 = vunpack.c.l.b16 %v400
  %v418 = vunpack.c.h.b16 %v400
  %v419 = vunpack.c.l.b16 %v401
  %v420 = vunpack.c.h.b16 %v401
  %v421 = vunpack.c.l.b16 %v402
  %v422 = vunpack.c.h.b16 %v402
  %v423 = vunpack.c.l.b16 %v403
  %v424 = vunpack.c.h.b16 %v403
  %v425 = vunpack.c.l.b16 %v404
  %v426 = vunpack.c.h.b16 %v404
  %v427 = vunpack.c.l.b16 %v405
  %v428 = vunpack.c.h.b16 %v405
  %v429 = vunpack.c.l.b16 %v406
  %v430 = vunpack.c.h.b16 %v406
  %v431 = vpack.c.b16 %v415, %v415
  %v432 = vpack.c.b16 %v416, %v416
  %v433 = vpack.c.b16 %v417, %v417
  %v434 = vpack.c.b16 %v418, %v418
  %v435 = vpack.c.b16 %v419, %v419
  %v436 = vpack.c.b16 %v420, %v420
  %v437 = vpack.c.b16 %v421, %v421
  %v438 = vpack.c.b16 %v422, %v422
  %v439 = vpack.c.b16 %v423, %v423
  %v440 = vpack.c.b16 %v424, %v424
  %v441 = vpack.c.b16 %v425, %v425
  %v442 = vpack.c.b16 %v426, %v426
  %v443 = vpack.c.b16 %v427, %v427
  %v444 = vpack.c.b16 %v428, %v428
  %v445 = vpack.c.b16 %v429, %v429
  %v446 = vpack.c.b16 %v430, %v430
  %vm463 = vcmask 125952
  %464 = vst.msk [vmem:[%s5] sm:$0xf] %vm463, %v431
  %465 = vst.msk [vmem:[%s5 + $0x4] sm:$0xf] %vm463, %v432
  %466 = vst.msk [vmem:[%s5 + $0x8] sm:$0xf] %vm463, %v433
  %467 = vst.msk [vmem:[%s5 + $0xc] sm:$0xf] %vm463, %v434
  %468 = vst.msk [vmem:[%s5 + $0x10] sm:$0xf] %vm463, %v435
  %469 = vst.msk [vmem:[%s5 + $0x14] sm:$0xf] %vm463, %v436
  %470 = vst.msk [vmem:[%s5 + $0x18] sm:$0xf] %vm463, %v437
  %471 = vst.msk [vmem:[%s5 + $0x1c] sm:$0xf] %vm463, %v438
  %472 = vst.msk [vmem:[%s5 + $0x20] sm:$0xf] %vm463, %v439
  %473 = vst.msk [vmem:[%s5 + $0x24] sm:$0xf] %vm463, %v440
  %474 = vst.msk [vmem:[%s5 + $0x28] sm:$0xf] %vm463, %v441
  %475 = vst.msk [vmem:[%s5 + $0x2c] sm:$0xf] %vm463, %v442
  %476 = vst.msk [vmem:[%s5 + $0x30] sm:$0xf] %vm463, %v443
  %477 = vst.msk [vmem:[%s5 + $0x34] sm:$0xf] %vm463, %v444
  %478 = vst.msk [vmem:[%s5 + $0x38] sm:$0xf] %vm463, %v445
  %479 = vst.msk [vmem:[%s5 + $0x3c] sm:$0xf] %vm463, %v446
  // Predicated region
  $region22: #{enhanced_degree_net_forward.5} parent=0 // pred_check
    _
  $region23: #{enhanced_degree_net_forward.5} parent=0 // pred_check_branch
    %481 = sbr.rel (0) target = $region25
  $region24: #{enhanced_degree_net_forward.5} parent=0 // pred_region
    _
  $region25: #{enhanced_degree_net_forward.5} parent=0 // pred_fallthru
    _
  // Predicated region
  $region26: #{enhanced_degree_net_forward.5} parent=0 // pred_check
    _
  $region27: #{enhanced_degree_net_forward.5} parent=0 // pred_check_branch
    %483 = sbr.rel (0) target = $region29
  $region28: #{enhanced_degree_net_forward.5} parent=0 // pred_region
    _
  $region29: #{enhanced_degree_net_forward.5} parent=0 // pred_fallthru
    _

// kernel: enhanced_degree_net_forward.6
$region0: #{enhanced_degree_net_forward.6}
  #allocation0 [shape = 'u32[]', space=smem, size = 0x4, offset = 0x4, fixed_abs, tag = 'smem constant byte address 0x4 - core index']
  #allocation1 [shape = 'u32[144,128]{1,0:T(1,128)}', space=vmem, size = 0x12000, scoped, tag = 'internal scratch']
  %s0 = inlined_call_operand.vmem [shape: bf16[32,64], index: 0, kind: input, shape index: {}]
  %s1 = inlined_call_operand.vmem [shape: bf16[64,24], index: 1, kind: input, shape index: {}]
  %s2 = inlined_call_operand.vmem [shape: f32[1,24], index: 2, kind: input, shape index: {}]
  %s3 = inlined_call_operand.vmem [shape: bf16[24,24], index: 3, kind: input, shape index: {}]
  %s4 = inlined_call_operand.vmem [shape: f32[1,24], index: 4, kind: input, shape index: {}]
  %s5 = inlined_call_operand.vmem [shape: bf16[32,24], index: 5, kind: output, shape index: {}]
  %s6 = sld [smem:[#allocation0]]
  $region30: #{enhanced_degree_net_forward.6} parent=0
    _
  %s8 = ssub.s32 1, %s6
  %s9 = scalar_select 0, %s8, %s6
  // Predicated region
  $region2: #{enhanced_degree_net_forward.6} parent=0 // pred_check
    _
  $region3: #{enhanced_degree_net_forward.6} parent=0 // pred_check_branch
    %11 = sbr.rel (0) target = $region5
  $region4: #{enhanced_degree_net_forward.6} parent=0 // pred_region
    _
  $region5: #{enhanced_degree_net_forward.6} parent=0 // pred_fallthru
    _
  // Predicated region
  $region6: #{enhanced_degree_net_forward.6} parent=0 // pred_check
    _
  $region7: #{enhanced_degree_net_forward.6} parent=0 // pred_check_branch
    %13 = sbr.rel (0) target = $region9
  $region8: #{enhanced_degree_net_forward.6} parent=0 // pred_region
    _
  $region9: #{enhanced_degree_net_forward.6} parent=0 // pred_fallthru
    _
  // Predicated region
  $region10: #{enhanced_degree_net_forward.6} parent=0 // pred_check
    _
  $region11: #{enhanced_degree_net_forward.6} parent=0 // pred_check_branch
    %15 = sbr.rel (0) target = $region13
  $region12: #{enhanced_degree_net_forward.6} parent=0 // pred_region
    _
  $region13: #{enhanced_degree_net_forward.6} parent=0 // pred_fallthru
    _
  // Predicated region
  $region14: #{enhanced_degree_net_forward.6} parent=0 // pred_check
    _
  $region15: #{enhanced_degree_net_forward.6} parent=0 // pred_check_branch
    %17 = sbr.rel (0) target = $region17
  $region16: #{enhanced_degree_net_forward.6} parent=0 // pred_region
    _
  $region17: #{enhanced_degree_net_forward.6} parent=0 // pred_fallthru
    _
  // Predicated region
  $region18: #{enhanced_degree_net_forward.6} parent=0 // pred_check
    _
  $region19: #{enhanced_degree_net_forward.6} parent=0 // pred_check_branch
    %19 = sbr.rel (0) target = $region21
  $region20: #{enhanced_degree_net_forward.6} parent=0 // pred_region
    _
  $region21: #{enhanced_degree_net_forward.6} parent=0 // pred_fallthru
    _
  %v21 = vld [vmem:[%s0] sm:$0xf]
  %v22 = vld [vmem:[%s0 + $0x4] sm:$0xf]
  %v23 = vld [vmem:[%s0 + $0x8] sm:$0xf]
  %v24 = vld [vmem:[%s0 + $0xc] sm:$0xf]
  %v25 = vld [vmem:[%s1] sm:$0xf]
  %v26 = vld [vmem:[%s1 + $0x4] sm:$0xf]
  %v27 = vld [vmem:[%s1 + $0x8] sm:$0xf]
  %v28 = vld [vmem:[%s1 + $0xc] sm:$0xf]
  %v29 = vld [vmem:[%s1 + $0x10] sm:$0xf]
  %v30 = vld [vmem:[%s1 + $0x14] sm:$0xf]
  %v31 = vld [vmem:[%s1 + $0x18] sm:$0xf]
  %v32 = vld [vmem:[%s1 + $0x1c] sm:$0xf]
  %v33 = vld [vmem:[%s2] sm:$0x1]
  %v35 = vlaneseq
  %v36 = vshrl.u32 %v35, 7
  %v37 = vsub.s32 0, %v36
  %v38 = vrot.slane %v33, %v37
  %v44 = vunpack.c.l.b16 %v21
  %v45 = vunpack.c.l.b16 %v22
  %v46 = vunpack.c.l.b16 %v23
  %v47 = vunpack.c.l.b16 %v24
  %v48 = vpack.c.b16 %v45, %v44
  %v49 = vpack.c.b16 %v47, %v46
  %v58 = vunpack.c.l.b16 %v25
  %v59 = vunpack.c.l.b16 %v26
  %v60 = vunpack.c.l.b16 %v27
  %v61 = vunpack.c.l.b16 %v28
  %v62 = vunpack.c.l.b16 %v29
  %v63 = vunpack.c.l.b16 %v30
  %v64 = vunpack.c.l.b16 %v31
  %v65 = vunpack.c.l.b16 %v32
  %v66 = vpack.c.b16 %v59, %v58
  %v67 = vpack.c.b16 %v61, %v60
  %v68 = vpack.c.b16 %v63, %v62
  %v69 = vpack.c.b16 %v65, %v64
  %vm74 = vcmask 523264
  %v76 = vsel %vm74, %v48, 0
  %v79 = vsel %vm74, %v49, 0
  %81 = vmatprep.subr.bf16.mxu0 0
  %82 = vmatpush1.bf16.msra.mxu0 0
  %83 = vmatprep.subr.bf16.mxu0 0
  %84 = vmatpush1.bf16.msra.mxu0 0
  %85 = vmatprep.subr.bf16.mxu0 0
  %86 = vmatpush1.bf16.msra.mxu0 0
  %87 = vmatprep.subr.bf16.mxu0 0
  %88 = vmatpush1.bf16.msra.mxu0 0
  %89 = vmatprep.subr.bf16.mxu0 0
  %90 = vmatpush1.bf16.msra.mxu0 %v69
  %91 = vmatprep.subr.bf16.mxu0 0
  %92 = vmatpush1.bf16.msra.mxu0 %v68
  %93 = vmatprep.subr.bf16.mxu0 0
  %94 = vmatpush1.bf16.msra.mxu0 %v67
  %95 = vmatprep.subr.bf16.mxu0 0
  %96 = vmatpush1.bf16.msra.mxu0 %v66
  %97 = vmatprep.subr.bf16.mxu0 0
  %98 = vmatpush2.bf16.msra.mxu0 0
  %99 = vmatprep.subr.bf16.mxu0 0
  %100 = vmatpush2.bf16.msra.mxu0 0
  %101 = vmatprep.subr.bf16.mxu0 0
  %102 = vmatpush2.bf16.msra.mxu0 0
  %103 = vmatprep.subr.bf16.mxu0 0
  %104 = vmatpush2.bf16.msra.mxu0 0
  %105 = vmatprep.subr.bf16.mxu0 0
  %106 = vmatpush2.bf16.msra.mxu0 0
  %107 = vmatprep.subr.bf16.mxu0 0
  %108 = vmatpush2.bf16.msra.mxu0 0
  %109 = vmatprep.subr.bf16.mxu0 0
  %110 = vmatpush2.bf16.msra.mxu0 0
  %111 = vmatprep.subr.bf16.mxu0 0
  %112 = vmatpush2.bf16.msra.mxu0 0
  %113 = vmatprep.mubr.bf16.mxu0 0
  %114 = vmatmul.mubr.bf16.gmra.mxu0 %v76
  %v115 = vpop.f32.mrf.mxu0
  %v116 = vadd.f32 %v38, %v115
  %v117 = vpop.f32.mrf.mxu0
  %v118 = vpop.f32.mrf.mxu0
  %v119 = vadd.f32 %v38, %v118
  %v120 = vpop.f32.mrf.mxu0
  %121 = vmatprep.mubr.bf16.mxu0 0
  %122 = vmatmul.mubr.bf16.gmra.mxu0 %v79
  %v123 = vpop.f32.mrf.mxu0
  %v124 = vadd.f32 %v38, %v123
  %v125 = vpop.f32.mrf.mxu0
  %v126 = vpop.f32.mrf.mxu0
  %v127 = vadd.f32 %v38, %v126
  %v128 = vpop.f32.mrf.mxu0
  %129 = vdwg.mxu0
  %v130 = vmax.f32 %v116, 0.0
  %v131 = vmax.f32 %v119, 0.0
  %v132 = vmax.f32 %v124, 0.0
  %v133 = vmax.f32 %v127, 0.0
  %v134 = vpack.c.bf16 %v131, %v130
  %v135 = vpack.c.bf16 %v133, %v132
  %v136 = vld [vmem:[%s3] sm:$0xf]
  %v137 = vld [vmem:[%s3 + $0x4] sm:$0xf]
  %v138 = vld [vmem:[%s3 + $0x8] sm:$0xf]
  %v139 = vld [vmem:[%s4] sm:$0x1]
  %v141 = vlaneseq
  %v142 = vshrl.u32 %v141, 7
  %v143 = vsub.s32 0, %v142
  %v144 = vrot.slane %v139, %v143
  %v149 = vunpack.c.l.b16 %v136
  %v150 = vunpack.c.l.b16 %v137
  %v151 = vunpack.c.l.b16 %v138
  %v152 = vpack.c.b16 %v150, %v149
  %v153 = vpack.c.b16 %v151, %v151
  %vm155 = vcmask 195584
  %v157 = vsel %vm155, %v134, 0
  %v160 = vsel %vm155, %v135, 0
  %vm162 = vcmask 1043456
  %v164 = vsel %vm162, %v153, 0
  %166 = vmatprep.subr.bf16.mxu0 0
  %167 = vmatpush1.bf16.msra.mxu0 0
  %168 = vmatprep.subr.bf16.mxu0 0
  %169 = vmatpush1.bf16.msra.mxu0 0
  %170 = vmatprep.subr.bf16.mxu0 0
  %171 = vmatpush1.bf16.msra.mxu0 0
  %172 = vmatprep.subr.bf16.mxu0 0
  %173 = vmatpush1.bf16.msra.mxu0 0
  %174 = vmatprep.subr.bf16.mxu0 0
  %175 = vmatpush1.bf16.msra.mxu0 0
  %176 = vmatprep.subr.bf16.mxu0 0
  %177 = vmatpush1.bf16.msra.mxu0 0
  %178 = vmatprep.subr.bf16.mxu0 0
  %179 = vmatpush1.bf16.msra.mxu0 %v164
  %180 = vmatprep.subr.bf16.mxu0 0
  %181 = vmatpush1.bf16.msra.mxu0 %v152
  %182 = vmatprep.subr.bf16.mxu0 0
  %183 = vmatpush2.bf16.msra.mxu0 0
  %184 = vmatprep.subr.bf16.mxu0 0
  %185 = vmatpush2.bf16.msra.mxu0 0
  %186 = vmatprep.subr.bf16.mxu0 0
  %187 = vmatpush2.bf16.msra.mxu0 0
  %188 = vmatprep.subr.bf16.mxu0 0
  %189 = vmatpush2.bf16.msra.mxu0 0
  %190 = vmatprep.subr.bf16.mxu0 0
  %191 = vmatpush2.bf16.msra.mxu0 0
  %192 = vmatprep.subr.bf16.mxu0 0
  %193 = vmatpush2.bf16.msra.mxu0 0
  %194 = vmatprep.subr.bf16.mxu0 0
  %195 = vmatpush2.bf16.msra.mxu0 0
  %196 = vmatprep.subr.bf16.mxu0 0
  %197 = vmatpush2.bf16.msra.mxu0 0
  %198 = vmatprep.mubr.bf16.mxu0 0
  %199 = vmatmul.mubr.bf16.gmra.mxu0 %v157
  %v200 = vpop.f32.mrf.mxu0
  %v201 = vadd.f32 %v144, %v200
  %v202 = vpop.f32.mrf.mxu0
  %v203 = vpop.f32.mrf.mxu0
  %v204 = vadd.f32 %v144, %v203
  %v205 = vpop.f32.mrf.mxu0
  %206 = vmatprep.mubr.bf16.mxu0 0
  %207 = vmatmul.mubr.bf16.gmra.mxu0 %v160
  %v208 = vpop.f32.mrf.mxu0
  %v209 = vadd.f32 %v144, %v208
  %v210 = vpop.f32.mrf.mxu0
  %v211 = vpop.f32.mrf.mxu0
  %v212 = vadd.f32 %v144, %v211
  %v213 = vpop.f32.mrf.mxu0
  %214 = vdwg.mxu0
  %v215 = vmax.f32 %v201, 0.0
  %v216 = vmax.f32 %v204, 0.0
  %v217 = vmax.f32 %v209, 0.0
  %v218 = vmax.f32 %v212, 0.0
  %v219 = vpack.c.bf16 %v216, %v215
  %v220 = vpack.c.bf16 %v218, %v217
  %v223 = vunpack.c.l.b16 %v219
  %v224 = vunpack.c.h.b16 %v219
  %v225 = vunpack.c.l.b16 %v220
  %v226 = vunpack.c.h.b16 %v220
  %v227 = vpack.c.b16 %v223, %v223
  %v228 = vpack.c.b16 %v224, %v224
  %v229 = vpack.c.b16 %v225, %v225
  %v230 = vpack.c.b16 %v226, %v226
  %vm235 = vcmask 191488
  %236 = vst.msk [vmem:[%s5] sm:$0xf] %vm235, %v227
  %237 = vst.msk [vmem:[%s5 + $0x4] sm:$0xf] %vm235, %v228
  %238 = vst.msk [vmem:[%s5 + $0x8] sm:$0xf] %vm235, %v229
  %239 = vst.msk [vmem:[%s5 + $0xc] sm:$0xf] %vm235, %v230
  // Predicated region
  $region22: #{enhanced_degree_net_forward.6} parent=0 // pred_check
    _
  $region23: #{enhanced_degree_net_forward.6} parent=0 // pred_check_branch
    %241 = sbr.rel (0) target = $region25
  $region24: #{enhanced_degree_net_forward.6} parent=0 // pred_region
    _
  $region25: #{enhanced_degree_net_forward.6} parent=0 // pred_fallthru
    _
  // Predicated region
  $region26: #{enhanced_degree_net_forward.6} parent=0 // pred_check
    _
  $region27: #{enhanced_degree_net_forward.6} parent=0 // pred_check_branch
    %243 = sbr.rel (0) target = $region29
  $region28: #{enhanced_degree_net_forward.6} parent=0 // pred_region
    _
  $region29: #{enhanced_degree_net_forward.6} parent=0 // pred_fallthru
    _

// kernel: enhanced_degree_net_forward.7
$region0: #{enhanced_degree_net_forward.7}
  #allocation0 [shape = 'u32[]', space=smem, size = 0x4, offset = 0x4, fixed_abs, tag = 'smem constant byte address 0x4 - core index']
  #allocation1 [shape = 'u32[144,128]{1,0:T(1,128)}', space=vmem, size = 0x12000, scoped, tag = 'internal scratch']
  %s0 = inlined_call_operand.smem [shape: u32[32], index: -1, kind: input, shape index: {}]
  %s1 = sld [smem:[%s0]]
  %s2 = scalar_lea.smem %s0, 1
  %s3 = sld [smem:[%s2]]
  %s4 = scalar_lea.smem %s0, 2
  %s5 = sld [smem:[%s4]]
  %s6 = scalar_lea.smem %s0, 3
  %s7 = sld [smem:[%s6]]
  %s8 = scalar_lea.smem %s0, 4
  %s9 = sld [smem:[%s8]]
  %s10 = scalar_lea.smem %s0, 5
  %s11 = sld [smem:[%s10]]
  %s12 = scalar_lea.smem %s0, 6
  %s13 = sld [smem:[%s12]]
  %s14 = scalar_lea.smem %s0, 7
  %s15 = sld [smem:[%s14]]
  %s16 = scalar_lea.smem %s0, 8
  %s17 = sld [smem:[%s16]]
  %s18 = scalar_lea.smem %s0, 9
  %s19 = sld [smem:[%s18]]
  %s20 = scalar_lea.smem %s0, 10
  %s21 = sld [smem:[%s20]]
  %s22 = scalar_lea.smem %s0, 11
  %s23 = sld [smem:[%s22]]
  %s24 = scalar_lea.smem %s0, 12
  %s25 = sld [smem:[%s24]]
  %s26 = scalar_lea.smem %s0, 13
  %s27 = sld [smem:[%s26]]
  %s28 = scalar_lea.smem %s0, 14
  %s29 = sld [smem:[%s28]]
  %s30 = scalar_lea.smem %s0, 15
  %s31 = sld [smem:[%s30]]
  %s32 = scalar_lea.smem %s0, 16
  %s33 = sld [smem:[%s32]]
  %s34 = scalar_lea.smem %s0, 17
  %s35 = sld [smem:[%s34]]
  %s36 = scalar_lea.smem %s0, 18
  %s37 = sld [smem:[%s36]]
  %s38 = scalar_lea.smem %s0, 19
  %s39 = sld [smem:[%s38]]
  %s40 = scalar_lea.smem %s0, 20
  %s41 = sld [smem:[%s40]]
  %s42 = scalar_lea.smem %s0, 21
  %s43 = sld [smem:[%s42]]
  %s44 = scalar_lea.smem %s0, 22
  %s45 = sld [smem:[%s44]]
  %s46 = scalar_lea.smem %s0, 23
  %s47 = sld [smem:[%s46]]
  %s48 = scalar_lea.smem %s0, 24
  %s49 = sld [smem:[%s48]]
  %s50 = scalar_lea.smem %s0, 25
  %s51 = sld [smem:[%s50]]
  %s52 = scalar_lea.smem %s0, 26
  %s53 = sld [smem:[%s52]]
  %s54 = scalar_lea.smem %s0, 27
  %s55 = sld [smem:[%s54]]
  %s56 = scalar_lea.smem %s0, 28
  %s57 = sld [smem:[%s56]]
  %s58 = scalar_lea.smem %s0, 29
  %s59 = sld [smem:[%s58]]
  %s60 = scalar_lea.smem %s0, 30
  %s61 = sld [smem:[%s60]]
  %s62 = scalar_lea.smem %s0, 31
  %s63 = sld [smem:[%s62]]
  %64 = xla_tuple %s59, %s61, %s63
  %s65 = sld [smem:[#allocation0]]
  $region146: #{enhanced_degree_net_forward.7} parent=0
    _
  %s67 = ssub.s32 1, %s65
  %s68 = scalar_select 0, %s67, %s65
  $region1: #{enhanced_degree_net_forward.7} parent=0
    #allocation2 [shape = 'u8[512]{0}', space=smem, size = 0x200, scoped, tag = 'input window, operand 0, single buffered']
    #allocation3 [shape = 's32[1]{0}', space=sflag, size = 0x4, scoped, tag = 'scoped memory for enhanced_degree_net_forward.7']
    %69 = vsyncpa [#allocation3], 0
    // Predicated region
    $region2: #{enhanced_degree_net_forward.7} parent=1 // pred_check
      _
    $region3: #{enhanced_degree_net_forward.7} parent=1 // pred_check_branch
      %71 = sbr.rel (0) target = $region5
    $region4: #{enhanced_degree_net_forward.7} parent=1 // pred_region
      %s73 = ssub.s32 16, 16
      %74 = vsyncadd [#allocation3], %s73
      %s76 = sshll.u32 %s1, 4
      %s77 = int_to_ptr.vmem [resolvable:$true] %s76
      %79 = dma.vmem_to_smem %s77, 16, [#allocation2], [#allocation3]
    $region5: #{enhanced_degree_net_forward.7} parent=1 // pred_fallthru
      _
    // Predicated region
    $region6: #{enhanced_degree_net_forward.7} parent=1 // pred_check
      _
    $region7: #{enhanced_degree_net_forward.7} parent=1 // pred_check_branch
      %81 = sbr.rel (0) target = $region9
    $region8: #{enhanced_degree_net_forward.7} parent=1 // pred_region
      _
    $region9: #{enhanced_degree_net_forward.7} parent=1 // pred_fallthru
      _
    // Predicated region
    $region10: #{enhanced_degree_net_forward.7} parent=1 // pred_check
      _
    $region11: #{enhanced_degree_net_forward.7} parent=1 // pred_check_branch
      %83 = sbr.rel (0) target = $region13
    $region12: #{enhanced_degree_net_forward.7} parent=1 // pred_region
      _
    $region13: #{enhanced_degree_net_forward.7} parent=1 // pred_fallthru
      _
    // Predicated region
    $region14: #{enhanced_degree_net_forward.7} parent=1 // pred_check
      _
    $region15: #{enhanced_degree_net_forward.7} parent=1 // pred_check_branch
      %85 = sbr.rel (0) target = $region17
    $region16: #{enhanced_degree_net_forward.7} parent=1 // pred_region
      _
    $region17: #{enhanced_degree_net_forward.7} parent=1 // pred_fallthru
      _
    // Predicated region
    $region18: #{enhanced_degree_net_forward.7} parent=1 // pred_check
      _
    $region19: #{enhanced_degree_net_forward.7} parent=1 // pred_check_branch
      %87 = sbr.rel (0) target = $region21
    $region20: #{enhanced_degree_net_forward.7} parent=1 // pred_region
      _
    $region21: #{enhanced_degree_net_forward.7} parent=1 // pred_fallthru
      _
    // Predicated region
    $region22: #{enhanced_degree_net_forward.7} parent=1 // pred_check
      _
    $region23: #{enhanced_degree_net_forward.7} parent=1 // pred_check_branch
      %89 = sbr.rel (0) target = $region25
    $region24: #{enhanced_degree_net_forward.7} parent=1 // pred_region
      _
    $region25: #{enhanced_degree_net_forward.7} parent=1 // pred_fallthru
      _
    // Predicated region
    $region26: #{enhanced_degree_net_forward.7} parent=1 // pred_check
      _
    $region27: #{enhanced_degree_net_forward.7} parent=1 // pred_check_branch
      %91 = sbr.rel (0) target = $region29
    $region28: #{enhanced_degree_net_forward.7} parent=1 // pred_region
      _
    $region29: #{enhanced_degree_net_forward.7} parent=1 // pred_fallthru
      _
    // Predicated region
    $region30: #{enhanced_degree_net_forward.7} parent=1 // pred_check
      _
    $region31: #{enhanced_degree_net_forward.7} parent=1 // pred_check_branch
      %93 = sbr.rel (0) target = $region33
    $region32: #{enhanced_degree_net_forward.7} parent=1 // pred_region
      _
    $region33: #{enhanced_degree_net_forward.7} parent=1 // pred_fallthru
      _
    // Predicated region
    $region34: #{enhanced_degree_net_forward.7} parent=1 // pred_check
      _
    $region35: #{enhanced_degree_net_forward.7} parent=1 // pred_check_branch
      %95 = sbr.rel (0) target = $region37
    $region36: #{enhanced_degree_net_forward.7} parent=1 // pred_region
      _
    $region37: #{enhanced_degree_net_forward.7} parent=1 // pred_fallthru
      _
    // Predicated region
    $region38: #{enhanced_degree_net_forward.7} parent=1 // pred_check
      _
    $region39: #{enhanced_degree_net_forward.7} parent=1 // pred_check_branch
      %97 = sbr.rel (0) target = $region41
    $region40: #{enhanced_degree_net_forward.7} parent=1 // pred_region
      _
    $region41: #{enhanced_degree_net_forward.7} parent=1 // pred_fallthru
      _
    // Predicated region
    $region42: #{enhanced_degree_net_forward.7} parent=1 // pred_check
      _
    $region43: #{enhanced_degree_net_forward.7} parent=1 // pred_check_branch
      %99 = sbr.rel (0) target = $region45
    $region44: #{enhanced_degree_net_forward.7} parent=1 // pred_region
      _
    $region45: #{enhanced_degree_net_forward.7} parent=1 // pred_fallthru
      _
    // Predicated region
    $region46: #{enhanced_degree_net_forward.7} parent=1 // pred_check
      _
    $region47: #{enhanced_degree_net_forward.7} parent=1 // pred_check_branch
      %101 = sbr.rel (0) target = $region49
    $region48: #{enhanced_degree_net_forward.7} parent=1 // pred_region
      _
    $region49: #{enhanced_degree_net_forward.7} parent=1 // pred_fallthru
      _
    // Predicated region
    $region50: #{enhanced_degree_net_forward.7} parent=1 // pred_check
      _
    $region51: #{enhanced_degree_net_forward.7} parent=1 // pred_check_branch
      %103 = sbr.rel (0) target = $region53
    $region52: #{enhanced_degree_net_forward.7} parent=1 // pred_region
      _
    $region53: #{enhanced_degree_net_forward.7} parent=1 // pred_fallthru
      _
    // Predicated region
    $region54: #{enhanced_degree_net_forward.7} parent=1 // pred_check
      _
    $region55: #{enhanced_degree_net_forward.7} parent=1 // pred_check_branch
      %105 = sbr.rel (0) target = $region57
    $region56: #{enhanced_degree_net_forward.7} parent=1 // pred_region
      _
    $region57: #{enhanced_degree_net_forward.7} parent=1 // pred_fallthru
      _
    // Predicated region
    $region58: #{enhanced_degree_net_forward.7} parent=1 // pred_check
      _
    $region59: #{enhanced_degree_net_forward.7} parent=1 // pred_check_branch
      %107 = sbr.rel (0) target = $region61
    $region60: #{enhanced_degree_net_forward.7} parent=1 // pred_region
      _
    $region61: #{enhanced_degree_net_forward.7} parent=1 // pred_fallthru
      _
    // Predicated region
    $region62: #{enhanced_degree_net_forward.7} parent=1 // pred_check
      _
    $region63: #{enhanced_degree_net_forward.7} parent=1 // pred_check_branch
      %109 = sbr.rel (0) target = $region65
    $region64: #{enhanced_degree_net_forward.7} parent=1 // pred_region
      _
    $region65: #{enhanced_degree_net_forward.7} parent=1 // pred_fallthru
      _
    // Predicated region
    $region66: #{enhanced_degree_net_forward.7} parent=1 // pred_check
      _
    $region67: #{enhanced_degree_net_forward.7} parent=1 // pred_check_branch
      %111 = sbr.rel (0) target = $region69
    $region68: #{enhanced_degree_net_forward.7} parent=1 // pred_region
      _
    $region69: #{enhanced_degree_net_forward.7} parent=1 // pred_fallthru
      _
    // Predicated region
    $region70: #{enhanced_degree_net_forward.7} parent=1 // pred_check
      _
    $region71: #{enhanced_degree_net_forward.7} parent=1 // pred_check_branch
      %113 = sbr.rel (0) target = $region73
    $region72: #{enhanced_degree_net_forward.7} parent=1 // pred_region
      _
    $region73: #{enhanced_degree_net_forward.7} parent=1 // pred_fallthru
      _
    // Predicated region
    $region74: #{enhanced_degree_net_forward.7} parent=1 // pred_check
      _
    $region75: #{enhanced_degree_net_forward.7} parent=1 // pred_check_branch
      %115 = sbr.rel (0) target = $region77
    $region76: #{enhanced_degree_net_forward.7} parent=1 // pred_region
      _
    $region77: #{enhanced_degree_net_forward.7} parent=1 // pred_fallthru
      _
    // Predicated region
    $region78: #{enhanced_degree_net_forward.7} parent=1 // pred_check
      _
    $region79: #{enhanced_degree_net_forward.7} parent=1 // pred_check_branch
      %117 = sbr.rel (0) target = $region81
    $region80: #{enhanced_degree_net_forward.7} parent=1 // pred_region
      _
    $region81: #{enhanced_degree_net_forward.7} parent=1 // pred_fallthru
      _
    // Predicated region
    $region82: #{enhanced_degree_net_forward.7} parent=1 // pred_check
      _
    $region83: #{enhanced_degree_net_forward.7} parent=1 // pred_check_branch
      %119 = sbr.rel (0) target = $region85
    $region84: #{enhanced_degree_net_forward.7} parent=1 // pred_region
      _
    $region85: #{enhanced_degree_net_forward.7} parent=1 // pred_fallthru
      _
    // Predicated region
    $region86: #{enhanced_degree_net_forward.7} parent=1 // pred_check
      _
    $region87: #{enhanced_degree_net_forward.7} parent=1 // pred_check_branch
      %121 = sbr.rel (0) target = $region89
    $region88: #{enhanced_degree_net_forward.7} parent=1 // pred_region
      _
    $region89: #{enhanced_degree_net_forward.7} parent=1 // pred_fallthru
      _
    // Predicated region
    $region90: #{enhanced_degree_net_forward.7} parent=1 // pred_check
      _
    $region91: #{enhanced_degree_net_forward.7} parent=1 // pred_check_branch
      %123 = sbr.rel (0) target = $region93
    $region92: #{enhanced_degree_net_forward.7} parent=1 // pred_region
      _
    $region93: #{enhanced_degree_net_forward.7} parent=1 // pred_fallthru
      _
    // Predicated region
    $region94: #{enhanced_degree_net_forward.7} parent=1 // pred_check
      _
    $region95: #{enhanced_degree_net_forward.7} parent=1 // pred_check_branch
      %125 = sbr.rel (0) target = $region97
    $region96: #{enhanced_degree_net_forward.7} parent=1 // pred_region
      _
    $region97: #{enhanced_degree_net_forward.7} parent=1 // pred_fallthru
      _
    // Predicated region
    $region98: #{enhanced_degree_net_forward.7} parent=1 // pred_check
      _
    $region99: #{enhanced_degree_net_forward.7} parent=1 // pred_check_branch
      %127 = sbr.rel (0) target = $region101
    $region100: #{enhanced_degree_net_forward.7} parent=1 // pred_region
      _
    $region101: #{enhanced_degree_net_forward.7} parent=1 // pred_fallthru
      _
    // Predicated region
    $region102: #{enhanced_degree_net_forward.7} parent=1 // pred_check
      _
    $region103: #{enhanced_degree_net_forward.7} parent=1 // pred_check_branch
      %129 = sbr.rel (0) target = $region105
    $region104: #{enhanced_degree_net_forward.7} parent=1 // pred_region
      _
    $region105: #{enhanced_degree_net_forward.7} parent=1 // pred_fallthru
      _
    // Predicated region
    $region106: #{enhanced_degree_net_forward.7} parent=1 // pred_check
      _
    $region107: #{enhanced_degree_net_forward.7} parent=1 // pred_check_branch
      %131 = sbr.rel (0) target = $region109
    $region108: #{enhanced_degree_net_forward.7} parent=1 // pred_region
      _
    $region109: #{enhanced_degree_net_forward.7} parent=1 // pred_fallthru
      _
    // Predicated region
    $region110: #{enhanced_degree_net_forward.7} parent=1 // pred_check
      _
    $region111: #{enhanced_degree_net_forward.7} parent=1 // pred_check_branch
      %133 = sbr.rel (0) target = $region113
    $region112: #{enhanced_degree_net_forward.7} parent=1 // pred_region
      _
    $region113: #{enhanced_degree_net_forward.7} parent=1 // pred_fallthru
      _
    // Predicated region
    $region114: #{enhanced_degree_net_forward.7} parent=1 // pred_check
      _
    $region115: #{enhanced_degree_net_forward.7} parent=1 // pred_check_branch
      %135 = sbr.rel (0) target = $region117
    $region116: #{enhanced_degree_net_forward.7} parent=1 // pred_region
      _
    $region117: #{enhanced_degree_net_forward.7} parent=1 // pred_fallthru
      _
    // Predicated region
    $region118: #{enhanced_degree_net_forward.7} parent=1 // pred_check
      _
    $region119: #{enhanced_degree_net_forward.7} parent=1 // pred_check_branch
      %137 = sbr.rel (0) target = $region121
    $region120: #{enhanced_degree_net_forward.7} parent=1 // pred_region
      %138 = dma.done [#allocation3], 16
    $region121: #{enhanced_degree_net_forward.7} parent=1 // pred_fallthru
      _
    %139 = sfence
    %v141 = vld [vmem:[%s3] sm:$0xf]
    %v142 = vld [vmem:[%s19] sm:$0xf]
    %v143 = vld [vmem:[%s19 + $0x4] sm:$0xf]
    %v144 = vld [vmem:[%s19 + $0x8] sm:$0xf]
    %v145 = vld [vmem:[%s19 + $0xc] sm:$0xf]
    %v146 = vld [vmem:[%s19 + $0x10] sm:$0xf]
    %v147 = vld [vmem:[%s19 + $0x14] sm:$0xf]
    %v148 = vld [vmem:[%s19 + $0x18] sm:$0xf]
    %v149 = vld [vmem:[%s19 + $0x1c] sm:$0xf]
    %v150 = vld [vmem:[%s19 + $0x20] sm:$0xf]
    %v151 = vld [vmem:[%s19 + $0x24] sm:$0xf]
    %v152 = vld [vmem:[%s19 + $0x28] sm:$0xf]
    %v153 = vld [vmem:[%s19 + $0x2c] sm:$0xf]
    %v154 = vld [vmem:[%s21] sm:$0x1]
    %v156 = vlaneseq
    %v157 = vshrl.u32 %v156, 7
    %v158 = vsub.s32 0, %v157
    %v159 = vrot.slane %v154, %v158
    %v173 = vunpack.c.l.b16 %v142
    %v174 = vunpack.c.l.b16 %v143
    %v175 = vunpack.c.l.b16 %v144
    %v176 = vunpack.c.l.b16 %v145
    %v177 = vunpack.c.l.b16 %v146
    %v178 = vunpack.c.l.b16 %v147
    %v179 = vunpack.c.l.b16 %v148
    %v180 = vunpack.c.l.b16 %v149
    %v181 = vunpack.c.l.b16 %v150
    %v182 = vunpack.c.l.b16 %v151
    %v183 = vunpack.c.l.b16 %v152
    %v184 = vunpack.c.l.b16 %v153
    %v185 = vpack.c.b16 %v174, %v173
    %v186 = vpack.c.b16 %v176, %v175
    %v187 = vpack.c.b16 %v178, %v177
    %v188 = vpack.c.b16 %v180, %v179
    %v189 = vpack.c.b16 %v182, %v181
    %v190 = vpack.c.b16 %v184, %v183
    %vm197 = vcmask 785408
    %v199 = vsel %vm197, %v141, 0
    %201 = vmatprep.subr.bf16.mxu0 0
    %202 = vmatpush1.bf16.msra.mxu0 0
    %203 = vmatprep.subr.bf16.mxu0 0
    %204 = vmatpush1.bf16.msra.mxu0 0
    %205 = vmatprep.subr.bf16.mxu0 0
    %206 = vmatpush1.bf16.msra.mxu0 %v190
    %207 = vmatprep.subr.bf16.mxu0 0
    %208 = vmatpush1.bf16.msra.mxu0 %v189
    %209 = vmatprep.subr.bf16.mxu0 0
    %210 = vmatpush1.bf16.msra.mxu0 %v188
    %211 = vmatprep.subr.bf16.mxu0 0
    %212 = vmatpush1.bf16.msra.mxu0 %v187
    %213 = vmatprep.subr.bf16.mxu0 0
    %214 = vmatpush1.bf16.msra.mxu0 %v186
    %215 = vmatprep.subr.bf16.mxu0 0
    %216 = vmatpush1.bf16.msra.mxu0 %v185
    %217 = vmatprep.subr.bf16.mxu0 0
    %218 = vmatpush2.bf16.msra.mxu0 0
    %219 = vmatprep.subr.bf16.mxu0 0
    %220 = vmatpush2.bf16.msra.mxu0 0
    %221 = vmatprep.subr.bf16.mxu0 0
    %222 = vmatpush2.bf16.msra.mxu0 0
    %223 = vmatprep.subr.bf16.mxu0 0
    %224 = vmatpush2.bf16.msra.mxu0 0
    %225 = vmatprep.subr.bf16.mxu0 0
    %226 = vmatpush2.bf16.msra.mxu0 0
    %227 = vmatprep.subr.bf16.mxu0 0
    %228 = vmatpush2.bf16.msra.mxu0 0
    %229 = vmatprep.subr.bf16.mxu0 0
    %230 = vmatpush2.bf16.msra.mxu0 0
    %231 = vmatprep.subr.bf16.mxu0 0
    %232 = vmatpush2.bf16.msra.mxu0 0
    %233 = vmatprep.mubr.bf16.mxu0 0
    %234 = vmatmul.mubr.bf16.gmra.mxu0 %v199
    %v235 = vpop.f32.mrf.mxu0
    %v236 = vadd.f32 %v159, %v235
    %v237 = vpop.f32.mrf.mxu0
    %v238 = vpop.f32.mrf.mxu0
    %v239 = vpop.f32.mrf.mxu0
    %240 = vdwg.mxu0
    %v241 = vmax.f32 %v236, 0.0
    %v242 = vld [vmem:[%s23] sm:$0xf]
    %v243 = vld [vmem:[%s23 + $0x4] sm:$0xf]
    %v244 = vld [vmem:[%s23 + $0x8] sm:$0xf]
    %v245 = vld [vmem:[%s23 + $0xc] sm:$0xf]
    %v246 = vpack.c.bf16 %v241, %v241
    %v247 = vld [vmem:[%s25] sm:$0x1]
    %v249 = vlaneseq
    %v250 = vshrl.u32 %v249, 7
    %v251 = vsub.s32 0, %v250
    %v252 = vrot.slane %v247, %v251
    %v258 = vunpack.c.l.b16 %v242
    %v259 = vunpack.c.l.b16 %v243
    %v260 = vunpack.c.l.b16 %v244
    %v261 = vunpack.c.l.b16 %v245
    %v262 = vpack.c.b16 %v259, %v258
    %v263 = vpack.c.b16 %v261, %v260
    %vm266 = vcmask 261120
    %v268 = vsel %vm266, %v246, 0
    %270 = vmatprep.subr.bf16.mxu0 0
    %271 = vmatpush1.bf16.msra.mxu0 0
    %272 = vmatprep.subr.bf16.mxu0 0
    %273 = vmatpush1.bf16.msra.mxu0 0
    %274 = vmatprep.subr.bf16.mxu0 0
    %275 = vmatpush1.bf16.msra.mxu0 0
    %276 = vmatprep.subr.bf16.mxu0 0
    %277 = vmatpush1.bf16.msra.mxu0 0
    %278 = vmatprep.subr.bf16.mxu0 0
    %279 = vmatpush1.bf16.msra.mxu0 0
    %280 = vmatprep.subr.bf16.mxu0 0
    %281 = vmatpush1.bf16.msra.mxu0 0
    %282 = vmatprep.subr.bf16.mxu0 0
    %283 = vmatpush1.bf16.msra.mxu0 %v263
    %284 = vmatprep.subr.bf16.mxu0 0
    %285 = vmatpush1.bf16.msra.mxu0 %v262
    %286 = vmatprep.subr.bf16.mxu0 0
    %287 = vmatpush2.bf16.msra.mxu0 0
    %288 = vmatprep.subr.bf16.mxu0 0
    %289 = vmatpush2.bf16.msra.mxu0 0
    %290 = vmatprep.subr.bf16.mxu0 0
    %291 = vmatpush2.bf16.msra.mxu0 0
    %292 = vmatprep.subr.bf16.mxu0 0
    %293 = vmatpush2.bf16.msra.mxu0 0
    %294 = vmatprep.subr.bf16.mxu0 0
    %295 = vmatpush2.bf16.msra.mxu0 0
    %296 = vmatprep.subr.bf16.mxu0 0
    %297 = vmatpush2.bf16.msra.mxu0 0
    %298 = vmatprep.subr.bf16.mxu0 0
    %299 = vmatpush2.bf16.msra.mxu0 0
    %300 = vmatprep.subr.bf16.mxu0 0
    %301 = vmatpush2.bf16.msra.mxu0 0
    %302 = vmatprep.mubr.bf16.mxu0 0
    %303 = vmatmul.mubr.bf16.gmra.mxu0 %v268
    %v304 = vpop.f32.mrf.mxu0
    %v305 = vadd.f32 %v252, %v304
    %v306 = vpop.f32.mrf.mxu0
    %v307 = vpop.f32.mrf.mxu0
    %v308 = vpop.f32.mrf.mxu0
    %309 = vdwg.mxu0
    %v310 = vmax.f32 %v305, 0.0
    %s311 = sld [smem:[#allocation2]]
    %s312 = sld [smem:[#allocation2 + $0x1]]
    %s313 = sld [smem:[#allocation2 + $0x2]]
    %v314 = vld [vmem:[%s27] sm:$0xf]
    %v315 = vld [vmem:[%s27 + $0x4] sm:$0xf]
    %v316 = vld [vmem:[%s27 + $0x8] sm:$0xf]
    %v317 = vld [vmem:[%s27 + $0xc] sm:$0xf]
    %v318 = vpack.c.bf16 %v310, %v310
    %v319 = vld [vmem:[%s29] sm:$0x1]
    %v321 = vlaneseq
    %v322 = vshrl.u32 %v321, 7
    %v323 = vsub.s32 0, %v322
    %v324 = vrot.slane %v319, %v323
    %v330 = vunpack.c.l.b16 %v314
    %v331 = vunpack.c.l.b16 %v315
    %v332 = vunpack.c.l.b16 %v316
    %v333 = vunpack.c.l.b16 %v317
    %v334 = vpack.c.b16 %v331, %v330
    %v335 = vpack.c.b16 %v333, %v332
    %v339 = vsel %vm266, %v318, 0
    %341 = vmatprep.subr.bf16.mxu0 0
    %342 = vmatpush1.bf16.msra.mxu0 0
    %343 = vmatprep.subr.bf16.mxu0 0
    %344 = vmatpush1.bf16.msra.mxu0 0
    %345 = vmatprep.subr.bf16.mxu0 0
    %346 = vmatpush1.bf16.msra.mxu0 0
    %347 = vmatprep.subr.bf16.mxu0 0
    %348 = vmatpush1.bf16.msra.mxu0 0
    %349 = vmatprep.subr.bf16.mxu0 0
    %350 = vmatpush1.bf16.msra.mxu0 0
    %351 = vmatprep.subr.bf16.mxu0 0
    %352 = vmatpush1.bf16.msra.mxu0 0
    %353 = vmatprep.subr.bf16.mxu0 0
    %354 = vmatpush1.bf16.msra.mxu0 %v335
    %355 = vmatprep.subr.bf16.mxu0 0
    %356 = vmatpush1.bf16.msra.mxu0 %v334
    %357 = vmatprep.subr.bf16.mxu0 0
    %358 = vmatpush2.bf16.msra.mxu0 0
    %359 = vmatprep.subr.bf16.mxu0 0
    %360 = vmatpush2.bf16.msra.mxu0 0
    %361 = vmatprep.subr.bf16.mxu0 0
    %362 = vmatpush2.bf16.msra.mxu0 0
    %363 = vmatprep.subr.bf16.mxu0 0
    %364 = vmatpush2.bf16.msra.mxu0 0
    %365 = vmatprep.subr.bf16.mxu0 0
    %366 = vmatpush2.bf16.msra.mxu0 0
    %367 = vmatprep.subr.bf16.mxu0 0
    %368 = vmatpush2.bf16.msra.mxu0 0
    %369 = vmatprep.subr.bf16.mxu0 0
    %370 = vmatpush2.bf16.msra.mxu0 0
    %371 = vmatprep.subr.bf16.mxu0 0
    %372 = vmatpush2.bf16.msra.mxu0 0
    %373 = vmatprep.mubr.bf16.mxu0 0
    %374 = vmatmul.mubr.bf16.gmra.mxu0 %v339
    %v375 = vpop.f32.mrf.mxu0
    %v376 = vadd.f32 %v324, %v375
    %v377 = vpop.f32.mrf.mxu0
    %v378 = vpop.f32.mrf.mxu0
    %v379 = vpop.f32.mrf.mxu0
    %380 = vdwg.mxu0
    %v381 = vmax.f32 %v376, 0.0
    %s382 = ssub.f32 1.0, %s311
    %v383 = vstv %s382
    %v384 = vmul.f32 %v383, %v381
    %v385 = vstv %s311
    %v386 = vmul.f32 %v385, %v381
    %388 = vrot.lane.b32.xlu0 %v386, 96
    %v389 = vpop.permute.xlu0 %388
    %v391 = vadd.f32 %v384, %v389
    %v392 = vld [vmem:[%s13] sm:$0xf]
    %v393 = vld [vmem:[%s13 + $0x4] sm:$0xf]
    %v394 = vld [vmem:[%s13 + $0x8] sm:$0xf]
    %v395 = vld [vmem:[%s13 + $0xc] sm:$0xf]
    %v396 = vpack.c.bf16 %v391, %v391
    %v397 = vld [vmem:[%s5] sm:$0xf]
    %v398 = vld [vmem:[%s5 + $0x4] sm:$0xf]
    %v399 = vld [vmem:[%s5 + $0x8] sm:$0xf]
    %v400 = vld [vmem:[%s5 + $0xc] sm:$0xf]
    %v401 = vld [vmem:[%s31] sm:$0xf]
    %v402 = vld [vmem:[%s31 + $0x4] sm:$0xf]
    %v403 = vld [vmem:[%s31 + $0x8] sm:$0xf]
    %v404 = vld [vmem:[%s33] sm:$0x1]
    %v406 = vlaneseq
    %v407 = vshrl.u32 %v406, 7
    %v408 = vsub.s32 0, %v407
    %v409 = vrot.slane %v404, %v408
    %v415 = vunpack.c.l.b16 %v397
    %v416 = vunpack.c.l.b16 %v398
    %v417 = vunpack.c.l.b16 %v399
    %v418 = vunpack.c.l.b16 %v400
    %v419 = vpack.c.b16 %v416, %v415
    %v420 = vpack.c.b16 %v418, %v417
    %v424 = vunpack.c.l.b16 %v401
    %v425 = vunpack.c.l.b16 %v402
    %v426 = vunpack.c.l.b16 %v403
    %v427 = vpack.c.b16 %v425, %v424
    %v428 = vpack.c.b16 %v426, %v426
    %vm430 = vcmask 195584
    %v432 = vsel %vm430, %v419, 0
    %v435 = vsel %vm430, %v420, 0
    %vm437 = vcmask 1043456
    %v439 = vsel %vm437, %v428, 0
    %441 = vmatprep.subr.bf16.mxu0 0
    %442 = vmatpush1.bf16.msra.mxu0 0
    %443 = vmatprep.subr.bf16.mxu0 0
    %444 = vmatpush1.bf16.msra.mxu0 0
    %445 = vmatprep.subr.bf16.mxu0 0
    %446 = vmatpush1.bf16.msra.mxu0 0
    %447 = vmatprep.subr.bf16.mxu0 0
    %448 = vmatpush1.bf16.msra.mxu0 0
    %449 = vmatprep.subr.bf16.mxu0 0
    %450 = vmatpush1.bf16.msra.mxu0 0
    %451 = vmatprep.subr.bf16.mxu0 0
    %452 = vmatpush1.bf16.msra.mxu0 0
    %453 = vmatprep.subr.bf16.mxu0 0
    %454 = vmatpush1.bf16.msra.mxu0 %v439
    %455 = vmatprep.subr.bf16.mxu0 0
    %456 = vmatpush1.bf16.msra.mxu0 %v427
    %457 = vmatprep.subr.bf16.mxu0 0
    %458 = vmatpush2.bf16.msra.mxu0 0
    %459 = vmatprep.subr.bf16.mxu0 0
    %460 = vmatpush2.bf16.msra.mxu0 0
    %461 = vmatprep.subr.bf16.mxu0 0
    %462 = vmatpush2.bf16.msra.mxu0 0
    %463 = vmatprep.subr.bf16.mxu0 0
    %464 = vmatpush2.bf16.msra.mxu0 0
    %465 = vmatprep.subr.bf16.mxu0 0
    %466 = vmatpush2.bf16.msra.mxu0 0
    %467 = vmatprep.subr.bf16.mxu0 0
    %468 = vmatpush2.bf16.msra.mxu0 0
    %469 = vmatprep.subr.bf16.mxu0 0
    %470 = vmatpush2.bf16.msra.mxu0 0
    %471 = vmatprep.subr.bf16.mxu0 0
    %472 = vmatpush2.bf16.msra.mxu0 0
    %473 = vmatprep.mubr.bf16.mxu0 0
    %474 = vmatmul.mubr.bf16.gmra.mxu0 %v432
    %v475 = vpop.f32.mrf.mxu0
    %v476 = vadd.f32 %v409, %v475
    %v477 = vpop.f32.mrf.mxu0
    %v478 = vpop.f32.mrf.mxu0
    %v479 = vadd.f32 %v409, %v478
    %v480 = vpop.f32.mrf.mxu0
    %481 = vmatprep.mubr.bf16.mxu0 0
    %482 = vmatmul.mubr.bf16.gmra.mxu0 %v435
    %v483 = vpop.f32.mrf.mxu0
    %v484 = vadd.f32 %v409, %v483
    %v485 = vpop.f32.mrf.mxu0
    %v486 = vpop.f32.mrf.mxu0
    %v487 = vadd.f32 %v409, %v486
    %v488 = vpop.f32.mrf.mxu0
    %489 = vdwg.mxu0
    %v490 = vmax.f32 %v476, 0.0
    %v491 = vmax.f32 %v479, 0.0
    %v492 = vmax.f32 %v484, 0.0
    %v493 = vmax.f32 %v487, 0.0
    %s494 = ssub.f32 1.0, %s312
    %v495 = vstv %s494
    %v496 = vmul.f32 %v495, %v490
    %v497 = vmul.f32 %v495, %v491
    %v498 = vmul.f32 %v495, %v492
    %v499 = vmul.f32 %v495, %v493
    %v500 = vstv %s312
    %v501 = vmul.f32 %v500, %v490
    %v502 = vmul.f32 %v500, %v491
    %v503 = vmul.f32 %v500, %v492
    %v504 = vmul.f32 %v500, %v493
    %509 = vrot.lane.b32.xlu0 %v501, 96
    %v510 = vpop.permute.xlu0 %509
    %511 = vrot.lane.b32.xlu0 %v502, 96
    %v512 = vpop.permute.xlu0 %511
    %513 = vrot.lane.b32.xlu0 %v503, 96
    %v514 = vpop.permute.xlu0 %513
    %515 = vrot.lane.b32.xlu0 %v504, 96
    %v516 = vpop.permute.xlu0 %515
    %v521 = vadd.f32 %v496, %v510
    %v522 = vadd.f32 %v497, %v512
    %v523 = vadd.f32 %v498, %v514
    %v524 = vadd.f32 %v499, %v516
    %v529 = vunpack.c.l.b16 %v392
    %v530 = vunpack.c.l.b16 %v393
    %v531 = vunpack.c.l.b16 %v394
    %v532 = vunpack.c.l.b16 %v395
    %v533 = vpack.c.b16 %v530, %v529
    %v534 = vpack.c.b16 %v532, %v531
    %vm535 = vcmask 64512
    %v537 = vsel %vm535, %v533, 0
    %v540 = vsel %vm535, %v534, 0
    %v543 = vsel %vm437, %v396, 0
    %545 = vmatprep.subr.bf16.mxu0 0
    %546 = vmatpush1.bf16.msra.mxu0 0
    %547 = vmatprep.subr.bf16.mxu0 0
    %548 = vmatpush1.bf16.msra.mxu0 0
    %549 = vmatprep.subr.bf16.mxu0 0
    %550 = vmatpush1.bf16.msra.mxu0 0
    %551 = vmatprep.subr.bf16.mxu0 0
    %552 = vmatpush1.bf16.msra.mxu0 0
    %553 = vmatprep.subr.bf16.mxu0 0
    %554 = vmatpush1.bf16.msra.mxu0 0
    %555 = vmatprep.subr.bf16.mxu0 0
    %556 = vmatpush1.bf16.msra.mxu0 0
    %557 = vmatprep.subr.bf16.mxu0 0
    %558 = vmatpush1.bf16.msra.mxu0 0
    %559 = vmatprep.subr.bf16.mxu0 0
    %560 = vmatpush1.bf16.msra.mxu0 %v543
    %561 = vmatprep.subr.bf16.mxu0 0
    %562 = vmatpush2.bf16.msra.mxu0 0
    %563 = vmatprep.subr.bf16.mxu0 0
    %564 = vmatpush2.bf16.msra.mxu0 0
    %565 = vmatprep.subr.bf16.mxu0 0
    %566 = vmatpush2.bf16.msra.mxu0 0
    %567 = vmatprep.subr.bf16.mxu0 0
    %568 = vmatpush2.bf16.msra.mxu0 0
    %569 = vmatprep.subr.bf16.mxu0 0
    %570 = vmatpush2.bf16.msra.mxu0 0
    %571 = vmatprep.subr.bf16.mxu0 0
    %572 = vmatpush2.bf16.msra.mxu0 0
    %573 = vmatprep.subr.bf16.mxu0 0
    %574 = vmatpush2.bf16.msra.mxu0 0
    %575 = vmatprep.subr.bf16.mxu0 0
    %576 = vmatpush2.bf16.msra.mxu0 0
    %577 = vmatprep.mubr.bf16.mxu0 0
    %578 = vmatmul.mubr.bf16.gmra.mxu0 %v537
    %v579 = vpop.f32.mrf.mxu0
    %v580 = vadd.f32 %v521, %v579
    %v581 = vpop.f32.mrf.mxu0
    %v582 = vpop.f32.mrf.mxu0
    %v583 = vadd.f32 %v522, %v582
    %v584 = vpop.f32.mrf.mxu0
    %585 = vmatprep.mubr.bf16.mxu0 0
    %586 = vmatmul.mubr.bf16.gmra.mxu0 %v540
    %v587 = vpop.f32.mrf.mxu0
    %v588 = vadd.f32 %v523, %v587
    %v589 = vpop.f32.mrf.mxu0
    %v590 = vpop.f32.mrf.mxu0
    %v591 = vadd.f32 %v524, %v590
    %v592 = vpop.f32.mrf.mxu0
    %593 = vdwg.mxu0
    %v594 = vld [vmem:[%s43] sm:$0xf]
    %v595 = vld [vmem:[%s43 + $0x4] sm:$0xf]
    %v596 = vld [vmem:[%s43 + $0x8] sm:$0xf]
    %v597 = vld [vmem:[%s43 + $0xc] sm:$0xf]
    %v598 = vpack.c.bf16 %v583, %v580
    %v599 = vpack.c.bf16 %v591, %v588
    %v600 = vld [vmem:[%s45] sm:$0x1]
    %v602 = vlaneseq
    %v603 = vshrl.u32 %v602, 7
    %v604 = vsub.s32 0, %v603
    %v605 = vrot.slane %v600, %v604
    %v611 = vunpack.c.l.b16 %v594
    %v612 = vunpack.c.l.b16 %v595
    %v613 = vunpack.c.l.b16 %v596
    %v614 = vunpack.c.l.b16 %v597
    %v615 = vpack.c.b16 %v612, %v611
    %v616 = vpack.c.b16 %v614, %v613
    %v620 = vsel %vm266, %v598, 0
    %v623 = vsel %vm266, %v599, 0
    %625 = vmatprep.subr.bf16.mxu0 0
    %626 = vmatpush1.bf16.msra.mxu0 0
    %627 = vmatprep.subr.bf16.mxu0 0
    %628 = vmatpush1.bf16.msra.mxu0 0
    %629 = vmatprep.subr.bf16.mxu0 0
    %630 = vmatpush1.bf16.msra.mxu0 0
    %631 = vmatprep.subr.bf16.mxu0 0
    %632 = vmatpush1.bf16.msra.mxu0 0
    %633 = vmatprep.subr.bf16.mxu0 0
    %634 = vmatpush1.bf16.msra.mxu0 0
    %635 = vmatprep.subr.bf16.mxu0 0
    %636 = vmatpush1.bf16.msra.mxu0 0
    %637 = vmatprep.subr.bf16.mxu0 0
    %638 = vmatpush1.bf16.msra.mxu0 %v616
    %639 = vmatprep.subr.bf16.mxu0 0
    %640 = vmatpush1.bf16.msra.mxu0 %v615
    %641 = vmatprep.subr.bf16.mxu0 0
    %642 = vmatpush2.bf16.msra.mxu0 0
    %643 = vmatprep.subr.bf16.mxu0 0
    %644 = vmatpush2.bf16.msra.mxu0 0
    %645 = vmatprep.subr.bf16.mxu0 0
    %646 = vmatpush2.bf16.msra.mxu0 0
    %647 = vmatprep.subr.bf16.mxu0 0
    %648 = vmatpush2.bf16.msra.mxu0 0
    %649 = vmatprep.subr.bf16.mxu0 0
    %650 = vmatpush2.bf16.msra.mxu0 0
    %651 = vmatprep.subr.bf16.mxu0 0
    %652 = vmatpush2.bf16.msra.mxu0 0
    %653 = vmatprep.subr.bf16.mxu0 0
    %654 = vmatpush2.bf16.msra.mxu0 0
    %655 = vmatprep.subr.bf16.mxu0 0
    %656 = vmatpush2.bf16.msra.mxu0 0
    %657 = vmatprep.mubr.bf16.mxu0 0
    %658 = vmatmul.mubr.bf16.gmra.mxu0 %v620
    %v659 = vpop.f32.mrf.mxu0
    %v660 = vadd.f32 %v605, %v659
    %v661 = vpop.f32.mrf.mxu0
    %v662 = vpop.f32.mrf.mxu0
    %v663 = vadd.f32 %v605, %v662
    %v664 = vpop.f32.mrf.mxu0
    %665 = vmatprep.mubr.bf16.mxu0 0
    %666 = vmatmul.mubr.bf16.gmra.mxu0 %v623
    %v667 = vpop.f32.mrf.mxu0
    %v668 = vadd.f32 %v605, %v667
    %v669 = vpop.f32.mrf.mxu0
    %v670 = vpop.f32.mrf.mxu0
    %v671 = vadd.f32 %v605, %v670
    %v672 = vpop.f32.mrf.mxu0
    %673 = vdwg.mxu0
    %v674 = vmax.f32 %v660, 0.0
    %v675 = vmax.f32 %v663, 0.0
    %v676 = vmax.f32 %v668, 0.0
    %v677 = vmax.f32 %v671, 0.0
    %v678 = vld [vmem:[%s15] sm:$0xf]
    %v679 = vld [vmem:[%s15 + $0x4] sm:$0xf]
    %v680 = vld [vmem:[%s15 + $0x8] sm:$0xf]
    %v681 = vld [vmem:[%s15 + $0xc] sm:$0xf]
    %v682 = vld [vmem:[%s15 + $0x10] sm:$0xf]
    %v683 = vld [vmem:[%s15 + $0x14] sm:$0xf]
    %v684 = vld [vmem:[%s15 + $0x18] sm:$0xf]
    %v685 = vld [vmem:[%s15 + $0x1c] sm:$0xf]
    %v686 = vld [vmem:[%s15 + $0x20] sm:$0xf]
    %v687 = vld [vmem:[%s15 + $0x24] sm:$0xf]
    %v688 = vld [vmem:[%s15 + $0x28] sm:$0xf]
    %v689 = vld [vmem:[%s15 + $0x2c] sm:$0xf]
    %v690 = vld [vmem:[%s15 + $0x30] sm:$0xf]
    %v691 = vld [vmem:[%s15 + $0x34] sm:$0xf]
    %v692 = vld [vmem:[%s15 + $0x38] sm:$0xf]
    %v693 = vld [vmem:[%s15 + $0x3c] sm:$0xf]
    %v694 = vpack.c.bf16 %v675, %v674
    %v695 = vpack.c.bf16 %v677, %v676
    %v696 = vld [vmem:[%s7] sm:$0xf]
    %v697 = vld [vmem:[%s7 + $0x4] sm:$0xf]
    %v698 = vld [vmem:[%s7 + $0x8] sm:$0xf]
    %v699 = vld [vmem:[%s7 + $0xc] sm:$0xf]
    %v700 = vld [vmem:[%s7 + $0x10] sm:$0xf]
    %v701 = vld [vmem:[%s7 + $0x14] sm:$0xf]
    %v702 = vld [vmem:[%s7 + $0x18] sm:$0xf]
    %v703 = vld [vmem:[%s7 + $0x1c] sm:$0xf]
    %v704 = vld [vmem:[%s7 + $0x20] sm:$0xf]
    %v705 = vld [vmem:[%s7 + $0x24] sm:$0xf]
    %v706 = vld [vmem:[%s7 + $0x28] sm:$0xf]
    %v707 = vld [vmem:[%s7 + $0x2c] sm:$0xf]
    %v708 = vld [vmem:[%s7 + $0x30] sm:$0xf]
    %v709 = vld [vmem:[%s7 + $0x34] sm:$0xf]
    %v710 = vld [vmem:[%s7 + $0x38] sm:$0xf]
    %v711 = vld [vmem:[%s7 + $0x3c] sm:$0xf]
    %v712 = vld [vmem:[%s35] sm:$0xf]
    %v713 = vld [vmem:[%s35 + $0x4] sm:$0xf]
    %v714 = vld [vmem:[%s37] sm:$0x1]
    %v716 = vlaneseq
    %v717 = vshrl.u32 %v716, 7
    %v718 = vsub.s32 0, %v717
    %v719 = vrot.slane %v714, %v718
    %v737 = vunpack.c.l.b16 %v696
    %v738 = vunpack.c.l.b16 %v697
    %v739 = vunpack.c.l.b16 %v698
    %v740 = vunpack.c.l.b16 %v699
    %v741 = vunpack.c.l.b16 %v700
    %v742 = vunpack.c.l.b16 %v701
    %v743 = vunpack.c.l.b16 %v702
    %v744 = vunpack.c.l.b16 %v703
    %v745 = vunpack.c.l.b16 %v704
    %v746 = vunpack.c.l.b16 %v705
    %v747 = vunpack.c.l.b16 %v706
    %v748 = vunpack.c.l.b16 %v707
    %v749 = vunpack.c.l.b16 %v708
    %v750 = vunpack.c.l.b16 %v709
    %v751 = vunpack.c.l.b16 %v710
    %v752 = vunpack.c.l.b16 %v711
    %v753 = vpack.c.b16 %v738, %v737
    %v754 = vpack.c.b16 %v740, %v739
    %v755 = vpack.c.b16 %v742, %v741
    %v756 = vpack.c.b16 %v744, %v743
    %v757 = vpack.c.b16 %v746, %v745
    %v758 = vpack.c.b16 %v748, %v747
    %v759 = vpack.c.b16 %v750, %v749
    %v760 = vpack.c.b16 %v752, %v751
    %v763 = vunpack.c.l.b16 %v712
    %v764 = vunpack.c.l.b16 %v713
    %v765 = vpack.c.b16 %v764, %v763
    %vm767 = vcmask 130048
    %v769 = vsel %vm767, %v753, 0
    %v772 = vsel %vm767, %v754, 0
    %v775 = vsel %vm767, %v755, 0
    %v778 = vsel %vm767, %v756, 0
    %v781 = vsel %vm767, %v757, 0
    %v784 = vsel %vm767, %v758, 0
    %v787 = vsel %vm767, %v759, 0
    %v790 = vsel %vm767, %v760, 0
    %792 = vmatprep.subr.bf16.mxu0 0
    %793 = vmatpush1.bf16.msra.mxu0 0
    %794 = vmatprep.subr.bf16.mxu0 0
    %795 = vmatpush1.bf16.msra.mxu0 0
    %796 = vmatprep.subr.bf16.mxu0 0
    %797 = vmatpush1.bf16.msra.mxu0 0
    %798 = vmatprep.subr.bf16.mxu0 0
    %799 = vmatpush1.bf16.msra.mxu0 0
    %800 = vmatprep.subr.bf16.mxu0 0
    %801 = vmatpush1.bf16.msra.mxu0 0
    %802 = vmatprep.subr.bf16.mxu0 0
    %803 = vmatpush1.bf16.msra.mxu0 0
    %804 = vmatprep.subr.bf16.mxu0 0
    %805 = vmatpush1.bf16.msra.mxu0 0
    %806 = vmatprep.subr.bf16.mxu0 0
    %807 = vmatpush1.bf16.msra.mxu0 %v765
    %808 = vmatprep.subr.bf16.mxu0 0
    %809 = vmatpush2.bf16.msra.mxu0 0
    %810 = vmatprep.subr.bf16.mxu0 0
    %811 = vmatpush2.bf16.msra.mxu0 0
    %812 = vmatprep.subr.bf16.mxu0 0
    %813 = vmatpush2.bf16.msra.mxu0 0
    %814 = vmatprep.subr.bf16.mxu0 0
    %815 = vmatpush2.bf16.msra.mxu0 0
    %816 = vmatprep.subr.bf16.mxu0 0
    %817 = vmatpush2.bf16.msra.mxu0 0
    %818 = vmatprep.subr.bf16.mxu0 0
    %819 = vmatpush2.bf16.msra.mxu0 0
    %820 = vmatprep.subr.bf16.mxu0 0
    %821 = vmatpush2.bf16.msra.mxu0 0
    %822 = vmatprep.subr.bf16.mxu0 0
    %823 = vmatpush2.bf16.msra.mxu0 0
    %824 = vmatprep.mubr.bf16.mxu0 0
    %825 = vmatmul.mubr.bf16.gmra.mxu0 %v769
    %v826 = vpop.f32.mrf.mxu0
    %v827 = vadd.f32 %v719, %v826
    %v828 = vpop.f32.mrf.mxu0
    %v829 = vpop.f32.mrf.mxu0
    %v830 = vadd.f32 %v719, %v829
    %v831 = vpop.f32.mrf.mxu0
    %832 = vmatprep.mubr.bf16.mxu0 0
    %833 = vmatmul.mubr.bf16.gmra.mxu0 %v772
    %v834 = vpop.f32.mrf.mxu0
    %v835 = vadd.f32 %v719, %v834
    %v836 = vpop.f32.mrf.mxu0
    %v837 = vpop.f32.mrf.mxu0
    %v838 = vadd.f32 %v719, %v837
    %v839 = vpop.f32.mrf.mxu0
    %840 = vmatprep.mubr.bf16.mxu0 0
    %841 = vmatmul.mubr.bf16.gmra.mxu0 %v775
    %v842 = vpop.f32.mrf.mxu0
    %v843 = vadd.f32 %v719, %v842
    %v844 = vpop.f32.mrf.mxu0
    %v845 = vpop.f32.mrf.mxu0
    %v846 = vadd.f32 %v719, %v845
    %v847 = vpop.f32.mrf.mxu0
    %848 = vmatprep.mubr.bf16.mxu0 0
    %849 = vmatmul.mubr.bf16.gmra.mxu0 %v778
    %v850 = vpop.f32.mrf.mxu0
    %v851 = vadd.f32 %v719, %v850
    %v852 = vpop.f32.mrf.mxu0
    %v853 = vpop.f32.mrf.mxu0
    %v854 = vadd.f32 %v719, %v853
    %v855 = vpop.f32.mrf.mxu0
    %856 = vmatprep.mubr.bf16.mxu0 0
    %857 = vmatmul.mubr.bf16.gmra.mxu0 %v781
    %v858 = vpop.f32.mrf.mxu0
    %v859 = vadd.f32 %v719, %v858
    %v860 = vpop.f32.mrf.mxu0
    %v861 = vpop.f32.mrf.mxu0
    %v862 = vadd.f32 %v719, %v861
    %v863 = vpop.f32.mrf.mxu0
    %864 = vmatprep.mubr.bf16.mxu0 0
    %865 = vmatmul.mubr.bf16.gmra.mxu0 %v784
    %v866 = vpop.f32.mrf.mxu0
    %v867 = vadd.f32 %v719, %v866
    %v868 = vpop.f32.mrf.mxu0
    %v869 = vpop.f32.mrf.mxu0
    %v870 = vadd.f32 %v719, %v869
    %v871 = vpop.f32.mrf.mxu0
    %872 = vmatprep.mubr.bf16.mxu0 0
    %873 = vmatmul.mubr.bf16.gmra.mxu0 %v787
    %v874 = vpop.f32.mrf.mxu0
    %v875 = vadd.f32 %v719, %v874
    %v876 = vpop.f32.mrf.mxu0
    %v877 = vpop.f32.mrf.mxu0
    %v878 = vadd.f32 %v719, %v877
    %v879 = vpop.f32.mrf.mxu0
    %880 = vmatprep.mubr.bf16.mxu0 0
    %881 = vmatmul.mubr.bf16.gmra.mxu0 %v790
    %v882 = vpop.f32.mrf.mxu0
    %v883 = vadd.f32 %v719, %v882
    %v884 = vpop.f32.mrf.mxu0
    %v885 = vpop.f32.mrf.mxu0
    %v886 = vadd.f32 %v719, %v885
    %v887 = vpop.f32.mrf.mxu0
    %888 = vdwg.mxu0
    %v889 = vmax.f32 %v827, 0.0
    %v890 = vmax.f32 %v830, 0.0
    %v891 = vmax.f32 %v835, 0.0
    %v892 = vmax.f32 %v838, 0.0
    %v893 = vmax.f32 %v843, 0.0
    %v894 = vmax.f32 %v846, 0.0
    %v895 = vmax.f32 %v851, 0.0
    %v896 = vmax.f32 %v854, 0.0
    %v897 = vmax.f32 %v859, 0.0
    %v898 = vmax.f32 %v862, 0.0
    %v899 = vmax.f32 %v867, 0.0
    %v900 = vmax.f32 %v870, 0.0
    %v901 = vmax.f32 %v875, 0.0
    %v902 = vmax.f32 %v878, 0.0
    %v903 = vmax.f32 %v883, 0.0
    %v904 = vmax.f32 %v886, 0.0
    %s905 = ssub.f32 1.0, %s313
    %v906 = vstv %s905
    %v907 = vmul.f32 %v906, %v889
    %v908 = vmul.f32 %v906, %v890
    %v909 = vmul.f32 %v906, %v891
    %v910 = vmul.f32 %v906, %v892
    %v911 = vmul.f32 %v906, %v893
    %v912 = vmul.f32 %v906, %v894
    %v913 = vmul.f32 %v906, %v895
    %v914 = vmul.f32 %v906, %v896
    %v915 = vmul.f32 %v906, %v897
    %v916 = vmul.f32 %v906, %v898
    %v917 = vmul.f32 %v906, %v899
    %v918 = vmul.f32 %v906, %v900
    %v919 = vmul.f32 %v906, %v901
    %v920 = vmul.f32 %v906, %v902
    %v921 = vmul.f32 %v906, %v903
    %v922 = vmul.f32 %v906, %v904
    %v923 = vstv %s313
    %v924 = vmul.f32 %v923, %v889
    %v925 = vmul.f32 %v923, %v890
    %v926 = vmul.f32 %v923, %v891
    %v927 = vmul.f32 %v923, %v892
    %v928 = vmul.f32 %v923, %v893
    %v929 = vmul.f32 %v923, %v894
    %v930 = vmul.f32 %v923, %v895
    %v931 = vmul.f32 %v923, %v896
    %v932 = vmul.f32 %v923, %v897
    %v933 = vmul.f32 %v923, %v898
    %v934 = vmul.f32 %v923, %v899
    %v935 = vmul.f32 %v923, %v900
    %v936 = vmul.f32 %v923, %v901
    %v937 = vmul.f32 %v923, %v902
    %v938 = vmul.f32 %v923, %v903
    %v939 = vmul.f32 %v923, %v904
    %956 = vrot.lane.b32.xlu0 %v924, 96
    %v957 = vpop.permute.xlu0 %956
    %958 = vrot.lane.b32.xlu0 %v925, 96
    %v959 = vpop.permute.xlu0 %958
    %960 = vrot.lane.b32.xlu0 %v926, 96
    %v961 = vpop.permute.xlu0 %960
    %962 = vrot.lane.b32.xlu0 %v927, 96
    %v963 = vpop.permute.xlu0 %962
    %964 = vrot.lane.b32.xlu0 %v928, 96
    %v965 = vpop.permute.xlu0 %964
    %966 = vrot.lane.b32.xlu0 %v929, 96
    %v967 = vpop.permute.xlu0 %966
    %968 = vrot.lane.b32.xlu0 %v930, 96
    %v969 = vpop.permute.xlu0 %968
    %970 = vrot.lane.b32.xlu0 %v931, 96
    %v971 = vpop.permute.xlu0 %970
    %972 = vrot.lane.b32.xlu0 %v932, 96
    %v973 = vpop.permute.xlu0 %972
    %974 = vrot.lane.b32.xlu0 %v933, 96
    %v975 = vpop.permute.xlu0 %974
    %976 = vrot.lane.b32.xlu0 %v934, 96
    %v977 = vpop.permute.xlu0 %976
    %978 = vrot.lane.b32.xlu0 %v935, 96
    %v979 = vpop.permute.xlu0 %978
    %980 = vrot.lane.b32.xlu0 %v936, 96
    %v981 = vpop.permute.xlu0 %980
    %982 = vrot.lane.b32.xlu0 %v937, 96
    %v983 = vpop.permute.xlu0 %982
    %984 = vrot.lane.b32.xlu0 %v938, 96
    %v985 = vpop.permute.xlu0 %984
    %986 = vrot.lane.b32.xlu0 %v939, 96
    %v987 = vpop.permute.xlu0 %986
    %v1004 = vadd.f32 %v907, %v957
    %v1005 = vadd.f32 %v908, %v959
    %v1006 = vadd.f32 %v909, %v961
    %v1007 = vadd.f32 %v910, %v963
    %v1008 = vadd.f32 %v911, %v965
    %v1009 = vadd.f32 %v912, %v967
    %v1010 = vadd.f32 %v913, %v969
    %v1011 = vadd.f32 %v914, %v971
    %v1012 = vadd.f32 %v915, %v973
    %v1013 = vadd.f32 %v916, %v975
    %v1014 = vadd.f32 %v917, %v977
    %v1015 = vadd.f32 %v918, %v979
    %v1016 = vadd.f32 %v919, %v981
    %v1017 = vadd.f32 %v920, %v983
    %v1018 = vadd.f32 %v921, %v985
    %v1019 = vadd.f32 %v922, %v987
    %v1036 = vunpack.c.l.b16 %v678
    %v1037 = vunpack.c.l.b16 %v679
    %v1038 = vunpack.c.l.b16 %v680
    %v1039 = vunpack.c.l.b16 %v681
    %v1040 = vunpack.c.l.b16 %v682
    %v1041 = vunpack.c.l.b16 %v683
    %v1042 = vunpack.c.l.b16 %v684
    %v1043 = vunpack.c.l.b16 %v685
    %v1044 = vunpack.c.l.b16 %v686
    %v1045 = vunpack.c.l.b16 %v687
    %v1046 = vunpack.c.l.b16 %v688
    %v1047 = vunpack.c.l.b16 %v689
    %v1048 = vunpack.c.l.b16 %v690
    %v1049 = vunpack.c.l.b16 %v691
    %v1050 = vunpack.c.l.b16 %v692
    %v1051 = vunpack.c.l.b16 %v693
    %v1052 = vpack.c.b16 %v1037, %v1036
    %v1053 = vpack.c.b16 %v1039, %v1038
    %v1054 = vpack.c.b16 %v1041, %v1040
    %v1055 = vpack.c.b16 %v1043, %v1042
    %v1056 = vpack.c.b16 %v1045, %v1044
    %v1057 = vpack.c.b16 %v1047, %v1046
    %v1058 = vpack.c.b16 %v1049, %v1048
    %v1059 = vpack.c.b16 %v1051, %v1050
    %v1061 = vsel %vm266, %v1052, 0
    %v1064 = vsel %vm266, %v1053, 0
    %v1067 = vsel %vm266, %v1054, 0
    %v1070 = vsel %vm266, %v1055, 0
    %v1073 = vsel %vm266, %v1056, 0
    %v1076 = vsel %vm266, %v1057, 0
    %v1079 = vsel %vm266, %v1058, 0
    %v1082 = vsel %vm266, %v1059, 0
    %1084 = vmatprep.subr.bf16.mxu0 0
    %1085 = vmatpush1.bf16.msra.mxu0 0
    %1086 = vmatprep.subr.bf16.mxu0 0
    %1087 = vmatpush1.bf16.msra.mxu0 0
    %1088 = vmatprep.subr.bf16.mxu0 0
    %1089 = vmatpush1.bf16.msra.mxu0 0
    %1090 = vmatprep.subr.bf16.mxu0 0
    %1091 = vmatpush1.bf16.msra.mxu0 0
    %1092 = vmatprep.subr.bf16.mxu0 0
    %1093 = vmatpush1.bf16.msra.mxu0 0
    %1094 = vmatprep.subr.bf16.mxu0 0
    %1095 = vmatpush1.bf16.msra.mxu0 0
    %1096 = vmatprep.subr.bf16.mxu0 0
    %1097 = vmatpush1.bf16.msra.mxu0 %v695
    %1098 = vmatprep.subr.bf16.mxu0 0
    %1099 = vmatpush1.bf16.msra.mxu0 %v694
    %1100 = vmatprep.subr.bf16.mxu0 0
    %1101 = vmatpush2.bf16.msra.mxu0 0
    %1102 = vmatprep.subr.bf16.mxu0 0
    %1103 = vmatpush2.bf16.msra.mxu0 0
    %1104 = vmatprep.subr.bf16.mxu0 0
    %1105 = vmatpush2.bf16.msra.mxu0 0
    %1106 = vmatprep.subr.bf16.mxu0 0
    %1107 = vmatpush2.bf16.msra.mxu0 0
    %1108 = vmatprep.subr.bf16.mxu0 0
    %1109 = vmatpush2.bf16.msra.mxu0 0
    %1110 = vmatprep.subr.bf16.mxu0 0
    %1111 = vmatpush2.bf16.msra.mxu0 0
    %1112 = vmatprep.subr.bf16.mxu0 0
    %1113 = vmatpush2.bf16.msra.mxu0 0
    %1114 = vmatprep.subr.bf16.mxu0 0
    %1115 = vmatpush2.bf16.msra.mxu0 0
    %1116 = vmatprep.mubr.bf16.mxu0 0
    %1117 = vmatmul.mubr.bf16.gmra.mxu0 %v1061
    %v1118 = vpop.f32.mrf.mxu0
    %v1119 = vadd.f32 %v1004, %v1118
    %v1120 = vpop.f32.mrf.mxu0
    %v1121 = vpop.f32.mrf.mxu0
    %v1122 = vadd.f32 %v1005, %v1121
    %v1123 = vpop.f32.mrf.mxu0
    %1124 = vmatprep.mubr.bf16.mxu0 0
    %1125 = vmatmul.mubr.bf16.gmra.mxu0 %v1064
    %v1126 = vpop.f32.mrf.mxu0
    %v1127 = vadd.f32 %v1006, %v1126
    %v1128 = vpop.f32.mrf.mxu0
    %v1129 = vpop.f32.mrf.mxu0
    %v1130 = vadd.f32 %v1007, %v1129
    %v1131 = vpop.f32.mrf.mxu0
    %1132 = vmatprep.mubr.bf16.mxu0 0
    %1133 = vmatmul.mubr.bf16.gmra.mxu0 %v1067
    %v1134 = vpop.f32.mrf.mxu0
    %v1135 = vadd.f32 %v1008, %v1134
    %v1136 = vpop.f32.mrf.mxu0
    %v1137 = vpop.f32.mrf.mxu0
    %v1138 = vadd.f32 %v1009, %v1137
    %v1139 = vpop.f32.mrf.mxu0
    %1140 = vmatprep.mubr.bf16.mxu0 0
    %1141 = vmatmul.mubr.bf16.gmra.mxu0 %v1070
    %v1142 = vpop.f32.mrf.mxu0
    %v1143 = vadd.f32 %v1010, %v1142
    %v1144 = vpop.f32.mrf.mxu0
    %v1145 = vpop.f32.mrf.mxu0
    %v1146 = vadd.f32 %v1011, %v1145
    %v1147 = vpop.f32.mrf.mxu0
    %1148 = vmatprep.mubr.bf16.mxu0 0
    %1149 = vmatmul.mubr.bf16.gmra.mxu0 %v1073
    %v1150 = vpop.f32.mrf.mxu0
    %v1151 = vadd.f32 %v1012, %v1150
    %v1152 = vpop.f32.mrf.mxu0
    %v1153 = vpop.f32.mrf.mxu0
    %v1154 = vadd.f32 %v1013, %v1153
    %v1155 = vpop.f32.mrf.mxu0
    %1156 = vmatprep.mubr.bf16.mxu0 0
    %1157 = vmatmul.mubr.bf16.gmra.mxu0 %v1076
    %v1158 = vpop.f32.mrf.mxu0
    %v1159 = vadd.f32 %v1014, %v1158
    %v1160 = vpop.f32.mrf.mxu0
    %v1161 = vpop.f32.mrf.mxu0
    %v1162 = vadd.f32 %v1015, %v1161
    %v1163 = vpop.f32.mrf.mxu0
    %1164 = vmatprep.mubr.bf16.mxu0 0
    %1165 = vmatmul.mubr.bf16.gmra.mxu0 %v1079
    %v1166 = vpop.f32.mrf.mxu0
    %v1167 = vadd.f32 %v1016, %v1166
    %v1168 = vpop.f32.mrf.mxu0
    %v1169 = vpop.f32.mrf.mxu0
    %v1170 = vadd.f32 %v1017, %v1169
    %v1171 = vpop.f32.mrf.mxu0
    %1172 = vmatprep.mubr.bf16.mxu0 0
    %1173 = vmatmul.mubr.bf16.gmra.mxu0 %v1082
    %v1174 = vpop.f32.mrf.mxu0
    %v1175 = vadd.f32 %v1018, %v1174
    %v1176 = vpop.f32.mrf.mxu0
    %v1177 = vpop.f32.mrf.mxu0
    %v1178 = vadd.f32 %v1019, %v1177
    %v1179 = vpop.f32.mrf.mxu0
    %1180 = vdwg.mxu0
    %v1181 = vld [vmem:[%s47] sm:$0xf]
    %v1182 = vld [vmem:[%s47 + $0x4] sm:$0xf]
    %v1183 = vld [vmem:[%s47 + $0x8] sm:$0xf]
    %v1184 = vld [vmem:[%s47 + $0xc] sm:$0xf]
    %v1185 = vpack.c.bf16 %v1122, %v1119
    %v1186 = vpack.c.bf16 %v1130, %v1127
    %v1187 = vpack.c.bf16 %v1138, %v1135
    %v1188 = vpack.c.bf16 %v1146, %v1143
    %v1189 = vpack.c.bf16 %v1154, %v1151
    %v1190 = vpack.c.bf16 %v1162, %v1159
    %v1191 = vpack.c.bf16 %v1170, %v1167
    %v1192 = vpack.c.bf16 %v1178, %v1175
    %v1193 = vld [vmem:[%s49] sm:$0x1]
    %v1195 = vlaneseq
    %v1196 = vshrl.u32 %v1195, 7
    %v1197 = vsub.s32 0, %v1196
    %v1198 = vrot.slane %v1193, %v1197
    %v1204 = vunpack.c.l.b16 %v1181
    %v1205 = vunpack.c.l.b16 %v1182
    %v1206 = vunpack.c.l.b16 %v1183
    %v1207 = vunpack.c.l.b16 %v1184
    %v1208 = vpack.c.b16 %v1205, %v1204
    %v1209 = vpack.c.b16 %v1207, %v1206
    %v1213 = vsel %vm266, %v1185, 0
    %v1216 = vsel %vm266, %v1186, 0
    %v1219 = vsel %vm266, %v1187, 0
    %v1222 = vsel %vm266, %v1188, 0
    %v1225 = vsel %vm266, %v1189, 0
    %v1228 = vsel %vm266, %v1190, 0
    %v1231 = vsel %vm266, %v1191, 0
    %v1234 = vsel %vm266, %v1192, 0
    %1236 = vmatprep.subr.bf16.mxu0 0
    %1237 = vmatpush1.bf16.msra.mxu0 0
    %1238 = vmatprep.subr.bf16.mxu0 0
    %1239 = vmatpush1.bf16.msra.mxu0 0
    %1240 = vmatprep.subr.bf16.mxu0 0
    %1241 = vmatpush1.bf16.msra.mxu0 0
    %1242 = vmatprep.subr.bf16.mxu0 0
    %1243 = vmatpush1.bf16.msra.mxu0 0
    %1244 = vmatprep.subr.bf16.mxu0 0
    %1245 = vmatpush1.bf16.msra.mxu0 0
    %1246 = vmatprep.subr.bf16.mxu0 0
    %1247 = vmatpush1.bf16.msra.mxu0 0
    %1248 = vmatprep.subr.bf16.mxu0 0
    %1249 = vmatpush1.bf16.msra.mxu0 %v1209
    %1250 = vmatprep.subr.bf16.mxu0 0
    %1251 = vmatpush1.bf16.msra.mxu0 %v1208
    %1252 = vmatprep.subr.bf16.mxu0 0
    %1253 = vmatpush2.bf16.msra.mxu0 0
    %1254 = vmatprep.subr.bf16.mxu0 0
    %1255 = vmatpush2.bf16.msra.mxu0 0
    %1256 = vmatprep.subr.bf16.mxu0 0
    %1257 = vmatpush2.bf16.msra.mxu0 0
    %1258 = vmatprep.subr.bf16.mxu0 0
    %1259 = vmatpush2.bf16.msra.mxu0 0
    %1260 = vmatprep.subr.bf16.mxu0 0
    %1261 = vmatpush2.bf16.msra.mxu0 0
    %1262 = vmatprep.subr.bf16.mxu0 0
    %1263 = vmatpush2.bf16.msra.mxu0 0
    %1264 = vmatprep.subr.bf16.mxu0 0
    %1265 = vmatpush2.bf16.msra.mxu0 0
    %1266 = vmatprep.subr.bf16.mxu0 0
    %1267 = vmatpush2.bf16.msra.mxu0 0
    %1268 = vmatprep.mubr.bf16.mxu0 0
    %1269 = vmatmul.mubr.bf16.gmra.mxu0 %v1213
    %v1270 = vpop.f32.mrf.mxu0
    %v1271 = vadd.f32 %v1198, %v1270
    %v1272 = vpop.f32.mrf.mxu0
    %v1273 = vpop.f32.mrf.mxu0
    %v1274 = vadd.f32 %v1198, %v1273
    %v1275 = vpop.f32.mrf.mxu0
    %1276 = vmatprep.mubr.bf16.mxu0 0
    %1277 = vmatmul.mubr.bf16.gmra.mxu0 %v1216
    %v1278 = vpop.f32.mrf.mxu0
    %v1279 = vadd.f32 %v1198, %v1278
    %v1280 = vpop.f32.mrf.mxu0
    %v1281 = vpop.f32.mrf.mxu0
    %v1282 = vadd.f32 %v1198, %v1281
    %v1283 = vpop.f32.mrf.mxu0
    %1284 = vmatprep.mubr.bf16.mxu0 0
    %1285 = vmatmul.mubr.bf16.gmra.mxu0 %v1219
    %v1286 = vpop.f32.mrf.mxu0
    %v1287 = vadd.f32 %v1198, %v1286
    %v1288 = vpop.f32.mrf.mxu0
    %v1289 = vpop.f32.mrf.mxu0
    %v1290 = vadd.f32 %v1198, %v1289
    %v1291 = vpop.f32.mrf.mxu0
    %1292 = vmatprep.mubr.bf16.mxu0 0
    %1293 = vmatmul.mubr.bf16.gmra.mxu0 %v1222
    %v1294 = vpop.f32.mrf.mxu0
    %v1295 = vadd.f32 %v1198, %v1294
    %v1296 = vpop.f32.mrf.mxu0
    %v1297 = vpop.f32.mrf.mxu0
    %v1298 = vadd.f32 %v1198, %v1297
    %v1299 = vpop.f32.mrf.mxu0
    %1300 = vmatprep.mubr.bf16.mxu0 0
    %1301 = vmatmul.mubr.bf16.gmra.mxu0 %v1225
    %v1302 = vpop.f32.mrf.mxu0
    %v1303 = vadd.f32 %v1198, %v1302
    %v1304 = vpop.f32.mrf.mxu0
    %v1305 = vpop.f32.mrf.mxu0
    %v1306 = vadd.f32 %v1198, %v1305
    %v1307 = vpop.f32.mrf.mxu0
    %1308 = vmatprep.mubr.bf16.mxu0 0
    %1309 = vmatmul.mubr.bf16.gmra.mxu0 %v1228
    %v1310 = vpop.f32.mrf.mxu0
    %v1311 = vadd.f32 %v1198, %v1310
    %v1312 = vpop.f32.mrf.mxu0
    %v1313 = vpop.f32.mrf.mxu0
    %v1314 = vadd.f32 %v1198, %v1313
    %v1315 = vpop.f32.mrf.mxu0
    %1316 = vmatprep.mubr.bf16.mxu0 0
    %1317 = vmatmul.mubr.bf16.gmra.mxu0 %v1231
    %v1318 = vpop.f32.mrf.mxu0
    %v1319 = vadd.f32 %v1198, %v1318
    %v1320 = vpop.f32.mrf.mxu0
    %v1321 = vpop.f32.mrf.mxu0
    %v1322 = vadd.f32 %v1198, %v1321
    %v1323 = vpop.f32.mrf.mxu0
    %1324 = vmatprep.mubr.bf16.mxu0 0
    %1325 = vmatmul.mubr.bf16.gmra.mxu0 %v1234
    %v1326 = vpop.f32.mrf.mxu0
    %v1327 = vadd.f32 %v1198, %v1326
    %v1328 = vpop.f32.mrf.mxu0
    %v1329 = vpop.f32.mrf.mxu0
    %v1330 = vadd.f32 %v1198, %v1329
    %v1331 = vpop.f32.mrf.mxu0
    %1332 = vdwg.mxu0
    %v1333 = vmax.f32 %v1271, 0.0
    %v1334 = vmax.f32 %v1274, 0.0
    %v1335 = vmax.f32 %v1279, 0.0
    %v1336 = vmax.f32 %v1282, 0.0
    %v1337 = vmax.f32 %v1287, 0.0
    %v1338 = vmax.f32 %v1290, 0.0
    %v1339 = vmax.f32 %v1295, 0.0
    %v1340 = vmax.f32 %v1298, 0.0
    %v1341 = vmax.f32 %v1303, 0.0
    %v1342 = vmax.f32 %v1306, 0.0
    %v1343 = vmax.f32 %v1311, 0.0
    %v1344 = vmax.f32 %v1314, 0.0
    %v1345 = vmax.f32 %v1319, 0.0
    %v1346 = vmax.f32 %v1322, 0.0
    %v1347 = vmax.f32 %v1327, 0.0
    %v1348 = vmax.f32 %v1330, 0.0
    %v1349 = vld [vmem:[%s9] sm:$0xf]
    %v1350 = vld [vmem:[%s9 + $0x4] sm:$0xf]
    %v1351 = vld [vmem:[%s9 + $0x8] sm:$0xf]
    %v1352 = vld [vmem:[%s9 + $0xc] sm:$0xf]
    %v1353 = vld [vmem:[%s9 + $0x10] sm:$0xf]
    %v1354 = vld [vmem:[%s9 + $0x14] sm:$0xf]
    %v1355 = vld [vmem:[%s9 + $0x18] sm:$0xf]
    %v1356 = vld [vmem:[%s9 + $0x1c] sm:$0xf]
    %v1357 = vld [vmem:[%s9 + $0x20] sm:$0xf]
    %v1358 = vld [vmem:[%s9 + $0x24] sm:$0xf]
    %v1359 = vld [vmem:[%s9 + $0x28] sm:$0xf]
    %v1360 = vld [vmem:[%s9 + $0x2c] sm:$0xf]
    %v1361 = vld [vmem:[%s9 + $0x30] sm:$0xf]
    %v1362 = vld [vmem:[%s9 + $0x34] sm:$0xf]
    %v1363 = vld [vmem:[%s9 + $0x38] sm:$0xf]
    %v1364 = vld [vmem:[%s9 + $0x3c] sm:$0xf]
    %v1365 = vld [vmem:[%s9 + $0x40] sm:$0xf]
    %v1366 = vld [vmem:[%s9 + $0x44] sm:$0xf]
    %v1367 = vld [vmem:[%s9 + $0x48] sm:$0xf]
    %v1368 = vld [vmem:[%s9 + $0x4c] sm:$0xf]
    %v1369 = vld [vmem:[%s9 + $0x50] sm:$0xf]
    %v1370 = vld [vmem:[%s9 + $0x54] sm:$0xf]
    %v1371 = vld [vmem:[%s9 + $0x58] sm:$0xf]
    %v1372 = vld [vmem:[%s9 + $0x5c] sm:$0xf]
    %v1373 = vld [vmem:[%s9 + $0x60] sm:$0xf]
    %v1374 = vld [vmem:[%s9 + $0x64] sm:$0xf]
    %v1375 = vld [vmem:[%s9 + $0x68] sm:$0xf]
    %v1376 = vld [vmem:[%s9 + $0x6c] sm:$0xf]
    %v1377 = vld [vmem:[%s9 + $0x70] sm:$0xf]
    %v1378 = vld [vmem:[%s9 + $0x74] sm:$0xf]
    %v1379 = vld [vmem:[%s9 + $0x78] sm:$0xf]
    %v1380 = vld [vmem:[%s9 + $0x7c] sm:$0xf]
    %v1381 = vld [vmem:[%s9 + $0x80] sm:$0xf]
    %v1382 = vld [vmem:[%s9 + $0x84] sm:$0xf]
    %v1383 = vld [vmem:[%s9 + $0x88] sm:$0xf]
    %v1384 = vld [vmem:[%s9 + $0x8c] sm:$0xf]
    %v1385 = vld [vmem:[%s9 + $0x90] sm:$0xf]
    %v1386 = vld [vmem:[%s9 + $0x94] sm:$0xf]
    %v1387 = vld [vmem:[%s9 + $0x98] sm:$0xf]
    %v1388 = vld [vmem:[%s9 + $0x9c] sm:$0xf]
    %v1389 = vld [vmem:[%s9 + $0xa0] sm:$0xf]
    %v1390 = vld [vmem:[%s9 + $0xa4] sm:$0xf]
    %v1391 = vld [vmem:[%s9 + $0xa8] sm:$0xf]
    %v1392 = vld [vmem:[%s9 + $0xac] sm:$0xf]
    %v1393 = vld [vmem:[%s9 + $0xb0] sm:$0xf]
    %v1394 = vld [vmem:[%s9 + $0xb4] sm:$0xf]
    %v1395 = vld [vmem:[%s9 + $0xb8] sm:$0xf]
    %v1396 = vld [vmem:[%s9 + $0xbc] sm:$0xf]
    %v1397 = vld [vmem:[%s9 + $0xc0] sm:$0xf]
    %v1398 = vld [vmem:[%s9 + $0xc4] sm:$0xf]
    %v1399 = vld [vmem:[%s9 + $0xc8] sm:$0xf]
    %v1400 = vld [vmem:[%s9 + $0xcc] sm:$0xf]
    %v1401 = vld [vmem:[%s9 + $0xd0] sm:$0xf]
    %v1402 = vld [vmem:[%s9 + $0xd4] sm:$0xf]
    %v1403 = vld [vmem:[%s9 + $0xd8] sm:$0xf]
    %v1404 = vld [vmem:[%s9 + $0xdc] sm:$0xf]
    %v1405 = vld [vmem:[%s9 + $0xe0] sm:$0xf]
    %v1406 = vld [vmem:[%s9 + $0xe4] sm:$0xf]
    %v1407 = vld [vmem:[%s9 + $0xe8] sm:$0xf]
    %v1408 = vld [vmem:[%s9 + $0xec] sm:$0xf]
    %v1409 = vld [vmem:[%s9 + $0xf0] sm:$0xf]
    %v1410 = vld [vmem:[%s9 + $0xf4] sm:$0xf]
    %v1411 = vld [vmem:[%s9 + $0xf8] sm:$0xf]
    %v1412 = vld [vmem:[%s9 + $0xfc] sm:$0xf]
    %v1413 = vld [vmem:[%s39] sm:$0xf]
    %v1414 = vld [vmem:[%s41] sm:$0x1]
    %v1416 = vlaneseq
    %v1417 = vshrl.u32 %v1416, 7
    %v1418 = vsub.s32 0, %v1417
    %v1419 = vrot.slane %v1414, %v1418
    %v1485 = vunpack.c.l.b16 %v1349
    %v1486 = vunpack.c.l.b16 %v1350
    %v1487 = vunpack.c.l.b16 %v1351
    %v1488 = vunpack.c.l.b16 %v1352
    %v1489 = vunpack.c.l.b16 %v1353
    %v1490 = vunpack.c.l.b16 %v1354
    %v1491 = vunpack.c.l.b16 %v1355
    %v1492 = vunpack.c.l.b16 %v1356
    %v1493 = vunpack.c.l.b16 %v1357
    %v1494 = vunpack.c.l.b16 %v1358
    %v1495 = vunpack.c.l.b16 %v1359
    %v1496 = vunpack.c.l.b16 %v1360
    %v1497 = vunpack.c.l.b16 %v1361
    %v1498 = vunpack.c.l.b16 %v1362
    %v1499 = vunpack.c.l.b16 %v1363
    %v1500 = vunpack.c.l.b16 %v1364
    %v1501 = vunpack.c.l.b16 %v1365
    %v1502 = vunpack.c.l.b16 %v1366
    %v1503 = vunpack.c.l.b16 %v1367
    %v1504 = vunpack.c.l.b16 %v1368
    %v1505 = vunpack.c.l.b16 %v1369
    %v1506 = vunpack.c.l.b16 %v1370
    %v1507 = vunpack.c.l.b16 %v1371
    %v1508 = vunpack.c.l.b16 %v1372
    %v1509 = vunpack.c.l.b16 %v1373
    %v1510 = vunpack.c.l.b16 %v1374
    %v1511 = vunpack.c.l.b16 %v1375
    %v1512 = vunpack.c.l.b16 %v1376
    %v1513 = vunpack.c.l.b16 %v1377
    %v1514 = vunpack.c.l.b16 %v1378
    %v1515 = vunpack.c.l.b16 %v1379
    %v1516 = vunpack.c.l.b16 %v1380
    %v1517 = vunpack.c.l.b16 %v1381
    %v1518 = vunpack.c.l.b16 %v1382
    %v1519 = vunpack.c.l.b16 %v1383
    %v1520 = vunpack.c.l.b16 %v1384
    %v1521 = vunpack.c.l.b16 %v1385
    %v1522 = vunpack.c.l.b16 %v1386
    %v1523 = vunpack.c.l.b16 %v1387
    %v1524 = vunpack.c.l.b16 %v1388
    %v1525 = vunpack.c.l.b16 %v1389
    %v1526 = vunpack.c.l.b16 %v1390
    %v1527 = vunpack.c.l.b16 %v1391
    %v1528 = vunpack.c.l.b16 %v1392
    %v1529 = vunpack.c.l.b16 %v1393
    %v1530 = vunpack.c.l.b16 %v1394
    %v1531 = vunpack.c.l.b16 %v1395
    %v1532 = vunpack.c.l.b16 %v1396
    %v1533 = vunpack.c.l.b16 %v1397
    %v1534 = vunpack.c.l.b16 %v1398
    %v1535 = vunpack.c.l.b16 %v1399
    %v1536 = vunpack.c.l.b16 %v1400
    %v1537 = vunpack.c.l.b16 %v1401
    %v1538 = vunpack.c.l.b16 %v1402
    %v1539 = vunpack.c.l.b16 %v1403
    %v1540 = vunpack.c.l.b16 %v1404
    %v1541 = vunpack.c.l.b16 %v1405
    %v1542 = vunpack.c.l.b16 %v1406
    %v1543 = vunpack.c.l.b16 %v1407
    %v1544 = vunpack.c.l.b16 %v1408
    %v1545 = vunpack.c.l.b16 %v1409
    %v1546 = vunpack.c.l.b16 %v1410
    %v1547 = vunpack.c.l.b16 %v1411
    %v1548 = vunpack.c.l.b16 %v1412
    %v1549 = vpack.c.b16 %v1486, %v1485
    %v1550 = vpack.c.b16 %v1488, %v1487
    %v1551 = vpack.c.b16 %v1490, %v1489
    %v1552 = vpack.c.b16 %v1492, %v1491
    %v1553 = vpack.c.b16 %v1494, %v1493
    %v1554 = vpack.c.b16 %v1496, %v1495
    %v1555 = vpack.c.b16 %v1498, %v1497
    %v1556 = vpack.c.b16 %v1500, %v1499
    %v1557 = vpack.c.b16 %v1502, %v1501
    %v1558 = vpack.c.b16 %v1504, %v1503
    %v1559 = vpack.c.b16 %v1506, %v1505
    %v1560 = vpack.c.b16 %v1508, %v1507
    %v1561 = vpack.c.b16 %v1510, %v1509
    %v1562 = vpack.c.b16 %v1512, %v1511
    %v1563 = vpack.c.b16 %v1514, %v1513
    %v1564 = vpack.c.b16 %v1516, %v1515
    %v1565 = vpack.c.b16 %v1518, %v1517
    %v1566 = vpack.c.b16 %v1520, %v1519
    %v1567 = vpack.c.b16 %v1522, %v1521
    %v1568 = vpack.c.b16 %v1524, %v1523
    %v1569 = vpack.c.b16 %v1526, %v1525
    %v1570 = vpack.c.b16 %v1528, %v1527
    %v1571 = vpack.c.b16 %v1530, %v1529
    %v1572 = vpack.c.b16 %v1532, %v1531
    %v1573 = vpack.c.b16 %v1534, %v1533
    %v1574 = vpack.c.b16 %v1536, %v1535
    %v1575 = vpack.c.b16 %v1538, %v1537
    %v1576 = vpack.c.b16 %v1540, %v1539
    %v1577 = vpack.c.b16 %v1542, %v1541
    %v1578 = vpack.c.b16 %v1544, %v1543
    %v1579 = vpack.c.b16 %v1546, %v1545
    %v1580 = vpack.c.b16 %v1548, %v1547
    %v1582 = vsel %vm535, %v1549, 0
    %v1585 = vsel %vm535, %v1550, 0
    %v1588 = vsel %vm535, %v1551, 0
    %v1591 = vsel %vm535, %v1552, 0
    %v1594 = vsel %vm535, %v1553, 0
    %v1597 = vsel %vm535, %v1554, 0
    %v1600 = vsel %vm535, %v1555, 0
    %v1603 = vsel %vm535, %v1556, 0
    %v1606 = vsel %vm535, %v1557, 0
    %v1609 = vsel %vm535, %v1558, 0
    %v1612 = vsel %vm535, %v1559, 0
    %v1615 = vsel %vm535, %v1560, 0
    %v1618 = vsel %vm535, %v1561, 0
    %v1621 = vsel %vm535, %v1562, 0
    %v1624 = vsel %vm535, %v1563, 0
    %v1627 = vsel %vm535, %v1564, 0
    %v1630 = vsel %vm535, %v1565, 0
    %v1633 = vsel %vm535, %v1566, 0
    %v1636 = vsel %vm535, %v1567, 0
    %v1639 = vsel %vm535, %v1568, 0
    %v1642 = vsel %vm535, %v1569, 0
    %v1645 = vsel %vm535, %v1570, 0
    %v1648 = vsel %vm535, %v1571, 0
    %v1651 = vsel %vm535, %v1572, 0
    %v1654 = vsel %vm535, %v1573, 0
    %v1657 = vsel %vm535, %v1574, 0
    %v1660 = vsel %vm535, %v1575, 0
    %v1663 = vsel %vm535, %v1576, 0
    %v1666 = vsel %vm535, %v1577, 0
    %v1669 = vsel %vm535, %v1578, 0
    %v1672 = vsel %vm535, %v1579, 0
    %v1675 = vsel %vm535, %v1580, 0
    %v1678 = vsel %vm437, %v1413, 0
    %1680 = vmatprep.subr.bf16.mxu0 0
    %1681 = vmatpush1.bf16.msra.mxu0 0
    %1682 = vmatprep.subr.bf16.mxu0 0
    %1683 = vmatpush1.bf16.msra.mxu0 0
    %1684 = vmatprep.subr.bf16.mxu0 0
    %1685 = vmatpush1.bf16.msra.mxu0 0
    %1686 = vmatprep.subr.bf16.mxu0 0
    %1687 = vmatpush1.bf16.msra.mxu0 0
    %1688 = vmatprep.subr.bf16.mxu0 0
    %1689 = vmatpush1.bf16.msra.mxu0 0
    %1690 = vmatprep.subr.bf16.mxu0 0
    %1691 = vmatpush1.bf16.msra.mxu0 0
    %1692 = vmatprep.subr.bf16.mxu0 0
    %1693 = vmatpush1.bf16.msra.mxu0 0
    %1694 = vmatprep.subr.bf16.mxu0 0
    %1695 = vmatpush1.bf16.msra.mxu0 %v1678
    %1696 = vmatprep.subr.bf16.mxu0 0
    %1697 = vmatpush2.bf16.msra.mxu0 0
    %1698 = vmatprep.subr.bf16.mxu0 0
    %1699 = vmatpush2.bf16.msra.mxu0 0
    %1700 = vmatprep.subr.bf16.mxu0 0
    %1701 = vmatpush2.bf16.msra.mxu0 0
    %1702 = vmatprep.subr.bf16.mxu0 0
    %1703 = vmatpush2.bf16.msra.mxu0 0
    %1704 = vmatprep.subr.bf16.mxu0 0
    %1705 = vmatpush2.bf16.msra.mxu0 0
    %1706 = vmatprep.subr.bf16.mxu0 0
    %1707 = vmatpush2.bf16.msra.mxu0 0
    %1708 = vmatprep.subr.bf16.mxu0 0
    %1709 = vmatpush2.bf16.msra.mxu0 0
    %1710 = vmatprep.subr.bf16.mxu0 0
    %1711 = vmatpush2.bf16.msra.mxu0 0
    %1712 = vmatprep.mubr.bf16.mxu0 0
    %1713 = vmatmul.mubr.bf16.gmra.mxu0 %v1582
    %v1714 = vpop.f32.mrf.mxu0
    %v1715 = vadd.f32 %v1419, %v1714
    %v1716 = vpop.f32.mrf.mxu0
    %v1717 = vpop.f32.mrf.mxu0
    %v1718 = vadd.f32 %v1419, %v1717
    %v1719 = vpop.f32.mrf.mxu0
    %1720 = vmatprep.mubr.bf16.mxu0 0
    %1721 = vmatmul.mubr.bf16.gmra.mxu0 %v1585
    %v1722 = vpop.f32.mrf.mxu0
    %v1723 = vadd.f32 %v1419, %v1722
    %v1724 = vpop.f32.mrf.mxu0
    %v1725 = vpop.f32.mrf.mxu0
    %v1726 = vadd.f32 %v1419, %v1725
    %v1727 = vpop.f32.mrf.mxu0
    %1728 = vmatprep.mubr.bf16.mxu0 0
    %1729 = vmatmul.mubr.bf16.gmra.mxu0 %v1588
    %v1730 = vpop.f32.mrf.mxu0
    %v1731 = vadd.f32 %v1419, %v1730
    %v1732 = vpop.f32.mrf.mxu0
    %v1733 = vpop.f32.mrf.mxu0
    %v1734 = vadd.f32 %v1419, %v1733
    %v1735 = vpop.f32.mrf.mxu0
    %1736 = vmatprep.mubr.bf16.mxu0 0
    %1737 = vmatmul.mubr.bf16.gmra.mxu0 %v1591
    %v1738 = vpop.f32.mrf.mxu0
    %v1739 = vadd.f32 %v1419, %v1738
    %v1740 = vpop.f32.mrf.mxu0
    %v1741 = vpop.f32.mrf.mxu0
    %v1742 = vadd.f32 %v1419, %v1741
    %v1743 = vpop.f32.mrf.mxu0
    %1744 = vmatprep.mubr.bf16.mxu0 0
    %1745 = vmatmul.mubr.bf16.gmra.mxu0 %v1594
    %v1746 = vpop.f32.mrf.mxu0
    %v1747 = vadd.f32 %v1419, %v1746
    %v1748 = vpop.f32.mrf.mxu0
    %v1749 = vpop.f32.mrf.mxu0
    %v1750 = vadd.f32 %v1419, %v1749
    %v1751 = vpop.f32.mrf.mxu0
    %1752 = vmatprep.mubr.bf16.mxu0 0
    %1753 = vmatmul.mubr.bf16.gmra.mxu0 %v1597
    %v1754 = vpop.f32.mrf.mxu0
    %v1755 = vadd.f32 %v1419, %v1754
    %v1756 = vpop.f32.mrf.mxu0
    %v1757 = vpop.f32.mrf.mxu0
    %v1758 = vadd.f32 %v1419, %v1757
    %v1759 = vpop.f32.mrf.mxu0
    %1760 = vmatprep.mubr.bf16.mxu0 0
    %1761 = vmatmul.mubr.bf16.gmra.mxu0 %v1600
    %v1762 = vpop.f32.mrf.mxu0
    %v1763 = vadd.f32 %v1419, %v1762
    %v1764 = vpop.f32.mrf.mxu0
    %v1765 = vpop.f32.mrf.mxu0
    %v1766 = vadd.f32 %v1419, %v1765
    %v1767 = vpop.f32.mrf.mxu0
    %1768 = vmatprep.mubr.bf16.mxu0 0
    %1769 = vmatmul.mubr.bf16.gmra.mxu0 %v1603
    %v1770 = vpop.f32.mrf.mxu0
    %v1771 = vadd.f32 %v1419, %v1770
    %v1772 = vpop.f32.mrf.mxu0
    %v1773 = vpop.f32.mrf.mxu0
    %v1774 = vadd.f32 %v1419, %v1773
    %v1775 = vpop.f32.mrf.mxu0
    %1776 = vmatprep.mubr.bf16.mxu0 0
    %1777 = vmatmul.mubr.bf16.gmra.mxu0 %v1606
    %v1778 = vpop.f32.mrf.mxu0
    %v1779 = vadd.f32 %v1419, %v1778
    %v1780 = vpop.f32.mrf.mxu0
    %v1781 = vpop.f32.mrf.mxu0
    %v1782 = vadd.f32 %v1419, %v1781
    %v1783 = vpop.f32.mrf.mxu0
    %1784 = vmatprep.mubr.bf16.mxu0 0
    %1785 = vmatmul.mubr.bf16.gmra.mxu0 %v1609
    %v1786 = vpop.f32.mrf.mxu0
    %v1787 = vadd.f32 %v1419, %v1786
    %v1788 = vpop.f32.mrf.mxu0
    %v1789 = vpop.f32.mrf.mxu0
    %v1790 = vadd.f32 %v1419, %v1789
    %v1791 = vpop.f32.mrf.mxu0
    %1792 = vmatprep.mubr.bf16.mxu0 0
    %1793 = vmatmul.mubr.bf16.gmra.mxu0 %v1612
    %v1794 = vpop.f32.mrf.mxu0
    %v1795 = vadd.f32 %v1419, %v1794
    %v1796 = vpop.f32.mrf.mxu0
    %v1797 = vpop.f32.mrf.mxu0
    %v1798 = vadd.f32 %v1419, %v1797
    %v1799 = vpop.f32.mrf.mxu0
    %1800 = vmatprep.mubr.bf16.mxu0 0
    %1801 = vmatmul.mubr.bf16.gmra.mxu0 %v1615
    %v1802 = vpop.f32.mrf.mxu0
    %v1803 = vadd.f32 %v1419, %v1802
    %v1804 = vpop.f32.mrf.mxu0
    %v1805 = vpop.f32.mrf.mxu0
    %v1806 = vadd.f32 %v1419, %v1805
    %v1807 = vpop.f32.mrf.mxu0
    %1808 = vmatprep.mubr.bf16.mxu0 0
    %1809 = vmatmul.mubr.bf16.gmra.mxu0 %v1618
    %v1810 = vpop.f32.mrf.mxu0
    %v1811 = vadd.f32 %v1419, %v1810
    %v1812 = vpop.f32.mrf.mxu0
    %v1813 = vpop.f32.mrf.mxu0
    %v1814 = vadd.f32 %v1419, %v1813
    %v1815 = vpop.f32.mrf.mxu0
    %1816 = vmatprep.mubr.bf16.mxu0 0
    %1817 = vmatmul.mubr.bf16.gmra.mxu0 %v1621
    %v1818 = vpop.f32.mrf.mxu0
    %v1819 = vadd.f32 %v1419, %v1818
    %v1820 = vpop.f32.mrf.mxu0
    %v1821 = vpop.f32.mrf.mxu0
    %v1822 = vadd.f32 %v1419, %v1821
    %v1823 = vpop.f32.mrf.mxu0
    %1824 = vmatprep.mubr.bf16.mxu0 0
    %1825 = vmatmul.mubr.bf16.gmra.mxu0 %v1624
    %v1826 = vpop.f32.mrf.mxu0
    %v1827 = vadd.f32 %v1419, %v1826
    %v1828 = vpop.f32.mrf.mxu0
    %v1829 = vpop.f32.mrf.mxu0
    %v1830 = vadd.f32 %v1419, %v1829
    %v1831 = vpop.f32.mrf.mxu0
    %1832 = vmatprep.mubr.bf16.mxu0 0
    %1833 = vmatmul.mubr.bf16.gmra.mxu0 %v1627
    %v1834 = vpop.f32.mrf.mxu0
    %v1835 = vadd.f32 %v1419, %v1834
    %v1836 = vpop.f32.mrf.mxu0
    %v1837 = vpop.f32.mrf.mxu0
    %v1838 = vadd.f32 %v1419, %v1837
    %v1839 = vpop.f32.mrf.mxu0
    %1840 = vmatprep.mubr.bf16.mxu0 0
    %1841 = vmatmul.mubr.bf16.gmra.mxu0 %v1630
    %v1842 = vpop.f32.mrf.mxu0
    %v1843 = vadd.f32 %v1419, %v1842
    %v1844 = vpop.f32.mrf.mxu0
    %v1845 = vpop.f32.mrf.mxu0
    %v1846 = vadd.f32 %v1419, %v1845
    %v1847 = vpop.f32.mrf.mxu0
    %1848 = vmatprep.mubr.bf16.mxu0 0
    %1849 = vmatmul.mubr.bf16.gmra.mxu0 %v1633
    %v1850 = vpop.f32.mrf.mxu0
    %v1851 = vadd.f32 %v1419, %v1850
    %v1852 = vpop.f32.mrf.mxu0
    %v1853 = vpop.f32.mrf.mxu0
    %v1854 = vadd.f32 %v1419, %v1853
    %v1855 = vpop.f32.mrf.mxu0
    %1856 = vmatprep.mubr.bf16.mxu0 0
    %1857 = vmatmul.mubr.bf16.gmra.mxu0 %v1636
    %v1858 = vpop.f32.mrf.mxu0
    %v1859 = vadd.f32 %v1419, %v1858
    %v1860 = vpop.f32.mrf.mxu0
    %v1861 = vpop.f32.mrf.mxu0
    %v1862 = vadd.f32 %v1419, %v1861
    %v1863 = vpop.f32.mrf.mxu0
    %1864 = vmatprep.mubr.bf16.mxu0 0
    %1865 = vmatmul.mubr.bf16.gmra.mxu0 %v1639
    %v1866 = vpop.f32.mrf.mxu0
    %v1867 = vadd.f32 %v1419, %v1866
    %v1868 = vpop.f32.mrf.mxu0
    %v1869 = vpop.f32.mrf.mxu0
    %v1870 = vadd.f32 %v1419, %v1869
    %v1871 = vpop.f32.mrf.mxu0
    %1872 = vmatprep.mubr.bf16.mxu0 0
    %1873 = vmatmul.mubr.bf16.gmra.mxu0 %v1642
    %v1874 = vpop.f32.mrf.mxu0
    %v1875 = vadd.f32 %v1419, %v1874
    %v1876 = vpop.f32.mrf.mxu0
    %v1877 = vpop.f32.mrf.mxu0
    %v1878 = vadd.f32 %v1419, %v1877
    %v1879 = vpop.f32.mrf.mxu0
    %1880 = vmatprep.mubr.bf16.mxu0 0
    %1881 = vmatmul.mubr.bf16.gmra.mxu0 %v1645
    %v1882 = vpop.f32.mrf.mxu0
    %v1883 = vadd.f32 %v1419, %v1882
    %v1884 = vpop.f32.mrf.mxu0
    %v1885 = vpop.f32.mrf.mxu0
    %v1886 = vadd.f32 %v1419, %v1885
    %v1887 = vpop.f32.mrf.mxu0
    %1888 = vmatprep.mubr.bf16.mxu0 0
    %1889 = vmatmul.mubr.bf16.gmra.mxu0 %v1648
    %v1890 = vpop.f32.mrf.mxu0
    %v1891 = vadd.f32 %v1419, %v1890
    %v1892 = vpop.f32.mrf.mxu0
    %v1893 = vpop.f32.mrf.mxu0
    %v1894 = vadd.f32 %v1419, %v1893
    %v1895 = vpop.f32.mrf.mxu0
    %1896 = vmatprep.mubr.bf16.mxu0 0
    %1897 = vmatmul.mubr.bf16.gmra.mxu0 %v1651
    %v1898 = vpop.f32.mrf.mxu0
    %v1899 = vadd.f32 %v1419, %v1898
    %v1900 = vpop.f32.mrf.mxu0
    %v1901 = vpop.f32.mrf.mxu0
    %v1902 = vadd.f32 %v1419, %v1901
    %v1903 = vpop.f32.mrf.mxu0
    %1904 = vmatprep.mubr.bf16.mxu0 0
    %1905 = vmatmul.mubr.bf16.gmra.mxu0 %v1654
    %v1906 = vpop.f32.mrf.mxu0
    %v1907 = vadd.f32 %v1419, %v1906
    %v1908 = vpop.f32.mrf.mxu0
    %v1909 = vpop.f32.mrf.mxu0
    %v1910 = vadd.f32 %v1419, %v1909
    %v1911 = vpop.f32.mrf.mxu0
    %1912 = vmatprep.mubr.bf16.mxu0 0
    %1913 = vmatmul.mubr.bf16.gmra.mxu0 %v1657
    %v1914 = vpop.f32.mrf.mxu0
    %v1915 = vadd.f32 %v1419, %v1914
    %v1916 = vpop.f32.mrf.mxu0
    %v1917 = vpop.f32.mrf.mxu0
    %v1918 = vadd.f32 %v1419, %v1917
    %v1919 = vpop.f32.mrf.mxu0
    %1920 = vmatprep.mubr.bf16.mxu0 0
    %1921 = vmatmul.mubr.bf16.gmra.mxu0 %v1660
    %v1922 = vpop.f32.mrf.mxu0
    %v1923 = vadd.f32 %v1419, %v1922
    %v1924 = vpop.f32.mrf.mxu0
    %v1925 = vpop.f32.mrf.mxu0
    %v1926 = vadd.f32 %v1419, %v1925
    %v1927 = vpop.f32.mrf.mxu0
    %1928 = vmatprep.mubr.bf16.mxu0 0
    %1929 = vmatmul.mubr.bf16.gmra.mxu0 %v1663
    %v1930 = vpop.f32.mrf.mxu0
    %v1931 = vadd.f32 %v1419, %v1930
    %v1932 = vpop.f32.mrf.mxu0
    %v1933 = vpop.f32.mrf.mxu0
    %v1934 = vadd.f32 %v1419, %v1933
    %v1935 = vpop.f32.mrf.mxu0
    %1936 = vmatprep.mubr.bf16.mxu0 0
    %1937 = vmatmul.mubr.bf16.gmra.mxu0 %v1666
    %v1938 = vpop.f32.mrf.mxu0
    %v1939 = vadd.f32 %v1419, %v1938
    %v1940 = vpop.f32.mrf.mxu0
    %v1941 = vpop.f32.mrf.mxu0
    %v1942 = vadd.f32 %v1419, %v1941
    %v1943 = vpop.f32.mrf.mxu0
    %1944 = vmatprep.mubr.bf16.mxu0 0
    %1945 = vmatmul.mubr.bf16.gmra.mxu0 %v1669
    %v1946 = vpop.f32.mrf.mxu0
    %v1947 = vadd.f32 %v1419, %v1946
    %v1948 = vpop.f32.mrf.mxu0
    %v1949 = vpop.f32.mrf.mxu0
    %v1950 = vadd.f32 %v1419, %v1949
    %v1951 = vpop.f32.mrf.mxu0
    %1952 = vmatprep.mubr.bf16.mxu0 0
    %1953 = vmatmul.mubr.bf16.gmra.mxu0 %v1672
    %v1954 = vpop.f32.mrf.mxu0
    %v1955 = vadd.f32 %v1419, %v1954
    %v1956 = vpop.f32.mrf.mxu0
    %v1957 = vpop.f32.mrf.mxu0
    %v1958 = vadd.f32 %v1419, %v1957
    %v1959 = vpop.f32.mrf.mxu0
    %1960 = vmatprep.mubr.bf16.mxu0 0
    %1961 = vmatmul.mubr.bf16.gmra.mxu0 %v1675
    %v1962 = vpop.f32.mrf.mxu0
    %v1963 = vadd.f32 %v1419, %v1962
    %v1964 = vpop.f32.mrf.mxu0
    %v1965 = vpop.f32.mrf.mxu0
    %v1966 = vadd.f32 %v1419, %v1965
    %v1967 = vpop.f32.mrf.mxu0
    %1968 = vdwg.mxu0
    %v1969 = vmax.f32 %v1715, 0.0
    %v1970 = vmax.f32 %v1718, 0.0
    %v1971 = vmax.f32 %v1723, 0.0
    %v1972 = vmax.f32 %v1726, 0.0
    %v1973 = vmax.f32 %v1731, 0.0
    %v1974 = vmax.f32 %v1734, 0.0
    %v1975 = vmax.f32 %v1739, 0.0
    %v1976 = vmax.f32 %v1742, 0.0
    %v1977 = vmax.f32 %v1747, 0.0
    %v1978 = vmax.f32 %v1750, 0.0
    %v1979 = vmax.f32 %v1755, 0.0
    %v1980 = vmax.f32 %v1758, 0.0
    %v1981 = vmax.f32 %v1763, 0.0
    %v1982 = vmax.f32 %v1766, 0.0
    %v1983 = vmax.f32 %v1771, 0.0
    %v1984 = vmax.f32 %v1774, 0.0
    %v1985 = vmax.f32 %v1779, 0.0
    %v1986 = vmax.f32 %v1782, 0.0
    %v1987 = vmax.f32 %v1787, 0.0
    %v1988 = vmax.f32 %v1790, 0.0
    %v1989 = vmax.f32 %v1795, 0.0
    %v1990 = vmax.f32 %v1798, 0.0
    %v1991 = vmax.f32 %v1803, 0.0
    %v1992 = vmax.f32 %v1806, 0.0
    %v1993 = vmax.f32 %v1811, 0.0
    %v1994 = vmax.f32 %v1814, 0.0
    %v1995 = vmax.f32 %v1819, 0.0
    %v1996 = vmax.f32 %v1822, 0.0
    %v1997 = vmax.f32 %v1827, 0.0
    %v1998 = vmax.f32 %v1830, 0.0
    %v1999 = vmax.f32 %v1835, 0.0
    %v2000 = vmax.f32 %v1838, 0.0
    %v2001 = vmax.f32 %v1843, 0.0
    %v2002 = vmax.f32 %v1846, 0.0
    %v2003 = vmax.f32 %v1851, 0.0
    %v2004 = vmax.f32 %v1854, 0.0
    %v2005 = vmax.f32 %v1859, 0.0
    %v2006 = vmax.f32 %v1862, 0.0
    %v2007 = vmax.f32 %v1867, 0.0
    %v2008 = vmax.f32 %v1870, 0.0
    %v2009 = vmax.f32 %v1875, 0.0
    %v2010 = vmax.f32 %v1878, 0.0
    %v2011 = vmax.f32 %v1883, 0.0
    %v2012 = vmax.f32 %v1886, 0.0
    %v2013 = vmax.f32 %v1891, 0.0
    %v2014 = vmax.f32 %v1894, 0.0
    %v2015 = vmax.f32 %v1899, 0.0
    %v2016 = vmax.f32 %v1902, 0.0
    %v2017 = vmax.f32 %v1907, 0.0
    %v2018 = vmax.f32 %v1910, 0.0
    %v2019 = vmax.f32 %v1915, 0.0
    %v2020 = vmax.f32 %v1918, 0.0
    %v2021 = vmax.f32 %v1923, 0.0
    %v2022 = vmax.f32 %v1926, 0.0
    %v2023 = vmax.f32 %v1931, 0.0
    %v2024 = vmax.f32 %v1934, 0.0
    %v2025 = vmax.f32 %v1939, 0.0
    %v2026 = vmax.f32 %v1942, 0.0
    %v2027 = vmax.f32 %v1947, 0.0
    %v2028 = vmax.f32 %v1950, 0.0
    %v2029 = vmax.f32 %v1955, 0.0
    %v2030 = vmax.f32 %v1958, 0.0
    %v2031 = vmax.f32 %v1963, 0.0
    %v2032 = vmax.f32 %v1966, 0.0
    %v2033 = vld [vmem:[%s17] sm:$0xf]
    %v2034 = vld [vmem:[%s17 + $0x4] sm:$0xf]
    %v2035 = vld [vmem:[%s17 + $0x8] sm:$0xf]
    %v2036 = vld [vmem:[%s17 + $0xc] sm:$0xf]
    %v2037 = vld [vmem:[%s17 + $0x10] sm:$0xf]
    %v2038 = vld [vmem:[%s17 + $0x14] sm:$0xf]
    %v2039 = vld [vmem:[%s17 + $0x18] sm:$0xf]
    %v2040 = vld [vmem:[%s17 + $0x1c] sm:$0xf]
    %v2041 = vld [vmem:[%s17 + $0x20] sm:$0xf]
    %v2042 = vld [vmem:[%s17 + $0x24] sm:$0xf]
    %v2043 = vld [vmem:[%s17 + $0x28] sm:$0xf]
    %v2044 = vld [vmem:[%s17 + $0x2c] sm:$0xf]
    %v2045 = vld [vmem:[%s17 + $0x30] sm:$0xf]
    %v2046 = vld [vmem:[%s17 + $0x34] sm:$0xf]
    %v2047 = vld [vmem:[%s17 + $0x38] sm:$0xf]
    %v2048 = vld [vmem:[%s17 + $0x3c] sm:$0xf]
    %v2049 = vld [vmem:[%s17 + $0x40] sm:$0xf]
    %v2050 = vld [vmem:[%s17 + $0x44] sm:$0xf]
    %v2051 = vld [vmem:[%s17 + $0x48] sm:$0xf]
    %v2052 = vld [vmem:[%s17 + $0x4c] sm:$0xf]
    %v2053 = vld [vmem:[%s17 + $0x50] sm:$0xf]
    %v2054 = vld [vmem:[%s17 + $0x54] sm:$0xf]
    %v2055 = vld [vmem:[%s17 + $0x58] sm:$0xf]
    %v2056 = vld [vmem:[%s17 + $0x5c] sm:$0xf]
    %v2057 = vld [vmem:[%s17 + $0x60] sm:$0xf]
    %v2058 = vld [vmem:[%s17 + $0x64] sm:$0xf]
    %v2059 = vld [vmem:[%s17 + $0x68] sm:$0xf]
    %v2060 = vld [vmem:[%s17 + $0x6c] sm:$0xf]
    %v2061 = vld [vmem:[%s17 + $0x70] sm:$0xf]
    %v2062 = vld [vmem:[%s17 + $0x74] sm:$0xf]
    %v2063 = vld [vmem:[%s17 + $0x78] sm:$0xf]
    %v2064 = vld [vmem:[%s17 + $0x7c] sm:$0xf]
    %v2065 = vld [vmem:[%s17 + $0x80] sm:$0xf]
    %v2066 = vld [vmem:[%s17 + $0x84] sm:$0xf]
    %v2067 = vld [vmem:[%s17 + $0x88] sm:$0xf]
    %v2068 = vld [vmem:[%s17 + $0x8c] sm:$0xf]
    %v2069 = vld [vmem:[%s17 + $0x90] sm:$0xf]
    %v2070 = vld [vmem:[%s17 + $0x94] sm:$0xf]
    %v2071 = vld [vmem:[%s17 + $0x98] sm:$0xf]
    %v2072 = vld [vmem:[%s17 + $0x9c] sm:$0xf]
    %v2073 = vld [vmem:[%s17 + $0xa0] sm:$0xf]
    %v2074 = vld [vmem:[%s17 + $0xa4] sm:$0xf]
    %v2075 = vld [vmem:[%s17 + $0xa8] sm:$0xf]
    %v2076 = vld [vmem:[%s17 + $0xac] sm:$0xf]
    %v2077 = vld [vmem:[%s17 + $0xb0] sm:$0xf]
    %v2078 = vld [vmem:[%s17 + $0xb4] sm:$0xf]
    %v2079 = vld [vmem:[%s17 + $0xb8] sm:$0xf]
    %v2080 = vld [vmem:[%s17 + $0xbc] sm:$0xf]
    %v2081 = vld [vmem:[%s17 + $0xc0] sm:$0xf]
    %v2082 = vld [vmem:[%s17 + $0xc4] sm:$0xf]
    %v2083 = vld [vmem:[%s17 + $0xc8] sm:$0xf]
    %v2084 = vld [vmem:[%s17 + $0xcc] sm:$0xf]
    %v2085 = vld [vmem:[%s17 + $0xd0] sm:$0xf]
    %v2086 = vld [vmem:[%s17 + $0xd4] sm:$0xf]
    %v2087 = vld [vmem:[%s17 + $0xd8] sm:$0xf]
    %v2088 = vld [vmem:[%s17 + $0xdc] sm:$0xf]
    %v2089 = vld [vmem:[%s17 + $0xe0] sm:$0xf]
    %v2090 = vld [vmem:[%s17 + $0xe4] sm:$0xf]
    %v2091 = vld [vmem:[%s17 + $0xe8] sm:$0xf]
    %v2092 = vld [vmem:[%s17 + $0xec] sm:$0xf]
    %v2093 = vld [vmem:[%s17 + $0xf0] sm:$0xf]
    %v2094 = vld [vmem:[%s17 + $0xf4] sm:$0xf]
    %v2095 = vld [vmem:[%s17 + $0xf8] sm:$0xf]
    %v2096 = vld [vmem:[%s17 + $0xfc] sm:$0xf]
    %v2097 = vpack.c.bf16 %v1334, %v1333
    %v2098 = vpack.c.bf16 %v1336, %v1335
    %v2099 = vpack.c.bf16 %v1338, %v1337
    %v2100 = vpack.c.bf16 %v1340, %v1339
    %v2101 = vpack.c.bf16 %v1342, %v1341
    %v2102 = vpack.c.bf16 %v1344, %v1343
    %v2103 = vpack.c.bf16 %v1346, %v1345
    %v2104 = vpack.c.bf16 %v1348, %v1347
    %v2169 = vunpack.c.l.b16 %v2033
    %v2170 = vunpack.c.l.b16 %v2034
    %v2171 = vunpack.c.l.b16 %v2035
    %v2172 = vunpack.c.l.b16 %v2036
    %v2173 = vunpack.c.l.b16 %v2037
    %v2174 = vunpack.c.l.b16 %v2038
    %v2175 = vunpack.c.l.b16 %v2039
    %v2176 = vunpack.c.l.b16 %v2040
    %v2177 = vunpack.c.l.b16 %v2041
    %v2178 = vunpack.c.l.b16 %v2042
    %v2179 = vunpack.c.l.b16 %v2043
    %v2180 = vunpack.c.l.b16 %v2044
    %v2181 = vunpack.c.l.b16 %v2045
    %v2182 = vunpack.c.l.b16 %v2046
    %v2183 = vunpack.c.l.b16 %v2047
    %v2184 = vunpack.c.l.b16 %v2048
    %v2185 = vunpack.c.l.b16 %v2049
    %v2186 = vunpack.c.l.b16 %v2050
    %v2187 = vunpack.c.l.b16 %v2051
    %v2188 = vunpack.c.l.b16 %v2052
    %v2189 = vunpack.c.l.b16 %v2053
    %v2190 = vunpack.c.l.b16 %v2054
    %v2191 = vunpack.c.l.b16 %v2055
    %v2192 = vunpack.c.l.b16 %v2056
    %v2193 = vunpack.c.l.b16 %v2057
    %v2194 = vunpack.c.l.b16 %v2058
    %v2195 = vunpack.c.l.b16 %v2059
    %v2196 = vunpack.c.l.b16 %v2060
    %v2197 = vunpack.c.l.b16 %v2061
    %v2198 = vunpack.c.l.b16 %v2062
    %v2199 = vunpack.c.l.b16 %v2063
    %v2200 = vunpack.c.l.b16 %v2064
    %v2201 = vunpack.c.l.b16 %v2065
    %v2202 = vunpack.c.l.b16 %v2066
    %v2203 = vunpack.c.l.b16 %v2067
    %v2204 = vunpack.c.l.b16 %v2068
    %v2205 = vunpack.c.l.b16 %v2069
    %v2206 = vunpack.c.l.b16 %v2070
    %v2207 = vunpack.c.l.b16 %v2071
    %v2208 = vunpack.c.l.b16 %v2072
    %v2209 = vunpack.c.l.b16 %v2073
    %v2210 = vunpack.c.l.b16 %v2074
    %v2211 = vunpack.c.l.b16 %v2075
    %v2212 = vunpack.c.l.b16 %v2076
    %v2213 = vunpack.c.l.b16 %v2077
    %v2214 = vunpack.c.l.b16 %v2078
    %v2215 = vunpack.c.l.b16 %v2079
    %v2216 = vunpack.c.l.b16 %v2080
    %v2217 = vunpack.c.l.b16 %v2081
    %v2218 = vunpack.c.l.b16 %v2082
    %v2219 = vunpack.c.l.b16 %v2083
    %v2220 = vunpack.c.l.b16 %v2084
    %v2221 = vunpack.c.l.b16 %v2085
    %v2222 = vunpack.c.l.b16 %v2086
    %v2223 = vunpack.c.l.b16 %v2087
    %v2224 = vunpack.c.l.b16 %v2088
    %v2225 = vunpack.c.l.b16 %v2089
    %v2226 = vunpack.c.l.b16 %v2090
    %v2227 = vunpack.c.l.b16 %v2091
    %v2228 = vunpack.c.l.b16 %v2092
    %v2229 = vunpack.c.l.b16 %v2093
    %v2230 = vunpack.c.l.b16 %v2094
    %v2231 = vunpack.c.l.b16 %v2095
    %v2232 = vunpack.c.l.b16 %v2096
    %v2233 = vpack.c.b16 %v2170, %v2169
    %v2234 = vpack.c.b16 %v2172, %v2171
    %v2235 = vpack.c.b16 %v2174, %v2173
    %v2236 = vpack.c.b16 %v2176, %v2175
    %v2237 = vpack.c.b16 %v2178, %v2177
    %v2238 = vpack.c.b16 %v2180, %v2179
    %v2239 = vpack.c.b16 %v2182, %v2181
    %v2240 = vpack.c.b16 %v2184, %v2183
    %v2241 = vpack.c.b16 %v2186, %v2185
    %v2242 = vpack.c.b16 %v2188, %v2187
    %v2243 = vpack.c.b16 %v2190, %v2189
    %v2244 = vpack.c.b16 %v2192, %v2191
    %v2245 = vpack.c.b16 %v2194, %v2193
    %v2246 = vpack.c.b16 %v2196, %v2195
    %v2247 = vpack.c.b16 %v2198, %v2197
    %v2248 = vpack.c.b16 %v2200, %v2199
    %v2249 = vpack.c.b16 %v2202, %v2201
    %v2250 = vpack.c.b16 %v2204, %v2203
    %v2251 = vpack.c.b16 %v2206, %v2205
    %v2252 = vpack.c.b16 %v2208, %v2207
    %v2253 = vpack.c.b16 %v2210, %v2209
    %v2254 = vpack.c.b16 %v2212, %v2211
    %v2255 = vpack.c.b16 %v2214, %v2213
    %v2256 = vpack.c.b16 %v2216, %v2215
    %v2257 = vpack.c.b16 %v2218, %v2217
    %v2258 = vpack.c.b16 %v2220, %v2219
    %v2259 = vpack.c.b16 %v2222, %v2221
    %v2260 = vpack.c.b16 %v2224, %v2223
    %v2261 = vpack.c.b16 %v2226, %v2225
    %v2262 = vpack.c.b16 %v2228, %v2227
    %v2263 = vpack.c.b16 %v2230, %v2229
    %v2264 = vpack.c.b16 %v2232, %v2231
    %2297 = vmatprep.subr.bf16.mxu0 0
    %2298 = vmatpush1.bf16.msra.mxu0 %v2104
    %2299 = vmatprep.subr.bf16.mxu0 0
    %2300 = vmatpush1.bf16.msra.mxu0 %v2103
    %2301 = vmatprep.subr.bf16.mxu0 0
    %2302 = vmatpush1.bf16.msra.mxu0 %v2102
    %2303 = vmatprep.subr.bf16.mxu0 0
    %2304 = vmatpush1.bf16.msra.mxu0 %v2101
    %2305 = vmatprep.subr.bf16.mxu0 0
    %2306 = vmatpush1.bf16.msra.mxu0 %v2100
    %2307 = vmatprep.subr.bf16.mxu0 0
    %2308 = vmatpush1.bf16.msra.mxu0 %v2099
    %2309 = vmatprep.subr.bf16.mxu0 0
    %2310 = vmatpush1.bf16.msra.mxu0 %v2098
    %2311 = vmatprep.subr.bf16.mxu0 0
    %2312 = vmatpush1.bf16.msra.mxu0 %v2097
    %2313 = vmatprep.subr.bf16.mxu0 0
    %2314 = vmatpush2.bf16.msra.mxu0 0
    %2315 = vmatprep.subr.bf16.mxu0 0
    %2316 = vmatpush2.bf16.msra.mxu0 0
    %2317 = vmatprep.subr.bf16.mxu0 0
    %2318 = vmatpush2.bf16.msra.mxu0 0
    %2319 = vmatprep.subr.bf16.mxu0 0
    %2320 = vmatpush2.bf16.msra.mxu0 0
    %2321 = vmatprep.subr.bf16.mxu0 0
    %2322 = vmatpush2.bf16.msra.mxu0 0
    %2323 = vmatprep.subr.bf16.mxu0 0
    %2324 = vmatpush2.bf16.msra.mxu0 0
    %2325 = vmatprep.subr.bf16.mxu0 0
    %2326 = vmatpush2.bf16.msra.mxu0 0
    %2327 = vmatprep.subr.bf16.mxu0 0
    %2328 = vmatpush2.bf16.msra.mxu0 0
    %2329 = vmatprep.mubr.bf16.mxu0 0
    %2330 = vmatmul.mubr.bf16.gmra.mxu0 %v2233
    %v2331 = vpop.f32.mrf.mxu0
    %v2332 = vadd.f32 %v1969, %v2331
    %v2333 = vpop.f32.mrf.mxu0
    %v2334 = vpop.f32.mrf.mxu0
    %v2335 = vadd.f32 %v1970, %v2334
    %v2336 = vpop.f32.mrf.mxu0
    %2337 = vmatprep.mubr.bf16.mxu0 0
    %2338 = vmatmul.mubr.bf16.gmra.mxu0 %v2234
    %v2339 = vpop.f32.mrf.mxu0
    %v2340 = vadd.f32 %v1971, %v2339
    %v2341 = vpop.f32.mrf.mxu0
    %v2342 = vpop.f32.mrf.mxu0
    %v2343 = vadd.f32 %v1972, %v2342
    %v2344 = vpop.f32.mrf.mxu0
    %2345 = vmatprep.mubr.bf16.mxu0 0
    %2346 = vmatmul.mubr.bf16.gmra.mxu0 %v2235
    %v2347 = vpop.f32.mrf.mxu0
    %v2348 = vadd.f32 %v1973, %v2347
    %v2349 = vpop.f32.mrf.mxu0
    %v2350 = vpop.f32.mrf.mxu0
    %v2351 = vadd.f32 %v1974, %v2350
    %v2352 = vpop.f32.mrf.mxu0
    %2353 = vmatprep.mubr.bf16.mxu0 0
    %2354 = vmatmul.mubr.bf16.gmra.mxu0 %v2236
    %v2355 = vpop.f32.mrf.mxu0
    %v2356 = vadd.f32 %v1975, %v2355
    %v2357 = vpop.f32.mrf.mxu0
    %v2358 = vpop.f32.mrf.mxu0
    %v2359 = vadd.f32 %v1976, %v2358
    %v2360 = vpop.f32.mrf.mxu0
    %2361 = vmatprep.mubr.bf16.mxu0 0
    %2362 = vmatmul.mubr.bf16.gmra.mxu0 %v2237
    %v2363 = vpop.f32.mrf.mxu0
    %v2364 = vadd.f32 %v1977, %v2363
    %v2365 = vpop.f32.mrf.mxu0
    %v2366 = vpop.f32.mrf.mxu0
    %v2367 = vadd.f32 %v1978, %v2366
    %v2368 = vpop.f32.mrf.mxu0
    %2369 = vmatprep.mubr.bf16.mxu0 0
    %2370 = vmatmul.mubr.bf16.gmra.mxu0 %v2238
    %v2371 = vpop.f32.mrf.mxu0
    %v2372 = vadd.f32 %v1979, %v2371
    %v2373 = vpop.f32.mrf.mxu0
    %v2374 = vpop.f32.mrf.mxu0
    %v2375 = vadd.f32 %v1980, %v2374
    %v2376 = vpop.f32.mrf.mxu0
    %2377 = vmatprep.mubr.bf16.mxu0 0
    %2378 = vmatmul.mubr.bf16.gmra.mxu0 %v2239
    %v2379 = vpop.f32.mrf.mxu0
    %v2380 = vadd.f32 %v1981, %v2379
    %v2381 = vpop.f32.mrf.mxu0
    %v2382 = vpop.f32.mrf.mxu0
    %v2383 = vadd.f32 %v1982, %v2382
    %v2384 = vpop.f32.mrf.mxu0
    %2385 = vmatprep.mubr.bf16.mxu0 0
    %2386 = vmatmul.mubr.bf16.gmra.mxu0 %v2240
    %v2387 = vpop.f32.mrf.mxu0
    %v2388 = vadd.f32 %v1983, %v2387
    %v2389 = vpop.f32.mrf.mxu0
    %v2390 = vpop.f32.mrf.mxu0
    %v2391 = vadd.f32 %v1984, %v2390
    %v2392 = vpop.f32.mrf.mxu0
    %2393 = vmatprep.mubr.bf16.mxu0 0
    %2394 = vmatmul.mubr.bf16.gmra.mxu0 %v2241
    %v2395 = vpop.f32.mrf.mxu0
    %v2396 = vadd.f32 %v1985, %v2395
    %v2397 = vpop.f32.mrf.mxu0
    %v2398 = vpop.f32.mrf.mxu0
    %v2399 = vadd.f32 %v1986, %v2398
    %v2400 = vpop.f32.mrf.mxu0
    %2401 = vmatprep.mubr.bf16.mxu0 0
    %2402 = vmatmul.mubr.bf16.gmra.mxu0 %v2242
    %v2403 = vpop.f32.mrf.mxu0
    %v2404 = vadd.f32 %v1987, %v2403
    %v2405 = vpop.f32.mrf.mxu0
    %v2406 = vpop.f32.mrf.mxu0
    %v2407 = vadd.f32 %v1988, %v2406
    %v2408 = vpop.f32.mrf.mxu0
    %2409 = vmatprep.mubr.bf16.mxu0 0
    %2410 = vmatmul.mubr.bf16.gmra.mxu0 %v2243
    %v2411 = vpop.f32.mrf.mxu0
    %v2412 = vadd.f32 %v1989, %v2411
    %v2413 = vpop.f32.mrf.mxu0
    %v2414 = vpop.f32.mrf.mxu0
    %v2415 = vadd.f32 %v1990, %v2414
    %v2416 = vpop.f32.mrf.mxu0
    %2417 = vmatprep.mubr.bf16.mxu0 0
    %2418 = vmatmul.mubr.bf16.gmra.mxu0 %v2244
    %v2419 = vpop.f32.mrf.mxu0
    %v2420 = vadd.f32 %v1991, %v2419
    %v2421 = vpop.f32.mrf.mxu0
    %v2422 = vpop.f32.mrf.mxu0
    %v2423 = vadd.f32 %v1992, %v2422
    %v2424 = vpop.f32.mrf.mxu0
    %2425 = vmatprep.mubr.bf16.mxu0 0
    %2426 = vmatmul.mubr.bf16.gmra.mxu0 %v2245
    %v2427 = vpop.f32.mrf.mxu0
    %v2428 = vadd.f32 %v1993, %v2427
    %v2429 = vpop.f32.mrf.mxu0
    %v2430 = vpop.f32.mrf.mxu0
    %v2431 = vadd.f32 %v1994, %v2430
    %v2432 = vpop.f32.mrf.mxu0
    %2433 = vmatprep.mubr.bf16.mxu0 0
    %2434 = vmatmul.mubr.bf16.gmra.mxu0 %v2246
    %v2435 = vpop.f32.mrf.mxu0
    %v2436 = vadd.f32 %v1995, %v2435
    %v2437 = vpop.f32.mrf.mxu0
    %v2438 = vpop.f32.mrf.mxu0
    %v2439 = vadd.f32 %v1996, %v2438
    %v2440 = vpop.f32.mrf.mxu0
    %2441 = vmatprep.mubr.bf16.mxu0 0
    %2442 = vmatmul.mubr.bf16.gmra.mxu0 %v2247
    %v2443 = vpop.f32.mrf.mxu0
    %v2444 = vadd.f32 %v1997, %v2443
    %v2445 = vpop.f32.mrf.mxu0
    %v2446 = vpop.f32.mrf.mxu0
    %v2447 = vadd.f32 %v1998, %v2446
    %v2448 = vpop.f32.mrf.mxu0
    %2449 = vmatprep.mubr.bf16.mxu0 0
    %2450 = vmatmul.mubr.bf16.gmra.mxu0 %v2248
    %v2451 = vpop.f32.mrf.mxu0
    %v2452 = vadd.f32 %v1999, %v2451
    %v2453 = vpop.f32.mrf.mxu0
    %v2454 = vpop.f32.mrf.mxu0
    %v2455 = vadd.f32 %v2000, %v2454
    %v2456 = vpop.f32.mrf.mxu0
    %2457 = vmatprep.mubr.bf16.mxu0 0
    %2458 = vmatmul.mubr.bf16.gmra.mxu0 %v2249
    %v2459 = vpop.f32.mrf.mxu0
    %v2460 = vadd.f32 %v2001, %v2459
    %v2461 = vpop.f32.mrf.mxu0
    %v2462 = vpop.f32.mrf.mxu0
    %v2463 = vadd.f32 %v2002, %v2462
    %v2464 = vpop.f32.mrf.mxu0
    %2465 = vmatprep.mubr.bf16.mxu0 0
    %2466 = vmatmul.mubr.bf16.gmra.mxu0 %v2250
    %v2467 = vpop.f32.mrf.mxu0
    %v2468 = vadd.f32 %v2003, %v2467
    %v2469 = vpop.f32.mrf.mxu0
    %v2470 = vpop.f32.mrf.mxu0
    %v2471 = vadd.f32 %v2004, %v2470
    %v2472 = vpop.f32.mrf.mxu0
    %2473 = vmatprep.mubr.bf16.mxu0 0
    %2474 = vmatmul.mubr.bf16.gmra.mxu0 %v2251
    %v2475 = vpop.f32.mrf.mxu0
    %v2476 = vadd.f32 %v2005, %v2475
    %v2477 = vpop.f32.mrf.mxu0
    %v2478 = vpop.f32.mrf.mxu0
    %v2479 = vadd.f32 %v2006, %v2478
    %v2480 = vpop.f32.mrf.mxu0
    %2481 = vmatprep.mubr.bf16.mxu0 0
    %2482 = vmatmul.mubr.bf16.gmra.mxu0 %v2252
    %v2483 = vpop.f32.mrf.mxu0
    %v2484 = vadd.f32 %v2007, %v2483
    %v2485 = vpop.f32.mrf.mxu0
    %v2486 = vpop.f32.mrf.mxu0
    %v2487 = vadd.f32 %v2008, %v2486
    %v2488 = vpop.f32.mrf.mxu0
    %2489 = vmatprep.mubr.bf16.mxu0 0
    %2490 = vmatmul.mubr.bf16.gmra.mxu0 %v2253
    %v2491 = vpop.f32.mrf.mxu0
    %v2492 = vadd.f32 %v2009, %v2491
    %v2493 = vpop.f32.mrf.mxu0
    %v2494 = vpop.f32.mrf.mxu0
    %v2495 = vadd.f32 %v2010, %v2494
    %v2496 = vpop.f32.mrf.mxu0
    %2497 = vmatprep.mubr.bf16.mxu0 0
    %2498 = vmatmul.mubr.bf16.gmra.mxu0 %v2254
    %v2499 = vpop.f32.mrf.mxu0
    %v2500 = vadd.f32 %v2011, %v2499
    %v2501 = vpop.f32.mrf.mxu0
    %v2502 = vpop.f32.mrf.mxu0
    %v2503 = vadd.f32 %v2012, %v2502
    %v2504 = vpop.f32.mrf.mxu0
    %2505 = vmatprep.mubr.bf16.mxu0 0
    %2506 = vmatmul.mubr.bf16.gmra.mxu0 %v2255
    %v2507 = vpop.f32.mrf.mxu0
    %v2508 = vadd.f32 %v2013, %v2507
    %v2509 = vpop.f32.mrf.mxu0
    %v2510 = vpop.f32.mrf.mxu0
    %v2511 = vadd.f32 %v2014, %v2510
    %v2512 = vpop.f32.mrf.mxu0
    %2513 = vmatprep.mubr.bf16.mxu0 0
    %2514 = vmatmul.mubr.bf16.gmra.mxu0 %v2256
    %v2515 = vpop.f32.mrf.mxu0
    %v2516 = vadd.f32 %v2015, %v2515
    %v2517 = vpop.f32.mrf.mxu0
    %v2518 = vpop.f32.mrf.mxu0
    %v2519 = vadd.f32 %v2016, %v2518
    %v2520 = vpop.f32.mrf.mxu0
    %2521 = vmatprep.mubr.bf16.mxu0 0
    %2522 = vmatmul.mubr.bf16.gmra.mxu0 %v2257
    %v2523 = vpop.f32.mrf.mxu0
    %v2524 = vadd.f32 %v2017, %v2523
    %v2525 = vpop.f32.mrf.mxu0
    %v2526 = vpop.f32.mrf.mxu0
    %v2527 = vadd.f32 %v2018, %v2526
    %v2528 = vpop.f32.mrf.mxu0
    %2529 = vmatprep.mubr.bf16.mxu0 0
    %2530 = vmatmul.mubr.bf16.gmra.mxu0 %v2258
    %v2531 = vpop.f32.mrf.mxu0
    %v2532 = vadd.f32 %v2019, %v2531
    %v2533 = vpop.f32.mrf.mxu0
    %v2534 = vpop.f32.mrf.mxu0
    %v2535 = vadd.f32 %v2020, %v2534
    %v2536 = vpop.f32.mrf.mxu0
    %2537 = vmatprep.mubr.bf16.mxu0 0
    %2538 = vmatmul.mubr.bf16.gmra.mxu0 %v2259
    %v2539 = vpop.f32.mrf.mxu0
    %v2540 = vadd.f32 %v2021, %v2539
    %v2541 = vpop.f32.mrf.mxu0
    %v2542 = vpop.f32.mrf.mxu0
    %v2543 = vadd.f32 %v2022, %v2542
    %v2544 = vpop.f32.mrf.mxu0
    %2545 = vmatprep.mubr.bf16.mxu0 0
    %2546 = vmatmul.mubr.bf16.gmra.mxu0 %v2260
    %v2547 = vpop.f32.mrf.mxu0
    %v2548 = vadd.f32 %v2023, %v2547
    %v2549 = vpop.f32.mrf.mxu0
    %v2550 = vpop.f32.mrf.mxu0
    %v2551 = vadd.f32 %v2024, %v2550
    %v2552 = vpop.f32.mrf.mxu0
    %2553 = vmatprep.mubr.bf16.mxu0 0
    %2554 = vmatmul.mubr.bf16.gmra.mxu0 %v2261
    %v2555 = vpop.f32.mrf.mxu0
    %v2556 = vadd.f32 %v2025, %v2555
    %v2557 = vpop.f32.mrf.mxu0
    %v2558 = vpop.f32.mrf.mxu0
    %v2559 = vadd.f32 %v2026, %v2558
    %v2560 = vpop.f32.mrf.mxu0
    %2561 = vmatprep.mubr.bf16.mxu0 0
    %2562 = vmatmul.mubr.bf16.gmra.mxu0 %v2262
    %v2563 = vpop.f32.mrf.mxu0
    %v2564 = vadd.f32 %v2027, %v2563
    %v2565 = vpop.f32.mrf.mxu0
    %v2566 = vpop.f32.mrf.mxu0
    %v2567 = vadd.f32 %v2028, %v2566
    %v2568 = vpop.f32.mrf.mxu0
    %2569 = vmatprep.mubr.bf16.mxu0 0
    %2570 = vmatmul.mubr.bf16.gmra.mxu0 %v2263
    %v2571 = vpop.f32.mrf.mxu0
    %v2572 = vadd.f32 %v2029, %v2571
    %v2573 = vpop.f32.mrf.mxu0
    %v2574 = vpop.f32.mrf.mxu0
    %v2575 = vadd.f32 %v2030, %v2574
    %v2576 = vpop.f32.mrf.mxu0
    %2577 = vmatprep.mubr.bf16.mxu0 0
    %2578 = vmatmul.mubr.bf16.gmra.mxu0 %v2264
    %v2579 = vpop.f32.mrf.mxu0
    %v2580 = vadd.f32 %v2031, %v2579
    %v2581 = vpop.f32.mrf.mxu0
    %v2582 = vpop.f32.mrf.mxu0
    %v2583 = vadd.f32 %v2032, %v2582
    %v2584 = vpop.f32.mrf.mxu0
    %2585 = vdwg.mxu0
    %v2586 = vld [vmem:[%s51] sm:$0xf]
    %v2587 = vld [vmem:[%s51 + $0x4] sm:$0xf]
    %v2588 = vld [vmem:[%s51 + $0x8] sm:$0xf]
    %v2589 = vld [vmem:[%s51 + $0xc] sm:$0xf]
    %v2590 = vpack.c.bf16 %v2335, %v2332
    %v2591 = vpack.c.bf16 %v2343, %v2340
    %v2592 = vpack.c.bf16 %v2351, %v2348
    %v2593 = vpack.c.bf16 %v2359, %v2356
    %v2594 = vpack.c.bf16 %v2367, %v2364
    %v2595 = vpack.c.bf16 %v2375, %v2372
    %v2596 = vpack.c.bf16 %v2383, %v2380
    %v2597 = vpack.c.bf16 %v2391, %v2388
    %v2598 = vpack.c.bf16 %v2399, %v2396
    %v2599 = vpack.c.bf16 %v2407, %v2404
    %v2600 = vpack.c.bf16 %v2415, %v2412
    %v2601 = vpack.c.bf16 %v2423, %v2420
    %v2602 = vpack.c.bf16 %v2431, %v2428
    %v2603 = vpack.c.bf16 %v2439, %v2436
    %v2604 = vpack.c.bf16 %v2447, %v2444
    %v2605 = vpack.c.bf16 %v2455, %v2452
    %v2606 = vpack.c.bf16 %v2463, %v2460
    %v2607 = vpack.c.bf16 %v2471, %v2468
    %v2608 = vpack.c.bf16 %v2479, %v2476
    %v2609 = vpack.c.bf16 %v2487, %v2484
    %v2610 = vpack.c.bf16 %v2495, %v2492
    %v2611 = vpack.c.bf16 %v2503, %v2500
    %v2612 = vpack.c.bf16 %v2511, %v2508
    %v2613 = vpack.c.bf16 %v2519, %v2516
    %v2614 = vpack.c.bf16 %v2527, %v2524
    %v2615 = vpack.c.bf16 %v2535, %v2532
    %v2616 = vpack.c.bf16 %v2543, %v2540
    %v2617 = vpack.c.bf16 %v2551, %v2548
    %v2618 = vpack.c.bf16 %v2559, %v2556
    %v2619 = vpack.c.bf16 %v2567, %v2564
    %v2620 = vpack.c.bf16 %v2575, %v2572
    %v2621 = vpack.c.bf16 %v2583, %v2580
    %v2622 = vld [vmem:[%s53] sm:$0x1]
    %v2624 = vlaneseq
    %v2625 = vshrl.u32 %v2624, 7
    %v2626 = vsub.s32 0, %v2625
    %v2627 = vrot.slane %v2622, %v2626
    %v2633 = vunpack.c.l.b16 %v2586
    %v2634 = vunpack.c.l.b16 %v2587
    %v2635 = vunpack.c.l.b16 %v2588
    %v2636 = vunpack.c.l.b16 %v2589
    %v2637 = vpack.c.b16 %v2634, %v2633
    %v2638 = vpack.c.b16 %v2636, %v2635
    %v2642 = vsel %vm266, %v2590, 0
    %v2645 = vsel %vm266, %v2591, 0
    %v2648 = vsel %vm266, %v2592, 0
    %v2651 = vsel %vm266, %v2593, 0
    %v2654 = vsel %vm266, %v2594, 0
    %v2657 = vsel %vm266, %v2595, 0
    %v2660 = vsel %vm266, %v2596, 0
    %v2663 = vsel %vm266, %v2597, 0
    %v2666 = vsel %vm266, %v2598, 0
    %v2669 = vsel %vm266, %v2599, 0
    %v2672 = vsel %vm266, %v2600, 0
    %v2675 = vsel %vm266, %v2601, 0
    %v2678 = vsel %vm266, %v2602, 0
    %v2681 = vsel %vm266, %v2603, 0
    %v2684 = vsel %vm266, %v2604, 0
    %v2687 = vsel %vm266, %v2605, 0
    %v2690 = vsel %vm266, %v2606, 0
    %v2693 = vsel %vm266, %v2607, 0
    %v2696 = vsel %vm266, %v2608, 0
    %v2699 = vsel %vm266, %v2609, 0
    %v2702 = vsel %vm266, %v2610, 0
    %v2705 = vsel %vm266, %v2611, 0
    %v2708 = vsel %vm266, %v2612, 0
    %v2711 = vsel %vm266, %v2613, 0
    %v2714 = vsel %vm266, %v2614, 0
    %v2717 = vsel %vm266, %v2615, 0
    %v2720 = vsel %vm266, %v2616, 0
    %v2723 = vsel %vm266, %v2617, 0
    %v2726 = vsel %vm266, %v2618, 0
    %v2729 = vsel %vm266, %v2619, 0
    %v2732 = vsel %vm266, %v2620, 0
    %v2735 = vsel %vm266, %v2621, 0
    %2737 = vmatprep.subr.bf16.mxu0 0
    %2738 = vmatpush1.bf16.msra.mxu0 0
    %2739 = vmatprep.subr.bf16.mxu0 0
    %2740 = vmatpush1.bf16.msra.mxu0 0
    %2741 = vmatprep.subr.bf16.mxu0 0
    %2742 = vmatpush1.bf16.msra.mxu0 0
    %2743 = vmatprep.subr.bf16.mxu0 0
    %2744 = vmatpush1.bf16.msra.mxu0 0
    %2745 = vmatprep.subr.bf16.mxu0 0
    %2746 = vmatpush1.bf16.msra.mxu0 0
    %2747 = vmatprep.subr.bf16.mxu0 0
    %2748 = vmatpush1.bf16.msra.mxu0 0
    %2749 = vmatprep.subr.bf16.mxu0 0
    %2750 = vmatpush1.bf16.msra.mxu0 %v2638
    %2751 = vmatprep.subr.bf16.mxu0 0
    %2752 = vmatpush1.bf16.msra.mxu0 %v2637
    %2753 = vmatprep.subr.bf16.mxu0 0
    %2754 = vmatpush2.bf16.msra.mxu0 0
    %2755 = vmatprep.subr.bf16.mxu0 0
    %2756 = vmatpush2.bf16.msra.mxu0 0
    %2757 = vmatprep.subr.bf16.mxu0 0
    %2758 = vmatpush2.bf16.msra.mxu0 0
    %2759 = vmatprep.subr.bf16.mxu0 0
    %2760 = vmatpush2.bf16.msra.mxu0 0
    %2761 = vmatprep.subr.bf16.mxu0 0
    %2762 = vmatpush2.bf16.msra.mxu0 0
    %2763 = vmatprep.subr.bf16.mxu0 0
    %2764 = vmatpush2.bf16.msra.mxu0 0
    %2765 = vmatprep.subr.bf16.mxu0 0
    %2766 = vmatpush2.bf16.msra.mxu0 0
    %2767 = vmatprep.subr.bf16.mxu0 0
    %2768 = vmatpush2.bf16.msra.mxu0 0
    %2769 = vmatprep.mubr.bf16.mxu0 0
    %2770 = vmatmul.mubr.bf16.gmra.mxu0 %v2642
    %v2771 = vpop.f32.mrf.mxu0
    %v2772 = vadd.f32 %v2627, %v2771
    %v2773 = vpop.f32.mrf.mxu0
    %v2774 = vpop.f32.mrf.mxu0
    %v2775 = vadd.f32 %v2627, %v2774
    %v2776 = vpop.f32.mrf.mxu0
    %2777 = vmatprep.mubr.bf16.mxu0 0
    %2778 = vmatmul.mubr.bf16.gmra.mxu0 %v2645
    %v2779 = vpop.f32.mrf.mxu0
    %v2780 = vadd.f32 %v2627, %v2779
    %v2781 = vpop.f32.mrf.mxu0
    %v2782 = vpop.f32.mrf.mxu0
    %v2783 = vadd.f32 %v2627, %v2782
    %v2784 = vpop.f32.mrf.mxu0
    %2785 = vmatprep.mubr.bf16.mxu0 0
    %2786 = vmatmul.mubr.bf16.gmra.mxu0 %v2648
    %v2787 = vpop.f32.mrf.mxu0
    %v2788 = vadd.f32 %v2627, %v2787
    %v2789 = vpop.f32.mrf.mxu0
    %v2790 = vpop.f32.mrf.mxu0
    %v2791 = vadd.f32 %v2627, %v2790
    %v2792 = vpop.f32.mrf.mxu0
    %2793 = vmatprep.mubr.bf16.mxu0 0
    %2794 = vmatmul.mubr.bf16.gmra.mxu0 %v2651
    %v2795 = vpop.f32.mrf.mxu0
    %v2796 = vadd.f32 %v2627, %v2795
    %v2797 = vpop.f32.mrf.mxu0
    %v2798 = vpop.f32.mrf.mxu0
    %v2799 = vadd.f32 %v2627, %v2798
    %v2800 = vpop.f32.mrf.mxu0
    %2801 = vmatprep.mubr.bf16.mxu0 0
    %2802 = vmatmul.mubr.bf16.gmra.mxu0 %v2654
    %v2803 = vpop.f32.mrf.mxu0
    %v2804 = vadd.f32 %v2627, %v2803
    %v2805 = vpop.f32.mrf.mxu0
    %v2806 = vpop.f32.mrf.mxu0
    %v2807 = vadd.f32 %v2627, %v2806
    %v2808 = vpop.f32.mrf.mxu0
    %2809 = vmatprep.mubr.bf16.mxu0 0
    %2810 = vmatmul.mubr.bf16.gmra.mxu0 %v2657
    %v2811 = vpop.f32.mrf.mxu0
    %v2812 = vadd.f32 %v2627, %v2811
    %v2813 = vpop.f32.mrf.mxu0
    %v2814 = vpop.f32.mrf.mxu0
    %v2815 = vadd.f32 %v2627, %v2814
    %v2816 = vpop.f32.mrf.mxu0
    %2817 = vmatprep.mubr.bf16.mxu0 0
    %2818 = vmatmul.mubr.bf16.gmra.mxu0 %v2660
    %v2819 = vpop.f32.mrf.mxu0
    %v2820 = vadd.f32 %v2627, %v2819
    %v2821 = vpop.f32.mrf.mxu0
    %v2822 = vpop.f32.mrf.mxu0
    %v2823 = vadd.f32 %v2627, %v2822
    %v2824 = vpop.f32.mrf.mxu0
    %2825 = vmatprep.mubr.bf16.mxu0 0
    %2826 = vmatmul.mubr.bf16.gmra.mxu0 %v2663
    %v2827 = vpop.f32.mrf.mxu0
    %v2828 = vadd.f32 %v2627, %v2827
    %v2829 = vpop.f32.mrf.mxu0
    %v2830 = vpop.f32.mrf.mxu0
    %v2831 = vadd.f32 %v2627, %v2830
    %v2832 = vpop.f32.mrf.mxu0
    %2833 = vmatprep.mubr.bf16.mxu0 0
    %2834 = vmatmul.mubr.bf16.gmra.mxu0 %v2666
    %v2835 = vpop.f32.mrf.mxu0
    %v2836 = vadd.f32 %v2627, %v2835
    %v2837 = vpop.f32.mrf.mxu0
    %v2838 = vpop.f32.mrf.mxu0
    %v2839 = vadd.f32 %v2627, %v2838
    %v2840 = vpop.f32.mrf.mxu0
    %2841 = vmatprep.mubr.bf16.mxu0 0
    %2842 = vmatmul.mubr.bf16.gmra.mxu0 %v2669
    %v2843 = vpop.f32.mrf.mxu0
    %v2844 = vadd.f32 %v2627, %v2843
    %v2845 = vpop.f32.mrf.mxu0
    %v2846 = vpop.f32.mrf.mxu0
    %v2847 = vadd.f32 %v2627, %v2846
    %v2848 = vpop.f32.mrf.mxu0
    %2849 = vmatprep.mubr.bf16.mxu0 0
    %2850 = vmatmul.mubr.bf16.gmra.mxu0 %v2672
    %v2851 = vpop.f32.mrf.mxu0
    %v2852 = vadd.f32 %v2627, %v2851
    %v2853 = vpop.f32.mrf.mxu0
    %v2854 = vpop.f32.mrf.mxu0
    %v2855 = vadd.f32 %v2627, %v2854
    %v2856 = vpop.f32.mrf.mxu0
    %2857 = vmatprep.mubr.bf16.mxu0 0
    %2858 = vmatmul.mubr.bf16.gmra.mxu0 %v2675
    %v2859 = vpop.f32.mrf.mxu0
    %v2860 = vadd.f32 %v2627, %v2859
    %v2861 = vpop.f32.mrf.mxu0
    %v2862 = vpop.f32.mrf.mxu0
    %v2863 = vadd.f32 %v2627, %v2862
    %v2864 = vpop.f32.mrf.mxu0
    %2865 = vmatprep.mubr.bf16.mxu0 0
    %2866 = vmatmul.mubr.bf16.gmra.mxu0 %v2678
    %v2867 = vpop.f32.mrf.mxu0
    %v2868 = vadd.f32 %v2627, %v2867
    %v2869 = vpop.f32.mrf.mxu0
    %v2870 = vpop.f32.mrf.mxu0
    %v2871 = vadd.f32 %v2627, %v2870
    %v2872 = vpop.f32.mrf.mxu0
    %2873 = vmatprep.mubr.bf16.mxu0 0
    %2874 = vmatmul.mubr.bf16.gmra.mxu0 %v2681
    %v2875 = vpop.f32.mrf.mxu0
    %v2876 = vadd.f32 %v2627, %v2875
    %v2877 = vpop.f32.mrf.mxu0
    %v2878 = vpop.f32.mrf.mxu0
    %v2879 = vadd.f32 %v2627, %v2878
    %v2880 = vpop.f32.mrf.mxu0
    %2881 = vmatprep.mubr.bf16.mxu0 0
    %2882 = vmatmul.mubr.bf16.gmra.mxu0 %v2684
    %v2883 = vpop.f32.mrf.mxu0
    %v2884 = vadd.f32 %v2627, %v2883
    %v2885 = vpop.f32.mrf.mxu0
    %v2886 = vpop.f32.mrf.mxu0
    %v2887 = vadd.f32 %v2627, %v2886
    %v2888 = vpop.f32.mrf.mxu0
    %2889 = vmatprep.mubr.bf16.mxu0 0
    %2890 = vmatmul.mubr.bf16.gmra.mxu0 %v2687
    %v2891 = vpop.f32.mrf.mxu0
    %v2892 = vadd.f32 %v2627, %v2891
    %v2893 = vpop.f32.mrf.mxu0
    %v2894 = vpop.f32.mrf.mxu0
    %v2895 = vadd.f32 %v2627, %v2894
    %v2896 = vpop.f32.mrf.mxu0
    %2897 = vmatprep.mubr.bf16.mxu0 0
    %2898 = vmatmul.mubr.bf16.gmra.mxu0 %v2690
    %v2899 = vpop.f32.mrf.mxu0
    %v2900 = vadd.f32 %v2627, %v2899
    %v2901 = vpop.f32.mrf.mxu0
    %v2902 = vpop.f32.mrf.mxu0
    %v2903 = vadd.f32 %v2627, %v2902
    %v2904 = vpop.f32.mrf.mxu0
    %2905 = vmatprep.mubr.bf16.mxu0 0
    %2906 = vmatmul.mubr.bf16.gmra.mxu0 %v2693
    %v2907 = vpop.f32.mrf.mxu0
    %v2908 = vadd.f32 %v2627, %v2907
    %v2909 = vpop.f32.mrf.mxu0
    %v2910 = vpop.f32.mrf.mxu0
    %v2911 = vadd.f32 %v2627, %v2910
    %v2912 = vpop.f32.mrf.mxu0
    %2913 = vmatprep.mubr.bf16.mxu0 0
    %2914 = vmatmul.mubr.bf16.gmra.mxu0 %v2696
    %v2915 = vpop.f32.mrf.mxu0
    %v2916 = vadd.f32 %v2627, %v2915
    %v2917 = vpop.f32.mrf.mxu0
    %v2918 = vpop.f32.mrf.mxu0
    %v2919 = vadd.f32 %v2627, %v2918
    %v2920 = vpop.f32.mrf.mxu0
    %2921 = vmatprep.mubr.bf16.mxu0 0
    %2922 = vmatmul.mubr.bf16.gmra.mxu0 %v2699
    %v2923 = vpop.f32.mrf.mxu0
    %v2924 = vadd.f32 %v2627, %v2923
    %v2925 = vpop.f32.mrf.mxu0
    %v2926 = vpop.f32.mrf.mxu0
    %v2927 = vadd.f32 %v2627, %v2926
    %v2928 = vpop.f32.mrf.mxu0
    %2929 = vmatprep.mubr.bf16.mxu0 0
    %2930 = vmatmul.mubr.bf16.gmra.mxu0 %v2702
    %v2931 = vpop.f32.mrf.mxu0
    %v2932 = vadd.f32 %v2627, %v2931
    %v2933 = vpop.f32.mrf.mxu0
    %v2934 = vpop.f32.mrf.mxu0
    %v2935 = vadd.f32 %v2627, %v2934
    %v2936 = vpop.f32.mrf.mxu0
    %2937 = vmatprep.mubr.bf16.mxu0 0
    %2938 = vmatmul.mubr.bf16.gmra.mxu0 %v2705
    %v2939 = vpop.f32.mrf.mxu0
    %v2940 = vadd.f32 %v2627, %v2939
    %v2941 = vpop.f32.mrf.mxu0
    %v2942 = vpop.f32.mrf.mxu0
    %v2943 = vadd.f32 %v2627, %v2942
    %v2944 = vpop.f32.mrf.mxu0
    %2945 = vmatprep.mubr.bf16.mxu0 0
    %2946 = vmatmul.mubr.bf16.gmra.mxu0 %v2708
    %v2947 = vpop.f32.mrf.mxu0
    %v2948 = vadd.f32 %v2627, %v2947
    %v2949 = vpop.f32.mrf.mxu0
    %v2950 = vpop.f32.mrf.mxu0
    %v2951 = vadd.f32 %v2627, %v2950
    %v2952 = vpop.f32.mrf.mxu0
    %2953 = vmatprep.mubr.bf16.mxu0 0
    %2954 = vmatmul.mubr.bf16.gmra.mxu0 %v2711
    %v2955 = vpop.f32.mrf.mxu0
    %v2956 = vadd.f32 %v2627, %v2955
    %v2957 = vpop.f32.mrf.mxu0
    %v2958 = vpop.f32.mrf.mxu0
    %v2959 = vadd.f32 %v2627, %v2958
    %v2960 = vpop.f32.mrf.mxu0
    %2961 = vmatprep.mubr.bf16.mxu0 0
    %2962 = vmatmul.mubr.bf16.gmra.mxu0 %v2714
    %v2963 = vpop.f32.mrf.mxu0
    %v2964 = vadd.f32 %v2627, %v2963
    %v2965 = vpop.f32.mrf.mxu0
    %v2966 = vpop.f32.mrf.mxu0
    %v2967 = vadd.f32 %v2627, %v2966
    %v2968 = vpop.f32.mrf.mxu0
    %2969 = vmatprep.mubr.bf16.mxu0 0
    %2970 = vmatmul.mubr.bf16.gmra.mxu0 %v2717
    %v2971 = vpop.f32.mrf.mxu0
    %v2972 = vadd.f32 %v2627, %v2971
    %v2973 = vpop.f32.mrf.mxu0
    %v2974 = vpop.f32.mrf.mxu0
    %v2975 = vadd.f32 %v2627, %v2974
    %v2976 = vpop.f32.mrf.mxu0
    %2977 = vmatprep.mubr.bf16.mxu0 0
    %2978 = vmatmul.mubr.bf16.gmra.mxu0 %v2720
    %v2979 = vpop.f32.mrf.mxu0
    %v2980 = vadd.f32 %v2627, %v2979
    %v2981 = vpop.f32.mrf.mxu0
    %v2982 = vpop.f32.mrf.mxu0
    %v2983 = vadd.f32 %v2627, %v2982
    %v2984 = vpop.f32.mrf.mxu0
    %2985 = vmatprep.mubr.bf16.mxu0 0
    %2986 = vmatmul.mubr.bf16.gmra.mxu0 %v2723
    %v2987 = vpop.f32.mrf.mxu0
    %v2988 = vadd.f32 %v2627, %v2987
    %v2989 = vpop.f32.mrf.mxu0
    %v2990 = vpop.f32.mrf.mxu0
    %v2991 = vadd.f32 %v2627, %v2990
    %v2992 = vpop.f32.mrf.mxu0
    %2993 = vmatprep.mubr.bf16.mxu0 0
    %2994 = vmatmul.mubr.bf16.gmra.mxu0 %v2726
    %v2995 = vpop.f32.mrf.mxu0
    %v2996 = vadd.f32 %v2627, %v2995
    %v2997 = vpop.f32.mrf.mxu0
    %v2998 = vpop.f32.mrf.mxu0
    %v2999 = vadd.f32 %v2627, %v2998
    %v3000 = vpop.f32.mrf.mxu0
    %3001 = vmatprep.mubr.bf16.mxu0 0
    %3002 = vmatmul.mubr.bf16.gmra.mxu0 %v2729
    %v3003 = vpop.f32.mrf.mxu0
    %v3004 = vadd.f32 %v2627, %v3003
    %v3005 = vpop.f32.mrf.mxu0
    %v3006 = vpop.f32.mrf.mxu0
    %v3007 = vadd.f32 %v2627, %v3006
    %v3008 = vpop.f32.mrf.mxu0
    %3009 = vmatprep.mubr.bf16.mxu0 0
    %3010 = vmatmul.mubr.bf16.gmra.mxu0 %v2732
    %v3011 = vpop.f32.mrf.mxu0
    %v3012 = vadd.f32 %v2627, %v3011
    %v3013 = vpop.f32.mrf.mxu0
    %v3014 = vpop.f32.mrf.mxu0
    %v3015 = vadd.f32 %v2627, %v3014
    %v3016 = vpop.f32.mrf.mxu0
    %3017 = vmatprep.mubr.bf16.mxu0 0
    %3018 = vmatmul.mubr.bf16.gmra.mxu0 %v2735
    %v3019 = vpop.f32.mrf.mxu0
    %v3020 = vadd.f32 %v2627, %v3019
    %v3021 = vpop.f32.mrf.mxu0
    %v3022 = vpop.f32.mrf.mxu0
    %v3023 = vadd.f32 %v2627, %v3022
    %v3024 = vpop.f32.mrf.mxu0
    %3025 = vdwg.mxu0
    %v3026 = vmax.f32 %v2772, 0.0
    %v3027 = vmax.f32 %v2775, 0.0
    %v3028 = vmax.f32 %v2780, 0.0
    %v3029 = vmax.f32 %v2783, 0.0
    %v3030 = vmax.f32 %v2788, 0.0
    %v3031 = vmax.f32 %v2791, 0.0
    %v3032 = vmax.f32 %v2796, 0.0
    %v3033 = vmax.f32 %v2799, 0.0
    %v3034 = vmax.f32 %v2804, 0.0
    %v3035 = vmax.f32 %v2807, 0.0
    %v3036 = vmax.f32 %v2812, 0.0
    %v3037 = vmax.f32 %v2815, 0.0
    %v3038 = vmax.f32 %v2820, 0.0
    %v3039 = vmax.f32 %v2823, 0.0
    %v3040 = vmax.f32 %v2828, 0.0
    %v3041 = vmax.f32 %v2831, 0.0
    %v3042 = vmax.f32 %v2836, 0.0
    %v3043 = vmax.f32 %v2839, 0.0
    %v3044 = vmax.f32 %v2844, 0.0
    %v3045 = vmax.f32 %v2847, 0.0
    %v3046 = vmax.f32 %v2852, 0.0
    %v3047 = vmax.f32 %v2855, 0.0
    %v3048 = vmax.f32 %v2860, 0.0
    %v3049 = vmax.f32 %v2863, 0.0
    %v3050 = vmax.f32 %v2868, 0.0
    %v3051 = vmax.f32 %v2871, 0.0
    %v3052 = vmax.f32 %v2876, 0.0
    %v3053 = vmax.f32 %v2879, 0.0
    %v3054 = vmax.f32 %v2884, 0.0
    %v3055 = vmax.f32 %v2887, 0.0
    %v3056 = vmax.f32 %v2892, 0.0
    %v3057 = vmax.f32 %v2895, 0.0
    %v3058 = vmax.f32 %v2900, 0.0
    %v3059 = vmax.f32 %v2903, 0.0
    %v3060 = vmax.f32 %v2908, 0.0
    %v3061 = vmax.f32 %v2911, 0.0
    %v3062 = vmax.f32 %v2916, 0.0
    %v3063 = vmax.f32 %v2919, 0.0
    %v3064 = vmax.f32 %v2924, 0.0
    %v3065 = vmax.f32 %v2927, 0.0
    %v3066 = vmax.f32 %v2932, 0.0
    %v3067 = vmax.f32 %v2935, 0.0
    %v3068 = vmax.f32 %v2940, 0.0
    %v3069 = vmax.f32 %v2943, 0.0
    %v3070 = vmax.f32 %v2948, 0.0
    %v3071 = vmax.f32 %v2951, 0.0
    %v3072 = vmax.f32 %v2956, 0.0
    %v3073 = vmax.f32 %v2959, 0.0
    %v3074 = vmax.f32 %v2964, 0.0
    %v3075 = vmax.f32 %v2967, 0.0
    %v3076 = vmax.f32 %v2972, 0.0
    %v3077 = vmax.f32 %v2975, 0.0
    %v3078 = vmax.f32 %v2980, 0.0
    %v3079 = vmax.f32 %v2983, 0.0
    %v3080 = vmax.f32 %v2988, 0.0
    %v3081 = vmax.f32 %v2991, 0.0
    %v3082 = vmax.f32 %v2996, 0.0
    %v3083 = vmax.f32 %v2999, 0.0
    %v3084 = vmax.f32 %v3004, 0.0
    %v3085 = vmax.f32 %v3007, 0.0
    %v3086 = vmax.f32 %v3012, 0.0
    %v3087 = vmax.f32 %v3015, 0.0
    %v3088 = vmax.f32 %v3020, 0.0
    %v3089 = vmax.f32 %v3023, 0.0
    %v3090 = vld [vmem:[%s55] sm:$0xf]
    %v3091 = vld [vmem:[%s55 + $0x4] sm:$0xf]
    %v3092 = vld [vmem:[%s55 + $0x8] sm:$0xf]
    %v3093 = vld [vmem:[%s55 + $0xc] sm:$0xf]
    %v3094 = vpack.c.bf16 %v3027, %v3026
    %v3095 = vpack.c.bf16 %v3029, %v3028
    %v3096 = vpack.c.bf16 %v3031, %v3030
    %v3097 = vpack.c.bf16 %v3033, %v3032
    %v3098 = vpack.c.bf16 %v3035, %v3034
    %v3099 = vpack.c.bf16 %v3037, %v3036
    %v3100 = vpack.c.bf16 %v3039, %v3038
    %v3101 = vpack.c.bf16 %v3041, %v3040
    %v3102 = vpack.c.bf16 %v3043, %v3042
    %v3103 = vpack.c.bf16 %v3045, %v3044
    %v3104 = vpack.c.bf16 %v3047, %v3046
    %v3105 = vpack.c.bf16 %v3049, %v3048
    %v3106 = vpack.c.bf16 %v3051, %v3050
    %v3107 = vpack.c.bf16 %v3053, %v3052
    %v3108 = vpack.c.bf16 %v3055, %v3054
    %v3109 = vpack.c.bf16 %v3057, %v3056
    %v3110 = vpack.c.bf16 %v3059, %v3058
    %v3111 = vpack.c.bf16 %v3061, %v3060
    %v3112 = vpack.c.bf16 %v3063, %v3062
    %v3113 = vpack.c.bf16 %v3065, %v3064
    %v3114 = vpack.c.bf16 %v3067, %v3066
    %v3115 = vpack.c.bf16 %v3069, %v3068
    %v3116 = vpack.c.bf16 %v3071, %v3070
    %v3117 = vpack.c.bf16 %v3073, %v3072
    %v3118 = vpack.c.bf16 %v3075, %v3074
    %v3119 = vpack.c.bf16 %v3077, %v3076
    %v3120 = vpack.c.bf16 %v3079, %v3078
    %v3121 = vpack.c.bf16 %v3081, %v3080
    %v3122 = vpack.c.bf16 %v3083, %v3082
    %v3123 = vpack.c.bf16 %v3085, %v3084
    %v3124 = vpack.c.bf16 %v3087, %v3086
    %v3125 = vpack.c.bf16 %v3089, %v3088
    %v3130 = vunpack.c.l.b16 %v3090
    %v3131 = vunpack.c.l.b16 %v3091
    %v3132 = vunpack.c.l.b16 %v3092
    %v3133 = vunpack.c.l.b16 %v3093
    %v3134 = vpack.c.b16 %v3131, %v3130
    %v3135 = vpack.c.b16 %v3133, %v3132
    %v3139 = vsel %vm266, %v3094, 0
    %v3142 = vsel %vm266, %v3095, 0
    %v3145 = vsel %vm266, %v3096, 0
    %v3148 = vsel %vm266, %v3097, 0
    %v3151 = vsel %vm266, %v3098, 0
    %v3154 = vsel %vm266, %v3099, 0
    %v3157 = vsel %vm266, %v3100, 0
    %v3160 = vsel %vm266, %v3101, 0
    %v3163 = vsel %vm266, %v3102, 0
    %v3166 = vsel %vm266, %v3103, 0
    %v3169 = vsel %vm266, %v3104, 0
    %v3172 = vsel %vm266, %v3105, 0
    %v3175 = vsel %vm266, %v3106, 0
    %v3178 = vsel %vm266, %v3107, 0
    %v3181 = vsel %vm266, %v3108, 0
    %v3184 = vsel %vm266, %v3109, 0
    %v3187 = vsel %vm266, %v3110, 0
    %v3190 = vsel %vm266, %v3111, 0
    %v3193 = vsel %vm266, %v3112, 0
    %v3196 = vsel %vm266, %v3113, 0
    %v3199 = vsel %vm266, %v3114, 0
    %v3202 = vsel %vm266, %v3115, 0
    %v3205 = vsel %vm266, %v3116, 0
    %v3208 = vsel %vm266, %v3117, 0
    %v3211 = vsel %vm266, %v3118, 0
    %v3214 = vsel %vm266, %v3119, 0
    %v3217 = vsel %vm266, %v3120, 0
    %v3220 = vsel %vm266, %v3121, 0
    %v3223 = vsel %vm266, %v3122, 0
    %v3226 = vsel %vm266, %v3123, 0
    %v3229 = vsel %vm266, %v3124, 0
    %v3232 = vsel %vm266, %v3125, 0
    %3234 = vmatprep.subr.bf16.mxu0 0
    %3235 = vmatpush1.bf16.msra.mxu0 0
    %3236 = vmatprep.subr.bf16.mxu0 0
    %3237 = vmatpush1.bf16.msra.mxu0 0
    %3238 = vmatprep.subr.bf16.mxu0 0
    %3239 = vmatpush1.bf16.msra.mxu0 0
    %3240 = vmatprep.subr.bf16.mxu0 0
    %3241 = vmatpush1.bf16.msra.mxu0 0
    %3242 = vmatprep.subr.bf16.mxu0 0
    %3243 = vmatpush1.bf16.msra.mxu0 0
    %3244 = vmatprep.subr.bf16.mxu0 0
    %3245 = vmatpush1.bf16.msra.mxu0 0
    %3246 = vmatprep.subr.bf16.mxu0 0
    %3247 = vmatpush1.bf16.msra.mxu0 %v3135
    %3248 = vmatprep.subr.bf16.mxu0 0
    %3249 = vmatpush1.bf16.msra.mxu0 %v3134
    %3250 = vmatprep.subr.bf16.mxu0 0
    %3251 = vmatpush2.bf16.msra.mxu0 0
    %3252 = vmatprep.subr.bf16.mxu0 0
    %3253 = vmatpush2.bf16.msra.mxu0 0
    %3254 = vmatprep.subr.bf16.mxu0 0
    %3255 = vmatpush2.bf16.msra.mxu0 0
    %3256 = vmatprep.subr.bf16.mxu0 0
    %3257 = vmatpush2.bf16.msra.mxu0 0
    %3258 = vmatprep.subr.bf16.mxu0 0
    %3259 = vmatpush2.bf16.msra.mxu0 0
    %3260 = vmatprep.subr.bf16.mxu0 0
    %3261 = vmatpush2.bf16.msra.mxu0 0
    %3262 = vmatprep.subr.bf16.mxu0 0
    %3263 = vmatpush2.bf16.msra.mxu0 0
    %3264 = vmatprep.subr.bf16.mxu0 0
    %3265 = vmatpush2.bf16.msra.mxu0 0
    %3266 = vmatprep.mubr.bf16.mxu0 0
    %3267 = vmatmul.mubr.bf16.gmra.mxu0 %v3139
    %v3268 = vpop.f32.mrf.mxu0
    %v3269 = vadd.f32 0.0, %v3268
    %v3270 = vpop.f32.mrf.mxu0
    %v3271 = vpop.f32.mrf.mxu0
    %v3272 = vadd.f32 0.0, %v3271
    %v3273 = vpop.f32.mrf.mxu0
    %3274 = vmatprep.mubr.bf16.mxu0 0
    %3275 = vmatmul.mubr.bf16.gmra.mxu0 %v3142
    %v3276 = vpop.f32.mrf.mxu0
    %v3277 = vadd.f32 0.0, %v3276
    %v3278 = vpop.f32.mrf.mxu0
    %v3279 = vpop.f32.mrf.mxu0
    %v3280 = vadd.f32 0.0, %v3279
    %v3281 = vpop.f32.mrf.mxu0
    %3282 = vmatprep.mubr.bf16.mxu0 0
    %3283 = vmatmul.mubr.bf16.gmra.mxu0 %v3145
    %v3284 = vpop.f32.mrf.mxu0
    %v3285 = vadd.f32 0.0, %v3284
    %v3286 = vpop.f32.mrf.mxu0
    %v3287 = vpop.f32.mrf.mxu0
    %v3288 = vadd.f32 0.0, %v3287
    %v3289 = vpop.f32.mrf.mxu0
    %3290 = vmatprep.mubr.bf16.mxu0 0
    %3291 = vmatmul.mubr.bf16.gmra.mxu0 %v3148
    %v3292 = vpop.f32.mrf.mxu0
    %v3293 = vadd.f32 0.0, %v3292
    %v3294 = vpop.f32.mrf.mxu0
    %v3295 = vpop.f32.mrf.mxu0
    %v3296 = vadd.f32 0.0, %v3295
    %v3297 = vpop.f32.mrf.mxu0
    %3298 = vmatprep.mubr.bf16.mxu0 0
    %3299 = vmatmul.mubr.bf16.gmra.mxu0 %v3151
    %v3300 = vpop.f32.mrf.mxu0
    %v3301 = vadd.f32 0.0, %v3300
    %v3302 = vpop.f32.mrf.mxu0
    %v3303 = vpop.f32.mrf.mxu0
    %v3304 = vadd.f32 0.0, %v3303
    %v3305 = vpop.f32.mrf.mxu0
    %3306 = vmatprep.mubr.bf16.mxu0 0
    %3307 = vmatmul.mubr.bf16.gmra.mxu0 %v3154
    %v3308 = vpop.f32.mrf.mxu0
    %v3309 = vadd.f32 0.0, %v3308
    %v3310 = vpop.f32.mrf.mxu0
    %v3311 = vpop.f32.mrf.mxu0
    %v3312 = vadd.f32 0.0, %v3311
    %v3313 = vpop.f32.mrf.mxu0
    %3314 = vmatprep.mubr.bf16.mxu0 0
    %3315 = vmatmul.mubr.bf16.gmra.mxu0 %v3157
    %v3316 = vpop.f32.mrf.mxu0
    %v3317 = vadd.f32 0.0, %v3316
    %v3318 = vpop.f32.mrf.mxu0
    %v3319 = vpop.f32.mrf.mxu0
    %v3320 = vadd.f32 0.0, %v3319
    %v3321 = vpop.f32.mrf.mxu0
    %3322 = vmatprep.mubr.bf16.mxu0 0
    %3323 = vmatmul.mubr.bf16.gmra.mxu0 %v3160
    %v3324 = vpop.f32.mrf.mxu0
    %v3325 = vadd.f32 0.0, %v3324
    %v3326 = vpop.f32.mrf.mxu0
    %v3327 = vpop.f32.mrf.mxu0
    %v3328 = vadd.f32 0.0, %v3327
    %v3329 = vpop.f32.mrf.mxu0
    %3330 = vmatprep.mubr.bf16.mxu0 0
    %3331 = vmatmul.mubr.bf16.gmra.mxu0 %v3163
    %v3332 = vpop.f32.mrf.mxu0
    %v3333 = vadd.f32 0.0, %v3332
    %v3334 = vpop.f32.mrf.mxu0
    %v3335 = vpop.f32.mrf.mxu0
    %v3336 = vadd.f32 0.0, %v3335
    %v3337 = vpop.f32.mrf.mxu0
    %3338 = vmatprep.mubr.bf16.mxu0 0
    %3339 = vmatmul.mubr.bf16.gmra.mxu0 %v3166
    %v3340 = vpop.f32.mrf.mxu0
    %v3341 = vadd.f32 0.0, %v3340
    %v3342 = vpop.f32.mrf.mxu0
    %v3343 = vpop.f32.mrf.mxu0
    %v3344 = vadd.f32 0.0, %v3343
    %v3345 = vpop.f32.mrf.mxu0
    %3346 = vmatprep.mubr.bf16.mxu0 0
    %3347 = vmatmul.mubr.bf16.gmra.mxu0 %v3169
    %v3348 = vpop.f32.mrf.mxu0
    %v3349 = vadd.f32 0.0, %v3348
    %v3350 = vpop.f32.mrf.mxu0
    %v3351 = vpop.f32.mrf.mxu0
    %v3352 = vadd.f32 0.0, %v3351
    %v3353 = vpop.f32.mrf.mxu0
    %3354 = vmatprep.mubr.bf16.mxu0 0
    %3355 = vmatmul.mubr.bf16.gmra.mxu0 %v3172
    %v3356 = vpop.f32.mrf.mxu0
    %v3357 = vadd.f32 0.0, %v3356
    %v3358 = vpop.f32.mrf.mxu0
    %v3359 = vpop.f32.mrf.mxu0
    %v3360 = vadd.f32 0.0, %v3359
    %v3361 = vpop.f32.mrf.mxu0
    %3362 = vmatprep.mubr.bf16.mxu0 0
    %3363 = vmatmul.mubr.bf16.gmra.mxu0 %v3175
    %v3364 = vpop.f32.mrf.mxu0
    %v3365 = vadd.f32 0.0, %v3364
    %v3366 = vpop.f32.mrf.mxu0
    %v3367 = vpop.f32.mrf.mxu0
    %v3368 = vadd.f32 0.0, %v3367
    %v3369 = vpop.f32.mrf.mxu0
    %3370 = vmatprep.mubr.bf16.mxu0 0
    %3371 = vmatmul.mubr.bf16.gmra.mxu0 %v3178
    %v3372 = vpop.f32.mrf.mxu0
    %v3373 = vadd.f32 0.0, %v3372
    %v3374 = vpop.f32.mrf.mxu0
    %v3375 = vpop.f32.mrf.mxu0
    %v3376 = vadd.f32 0.0, %v3375
    %v3377 = vpop.f32.mrf.mxu0
    %3378 = vmatprep.mubr.bf16.mxu0 0
    %3379 = vmatmul.mubr.bf16.gmra.mxu0 %v3181
    %v3380 = vpop.f32.mrf.mxu0
    %v3381 = vadd.f32 0.0, %v3380
    %v3382 = vpop.f32.mrf.mxu0
    %v3383 = vpop.f32.mrf.mxu0
    %v3384 = vadd.f32 0.0, %v3383
    %v3385 = vpop.f32.mrf.mxu0
    %3386 = vmatprep.mubr.bf16.mxu0 0
    %3387 = vmatmul.mubr.bf16.gmra.mxu0 %v3184
    %v3388 = vpop.f32.mrf.mxu0
    %v3389 = vadd.f32 0.0, %v3388
    %v3390 = vpop.f32.mrf.mxu0
    %v3391 = vpop.f32.mrf.mxu0
    %v3392 = vadd.f32 0.0, %v3391
    %v3393 = vpop.f32.mrf.mxu0
    %3394 = vmatprep.mubr.bf16.mxu0 0
    %3395 = vmatmul.mubr.bf16.gmra.mxu0 %v3187
    %v3396 = vpop.f32.mrf.mxu0
    %v3397 = vadd.f32 0.0, %v3396
    %v3398 = vpop.f32.mrf.mxu0
    %v3399 = vpop.f32.mrf.mxu0
    %v3400 = vadd.f32 0.0, %v3399
    %v3401 = vpop.f32.mrf.mxu0
    %3402 = vmatprep.mubr.bf16.mxu0 0
    %3403 = vmatmul.mubr.bf16.gmra.mxu0 %v3190
    %v3404 = vpop.f32.mrf.mxu0
    %v3405 = vadd.f32 0.0, %v3404
    %v3406 = vpop.f32.mrf.mxu0
    %v3407 = vpop.f32.mrf.mxu0
    %v3408 = vadd.f32 0.0, %v3407
    %v3409 = vpop.f32.mrf.mxu0
    %3410 = vmatprep.mubr.bf16.mxu0 0
    %3411 = vmatmul.mubr.bf16.gmra.mxu0 %v3193
    %v3412 = vpop.f32.mrf.mxu0
    %v3413 = vadd.f32 0.0, %v3412
    %v3414 = vpop.f32.mrf.mxu0
    %v3415 = vpop.f32.mrf.mxu0
    %v3416 = vadd.f32 0.0, %v3415
    %v3417 = vpop.f32.mrf.mxu0
    %3418 = vmatprep.mubr.bf16.mxu0 0
    %3419 = vmatmul.mubr.bf16.gmra.mxu0 %v3196
    %v3420 = vpop.f32.mrf.mxu0
    %v3421 = vadd.f32 0.0, %v3420
    %v3422 = vpop.f32.mrf.mxu0
    %v3423 = vpop.f32.mrf.mxu0
    %v3424 = vadd.f32 0.0, %v3423
    %v3425 = vpop.f32.mrf.mxu0
    %3426 = vmatprep.mubr.bf16.mxu0 0
    %3427 = vmatmul.mubr.bf16.gmra.mxu0 %v3199
    %v3428 = vpop.f32.mrf.mxu0
    %v3429 = vadd.f32 0.0, %v3428
    %v3430 = vpop.f32.mrf.mxu0
    %v3431 = vpop.f32.mrf.mxu0
    %v3432 = vadd.f32 0.0, %v3431
    %v3433 = vpop.f32.mrf.mxu0
    %3434 = vmatprep.mubr.bf16.mxu0 0
    %3435 = vmatmul.mubr.bf16.gmra.mxu0 %v3202
    %v3436 = vpop.f32.mrf.mxu0
    %v3437 = vadd.f32 0.0, %v3436
    %v3438 = vpop.f32.mrf.mxu0
    %v3439 = vpop.f32.mrf.mxu0
    %v3440 = vadd.f32 0.0, %v3439
    %v3441 = vpop.f32.mrf.mxu0
    %3442 = vmatprep.mubr.bf16.mxu0 0
    %3443 = vmatmul.mubr.bf16.gmra.mxu0 %v3205
    %v3444 = vpop.f32.mrf.mxu0
    %v3445 = vadd.f32 0.0, %v3444
    %v3446 = vpop.f32.mrf.mxu0
    %v3447 = vpop.f32.mrf.mxu0
    %v3448 = vadd.f32 0.0, %v3447
    %v3449 = vpop.f32.mrf.mxu0
    %3450 = vmatprep.mubr.bf16.mxu0 0
    %3451 = vmatmul.mubr.bf16.gmra.mxu0 %v3208
    %v3452 = vpop.f32.mrf.mxu0
    %v3453 = vadd.f32 0.0, %v3452
    %v3454 = vpop.f32.mrf.mxu0
    %v3455 = vpop.f32.mrf.mxu0
    %v3456 = vadd.f32 0.0, %v3455
    %v3457 = vpop.f32.mrf.mxu0
    %3458 = vmatprep.mubr.bf16.mxu0 0
    %3459 = vmatmul.mubr.bf16.gmra.mxu0 %v3211
    %v3460 = vpop.f32.mrf.mxu0
    %v3461 = vadd.f32 0.0, %v3460
    %v3462 = vpop.f32.mrf.mxu0
    %v3463 = vpop.f32.mrf.mxu0
    %v3464 = vadd.f32 0.0, %v3463
    %v3465 = vpop.f32.mrf.mxu0
    %3466 = vmatprep.mubr.bf16.mxu0 0
    %3467 = vmatmul.mubr.bf16.gmra.mxu0 %v3214
    %v3468 = vpop.f32.mrf.mxu0
    %v3469 = vadd.f32 0.0, %v3468
    %v3470 = vpop.f32.mrf.mxu0
    %v3471 = vpop.f32.mrf.mxu0
    %v3472 = vadd.f32 0.0, %v3471
    %v3473 = vpop.f32.mrf.mxu0
    %3474 = vmatprep.mubr.bf16.mxu0 0
    %3475 = vmatmul.mubr.bf16.gmra.mxu0 %v3217
    %v3476 = vpop.f32.mrf.mxu0
    %v3477 = vadd.f32 0.0, %v3476
    %v3478 = vpop.f32.mrf.mxu0
    %v3479 = vpop.f32.mrf.mxu0
    %v3480 = vadd.f32 0.0, %v3479
    %v3481 = vpop.f32.mrf.mxu0
    %3482 = vmatprep.mubr.bf16.mxu0 0
    %3483 = vmatmul.mubr.bf16.gmra.mxu0 %v3220
    %v3484 = vpop.f32.mrf.mxu0
    %v3485 = vadd.f32 0.0, %v3484
    %v3486 = vpop.f32.mrf.mxu0
    %v3487 = vpop.f32.mrf.mxu0
    %v3488 = vadd.f32 0.0, %v3487
    %v3489 = vpop.f32.mrf.mxu0
    %3490 = vmatprep.mubr.bf16.mxu0 0
    %3491 = vmatmul.mubr.bf16.gmra.mxu0 %v3223
    %v3492 = vpop.f32.mrf.mxu0
    %v3493 = vadd.f32 0.0, %v3492
    %v3494 = vpop.f32.mrf.mxu0
    %v3495 = vpop.f32.mrf.mxu0
    %v3496 = vadd.f32 0.0, %v3495
    %v3497 = vpop.f32.mrf.mxu0
    %3498 = vmatprep.mubr.bf16.mxu0 0
    %3499 = vmatmul.mubr.bf16.gmra.mxu0 %v3226
    %v3500 = vpop.f32.mrf.mxu0
    %v3501 = vadd.f32 0.0, %v3500
    %v3502 = vpop.f32.mrf.mxu0
    %v3503 = vpop.f32.mrf.mxu0
    %v3504 = vadd.f32 0.0, %v3503
    %v3505 = vpop.f32.mrf.mxu0
    %3506 = vmatprep.mubr.bf16.mxu0 0
    %3507 = vmatmul.mubr.bf16.gmra.mxu0 %v3229
    %v3508 = vpop.f32.mrf.mxu0
    %v3509 = vadd.f32 0.0, %v3508
    %v3510 = vpop.f32.mrf.mxu0
    %v3511 = vpop.f32.mrf.mxu0
    %v3512 = vadd.f32 0.0, %v3511
    %v3513 = vpop.f32.mrf.mxu0
    %3514 = vmatprep.mubr.bf16.mxu0 0
    %3515 = vmatmul.mubr.bf16.gmra.mxu0 %v3232
    %v3516 = vpop.f32.mrf.mxu0
    %v3517 = vadd.f32 0.0, %v3516
    %v3518 = vpop.f32.mrf.mxu0
    %v3519 = vpop.f32.mrf.mxu0
    %v3520 = vadd.f32 0.0, %v3519
    %v3521 = vpop.f32.mrf.mxu0
    %3522 = vdwg.mxu0
    %v3523 = vlaneseq
    %v3524 = vand.u32 %v3523, 127
    %vm3525 = vcmp.eq.s32.totalorder %v3524, 1
    %v3526 = vld [vmem:[%s11] sm:$0xff]
    %v3527 = vld [vmem:[%s11 + $0x8] sm:$0xff]
    %v3528 = vld [vmem:[%s11 + $0x10] sm:$0xff]
    %v3529 = vld [vmem:[%s11 + $0x18] sm:$0xff]
    %v3530 = vld [vmem:[%s11 + $0x20] sm:$0xff]
    %v3531 = vld [vmem:[%s11 + $0x28] sm:$0xff]
    %v3532 = vld [vmem:[%s11 + $0x30] sm:$0xff]
    %v3533 = vld [vmem:[%s11 + $0x38] sm:$0xff]
    %v3534 = vld [vmem:[%s11 + $0x40] sm:$0xff]
    %v3535 = vld [vmem:[%s11 + $0x48] sm:$0xff]
    %v3536 = vld [vmem:[%s11 + $0x50] sm:$0xff]
    %v3537 = vld [vmem:[%s11 + $0x58] sm:$0xff]
    %v3538 = vld [vmem:[%s11 + $0x60] sm:$0xff]
    %v3539 = vld [vmem:[%s11 + $0x68] sm:$0xff]
    %v3540 = vld [vmem:[%s11 + $0x70] sm:$0xff]
    %v3541 = vld [vmem:[%s11 + $0x78] sm:$0xff]
    %v3542 = vld [vmem:[%s11 + $0x80] sm:$0xff]
    %v3543 = vld [vmem:[%s11 + $0x88] sm:$0xff]
    %v3544 = vld [vmem:[%s11 + $0x90] sm:$0xff]
    %v3545 = vld [vmem:[%s11 + $0x98] sm:$0xff]
    %v3546 = vld [vmem:[%s11 + $0xa0] sm:$0xff]
    %v3547 = vld [vmem:[%s11 + $0xa8] sm:$0xff]
    %v3548 = vld [vmem:[%s11 + $0xb0] sm:$0xff]
    %v3549 = vld [vmem:[%s11 + $0xb8] sm:$0xff]
    %v3550 = vld [vmem:[%s11 + $0xc0] sm:$0xff]
    %v3551 = vld [vmem:[%s11 + $0xc8] sm:$0xff]
    %v3552 = vld [vmem:[%s11 + $0xd0] sm:$0xff]
    %v3553 = vld [vmem:[%s11 + $0xd8] sm:$0xff]
    %v3554 = vld [vmem:[%s11 + $0xe0] sm:$0xff]
    %v3555 = vld [vmem:[%s11 + $0xe8] sm:$0xff]
    %v3556 = vld [vmem:[%s11 + $0xf0] sm:$0xff]
    %v3557 = vld [vmem:[%s11 + $0xf8] sm:$0xff]
    %v3558 = vld [vmem:[%s11 + $0x100] sm:$0xff]
    %v3559 = vld [vmem:[%s11 + $0x108] sm:$0xff]
    %v3560 = vld [vmem:[%s11 + $0x110] sm:$0xff]
    %v3561 = vld [vmem:[%s11 + $0x118] sm:$0xff]
    %v3562 = vld [vmem:[%s11 + $0x120] sm:$0xff]
    %v3563 = vld [vmem:[%s11 + $0x128] sm:$0xff]
    %v3564 = vld [vmem:[%s11 + $0x130] sm:$0xff]
    %v3565 = vld [vmem:[%s11 + $0x138] sm:$0xff]
    %v3566 = vld [vmem:[%s11 + $0x140] sm:$0xff]
    %v3567 = vld [vmem:[%s11 + $0x148] sm:$0xff]
    %v3568 = vld [vmem:[%s11 + $0x150] sm:$0xff]
    %v3569 = vld [vmem:[%s11 + $0x158] sm:$0xff]
    %v3570 = vld [vmem:[%s11 + $0x160] sm:$0xff]
    %v3571 = vld [vmem:[%s11 + $0x168] sm:$0xff]
    %v3572 = vld [vmem:[%s11 + $0x170] sm:$0xff]
    %v3573 = vld [vmem:[%s11 + $0x178] sm:$0xff]
    %v3574 = vld [vmem:[%s11 + $0x180] sm:$0xff]
    %v3575 = vld [vmem:[%s11 + $0x188] sm:$0xff]
    %v3576 = vld [vmem:[%s11 + $0x190] sm:$0xff]
    %v3577 = vld [vmem:[%s11 + $0x198] sm:$0xff]
    %v3578 = vld [vmem:[%s11 + $0x1a0] sm:$0xff]
    %v3579 = vld [vmem:[%s11 + $0x1a8] sm:$0xff]
    %v3580 = vld [vmem:[%s11 + $0x1b0] sm:$0xff]
    %v3581 = vld [vmem:[%s11 + $0x1b8] sm:$0xff]
    %v3582 = vld [vmem:[%s11 + $0x1c0] sm:$0xff]
    %v3583 = vld [vmem:[%s11 + $0x1c8] sm:$0xff]
    %v3584 = vld [vmem:[%s11 + $0x1d0] sm:$0xff]
    %v3585 = vld [vmem:[%s11 + $0x1d8] sm:$0xff]
    %v3586 = vld [vmem:[%s11 + $0x1e0] sm:$0xff]
    %v3587 = vld [vmem:[%s11 + $0x1e8] sm:$0xff]
    %v3588 = vld [vmem:[%s11 + $0x1f0] sm:$0xff]
    %v3589 = vld [vmem:[%s11 + $0x1f8] sm:$0xff]
    %3591 = vset.pattern.permute.xlu0 0
    %3592 = vperm.xlu0 %3591, %v3526
    %v3593 = vpop.permute.xlu0 %3592
    %3596 = vset.pattern.permute.xlu0 0
    %3597 = vperm.xlu0 %3596, %v3527
    %v3598 = vpop.permute.xlu0 %3597
    %3601 = vset.pattern.permute.xlu0 0
    %3602 = vperm.xlu0 %3601, %v3528
    %v3603 = vpop.permute.xlu0 %3602
    %3606 = vset.pattern.permute.xlu0 0
    %3607 = vperm.xlu0 %3606, %v3529
    %v3608 = vpop.permute.xlu0 %3607
    %3611 = vset.pattern.permute.xlu0 0
    %3612 = vperm.xlu0 %3611, %v3530
    %v3613 = vpop.permute.xlu0 %3612
    %3616 = vset.pattern.permute.xlu0 0
    %3617 = vperm.xlu0 %3616, %v3531
    %v3618 = vpop.permute.xlu0 %3617
    %3621 = vset.pattern.permute.xlu0 0
    %3622 = vperm.xlu0 %3621, %v3532
    %v3623 = vpop.permute.xlu0 %3622
    %3626 = vset.pattern.permute.xlu0 0
    %3627 = vperm.xlu0 %3626, %v3533
    %v3628 = vpop.permute.xlu0 %3627
    %3631 = vset.pattern.permute.xlu0 0
    %3632 = vperm.xlu0 %3631, %v3534
    %v3633 = vpop.permute.xlu0 %3632
    %3636 = vset.pattern.permute.xlu0 0
    %3637 = vperm.xlu0 %3636, %v3535
    %v3638 = vpop.permute.xlu0 %3637
    %3641 = vset.pattern.permute.xlu0 0
    %3642 = vperm.xlu0 %3641, %v3536
    %v3643 = vpop.permute.xlu0 %3642
    %3646 = vset.pattern.permute.xlu0 0
    %3647 = vperm.xlu0 %3646, %v3537
    %v3648 = vpop.permute.xlu0 %3647
    %3651 = vset.pattern.permute.xlu0 0
    %3652 = vperm.xlu0 %3651, %v3538
    %v3653 = vpop.permute.xlu0 %3652
    %3656 = vset.pattern.permute.xlu0 0
    %3657 = vperm.xlu0 %3656, %v3539
    %v3658 = vpop.permute.xlu0 %3657
    %3661 = vset.pattern.permute.xlu0 0
    %3662 = vperm.xlu0 %3661, %v3540
    %v3663 = vpop.permute.xlu0 %3662
    %3666 = vset.pattern.permute.xlu0 0
    %3667 = vperm.xlu0 %3666, %v3541
    %v3668 = vpop.permute.xlu0 %3667
    %3671 = vset.pattern.permute.xlu0 0
    %3672 = vperm.xlu0 %3671, %v3542
    %v3673 = vpop.permute.xlu0 %3672
    %3676 = vset.pattern.permute.xlu0 0
    %3677 = vperm.xlu0 %3676, %v3543
    %v3678 = vpop.permute.xlu0 %3677
    %3681 = vset.pattern.permute.xlu0 0
    %3682 = vperm.xlu0 %3681, %v3544
    %v3683 = vpop.permute.xlu0 %3682
    %3686 = vset.pattern.permute.xlu0 0
    %3687 = vperm.xlu0 %3686, %v3545
    %v3688 = vpop.permute.xlu0 %3687
    %3691 = vset.pattern.permute.xlu0 0
    %3692 = vperm.xlu0 %3691, %v3546
    %v3693 = vpop.permute.xlu0 %3692
    %3696 = vset.pattern.permute.xlu0 0
    %3697 = vperm.xlu0 %3696, %v3547
    %v3698 = vpop.permute.xlu0 %3697
    %3701 = vset.pattern.permute.xlu0 0
    %3702 = vperm.xlu0 %3701, %v3548
    %v3703 = vpop.permute.xlu0 %3702
    %3706 = vset.pattern.permute.xlu0 0
    %3707 = vperm.xlu0 %3706, %v3549
    %v3708 = vpop.permute.xlu0 %3707
    %3711 = vset.pattern.permute.xlu0 0
    %3712 = vperm.xlu0 %3711, %v3550
    %v3713 = vpop.permute.xlu0 %3712
    %3716 = vset.pattern.permute.xlu0 0
    %3717 = vperm.xlu0 %3716, %v3551
    %v3718 = vpop.permute.xlu0 %3717
    %3721 = vset.pattern.permute.xlu0 0
    %3722 = vperm.xlu0 %3721, %v3552
    %v3723 = vpop.permute.xlu0 %3722
    %3726 = vset.pattern.permute.xlu0 0
    %3727 = vperm.xlu0 %3726, %v3553
    %v3728 = vpop.permute.xlu0 %3727
    %3731 = vset.pattern.permute.xlu0 0
    %3732 = vperm.xlu0 %3731, %v3554
    %v3733 = vpop.permute.xlu0 %3732
    %3736 = vset.pattern.permute.xlu0 0
    %3737 = vperm.xlu0 %3736, %v3555
    %v3738 = vpop.permute.xlu0 %3737
    %3741 = vset.pattern.permute.xlu0 0
    %3742 = vperm.xlu0 %3741, %v3556
    %v3743 = vpop.permute.xlu0 %3742
    %3746 = vset.pattern.permute.xlu0 0
    %3747 = vperm.xlu0 %3746, %v3557
    %v3748 = vpop.permute.xlu0 %3747
    %3751 = vset.pattern.permute.xlu0 0
    %3752 = vperm.xlu0 %3751, %v3558
    %v3753 = vpop.permute.xlu0 %3752
    %3756 = vset.pattern.permute.xlu0 0
    %3757 = vperm.xlu0 %3756, %v3559
    %v3758 = vpop.permute.xlu0 %3757
    %3761 = vset.pattern.permute.xlu0 0
    %3762 = vperm.xlu0 %3761, %v3560
    %v3763 = vpop.permute.xlu0 %3762
    %3766 = vset.pattern.permute.xlu0 0
    %3767 = vperm.xlu0 %3766, %v3561
    %v3768 = vpop.permute.xlu0 %3767
    %3771 = vset.pattern.permute.xlu0 0
    %3772 = vperm.xlu0 %3771, %v3562
    %v3773 = vpop.permute.xlu0 %3772
    %3776 = vset.pattern.permute.xlu0 0
    %3777 = vperm.xlu0 %3776, %v3563
    %v3778 = vpop.permute.xlu0 %3777
    %3781 = vset.pattern.permute.xlu0 0
    %3782 = vperm.xlu0 %3781, %v3564
    %v3783 = vpop.permute.xlu0 %3782
    %3786 = vset.pattern.permute.xlu0 0
    %3787 = vperm.xlu0 %3786, %v3565
    %v3788 = vpop.permute.xlu0 %3787
    %3791 = vset.pattern.permute.xlu0 0
    %3792 = vperm.xlu0 %3791, %v3566
    %v3793 = vpop.permute.xlu0 %3792
    %3796 = vset.pattern.permute.xlu0 0
    %3797 = vperm.xlu0 %3796, %v3567
    %v3798 = vpop.permute.xlu0 %3797
    %3801 = vset.pattern.permute.xlu0 0
    %3802 = vperm.xlu0 %3801, %v3568
    %v3803 = vpop.permute.xlu0 %3802
    %3806 = vset.pattern.permute.xlu0 0
    %3807 = vperm.xlu0 %3806, %v3569
    %v3808 = vpop.permute.xlu0 %3807
    %3811 = vset.pattern.permute.xlu0 0
    %3812 = vperm.xlu0 %3811, %v3570
    %v3813 = vpop.permute.xlu0 %3812
    %3816 = vset.pattern.permute.xlu0 0
    %3817 = vperm.xlu0 %3816, %v3571
    %v3818 = vpop.permute.xlu0 %3817
    %3821 = vset.pattern.permute.xlu0 0
    %3822 = vperm.xlu0 %3821, %v3572
    %v3823 = vpop.permute.xlu0 %3822
    %3826 = vset.pattern.permute.xlu0 0
    %3827 = vperm.xlu0 %3826, %v3573
    %v3828 = vpop.permute.xlu0 %3827
    %3831 = vset.pattern.permute.xlu0 0
    %3832 = vperm.xlu0 %3831, %v3574
    %v3833 = vpop.permute.xlu0 %3832
    %3836 = vset.pattern.permute.xlu0 0
    %3837 = vperm.xlu0 %3836, %v3575
    %v3838 = vpop.permute.xlu0 %3837
    %3841 = vset.pattern.permute.xlu0 0
    %3842 = vperm.xlu0 %3841, %v3576
    %v3843 = vpop.permute.xlu0 %3842
    %3846 = vset.pattern.permute.xlu0 0
    %3847 = vperm.xlu0 %3846, %v3577
    %v3848 = vpop.permute.xlu0 %3847
    %3851 = vset.pattern.permute.xlu0 0
    %3852 = vperm.xlu0 %3851, %v3578
    %v3853 = vpop.permute.xlu0 %3852
    %3856 = vset.pattern.permute.xlu0 0
    %3857 = vperm.xlu0 %3856, %v3579
    %v3858 = vpop.permute.xlu0 %3857
    %3861 = vset.pattern.permute.xlu0 0
    %3862 = vperm.xlu0 %3861, %v3580
    %v3863 = vpop.permute.xlu0 %3862
    %3866 = vset.pattern.permute.xlu0 0
    %3867 = vperm.xlu0 %3866, %v3581
    %v3868 = vpop.permute.xlu0 %3867
    %3871 = vset.pattern.permute.xlu0 0
    %3872 = vperm.xlu0 %3871, %v3582
    %v3873 = vpop.permute.xlu0 %3872
    %3876 = vset.pattern.permute.xlu0 0
    %3877 = vperm.xlu0 %3876, %v3583
    %v3878 = vpop.permute.xlu0 %3877
    %3881 = vset.pattern.permute.xlu0 0
    %3882 = vperm.xlu0 %3881, %v3584
    %v3883 = vpop.permute.xlu0 %3882
    %3886 = vset.pattern.permute.xlu0 0
    %3887 = vperm.xlu0 %3886, %v3585
    %v3888 = vpop.permute.xlu0 %3887
    %3891 = vset.pattern.permute.xlu0 0
    %3892 = vperm.xlu0 %3891, %v3586
    %v3893 = vpop.permute.xlu0 %3892
    %3896 = vset.pattern.permute.xlu0 0
    %3897 = vperm.xlu0 %3896, %v3587
    %v3898 = vpop.permute.xlu0 %3897
    %3901 = vset.pattern.permute.xlu0 0
    %3902 = vperm.xlu0 %3901, %v3588
    %v3903 = vpop.permute.xlu0 %3902
    %3906 = vset.pattern.permute.xlu0 0
    %3907 = vperm.xlu0 %3906, %v3589
    %v3908 = vpop.permute.xlu0 %3907
    %v3910 = vmul.f32 %v3269, %v3593
    %v3911 = vmul.f32 %v3272, %v3598
    %v3912 = vmul.f32 %v3277, %v3603
    %v3913 = vmul.f32 %v3280, %v3608
    %v3914 = vmul.f32 %v3285, %v3613
    %v3915 = vmul.f32 %v3288, %v3618
    %v3916 = vmul.f32 %v3293, %v3623
    %v3917 = vmul.f32 %v3296, %v3628
    %v3918 = vmul.f32 %v3301, %v3633
    %v3919 = vmul.f32 %v3304, %v3638
    %v3920 = vmul.f32 %v3309, %v3643
    %v3921 = vmul.f32 %v3312, %v3648
    %v3922 = vmul.f32 %v3317, %v3653
    %v3923 = vmul.f32 %v3320, %v3658
    %v3924 = vmul.f32 %v3325, %v3663
    %v3925 = vmul.f32 %v3328, %v3668
    %v3926 = vmul.f32 %v3333, %v3673
    %v3927 = vmul.f32 %v3336, %v3678
    %v3928 = vmul.f32 %v3341, %v3683
    %v3929 = vmul.f32 %v3344, %v3688
    %v3930 = vmul.f32 %v3349, %v3693
    %v3931 = vmul.f32 %v3352, %v3698
    %v3932 = vmul.f32 %v3357, %v3703
    %v3933 = vmul.f32 %v3360, %v3708
    %v3934 = vmul.f32 %v3365, %v3713
    %v3935 = vmul.f32 %v3368, %v3718
    %v3936 = vmul.f32 %v3373, %v3723
    %v3937 = vmul.f32 %v3376, %v3728
    %v3938 = vmul.f32 %v3381, %v3733
    %v3939 = vmul.f32 %v3384, %v3738
    %v3940 = vmul.f32 %v3389, %v3743
    %v3941 = vmul.f32 %v3392, %v3748
    %v3942 = vmul.f32 %v3397, %v3753
    %v3943 = vmul.f32 %v3400, %v3758
    %v3944 = vmul.f32 %v3405, %v3763
    %v3945 = vmul.f32 %v3408, %v3768
    %v3946 = vmul.f32 %v3413, %v3773
    %v3947 = vmul.f32 %v3416, %v3778
    %v3948 = vmul.f32 %v3421, %v3783
    %v3949 = vmul.f32 %v3424, %v3788
    %v3950 = vmul.f32 %v3429, %v3793
    %v3951 = vmul.f32 %v3432, %v3798
    %v3952 = vmul.f32 %v3437, %v3803
    %v3953 = vmul.f32 %v3440, %v3808
    %v3954 = vmul.f32 %v3445, %v3813
    %v3955 = vmul.f32 %v3448, %v3818
    %v3956 = vmul.f32 %v3453, %v3823
    %v3957 = vmul.f32 %v3456, %v3828
    %v3958 = vmul.f32 %v3461, %v3833
    %v3959 = vmul.f32 %v3464, %v3838
    %v3960 = vmul.f32 %v3469, %v3843
    %v3961 = vmul.f32 %v3472, %v3848
    %v3962 = vmul.f32 %v3477, %v3853
    %v3963 = vmul.f32 %v3480, %v3858
    %v3964 = vmul.f32 %v3485, %v3863
    %v3965 = vmul.f32 %v3488, %v3868
    %v3966 = vmul.f32 %v3493, %v3873
    %v3967 = vmul.f32 %v3496, %v3878
    %v3968 = vmul.f32 %v3501, %v3883
    %v3969 = vmul.f32 %v3504, %v3888
    %v3970 = vmul.f32 %v3509, %v3893
    %v3971 = vmul.f32 %v3512, %v3898
    %v3972 = vmul.f32 %v3517, %v3903
    %v3973 = vmul.f32 %v3520, %v3908
    %v3974 = vsel %vm3525, %v3910, %v3269
    %v3975 = vsel %vm3525, %v3911, %v3272
    %v3976 = vsel %vm3525, %v3912, %v3277
    %v3977 = vsel %vm3525, %v3913, %v3280
    %v3978 = vsel %vm3525, %v3914, %v3285
    %v3979 = vsel %vm3525, %v3915, %v3288
    %v3980 = vsel %vm3525, %v3916, %v3293
    %v3981 = vsel %vm3525, %v3917, %v3296
    %v3982 = vsel %vm3525, %v3918, %v3301
    %v3983 = vsel %vm3525, %v3919, %v3304
    %v3984 = vsel %vm3525, %v3920, %v3309
    %v3985 = vsel %vm3525, %v3921, %v3312
    %v3986 = vsel %vm3525, %v3922, %v3317
    %v3987 = vsel %vm3525, %v3923, %v3320
    %v3988 = vsel %vm3525, %v3924, %v3325
    %v3989 = vsel %vm3525, %v3925, %v3328
    %v3990 = vsel %vm3525, %v3926, %v3333
    %v3991 = vsel %vm3525, %v3927, %v3336
    %v3992 = vsel %vm3525, %v3928, %v3341
    %v3993 = vsel %vm3525, %v3929, %v3344
    %v3994 = vsel %vm3525, %v3930, %v3349
    %v3995 = vsel %vm3525, %v3931, %v3352
    %v3996 = vsel %vm3525, %v3932, %v3357
    %v3997 = vsel %vm3525, %v3933, %v3360
    %v3998 = vsel %vm3525, %v3934, %v3365
    %v3999 = vsel %vm3525, %v3935, %v3368
    %v4000 = vsel %vm3525, %v3936, %v3373
    %v4001 = vsel %vm3525, %v3937, %v3376
    %v4002 = vsel %vm3525, %v3938, %v3381
    %v4003 = vsel %vm3525, %v3939, %v3384
    %v4004 = vsel %vm3525, %v3940, %v3389
    %v4005 = vsel %vm3525, %v3941, %v3392
    %v4006 = vsel %vm3525, %v3942, %v3397
    %v4007 = vsel %vm3525, %v3943, %v3400
    %v4008 = vsel %vm3525, %v3944, %v3405
    %v4009 = vsel %vm3525, %v3945, %v3408
    %v4010 = vsel %vm3525, %v3946, %v3413
    %v4011 = vsel %vm3525, %v3947, %v3416
    %v4012 = vsel %vm3525, %v3948, %v3421
    %v4013 = vsel %vm3525, %v3949, %v3424
    %v4014 = vsel %vm3525, %v3950, %v3429
    %v4015 = vsel %vm3525, %v3951, %v3432
    %v4016 = vsel %vm3525, %v3952, %v3437
    %v4017 = vsel %vm3525, %v3953, %v3440
    %v4018 = vsel %vm3525, %v3954, %v3445
    %v4019 = vsel %vm3525, %v3955, %v3448
    %v4020 = vsel %vm3525, %v3956, %v3453
    %v4021 = vsel %vm3525, %v3957, %v3456
    %v4022 = vsel %vm3525, %v3958, %v3461
    %v4023 = vsel %vm3525, %v3959, %v3464
    %v4024 = vsel %vm3525, %v3960, %v3469
    %v4025 = vsel %vm3525, %v3961, %v3472
    %v4026 = vsel %vm3525, %v3962, %v3477
    %v4027 = vsel %vm3525, %v3963, %v3480
    %v4028 = vsel %vm3525, %v3964, %v3485
    %v4029 = vsel %vm3525, %v3965, %v3488
    %v4030 = vsel %vm3525, %v3966, %v3493
    %v4031 = vsel %vm3525, %v3967, %v3496
    %v4032 = vsel %vm3525, %v3968, %v3501
    %v4033 = vsel %vm3525, %v3969, %v3504
    %v4034 = vsel %vm3525, %v3970, %v3509
    %v4035 = vsel %vm3525, %v3971, %v3512
    %v4036 = vsel %vm3525, %v3972, %v3517
    %v4037 = vsel %vm3525, %v3973, %v3520
    %v4038 = vld [vmem:[%s57] sm:$0x1]
    %v4040 = vlaneseq
    %v4041 = vshrl.u32 %v4040, 7
    %v4042 = vsub.s32 0, %v4041
    %v4043 = vrot.slane %v4038, %v4042
    %v4045 = vadd.f32 %v3974, %v4043
    %v4046 = vadd.f32 %v3975, %v4043
    %v4047 = vadd.f32 %v3976, %v4043
    %v4048 = vadd.f32 %v3977, %v4043
    %v4049 = vadd.f32 %v3978, %v4043
    %v4050 = vadd.f32 %v3979, %v4043
    %v4051 = vadd.f32 %v3980, %v4043
    %v4052 = vadd.f32 %v3981, %v4043
    %v4053 = vadd.f32 %v3982, %v4043
    %v4054 = vadd.f32 %v3983, %v4043
    %v4055 = vadd.f32 %v3984, %v4043
    %v4056 = vadd.f32 %v3985, %v4043
    %v4057 = vadd.f32 %v3986, %v4043
    %v4058 = vadd.f32 %v3987, %v4043
    %v4059 = vadd.f32 %v3988, %v4043
    %v4060 = vadd.f32 %v3989, %v4043
    %v4061 = vadd.f32 %v3990, %v4043
    %v4062 = vadd.f32 %v3991, %v4043
    %v4063 = vadd.f32 %v3992, %v4043
    %v4064 = vadd.f32 %v3993, %v4043
    %v4065 = vadd.f32 %v3994, %v4043
    %v4066 = vadd.f32 %v3995, %v4043
    %v4067 = vadd.f32 %v3996, %v4043
    %v4068 = vadd.f32 %v3997, %v4043
    %v4069 = vadd.f32 %v3998, %v4043
    %v4070 = vadd.f32 %v3999, %v4043
    %v4071 = vadd.f32 %v4000, %v4043
    %v4072 = vadd.f32 %v4001, %v4043
    %v4073 = vadd.f32 %v4002, %v4043
    %v4074 = vadd.f32 %v4003, %v4043
    %v4075 = vadd.f32 %v4004, %v4043
    %v4076 = vadd.f32 %v4005, %v4043
    %v4077 = vadd.f32 %v4006, %v4043
    %v4078 = vadd.f32 %v4007, %v4043
    %v4079 = vadd.f32 %v4008, %v4043
    %v4080 = vadd.f32 %v4009, %v4043
    %v4081 = vadd.f32 %v4010, %v4043
    %v4082 = vadd.f32 %v4011, %v4043
    %v4083 = vadd.f32 %v4012, %v4043
    %v4084 = vadd.f32 %v4013, %v4043
    %v4085 = vadd.f32 %v4014, %v4043
    %v4086 = vadd.f32 %v4015, %v4043
    %v4087 = vadd.f32 %v4016, %v4043
    %v4088 = vadd.f32 %v4017, %v4043
    %v4089 = vadd.f32 %v4018, %v4043
    %v4090 = vadd.f32 %v4019, %v4043
    %v4091 = vadd.f32 %v4020, %v4043
    %v4092 = vadd.f32 %v4021, %v4043
    %v4093 = vadd.f32 %v4022, %v4043
    %v4094 = vadd.f32 %v4023, %v4043
    %v4095 = vadd.f32 %v4024, %v4043
    %v4096 = vadd.f32 %v4025, %v4043
    %v4097 = vadd.f32 %v4026, %v4043
    %v4098 = vadd.f32 %v4027, %v4043
    %v4099 = vadd.f32 %v4028, %v4043
    %v4100 = vadd.f32 %v4029, %v4043
    %v4101 = vadd.f32 %v4030, %v4043
    %v4102 = vadd.f32 %v4031, %v4043
    %v4103 = vadd.f32 %v4032, %v4043
    %v4104 = vadd.f32 %v4033, %v4043
    %v4105 = vadd.f32 %v4034, %v4043
    %v4106 = vadd.f32 %v4035, %v4043
    %v4107 = vadd.f32 %v4036, %v4043
    %v4108 = vadd.f32 %v4037, %v4043
    %vm4109 = vcmp.eq.s32.totalorder %v3524, 2
    %v4110 = vxor.u32 %v4045, 2147483648
    %v4111 = vxor.u32 %v4046, 2147483648
    %v4112 = vxor.u32 %v4047, 2147483648
    %v4113 = vxor.u32 %v4048, 2147483648
    %v4114 = vxor.u32 %v4049, 2147483648
    %v4115 = vxor.u32 %v4050, 2147483648
    %v4116 = vxor.u32 %v4051, 2147483648
    %v4117 = vxor.u32 %v4052, 2147483648
    %v4118 = vxor.u32 %v4053, 2147483648
    %v4119 = vxor.u32 %v4054, 2147483648
    %v4120 = vxor.u32 %v4055, 2147483648
    %v4121 = vxor.u32 %v4056, 2147483648
    %v4122 = vxor.u32 %v4057, 2147483648
    %v4123 = vxor.u32 %v4058, 2147483648
    %v4124 = vxor.u32 %v4059, 2147483648
    %v4125 = vxor.u32 %v4060, 2147483648
    %v4126 = vxor.u32 %v4061, 2147483648
    %v4127 = vxor.u32 %v4062, 2147483648
    %v4128 = vxor.u32 %v4063, 2147483648
    %v4129 = vxor.u32 %v4064, 2147483648
    %v4130 = vxor.u32 %v4065, 2147483648
    %v4131 = vxor.u32 %v4066, 2147483648
    %v4132 = vxor.u32 %v4067, 2147483648
    %v4133 = vxor.u32 %v4068, 2147483648
    %v4134 = vxor.u32 %v4069, 2147483648
    %v4135 = vxor.u32 %v4070, 2147483648
    %v4136 = vxor.u32 %v4071, 2147483648
    %v4137 = vxor.u32 %v4072, 2147483648
    %v4138 = vxor.u32 %v4073, 2147483648
    %v4139 = vxor.u32 %v4074, 2147483648
    %v4140 = vxor.u32 %v4075, 2147483648
    %v4141 = vxor.u32 %v4076, 2147483648
    %v4142 = vxor.u32 %v4077, 2147483648
    %v4143 = vxor.u32 %v4078, 2147483648
    %v4144 = vxor.u32 %v4079, 2147483648
    %v4145 = vxor.u32 %v4080, 2147483648
    %v4146 = vxor.u32 %v4081, 2147483648
    %v4147 = vxor.u32 %v4082, 2147483648
    %v4148 = vxor.u32 %v4083, 2147483648
    %v4149 = vxor.u32 %v4084, 2147483648
    %v4150 = vxor.u32 %v4085, 2147483648
    %v4151 = vxor.u32 %v4086, 2147483648
    %v4152 = vxor.u32 %v4087, 2147483648
    %v4153 = vxor.u32 %v4088, 2147483648
    %v4154 = vxor.u32 %v4089, 2147483648
    %v4155 = vxor.u32 %v4090, 2147483648
    %v4156 = vxor.u32 %v4091, 2147483648
    %v4157 = vxor.u32 %v4092, 2147483648
    %v4158 = vxor.u32 %v4093, 2147483648
    %v4159 = vxor.u32 %v4094, 2147483648
    %v4160 = vxor.u32 %v4095, 2147483648
    %v4161 = vxor.u32 %v4096, 2147483648
    %v4162 = vxor.u32 %v4097, 2147483648
    %v4163 = vxor.u32 %v4098, 2147483648
    %v4164 = vxor.u32 %v4099, 2147483648
    %v4165 = vxor.u32 %v4100, 2147483648
    %v4166 = vxor.u32 %v4101, 2147483648
    %v4167 = vxor.u32 %v4102, 2147483648
    %v4168 = vxor.u32 %v4103, 2147483648
    %v4169 = vxor.u32 %v4104, 2147483648
    %v4170 = vxor.u32 %v4105, 2147483648
    %v4171 = vxor.u32 %v4106, 2147483648
    %v4172 = vxor.u32 %v4107, 2147483648
    %v4173 = vxor.u32 %v4108, 2147483648
    %v4174 = vmul.f32 %v4110, 1.442695
    %v4175 = vpow.pop %v4174
    %v4176 = vmul.f32 %v4111, 1.442695
    %v4177 = vpow.pop %v4176
    %v4178 = vmul.f32 %v4112, 1.442695
    %v4179 = vpow.pop %v4178
    %v4180 = vmul.f32 %v4113, 1.442695
    %v4181 = vpow.pop %v4180
    %v4182 = vmul.f32 %v4114, 1.442695
    %v4183 = vpow.pop %v4182
    %v4184 = vmul.f32 %v4115, 1.442695
    %v4185 = vpow.pop %v4184
    %v4186 = vmul.f32 %v4116, 1.442695
    %v4187 = vpow.pop %v4186
    %v4188 = vmul.f32 %v4117, 1.442695
    %v4189 = vpow.pop %v4188
    %v4190 = vmul.f32 %v4118, 1.442695
    %v4191 = vpow.pop %v4190
    %v4192 = vmul.f32 %v4119, 1.442695
    %v4193 = vpow.pop %v4192
    %v4194 = vmul.f32 %v4120, 1.442695
    %v4195 = vpow.pop %v4194
    %v4196 = vmul.f32 %v4121, 1.442695
    %v4197 = vpow.pop %v4196
    %v4198 = vmul.f32 %v4122, 1.442695
    %v4199 = vpow.pop %v4198
    %v4200 = vmul.f32 %v4123, 1.442695
    %v4201 = vpow.pop %v4200
    %v4202 = vmul.f32 %v4124, 1.442695
    %v4203 = vpow.pop %v4202
    %v4204 = vmul.f32 %v4125, 1.442695
    %v4205 = vpow.pop %v4204
    %v4206 = vmul.f32 %v4126, 1.442695
    %v4207 = vpow.pop %v4206
    %v4208 = vmul.f32 %v4127, 1.442695
    %v4209 = vpow.pop %v4208
    %v4210 = vmul.f32 %v4128, 1.442695
    %v4211 = vpow.pop %v4210
    %v4212 = vmul.f32 %v4129, 1.442695
    %v4213 = vpow.pop %v4212
    %v4214 = vmul.f32 %v4130, 1.442695
    %v4215 = vpow.pop %v4214
    %v4216 = vmul.f32 %v4131, 1.442695
    %v4217 = vpow.pop %v4216
    %v4218 = vmul.f32 %v4132, 1.442695
    %v4219 = vpow.pop %v4218
    %v4220 = vmul.f32 %v4133, 1.442695
    %v4221 = vpow.pop %v4220
    %v4222 = vmul.f32 %v4134, 1.442695
    %v4223 = vpow.pop %v4222
    %v4224 = vmul.f32 %v4135, 1.442695
    %v4225 = vpow.pop %v4224
    %v4226 = vmul.f32 %v4136, 1.442695
    %v4227 = vpow.pop %v4226
    %v4228 = vmul.f32 %v4137, 1.442695
    %v4229 = vpow.pop %v4228
    %v4230 = vmul.f32 %v4138, 1.442695
    %v4231 = vpow.pop %v4230
    %v4232 = vmul.f32 %v4139, 1.442695
    %v4233 = vpow.pop %v4232
    %v4234 = vmul.f32 %v4140, 1.442695
    %v4235 = vpow.pop %v4234
    %v4236 = vmul.f32 %v4141, 1.442695
    %v4237 = vpow.pop %v4236
    %v4238 = vmul.f32 %v4142, 1.442695
    %v4239 = vpow.pop %v4238
    %v4240 = vmul.f32 %v4143, 1.442695
    %v4241 = vpow.pop %v4240
    %v4242 = vmul.f32 %v4144, 1.442695
    %v4243 = vpow.pop %v4242
    %v4244 = vmul.f32 %v4145, 1.442695
    %v4245 = vpow.pop %v4244
    %v4246 = vmul.f32 %v4146, 1.442695
    %v4247 = vpow.pop %v4246
    %v4248 = vmul.f32 %v4147, 1.442695
    %v4249 = vpow.pop %v4248
    %v4250 = vmul.f32 %v4148, 1.442695
    %v4251 = vpow.pop %v4250
    %v4252 = vmul.f32 %v4149, 1.442695
    %v4253 = vpow.pop %v4252
    %v4254 = vmul.f32 %v4150, 1.442695
    %v4255 = vpow.pop %v4254
    %v4256 = vmul.f32 %v4151, 1.442695
    %v4257 = vpow.pop %v4256
    %v4258 = vmul.f32 %v4152, 1.442695
    %v4259 = vpow.pop %v4258
    %v4260 = vmul.f32 %v4153, 1.442695
    %v4261 = vpow.pop %v4260
    %v4262 = vmul.f32 %v4154, 1.442695
    %v4263 = vpow.pop %v4262
    %v4264 = vmul.f32 %v4155, 1.442695
    %v4265 = vpow.pop %v4264
    %v4266 = vmul.f32 %v4156, 1.442695
    %v4267 = vpow.pop %v4266
    %v4268 = vmul.f32 %v4157, 1.442695
    %v4269 = vpow.pop %v4268
    %v4270 = vmul.f32 %v4158, 1.442695
    %v4271 = vpow.pop %v4270
    %v4272 = vmul.f32 %v4159, 1.442695
    %v4273 = vpow.pop %v4272
    %v4274 = vmul.f32 %v4160, 1.442695
    %v4275 = vpow.pop %v4274
    %v4276 = vmul.f32 %v4161, 1.442695
    %v4277 = vpow.pop %v4276
    %v4278 = vmul.f32 %v4162, 1.442695
    %v4279 = vpow.pop %v4278
    %v4280 = vmul.f32 %v4163, 1.442695
    %v4281 = vpow.pop %v4280
    %v4282 = vmul.f32 %v4164, 1.442695
    %v4283 = vpow.pop %v4282
    %v4284 = vmul.f32 %v4165, 1.442695
    %v4285 = vpow.pop %v4284
    %v4286 = vmul.f32 %v4166, 1.442695
    %v4287 = vpow.pop %v4286
    %v4288 = vmul.f32 %v4167, 1.442695
    %v4289 = vpow.pop %v4288
    %v4290 = vmul.f32 %v4168, 1.442695
    %v4291 = vpow.pop %v4290
    %v4292 = vmul.f32 %v4169, 1.442695
    %v4293 = vpow.pop %v4292
    %v4294 = vmul.f32 %v4170, 1.442695
    %v4295 = vpow.pop %v4294
    %v4296 = vmul.f32 %v4171, 1.442695
    %v4297 = vpow.pop %v4296
    %v4298 = vmul.f32 %v4172, 1.442695
    %v4299 = vpow.pop %v4298
    %v4300 = vmul.f32 %v4173, 1.442695
    %v4301 = vpow.pop %v4300
    %v4302 = vadd.f32 %v4175, 1.0
    %v4303 = vadd.f32 %v4177, 1.0
    %v4304 = vadd.f32 %v4179, 1.0
    %v4305 = vadd.f32 %v4181, 1.0
    %v4306 = vadd.f32 %v4183, 1.0
    %v4307 = vadd.f32 %v4185, 1.0
    %v4308 = vadd.f32 %v4187, 1.0
    %v4309 = vadd.f32 %v4189, 1.0
    %v4310 = vadd.f32 %v4191, 1.0
    %v4311 = vadd.f32 %v4193, 1.0
    %v4312 = vadd.f32 %v4195, 1.0
    %v4313 = vadd.f32 %v4197, 1.0
    %v4314 = vadd.f32 %v4199, 1.0
    %v4315 = vadd.f32 %v4201, 1.0
    %v4316 = vadd.f32 %v4203, 1.0
    %v4317 = vadd.f32 %v4205, 1.0
    %v4318 = vadd.f32 %v4207, 1.0
    %v4319 = vadd.f32 %v4209, 1.0
    %v4320 = vadd.f32 %v4211, 1.0
    %v4321 = vadd.f32 %v4213, 1.0
    %v4322 = vadd.f32 %v4215, 1.0
    %v4323 = vadd.f32 %v4217, 1.0
    %v4324 = vadd.f32 %v4219, 1.0
    %v4325 = vadd.f32 %v4221, 1.0
    %v4326 = vadd.f32 %v4223, 1.0
    %v4327 = vadd.f32 %v4225, 1.0
    %v4328 = vadd.f32 %v4227, 1.0
    %v4329 = vadd.f32 %v4229, 1.0
    %v4330 = vadd.f32 %v4231, 1.0
    %v4331 = vadd.f32 %v4233, 1.0
    %v4332 = vadd.f32 %v4235, 1.0
    %v4333 = vadd.f32 %v4237, 1.0
    %v4334 = vadd.f32 %v4239, 1.0
    %v4335 = vadd.f32 %v4241, 1.0
    %v4336 = vadd.f32 %v4243, 1.0
    %v4337 = vadd.f32 %v4245, 1.0
    %v4338 = vadd.f32 %v4247, 1.0
    %v4339 = vadd.f32 %v4249, 1.0
    %v4340 = vadd.f32 %v4251, 1.0
    %v4341 = vadd.f32 %v4253, 1.0
    %v4342 = vadd.f32 %v4255, 1.0
    %v4343 = vadd.f32 %v4257, 1.0
    %v4344 = vadd.f32 %v4259, 1.0
    %v4345 = vadd.f32 %v4261, 1.0
    %v4346 = vadd.f32 %v4263, 1.0
    %v4347 = vadd.f32 %v4265, 1.0
    %v4348 = vadd.f32 %v4267, 1.0
    %v4349 = vadd.f32 %v4269, 1.0
    %v4350 = vadd.f32 %v4271, 1.0
    %v4351 = vadd.f32 %v4273, 1.0
    %v4352 = vadd.f32 %v4275, 1.0
    %v4353 = vadd.f32 %v4277, 1.0
    %v4354 = vadd.f32 %v4279, 1.0
    %v4355 = vadd.f32 %v4281, 1.0
    %v4356 = vadd.f32 %v4283, 1.0
    %v4357 = vadd.f32 %v4285, 1.0
    %v4358 = vadd.f32 %v4287, 1.0
    %v4359 = vadd.f32 %v4289, 1.0
    %v4360 = vadd.f32 %v4291, 1.0
    %v4361 = vadd.f32 %v4293, 1.0
    %v4362 = vadd.f32 %v4295, 1.0
    %v4363 = vadd.f32 %v4297, 1.0
    %v4364 = vadd.f32 %v4299, 1.0
    %v4365 = vadd.f32 %v4301, 1.0
    %v4366 = vrcp.pop %v4302
    %v4367 = vmul.f32 1.0, %v4366
    %v4368 = vrcp.pop %v4303
    %v4369 = vmul.f32 1.0, %v4368
    %v4370 = vrcp.pop %v4304
    %v4371 = vmul.f32 1.0, %v4370
    %v4372 = vrcp.pop %v4305
    %v4373 = vmul.f32 1.0, %v4372
    %v4374 = vrcp.pop %v4306
    %v4375 = vmul.f32 1.0, %v4374
    %v4376 = vrcp.pop %v4307
    %v4377 = vmul.f32 1.0, %v4376
    %v4378 = vrcp.pop %v4308
    %v4379 = vmul.f32 1.0, %v4378
    %v4380 = vrcp.pop %v4309
    %v4381 = vmul.f32 1.0, %v4380
    %v4382 = vrcp.pop %v4310
    %v4383 = vmul.f32 1.0, %v4382
    %v4384 = vrcp.pop %v4311
    %v4385 = vmul.f32 1.0, %v4384
    %v4386 = vrcp.pop %v4312
    %v4387 = vmul.f32 1.0, %v4386
    %v4388 = vrcp.pop %v4313
    %v4389 = vmul.f32 1.0, %v4388
    %v4390 = vrcp.pop %v4314
    %v4391 = vmul.f32 1.0, %v4390
    %v4392 = vrcp.pop %v4315
    %v4393 = vmul.f32 1.0, %v4392
    %v4394 = vrcp.pop %v4316
    %v4395 = vmul.f32 1.0, %v4394
    %v4396 = vrcp.pop %v4317
    %v4397 = vmul.f32 1.0, %v4396
    %v4398 = vrcp.pop %v4318
    %v4399 = vmul.f32 1.0, %v4398
    %v4400 = vrcp.pop %v4319
    %v4401 = vmul.f32 1.0, %v4400
    %v4402 = vrcp.pop %v4320
    %v4403 = vmul.f32 1.0, %v4402
    %v4404 = vrcp.pop %v4321
    %v4405 = vmul.f32 1.0, %v4404
    %v4406 = vrcp.pop %v4322
    %v4407 = vmul.f32 1.0, %v4406
    %v4408 = vrcp.pop %v4323
    %v4409 = vmul.f32 1.0, %v4408
    %v4410 = vrcp.pop %v4324
    %v4411 = vmul.f32 1.0, %v4410
    %v4412 = vrcp.pop %v4325
    %v4413 = vmul.f32 1.0, %v4412
    %v4414 = vrcp.pop %v4326
    %v4415 = vmul.f32 1.0, %v4414
    %v4416 = vrcp.pop %v4327
    %v4417 = vmul.f32 1.0, %v4416
    %v4418 = vrcp.pop %v4328
    %v4419 = vmul.f32 1.0, %v4418
    %v4420 = vrcp.pop %v4329
    %v4421 = vmul.f32 1.0, %v4420
    %v4422 = vrcp.pop %v4330
    %v4423 = vmul.f32 1.0, %v4422
    %v4424 = vrcp.pop %v4331
    %v4425 = vmul.f32 1.0, %v4424
    %v4426 = vrcp.pop %v4332
    %v4427 = vmul.f32 1.0, %v4426
    %v4428 = vrcp.pop %v4333
    %v4429 = vmul.f32 1.0, %v4428
    %v4430 = vrcp.pop %v4334
    %v4431 = vmul.f32 1.0, %v4430
    %v4432 = vrcp.pop %v4335
    %v4433 = vmul.f32 1.0, %v4432
    %v4434 = vrcp.pop %v4336
    %v4435 = vmul.f32 1.0, %v4434
    %v4436 = vrcp.pop %v4337
    %v4437 = vmul.f32 1.0, %v4436
    %v4438 = vrcp.pop %v4338
    %v4439 = vmul.f32 1.0, %v4438
    %v4440 = vrcp.pop %v4339
    %v4441 = vmul.f32 1.0, %v4440
    %v4442 = vrcp.pop %v4340
    %v4443 = vmul.f32 1.0, %v4442
    %v4444 = vrcp.pop %v4341
    %v4445 = vmul.f32 1.0, %v4444
    %v4446 = vrcp.pop %v4342
    %v4447 = vmul.f32 1.0, %v4446
    %v4448 = vrcp.pop %v4343
    %v4449 = vmul.f32 1.0, %v4448
    %v4450 = vrcp.pop %v4344
    %v4451 = vmul.f32 1.0, %v4450
    %v4452 = vrcp.pop %v4345
    %v4453 = vmul.f32 1.0, %v4452
    %v4454 = vrcp.pop %v4346
    %v4455 = vmul.f32 1.0, %v4454
    %v4456 = vrcp.pop %v4347
    %v4457 = vmul.f32 1.0, %v4456
    %v4458 = vrcp.pop %v4348
    %v4459 = vmul.f32 1.0, %v4458
    %v4460 = vrcp.pop %v4349
    %v4461 = vmul.f32 1.0, %v4460
    %v4462 = vrcp.pop %v4350
    %v4463 = vmul.f32 1.0, %v4462
    %v4464 = vrcp.pop %v4351
    %v4465 = vmul.f32 1.0, %v4464
    %v4466 = vrcp.pop %v4352
    %v4467 = vmul.f32 1.0, %v4466
    %v4468 = vrcp.pop %v4353
    %v4469 = vmul.f32 1.0, %v4468
    %v4470 = vrcp.pop %v4354
    %v4471 = vmul.f32 1.0, %v4470
    %v4472 = vrcp.pop %v4355
    %v4473 = vmul.f32 1.0, %v4472
    %v4474 = vrcp.pop %v4356
    %v4475 = vmul.f32 1.0, %v4474
    %v4476 = vrcp.pop %v4357
    %v4477 = vmul.f32 1.0, %v4476
    %v4478 = vrcp.pop %v4358
    %v4479 = vmul.f32 1.0, %v4478
    %v4480 = vrcp.pop %v4359
    %v4481 = vmul.f32 1.0, %v4480
    %v4482 = vrcp.pop %v4360
    %v4483 = vmul.f32 1.0, %v4482
    %v4484 = vrcp.pop %v4361
    %v4485 = vmul.f32 1.0, %v4484
    %v4486 = vrcp.pop %v4362
    %v4487 = vmul.f32 1.0, %v4486
    %v4488 = vrcp.pop %v4363
    %v4489 = vmul.f32 1.0, %v4488
    %v4490 = vrcp.pop %v4364
    %v4491 = vmul.f32 1.0, %v4490
    %v4492 = vrcp.pop %v4365
    %v4493 = vmul.f32 1.0, %v4492
    %v4494 = vsel %vm4109, %v4367, %v4045
    %v4495 = vsel %vm4109, %v4369, %v4046
    %v4496 = vsel %vm4109, %v4371, %v4047
    %v4497 = vsel %vm4109, %v4373, %v4048
    %v4498 = vsel %vm4109, %v4375, %v4049
    %v4499 = vsel %vm4109, %v4377, %v4050
    %v4500 = vsel %vm4109, %v4379, %v4051
    %v4501 = vsel %vm4109, %v4381, %v4052
    %v4502 = vsel %vm4109, %v4383, %v4053
    %v4503 = vsel %vm4109, %v4385, %v4054
    %v4504 = vsel %vm4109, %v4387, %v4055
    %v4505 = vsel %vm4109, %v4389, %v4056
    %v4506 = vsel %vm4109, %v4391, %v4057
    %v4507 = vsel %vm4109, %v4393, %v4058
    %v4508 = vsel %vm4109, %v4395, %v4059
    %v4509 = vsel %vm4109, %v4397, %v4060
    %v4510 = vsel %vm4109, %v4399, %v4061
    %v4511 = vsel %vm4109, %v4401, %v4062
    %v4512 = vsel %vm4109, %v4403, %v4063
    %v4513 = vsel %vm4109, %v4405, %v4064
    %v4514 = vsel %vm4109, %v4407, %v4065
    %v4515 = vsel %vm4109, %v4409, %v4066
    %v4516 = vsel %vm4109, %v4411, %v4067
    %v4517 = vsel %vm4109, %v4413, %v4068
    %v4518 = vsel %vm4109, %v4415, %v4069
    %v4519 = vsel %vm4109, %v4417, %v4070
    %v4520 = vsel %vm4109, %v4419, %v4071
    %v4521 = vsel %vm4109, %v4421, %v4072
    %v4522 = vsel %vm4109, %v4423, %v4073
    %v4523 = vsel %vm4109, %v4425, %v4074
    %v4524 = vsel %vm4109, %v4427, %v4075
    %v4525 = vsel %vm4109, %v4429, %v4076
    %v4526 = vsel %vm4109, %v4431, %v4077
    %v4527 = vsel %vm4109, %v4433, %v4078
    %v4528 = vsel %vm4109, %v4435, %v4079
    %v4529 = vsel %vm4109, %v4437, %v4080
    %v4530 = vsel %vm4109, %v4439, %v4081
    %v4531 = vsel %vm4109, %v4441, %v4082
    %v4532 = vsel %vm4109, %v4443, %v4083
    %v4533 = vsel %vm4109, %v4445, %v4084
    %v4534 = vsel %vm4109, %v4447, %v4085
    %v4535 = vsel %vm4109, %v4449, %v4086
    %v4536 = vsel %vm4109, %v4451, %v4087
    %v4537 = vsel %vm4109, %v4453, %v4088
    %v4538 = vsel %vm4109, %v4455, %v4089
    %v4539 = vsel %vm4109, %v4457, %v4090
    %v4540 = vsel %vm4109, %v4459, %v4091
    %v4541 = vsel %vm4109, %v4461, %v4092
    %v4542 = vsel %vm4109, %v4463, %v4093
    %v4543 = vsel %vm4109, %v4465, %v4094
    %v4544 = vsel %vm4109, %v4467, %v4095
    %v4545 = vsel %vm4109, %v4469, %v4096
    %v4546 = vsel %vm4109, %v4471, %v4097
    %v4547 = vsel %vm4109, %v4473, %v4098
    %v4548 = vsel %vm4109, %v4475, %v4099
    %v4549 = vsel %vm4109, %v4477, %v4100
    %v4550 = vsel %vm4109, %v4479, %v4101
    %v4551 = vsel %vm4109, %v4481, %v4102
    %v4552 = vsel %vm4109, %v4483, %v4103
    %v4553 = vsel %vm4109, %v4485, %v4104
    %v4554 = vsel %vm4109, %v4487, %v4105
    %v4555 = vsel %vm4109, %v4489, %v4106
    %v4556 = vsel %vm4109, %v4491, %v4107
    %v4557 = vsel %vm4109, %v4493, %v4108
    %vm4558 = vcmask 7168
    %4559 = vst.msk [vmem:[%s59] sm:$0xff] %vm4558, %v4494
    %4560 = vst.msk [vmem:[%s59 + $0x8] sm:$0xff] %vm4558, %v4495
    %4561 = vst.msk [vmem:[%s59 + $0x10] sm:$0xff] %vm4558, %v4496
    %4562 = vst.msk [vmem:[%s59 + $0x18] sm:$0xff] %vm4558, %v4497
    %4563 = vst.msk [vmem:[%s59 + $0x20] sm:$0xff] %vm4558, %v4498
    %4564 = vst.msk [vmem:[%s59 + $0x28] sm:$0xff] %vm4558, %v4499
    %4565 = vst.msk [vmem:[%s59 + $0x30] sm:$0xff] %vm4558, %v4500
    %4566 = vst.msk [vmem:[%s59 + $0x38] sm:$0xff] %vm4558, %v4501
    %4567 = vst.msk [vmem:[%s59 + $0x40] sm:$0xff] %vm4558, %v4502
    %4568 = vst.msk [vmem:[%s59 + $0x48] sm:$0xff] %vm4558, %v4503
    %4569 = vst.msk [vmem:[%s59 + $0x50] sm:$0xff] %vm4558, %v4504
    %4570 = vst.msk [vmem:[%s59 + $0x58] sm:$0xff] %vm4558, %v4505
    %4571 = vst.msk [vmem:[%s59 + $0x60] sm:$0xff] %vm4558, %v4506
    %4572 = vst.msk [vmem:[%s59 + $0x68] sm:$0xff] %vm4558, %v4507
    %4573 = vst.msk [vmem:[%s59 + $0x70] sm:$0xff] %vm4558, %v4508
    %4574 = vst.msk [vmem:[%s59 + $0x78] sm:$0xff] %vm4558, %v4509
    %4575 = vst.msk [vmem:[%s59 + $0x80] sm:$0xff] %vm4558, %v4510
    %4576 = vst.msk [vmem:[%s59 + $0x88] sm:$0xff] %vm4558, %v4511
    %4577 = vst.msk [vmem:[%s59 + $0x90] sm:$0xff] %vm4558, %v4512
    %4578 = vst.msk [vmem:[%s59 + $0x98] sm:$0xff] %vm4558, %v4513
    %4579 = vst.msk [vmem:[%s59 + $0xa0] sm:$0xff] %vm4558, %v4514
    %4580 = vst.msk [vmem:[%s59 + $0xa8] sm:$0xff] %vm4558, %v4515
    %4581 = vst.msk [vmem:[%s59 + $0xb0] sm:$0xff] %vm4558, %v4516
    %4582 = vst.msk [vmem:[%s59 + $0xb8] sm:$0xff] %vm4558, %v4517
    %4583 = vst.msk [vmem:[%s59 + $0xc0] sm:$0xff] %vm4558, %v4518
    %4584 = vst.msk [vmem:[%s59 + $0xc8] sm:$0xff] %vm4558, %v4519
    %4585 = vst.msk [vmem:[%s59 + $0xd0] sm:$0xff] %vm4558, %v4520
    %4586 = vst.msk [vmem:[%s59 + $0xd8] sm:$0xff] %vm4558, %v4521
    %4587 = vst.msk [vmem:[%s59 + $0xe0] sm:$0xff] %vm4558, %v4522
    %4588 = vst.msk [vmem:[%s59 + $0xe8] sm:$0xff] %vm4558, %v4523
    %4589 = vst.msk [vmem:[%s59 + $0xf0] sm:$0xff] %vm4558, %v4524
    %4590 = vst.msk [vmem:[%s59 + $0xf8] sm:$0xff] %vm4558, %v4525
    %4591 = vst.msk [vmem:[%s59 + $0x100] sm:$0xff] %vm4558, %v4526
    %4592 = vst.msk [vmem:[%s59 + $0x108] sm:$0xff] %vm4558, %v4527
    %4593 = vst.msk [vmem:[%s59 + $0x110] sm:$0xff] %vm4558, %v4528
    %4594 = vst.msk [vmem:[%s59 + $0x118] sm:$0xff] %vm4558, %v4529
    %4595 = vst.msk [vmem:[%s59 + $0x120] sm:$0xff] %vm4558, %v4530
    %4596 = vst.msk [vmem:[%s59 + $0x128] sm:$0xff] %vm4558, %v4531
    %4597 = vst.msk [vmem:[%s59 + $0x130] sm:$0xff] %vm4558, %v4532
    %4598 = vst.msk [vmem:[%s59 + $0x138] sm:$0xff] %vm4558, %v4533
    %4599 = vst.msk [vmem:[%s59 + $0x140] sm:$0xff] %vm4558, %v4534
    %4600 = vst.msk [vmem:[%s59 + $0x148] sm:$0xff] %vm4558, %v4535
    %4601 = vst.msk [vmem:[%s59 + $0x150] sm:$0xff] %vm4558, %v4536
    %4602 = vst.msk [vmem:[%s59 + $0x158] sm:$0xff] %vm4558, %v4537
    %4603 = vst.msk [vmem:[%s59 + $0x160] sm:$0xff] %vm4558, %v4538
    %4604 = vst.msk [vmem:[%s59 + $0x168] sm:$0xff] %vm4558, %v4539
    %4605 = vst.msk [vmem:[%s59 + $0x170] sm:$0xff] %vm4558, %v4540
    %4606 = vst.msk [vmem:[%s59 + $0x178] sm:$0xff] %vm4558, %v4541
    %4607 = vst.msk [vmem:[%s59 + $0x180] sm:$0xff] %vm4558, %v4542
    %4608 = vst.msk [vmem:[%s59 + $0x188] sm:$0xff] %vm4558, %v4543
    %4609 = vst.msk [vmem:[%s59 + $0x190] sm:$0xff] %vm4558, %v4544
    %4610 = vst.msk [vmem:[%s59 + $0x198] sm:$0xff] %vm4558, %v4545
    %4611 = vst.msk [vmem:[%s59 + $0x1a0] sm:$0xff] %vm4558, %v4546
    %4612 = vst.msk [vmem:[%s59 + $0x1a8] sm:$0xff] %vm4558, %v4547
    %4613 = vst.msk [vmem:[%s59 + $0x1b0] sm:$0xff] %vm4558, %v4548
    %4614 = vst.msk [vmem:[%s59 + $0x1b8] sm:$0xff] %vm4558, %v4549
    %4615 = vst.msk [vmem:[%s59 + $0x1c0] sm:$0xff] %vm4558, %v4550
    %4616 = vst.msk [vmem:[%s59 + $0x1c8] sm:$0xff] %vm4558, %v4551
    %4617 = vst.msk [vmem:[%s59 + $0x1d0] sm:$0xff] %vm4558, %v4552
    %4618 = vst.msk [vmem:[%s59 + $0x1d8] sm:$0xff] %vm4558, %v4553
    %4619 = vst.msk [vmem:[%s59 + $0x1e0] sm:$0xff] %vm4558, %v4554
    %4620 = vst.msk [vmem:[%s59 + $0x1e8] sm:$0xff] %vm4558, %v4555
    %4621 = vst.msk [vmem:[%s59 + $0x1f0] sm:$0xff] %vm4558, %v4556
    %4622 = vst.msk [vmem:[%s59 + $0x1f8] sm:$0xff] %vm4558, %v4557
    %4687 = vrot.lane.b32.xlu0 %v4494, 127
    %v4688 = vpop.permute.xlu0 %4687
    %4689 = vrot.lane.b32.xlu0 %v4495, 127
    %v4690 = vpop.permute.xlu0 %4689
    %4691 = vrot.lane.b32.xlu0 %v4496, 127
    %v4692 = vpop.permute.xlu0 %4691
    %4693 = vrot.lane.b32.xlu0 %v4497, 127
    %v4694 = vpop.permute.xlu0 %4693
    %4695 = vrot.lane.b32.xlu0 %v4498, 127
    %v4696 = vpop.permute.xlu0 %4695
    %4697 = vrot.lane.b32.xlu0 %v4499, 127
    %v4698 = vpop.permute.xlu0 %4697
    %4699 = vrot.lane.b32.xlu0 %v4500, 127
    %v4700 = vpop.permute.xlu0 %4699
    %4701 = vrot.lane.b32.xlu0 %v4501, 127
    %v4702 = vpop.permute.xlu0 %4701
    %4703 = vrot.lane.b32.xlu0 %v4502, 127
    %v4704 = vpop.permute.xlu0 %4703
    %4705 = vrot.lane.b32.xlu0 %v4503, 127
    %v4706 = vpop.permute.xlu0 %4705
    %4707 = vrot.lane.b32.xlu0 %v4504, 127
    %v4708 = vpop.permute.xlu0 %4707
    %4709 = vrot.lane.b32.xlu0 %v4505, 127
    %v4710 = vpop.permute.xlu0 %4709
    %4711 = vrot.lane.b32.xlu0 %v4506, 127
    %v4712 = vpop.permute.xlu0 %4711
    %4713 = vrot.lane.b32.xlu0 %v4507, 127
    %v4714 = vpop.permute.xlu0 %4713
    %4715 = vrot.lane.b32.xlu0 %v4508, 127
    %v4716 = vpop.permute.xlu0 %4715
    %4717 = vrot.lane.b32.xlu0 %v4509, 127
    %v4718 = vpop.permute.xlu0 %4717
    %4719 = vrot.lane.b32.xlu0 %v4510, 127
    %v4720 = vpop.permute.xlu0 %4719
    %4721 = vrot.lane.b32.xlu0 %v4511, 127
    %v4722 = vpop.permute.xlu0 %4721
    %4723 = vrot.lane.b32.xlu0 %v4512, 127
    %v4724 = vpop.permute.xlu0 %4723
    %4725 = vrot.lane.b32.xlu0 %v4513, 127
    %v4726 = vpop.permute.xlu0 %4725
    %4727 = vrot.lane.b32.xlu0 %v4514, 127
    %v4728 = vpop.permute.xlu0 %4727
    %4729 = vrot.lane.b32.xlu0 %v4515, 127
    %v4730 = vpop.permute.xlu0 %4729
    %4731 = vrot.lane.b32.xlu0 %v4516, 127
    %v4732 = vpop.permute.xlu0 %4731
    %4733 = vrot.lane.b32.xlu0 %v4517, 127
    %v4734 = vpop.permute.xlu0 %4733
    %4735 = vrot.lane.b32.xlu0 %v4518, 127
    %v4736 = vpop.permute.xlu0 %4735
    %4737 = vrot.lane.b32.xlu0 %v4519, 127
    %v4738 = vpop.permute.xlu0 %4737
    %4739 = vrot.lane.b32.xlu0 %v4520, 127
    %v4740 = vpop.permute.xlu0 %4739
    %4741 = vrot.lane.b32.xlu0 %v4521, 127
    %v4742 = vpop.permute.xlu0 %4741
    %4743 = vrot.lane.b32.xlu0 %v4522, 127
    %v4744 = vpop.permute.xlu0 %4743
    %4745 = vrot.lane.b32.xlu0 %v4523, 127
    %v4746 = vpop.permute.xlu0 %4745
    %4747 = vrot.lane.b32.xlu0 %v4524, 127
    %v4748 = vpop.permute.xlu0 %4747
    %4749 = vrot.lane.b32.xlu0 %v4525, 127
    %v4750 = vpop.permute.xlu0 %4749
    %4751 = vrot.lane.b32.xlu0 %v4526, 127
    %v4752 = vpop.permute.xlu0 %4751
    %4753 = vrot.lane.b32.xlu0 %v4527, 127
    %v4754 = vpop.permute.xlu0 %4753
    %4755 = vrot.lane.b32.xlu0 %v4528, 127
    %v4756 = vpop.permute.xlu0 %4755
    %4757 = vrot.lane.b32.xlu0 %v4529, 127
    %v4758 = vpop.permute.xlu0 %4757
    %4759 = vrot.lane.b32.xlu0 %v4530, 127
    %v4760 = vpop.permute.xlu0 %4759
    %4761 = vrot.lane.b32.xlu0 %v4531, 127
    %v4762 = vpop.permute.xlu0 %4761
    %4763 = vrot.lane.b32.xlu0 %v4532, 127
    %v4764 = vpop.permute.xlu0 %4763
    %4765 = vrot.lane.b32.xlu0 %v4533, 127
    %v4766 = vpop.permute.xlu0 %4765
    %4767 = vrot.lane.b32.xlu0 %v4534, 127
    %v4768 = vpop.permute.xlu0 %4767
    %4769 = vrot.lane.b32.xlu0 %v4535, 127
    %v4770 = vpop.permute.xlu0 %4769
    %4771 = vrot.lane.b32.xlu0 %v4536, 127
    %v4772 = vpop.permute.xlu0 %4771
    %4773 = vrot.lane.b32.xlu0 %v4537, 127
    %v4774 = vpop.permute.xlu0 %4773
    %4775 = vrot.lane.b32.xlu0 %v4538, 127
    %v4776 = vpop.permute.xlu0 %4775
    %4777 = vrot.lane.b32.xlu0 %v4539, 127
    %v4778 = vpop.permute.xlu0 %4777
    %4779 = vrot.lane.b32.xlu0 %v4540, 127
    %v4780 = vpop.permute.xlu0 %4779
    %4781 = vrot.lane.b32.xlu0 %v4541, 127
    %v4782 = vpop.permute.xlu0 %4781
    %4783 = vrot.lane.b32.xlu0 %v4542, 127
    %v4784 = vpop.permute.xlu0 %4783
    %4785 = vrot.lane.b32.xlu0 %v4543, 127
    %v4786 = vpop.permute.xlu0 %4785
    %4787 = vrot.lane.b32.xlu0 %v4544, 127
    %v4788 = vpop.permute.xlu0 %4787
    %4789 = vrot.lane.b32.xlu0 %v4545, 127
    %v4790 = vpop.permute.xlu0 %4789
    %4791 = vrot.lane.b32.xlu0 %v4546, 127
    %v4792 = vpop.permute.xlu0 %4791
    %4793 = vrot.lane.b32.xlu0 %v4547, 127
    %v4794 = vpop.permute.xlu0 %4793
    %4795 = vrot.lane.b32.xlu0 %v4548, 127
    %v4796 = vpop.permute.xlu0 %4795
    %4797 = vrot.lane.b32.xlu0 %v4549, 127
    %v4798 = vpop.permute.xlu0 %4797
    %4799 = vrot.lane.b32.xlu0 %v4550, 127
    %v4800 = vpop.permute.xlu0 %4799
    %4801 = vrot.lane.b32.xlu0 %v4551, 127
    %v4802 = vpop.permute.xlu0 %4801
    %4803 = vrot.lane.b32.xlu0 %v4552, 127
    %v4804 = vpop.permute.xlu0 %4803
    %4805 = vrot.lane.b32.xlu0 %v4553, 127
    %v4806 = vpop.permute.xlu0 %4805
    %4807 = vrot.lane.b32.xlu0 %v4554, 127
    %v4808 = vpop.permute.xlu0 %4807
    %4809 = vrot.lane.b32.xlu0 %v4555, 127
    %v4810 = vpop.permute.xlu0 %4809
    %4811 = vrot.lane.b32.xlu0 %v4556, 127
    %v4812 = vpop.permute.xlu0 %4811
    %4813 = vrot.lane.b32.xlu0 %v4557, 127
    %v4814 = vpop.permute.xlu0 %4813
    %4879 = vst.msk [vmem:[%s61] sm:$0xff] %vm4558, %v4688
    %4880 = vst.msk [vmem:[%s61 + $0x8] sm:$0xff] %vm4558, %v4690
    %4881 = vst.msk [vmem:[%s61 + $0x10] sm:$0xff] %vm4558, %v4692
    %4882 = vst.msk [vmem:[%s61 + $0x18] sm:$0xff] %vm4558, %v4694
    %4883 = vst.msk [vmem:[%s61 + $0x20] sm:$0xff] %vm4558, %v4696
    %4884 = vst.msk [vmem:[%s61 + $0x28] sm:$0xff] %vm4558, %v4698
    %4885 = vst.msk [vmem:[%s61 + $0x30] sm:$0xff] %vm4558, %v4700
    %4886 = vst.msk [vmem:[%s61 + $0x38] sm:$0xff] %vm4558, %v4702
    %4887 = vst.msk [vmem:[%s61 + $0x40] sm:$0xff] %vm4558, %v4704
    %4888 = vst.msk [vmem:[%s61 + $0x48] sm:$0xff] %vm4558, %v4706
    %4889 = vst.msk [vmem:[%s61 + $0x50] sm:$0xff] %vm4558, %v4708
    %4890 = vst.msk [vmem:[%s61 + $0x58] sm:$0xff] %vm4558, %v4710
    %4891 = vst.msk [vmem:[%s61 + $0x60] sm:$0xff] %vm4558, %v4712
    %4892 = vst.msk [vmem:[%s61 + $0x68] sm:$0xff] %vm4558, %v4714
    %4893 = vst.msk [vmem:[%s61 + $0x70] sm:$0xff] %vm4558, %v4716
    %4894 = vst.msk [vmem:[%s61 + $0x78] sm:$0xff] %vm4558, %v4718
    %4895 = vst.msk [vmem:[%s61 + $0x80] sm:$0xff] %vm4558, %v4720
    %4896 = vst.msk [vmem:[%s61 + $0x88] sm:$0xff] %vm4558, %v4722
    %4897 = vst.msk [vmem:[%s61 + $0x90] sm:$0xff] %vm4558, %v4724
    %4898 = vst.msk [vmem:[%s61 + $0x98] sm:$0xff] %vm4558, %v4726
    %4899 = vst.msk [vmem:[%s61 + $0xa0] sm:$0xff] %vm4558, %v4728
    %4900 = vst.msk [vmem:[%s61 + $0xa8] sm:$0xff] %vm4558, %v4730
    %4901 = vst.msk [vmem:[%s61 + $0xb0] sm:$0xff] %vm4558, %v4732
    %4902 = vst.msk [vmem:[%s61 + $0xb8] sm:$0xff] %vm4558, %v4734
    %4903 = vst.msk [vmem:[%s61 + $0xc0] sm:$0xff] %vm4558, %v4736
    %4904 = vst.msk [vmem:[%s61 + $0xc8] sm:$0xff] %vm4558, %v4738
    %4905 = vst.msk [vmem:[%s61 + $0xd0] sm:$0xff] %vm4558, %v4740
    %4906 = vst.msk [vmem:[%s61 + $0xd8] sm:$0xff] %vm4558, %v4742
    %4907 = vst.msk [vmem:[%s61 + $0xe0] sm:$0xff] %vm4558, %v4744
    %4908 = vst.msk [vmem:[%s61 + $0xe8] sm:$0xff] %vm4558, %v4746
    %4909 = vst.msk [vmem:[%s61 + $0xf0] sm:$0xff] %vm4558, %v4748
    %4910 = vst.msk [vmem:[%s61 + $0xf8] sm:$0xff] %vm4558, %v4750
    %4911 = vst.msk [vmem:[%s61 + $0x100] sm:$0xff] %vm4558, %v4752
    %4912 = vst.msk [vmem:[%s61 + $0x108] sm:$0xff] %vm4558, %v4754
    %4913 = vst.msk [vmem:[%s61 + $0x110] sm:$0xff] %vm4558, %v4756
    %4914 = vst.msk [vmem:[%s61 + $0x118] sm:$0xff] %vm4558, %v4758
    %4915 = vst.msk [vmem:[%s61 + $0x120] sm:$0xff] %vm4558, %v4760
    %4916 = vst.msk [vmem:[%s61 + $0x128] sm:$0xff] %vm4558, %v4762
    %4917 = vst.msk [vmem:[%s61 + $0x130] sm:$0xff] %vm4558, %v4764
    %4918 = vst.msk [vmem:[%s61 + $0x138] sm:$0xff] %vm4558, %v4766
    %4919 = vst.msk [vmem:[%s61 + $0x140] sm:$0xff] %vm4558, %v4768
    %4920 = vst.msk [vmem:[%s61 + $0x148] sm:$0xff] %vm4558, %v4770
    %4921 = vst.msk [vmem:[%s61 + $0x150] sm:$0xff] %vm4558, %v4772
    %4922 = vst.msk [vmem:[%s61 + $0x158] sm:$0xff] %vm4558, %v4774
    %4923 = vst.msk [vmem:[%s61 + $0x160] sm:$0xff] %vm4558, %v4776
    %4924 = vst.msk [vmem:[%s61 + $0x168] sm:$0xff] %vm4558, %v4778
    %4925 = vst.msk [vmem:[%s61 + $0x170] sm:$0xff] %vm4558, %v4780
    %4926 = vst.msk [vmem:[%s61 + $0x178] sm:$0xff] %vm4558, %v4782
    %4927 = vst.msk [vmem:[%s61 + $0x180] sm:$0xff] %vm4558, %v4784
    %4928 = vst.msk [vmem:[%s61 + $0x188] sm:$0xff] %vm4558, %v4786
    %4929 = vst.msk [vmem:[%s61 + $0x190] sm:$0xff] %vm4558, %v4788
    %4930 = vst.msk [vmem:[%s61 + $0x198] sm:$0xff] %vm4558, %v4790
    %4931 = vst.msk [vmem:[%s61 + $0x1a0] sm:$0xff] %vm4558, %v4792
    %4932 = vst.msk [vmem:[%s61 + $0x1a8] sm:$0xff] %vm4558, %v4794
    %4933 = vst.msk [vmem:[%s61 + $0x1b0] sm:$0xff] %vm4558, %v4796
    %4934 = vst.msk [vmem:[%s61 + $0x1b8] sm:$0xff] %vm4558, %v4798
    %4935 = vst.msk [vmem:[%s61 + $0x1c0] sm:$0xff] %vm4558, %v4800
    %4936 = vst.msk [vmem:[%s61 + $0x1c8] sm:$0xff] %vm4558, %v4802
    %4937 = vst.msk [vmem:[%s61 + $0x1d0] sm:$0xff] %vm4558, %v4804
    %4938 = vst.msk [vmem:[%s61 + $0x1d8] sm:$0xff] %vm4558, %v4806
    %4939 = vst.msk [vmem:[%s61 + $0x1e0] sm:$0xff] %vm4558, %v4808
    %4940 = vst.msk [vmem:[%s61 + $0x1e8] sm:$0xff] %vm4558, %v4810
    %4941 = vst.msk [vmem:[%s61 + $0x1f0] sm:$0xff] %vm4558, %v4812
    %4942 = vst.msk [vmem:[%s61 + $0x1f8] sm:$0xff] %vm4558, %v4814
    %4943 = vrot.lane.b32.xlu0 %v4494, 126
    %v4944 = vpop.permute.xlu0 %4943
    %4945 = vrot.lane.b32.xlu0 %v4495, 126
    %v4946 = vpop.permute.xlu0 %4945
    %4947 = vrot.lane.b32.xlu0 %v4496, 126
    %v4948 = vpop.permute.xlu0 %4947
    %4949 = vrot.lane.b32.xlu0 %v4497, 126
    %v4950 = vpop.permute.xlu0 %4949
    %4951 = vrot.lane.b32.xlu0 %v4498, 126
    %v4952 = vpop.permute.xlu0 %4951
    %4953 = vrot.lane.b32.xlu0 %v4499, 126
    %v4954 = vpop.permute.xlu0 %4953
    %4955 = vrot.lane.b32.xlu0 %v4500, 126
    %v4956 = vpop.permute.xlu0 %4955
    %4957 = vrot.lane.b32.xlu0 %v4501, 126
    %v4958 = vpop.permute.xlu0 %4957
    %4959 = vrot.lane.b32.xlu0 %v4502, 126
    %v4960 = vpop.permute.xlu0 %4959
    %4961 = vrot.lane.b32.xlu0 %v4503, 126
    %v4962 = vpop.permute.xlu0 %4961
    %4963 = vrot.lane.b32.xlu0 %v4504, 126
    %v4964 = vpop.permute.xlu0 %4963
    %4965 = vrot.lane.b32.xlu0 %v4505, 126
    %v4966 = vpop.permute.xlu0 %4965
    %4967 = vrot.lane.b32.xlu0 %v4506, 126
    %v4968 = vpop.permute.xlu0 %4967
    %4969 = vrot.lane.b32.xlu0 %v4507, 126
    %v4970 = vpop.permute.xlu0 %4969
    %4971 = vrot.lane.b32.xlu0 %v4508, 126
    %v4972 = vpop.permute.xlu0 %4971
    %4973 = vrot.lane.b32.xlu0 %v4509, 126
    %v4974 = vpop.permute.xlu0 %4973
    %4975 = vrot.lane.b32.xlu0 %v4510, 126
    %v4976 = vpop.permute.xlu0 %4975
    %4977 = vrot.lane.b32.xlu0 %v4511, 126
    %v4978 = vpop.permute.xlu0 %4977
    %4979 = vrot.lane.b32.xlu0 %v4512, 126
    %v4980 = vpop.permute.xlu0 %4979
    %4981 = vrot.lane.b32.xlu0 %v4513, 126
    %v4982 = vpop.permute.xlu0 %4981
    %4983 = vrot.lane.b32.xlu0 %v4514, 126
    %v4984 = vpop.permute.xlu0 %4983
    %4985 = vrot.lane.b32.xlu0 %v4515, 126
    %v4986 = vpop.permute.xlu0 %4985
    %4987 = vrot.lane.b32.xlu0 %v4516, 126
    %v4988 = vpop.permute.xlu0 %4987
    %4989 = vrot.lane.b32.xlu0 %v4517, 126
    %v4990 = vpop.permute.xlu0 %4989
    %4991 = vrot.lane.b32.xlu0 %v4518, 126
    %v4992 = vpop.permute.xlu0 %4991
    %4993 = vrot.lane.b32.xlu0 %v4519, 126
    %v4994 = vpop.permute.xlu0 %4993
    %4995 = vrot.lane.b32.xlu0 %v4520, 126
    %v4996 = vpop.permute.xlu0 %4995
    %4997 = vrot.lane.b32.xlu0 %v4521, 126
    %v4998 = vpop.permute.xlu0 %4997
    %4999 = vrot.lane.b32.xlu0 %v4522, 126
    %v5000 = vpop.permute.xlu0 %4999
    %5001 = vrot.lane.b32.xlu0 %v4523, 126
    %v5002 = vpop.permute.xlu0 %5001
    %5003 = vrot.lane.b32.xlu0 %v4524, 126
    %v5004 = vpop.permute.xlu0 %5003
    %5005 = vrot.lane.b32.xlu0 %v4525, 126
    %v5006 = vpop.permute.xlu0 %5005
    %5007 = vrot.lane.b32.xlu0 %v4526, 126
    %v5008 = vpop.permute.xlu0 %5007
    %5009 = vrot.lane.b32.xlu0 %v4527, 126
    %v5010 = vpop.permute.xlu0 %5009
    %5011 = vrot.lane.b32.xlu0 %v4528, 126
    %v5012 = vpop.permute.xlu0 %5011
    %5013 = vrot.lane.b32.xlu0 %v4529, 126
    %v5014 = vpop.permute.xlu0 %5013
    %5015 = vrot.lane.b32.xlu0 %v4530, 126
    %v5016 = vpop.permute.xlu0 %5015
    %5017 = vrot.lane.b32.xlu0 %v4531, 126
    %v5018 = vpop.permute.xlu0 %5017
    %5019 = vrot.lane.b32.xlu0 %v4532, 126
    %v5020 = vpop.permute.xlu0 %5019
    %5021 = vrot.lane.b32.xlu0 %v4533, 126
    %v5022 = vpop.permute.xlu0 %5021
    %5023 = vrot.lane.b32.xlu0 %v4534, 126
    %v5024 = vpop.permute.xlu0 %5023
    %5025 = vrot.lane.b32.xlu0 %v4535, 126
    %v5026 = vpop.permute.xlu0 %5025
    %5027 = vrot.lane.b32.xlu0 %v4536, 126
    %v5028 = vpop.permute.xlu0 %5027
    %5029 = vrot.lane.b32.xlu0 %v4537, 126
    %v5030 = vpop.permute.xlu0 %5029
    %5031 = vrot.lane.b32.xlu0 %v4538, 126
    %v5032 = vpop.permute.xlu0 %5031
    %5033 = vrot.lane.b32.xlu0 %v4539, 126
    %v5034 = vpop.permute.xlu0 %5033
    %5035 = vrot.lane.b32.xlu0 %v4540, 126
    %v5036 = vpop.permute.xlu0 %5035
    %5037 = vrot.lane.b32.xlu0 %v4541, 126
    %v5038 = vpop.permute.xlu0 %5037
    %5039 = vrot.lane.b32.xlu0 %v4542, 126
    %v5040 = vpop.permute.xlu0 %5039
    %5041 = vrot.lane.b32.xlu0 %v4543, 126
    %v5042 = vpop.permute.xlu0 %5041
    %5043 = vrot.lane.b32.xlu0 %v4544, 126
    %v5044 = vpop.permute.xlu0 %5043
    %5045 = vrot.lane.b32.xlu0 %v4545, 126
    %v5046 = vpop.permute.xlu0 %5045
    %5047 = vrot.lane.b32.xlu0 %v4546, 126
    %v5048 = vpop.permute.xlu0 %5047
    %5049 = vrot.lane.b32.xlu0 %v4547, 126
    %v5050 = vpop.permute.xlu0 %5049
    %5051 = vrot.lane.b32.xlu0 %v4548, 126
    %v5052 = vpop.permute.xlu0 %5051
    %5053 = vrot.lane.b32.xlu0 %v4549, 126
    %v5054 = vpop.permute.xlu0 %5053
    %5055 = vrot.lane.b32.xlu0 %v4550, 126
    %v5056 = vpop.permute.xlu0 %5055
    %5057 = vrot.lane.b32.xlu0 %v4551, 126
    %v5058 = vpop.permute.xlu0 %5057
    %5059 = vrot.lane.b32.xlu0 %v4552, 126
    %v5060 = vpop.permute.xlu0 %5059
    %5061 = vrot.lane.b32.xlu0 %v4553, 126
    %v5062 = vpop.permute.xlu0 %5061
    %5063 = vrot.lane.b32.xlu0 %v4554, 126
    %v5064 = vpop.permute.xlu0 %5063
    %5065 = vrot.lane.b32.xlu0 %v4555, 126
    %v5066 = vpop.permute.xlu0 %5065
    %5067 = vrot.lane.b32.xlu0 %v4556, 126
    %v5068 = vpop.permute.xlu0 %5067
    %5069 = vrot.lane.b32.xlu0 %v4557, 126
    %v5070 = vpop.permute.xlu0 %5069
    %5135 = vst.msk [vmem:[%s63] sm:$0xff] %vm4558, %v4944
    %5136 = vst.msk [vmem:[%s63 + $0x8] sm:$0xff] %vm4558, %v4946
    %5137 = vst.msk [vmem:[%s63 + $0x10] sm:$0xff] %vm4558, %v4948
    %5138 = vst.msk [vmem:[%s63 + $0x18] sm:$0xff] %vm4558, %v4950
    %5139 = vst.msk [vmem:[%s63 + $0x20] sm:$0xff] %vm4558, %v4952
    %5140 = vst.msk [vmem:[%s63 + $0x28] sm:$0xff] %vm4558, %v4954
    %5141 = vst.msk [vmem:[%s63 + $0x30] sm:$0xff] %vm4558, %v4956
    %5142 = vst.msk [vmem:[%s63 + $0x38] sm:$0xff] %vm4558, %v4958
    %5143 = vst.msk [vmem:[%s63 + $0x40] sm:$0xff] %vm4558, %v4960
    %5144 = vst.msk [vmem:[%s63 + $0x48] sm:$0xff] %vm4558, %v4962
    %5145 = vst.msk [vmem:[%s63 + $0x50] sm:$0xff] %vm4558, %v4964
    %5146 = vst.msk [vmem:[%s63 + $0x58] sm:$0xff] %vm4558, %v4966
    %5147 = vst.msk [vmem:[%s63 + $0x60] sm:$0xff] %vm4558, %v4968
    %5148 = vst.msk [vmem:[%s63 + $0x68] sm:$0xff] %vm4558, %v4970
    %5149 = vst.msk [vmem:[%s63 + $0x70] sm:$0xff] %vm4558, %v4972
    %5150 = vst.msk [vmem:[%s63 + $0x78] sm:$0xff] %vm4558, %v4974
    %5151 = vst.msk [vmem:[%s63 + $0x80] sm:$0xff] %vm4558, %v4976
    %5152 = vst.msk [vmem:[%s63 + $0x88] sm:$0xff] %vm4558, %v4978
    %5153 = vst.msk [vmem:[%s63 + $0x90] sm:$0xff] %vm4558, %v4980
    %5154 = vst.msk [vmem:[%s63 + $0x98] sm:$0xff] %vm4558, %v4982
    %5155 = vst.msk [vmem:[%s63 + $0xa0] sm:$0xff] %vm4558, %v4984
    %5156 = vst.msk [vmem:[%s63 + $0xa8] sm:$0xff] %vm4558, %v4986
    %5157 = vst.msk [vmem:[%s63 + $0xb0] sm:$0xff] %vm4558, %v4988
    %5158 = vst.msk [vmem:[%s63 + $0xb8] sm:$0xff] %vm4558, %v4990
    %5159 = vst.msk [vmem:[%s63 + $0xc0] sm:$0xff] %vm4558, %v4992
    %5160 = vst.msk [vmem:[%s63 + $0xc8] sm:$0xff] %vm4558, %v4994
    %5161 = vst.msk [vmem:[%s63 + $0xd0] sm:$0xff] %vm4558, %v4996
    %5162 = vst.msk [vmem:[%s63 + $0xd8] sm:$0xff] %vm4558, %v4998
    %5163 = vst.msk [vmem:[%s63 + $0xe0] sm:$0xff] %vm4558, %v5000
    %5164 = vst.msk [vmem:[%s63 + $0xe8] sm:$0xff] %vm4558, %v5002
    %5165 = vst.msk [vmem:[%s63 + $0xf0] sm:$0xff] %vm4558, %v5004
    %5166 = vst.msk [vmem:[%s63 + $0xf8] sm:$0xff] %vm4558, %v5006
    %5167 = vst.msk [vmem:[%s63 + $0x100] sm:$0xff] %vm4558, %v5008
    %5168 = vst.msk [vmem:[%s63 + $0x108] sm:$0xff] %vm4558, %v5010
    %5169 = vst.msk [vmem:[%s63 + $0x110] sm:$0xff] %vm4558, %v5012
    %5170 = vst.msk [vmem:[%s63 + $0x118] sm:$0xff] %vm4558, %v5014
    %5171 = vst.msk [vmem:[%s63 + $0x120] sm:$0xff] %vm4558, %v5016
    %5172 = vst.msk [vmem:[%s63 + $0x128] sm:$0xff] %vm4558, %v5018
    %5173 = vst.msk [vmem:[%s63 + $0x130] sm:$0xff] %vm4558, %v5020
    %5174 = vst.msk [vmem:[%s63 + $0x138] sm:$0xff] %vm4558, %v5022
    %5175 = vst.msk [vmem:[%s63 + $0x140] sm:$0xff] %vm4558, %v5024
    %5176 = vst.msk [vmem:[%s63 + $0x148] sm:$0xff] %vm4558, %v5026
    %5177 = vst.msk [vmem:[%s63 + $0x150] sm:$0xff] %vm4558, %v5028
    %5178 = vst.msk [vmem:[%s63 + $0x158] sm:$0xff] %vm4558, %v5030
    %5179 = vst.msk [vmem:[%s63 + $0x160] sm:$0xff] %vm4558, %v5032
    %5180 = vst.msk [vmem:[%s63 + $0x168] sm:$0xff] %vm4558, %v5034
    %5181 = vst.msk [vmem:[%s63 + $0x170] sm:$0xff] %vm4558, %v5036
    %5182 = vst.msk [vmem:[%s63 + $0x178] sm:$0xff] %vm4558, %v5038
    %5183 = vst.msk [vmem:[%s63 + $0x180] sm:$0xff] %vm4558, %v5040
    %5184 = vst.msk [vmem:[%s63 + $0x188] sm:$0xff] %vm4558, %v5042
    %5185 = vst.msk [vmem:[%s63 + $0x190] sm:$0xff] %vm4558, %v5044
    %5186 = vst.msk [vmem:[%s63 + $0x198] sm:$0xff] %vm4558, %v5046
    %5187 = vst.msk [vmem:[%s63 + $0x1a0] sm:$0xff] %vm4558, %v5048
    %5188 = vst.msk [vmem:[%s63 + $0x1a8] sm:$0xff] %vm4558, %v5050
    %5189 = vst.msk [vmem:[%s63 + $0x1b0] sm:$0xff] %vm4558, %v5052
    %5190 = vst.msk [vmem:[%s63 + $0x1b8] sm:$0xff] %vm4558, %v5054
    %5191 = vst.msk [vmem:[%s63 + $0x1c0] sm:$0xff] %vm4558, %v5056
    %5192 = vst.msk [vmem:[%s63 + $0x1c8] sm:$0xff] %vm4558, %v5058
    %5193 = vst.msk [vmem:[%s63 + $0x1d0] sm:$0xff] %vm4558, %v5060
    %5194 = vst.msk [vmem:[%s63 + $0x1d8] sm:$0xff] %vm4558, %v5062
    %5195 = vst.msk [vmem:[%s63 + $0x1e0] sm:$0xff] %vm4558, %v5064
    %5196 = vst.msk [vmem:[%s63 + $0x1e8] sm:$0xff] %vm4558, %v5066
    %5197 = vst.msk [vmem:[%s63 + $0x1f0] sm:$0xff] %vm4558, %v5068
    %5198 = vst.msk [vmem:[%s63 + $0x1f8] sm:$0xff] %vm4558, %v5070
    // Predicated region
    $region122: #{enhanced_degree_net_forward.7} parent=1 // pred_check
      _
    $region123: #{enhanced_degree_net_forward.7} parent=1 // pred_check_branch
      %5200 = sbr.rel (0) target = $region125
    $region124: #{enhanced_degree_net_forward.7} parent=1 // pred_region
      _
    $region125: #{enhanced_degree_net_forward.7} parent=1 // pred_fallthru
      _
    // Predicated region
    $region126: #{enhanced_degree_net_forward.7} parent=1 // pred_check
      _
    $region127: #{enhanced_degree_net_forward.7} parent=1 // pred_check_branch
      %5202 = sbr.rel (0) target = $region129
    $region128: #{enhanced_degree_net_forward.7} parent=1 // pred_region
      _
    $region129: #{enhanced_degree_net_forward.7} parent=1 // pred_fallthru
      _
    // Predicated region
    $region130: #{enhanced_degree_net_forward.7} parent=1 // pred_check
      _
    $region131: #{enhanced_degree_net_forward.7} parent=1 // pred_check_branch
      %5204 = sbr.rel (0) target = $region133
    $region132: #{enhanced_degree_net_forward.7} parent=1 // pred_region
      _
    $region133: #{enhanced_degree_net_forward.7} parent=1 // pred_fallthru
      _
    // Predicated region
    $region134: #{enhanced_degree_net_forward.7} parent=1 // pred_check
      _
    $region135: #{enhanced_degree_net_forward.7} parent=1 // pred_check_branch
      %5206 = sbr.rel (0) target = $region137
    $region136: #{enhanced_degree_net_forward.7} parent=1 // pred_region
      _
    $region137: #{enhanced_degree_net_forward.7} parent=1 // pred_fallthru
      _
    // Predicated region
    $region138: #{enhanced_degree_net_forward.7} parent=1 // pred_check
      _
    $region139: #{enhanced_degree_net_forward.7} parent=1 // pred_check_branch
      %5208 = sbr.rel (0) target = $region141
    $region140: #{enhanced_degree_net_forward.7} parent=1 // pred_region
      _
    $region141: #{enhanced_degree_net_forward.7} parent=1 // pred_fallthru
      _
    // Predicated region
    $region142: #{enhanced_degree_net_forward.7} parent=1 // pred_check
      _
    $region143: #{enhanced_degree_net_forward.7} parent=1 // pred_check_branch
      %5210 = sbr.rel (0) target = $region145
    $region144: #{enhanced_degree_net_forward.7} parent=1 // pred_region
      _
    $region145: #{enhanced_degree_net_forward.7} parent=1 // pred_fallthru
      _
    %5211 = vsyncpa [#allocation3], 1

</llo_original>
